<compile_context>
chip_gen: v5e
topology: v5e:2x2
jax: 0.10.0
libtpu: 0.0.40
codegen_flags: <defaults>
</compile_context>

<pallas_src>
import jax
import jax.numpy as jnp
import numpy as np
from jax import lax
from jax.experimental import pallas as pl
from jax.experimental.pallas import tpu as pltpu


_VMEM_LIMIT = 64 * 1024 * 1024          # <= physical VMEM on v5e/v6e/v7x


def _round_up(x, m):
    return ((x + m - 1) // m) * m


_ROW_TILE_MAX = None


def _row_tile_max():
    """Row-tile cap: 512 on v5e/v6e (128 MiB VMEM), 256 on v7x-class parts (64 MiB)."""
    global _ROW_TILE_MAX
    if _ROW_TILE_MAX is None:
        try:
            kind = jax.devices()[0].device_kind.lower()
            _ROW_TILE_MAX = 256 if "7" in kind else 512
        except Exception:
            _ROW_TILE_MAX = 256
    return _ROW_TILE_MAX


def _row_tile(n):
    mx = _row_tile_max()
    return mx if n >= mx else _round_up(n, 8)


def _col_tile(m, max_col_tile):
    """Largest 128-multiple divisor of m that is <= max_col_tile (m is a 128-multiple)."""
    if m <= max_col_tile:
        return m
    tn = (max_col_tile // 128) * 128
    while m % tn:
        tn -= 128
    return tn


def _spec(block_shape, index_map, *, buffers=None):
    """BlockSpec with an optional pipelining depth; falls back silently to the default
    double-buffering if this JAX build does not support pipeline_mode."""
    if buffers is not None:
        try:
            return pl.BlockSpec(block_shape, index_map,
                                pipeline_mode=pl.Buffered(buffer_count=buffers))
        except Exception:
            pass
    return pl.BlockSpec(block_shape, index_map)


# ----------------------------------------------------------------------------
# Pallas kernels
# ----------------------------------------------------------------------------
def linear_embed_kernel(x_ref, w_ref, b_ref, o_ref):
    """o = x @ W + b  (hoisted layer-0 input projection / generic GEMM)."""
    o_ref[...] = (jnp.dot(x_ref[...], w_ref[...], preferred_element_type=jnp.float32)
                  + b_ref[...])


def linear_dirs_kernel(a_ref, b_ref, wa_ref, wb_ref, bias_ref, o_ref):
    """o = h_fwd @ Wa + h_bwd @ Wb + bias.

    Consumes the stacked (2, N, Hp) hidden-state array through two index_maps, so
    [h_fwd, h_bwd] is never concatenated in HBM.
    """
    o_ref[...] = (jnp.dot(a_ref[...], wa_ref[...], preferred_element_type=jnp.float32)
                  + jnp.dot(b_ref[...], wb_ref[...], preferred_element_type=jnp.float32)
                  + bias_ref[...])


def lstm_dir_chunk_kernel(gx_ref, whh_ref, h_out_ref, h_sc, c_sc):
    """One LSTM direction, one chunk of Tc timesteps per grid step.

    grid = (2, nC): axis 0 = direction (parallel; may be split across TensorCores on
    v7x), axis 1 = time chunk (arbitrary / sequential). gates_x (= x @ W_ih + b) is
    precomputed outside, so this kernel only does h_prev @ W_hh + gate nonlinearities.
    (h, c) are carried in vregs inside the chunk and hit VMEM scratch only at chunk
    boundaries. Gate layout is [i, f, g, o], each gate padded to Hp (128-lane multiple);
    padded lanes stay exactly 0 because the state starts at 0 and padded weights are 0.
    """
    d = pl.program_id(0)       # 0 = forward, 1 = backward
    c_idx = pl.program_id(1)

    @pl.when(c_idx == 0)
    def _():
        h_sc[...] = jnp.zeros_like(h_sc)
        c_sc[...] = jnp.zeros_like(c_sc)

    Tc = gx_ref.shape[0]
    Hp = h_sc.shape[1]
    whh = whh_ref[...]          # (Hp, 4*Hp), resident across the chunk

    def step(i, carry):
        h_prev, c_prev = carry
        # forward walks local time 0..Tc-1, backward walks Tc-1..0 (reverse).
        t = i + d * (Tc - 1 - 2 * i)
        gates = gx_ref[t] + jnp.dot(h_prev, whh, preferred_element_type=jnp.float32)
        i_g = jax.nn.sigmoid(gates[:, 0 * Hp:1 * Hp])
        f_g = jax.nn.sigmoid(gates[:, 1 * Hp:2 * Hp])
        g_g = jnp.tanh(gates[:, 2 * Hp:3 * Hp])
        o_g = jax.nn.sigmoid(gates[:, 3 * Hp:4 * Hp])
        c_new = f_g * c_prev + i_g * g_g
        h_new = o_g * jnp.tanh(c_new)
        h_out_ref[t] = h_new
        return h_new, c_new

    h_fin, c_fin = lax.fori_loop(0, Tc, step, (h_sc[...], c_sc[...]), unroll=True)
    h_sc[...] = h_fin
    c_sc[...] = c_fin


# ----------------------------------------------------------------------------
# Pallas-call wrappers
# ----------------------------------------------------------------------------
def linear_embed(x, w, b, *, max_col_tile=2048):
    """x: (N, K) -> (N, M) = x @ w + b, row- and (optionally) column-tiled."""
    n, k = x.shape
    m = w.shape[1]
    tile_r = _row_tile(n)
    n_pad = _round_up(n, tile_r)
    if n_pad != n:
        x = jnp.pad(x, ((0, n_pad - n), (0, 0)))
    tn = _col_tile(m, max_col_tile)
    n_rt, n_ct = n_pad // tile_r, m // tn

    if n_ct == 1:
        grid = (n_rt,)
        in_specs = [pl.BlockSpec((tile_r, k), lambda i: (i, 0)),
                    _spec((k, m), lambda i: (0, 0), buffers=1),   # invariant weights
                    _spec((1, m), lambda i: (0, 0), buffers=1)]
        out_specs = pl.BlockSpec((tile_r, m), lambda i: (i, 0))
        sems = ("parallel",)
    else:
        # Column tiles on the outer axis so the current weight column block stays
        # resident across the whole row sweep.
        grid = (n_ct, n_rt)
        in_specs = [pl.BlockSpec((tile_r, k), lambda j, i: (i, 0)),
                    pl.BlockSpec((k, tn), lambda j, i: (0, j)),
                    pl.BlockSpec((1, tn), lambda j, i: (0, j))]
        out_specs = pl.BlockSpec((tile_r, tn), lambda j, i: (i, j))
        sems = ("parallel", "parallel")

    out = pl.pallas_call(
        linear_embed_kernel,
        out_shape=jax.ShapeDtypeStruct((n_pad, m), jnp.float32),
        grid_spec=pltpu.PrefetchScalarGridSpec(
            num_scalar_prefetch=0, grid=grid, in_specs=in_specs, out_specs=out_specs),
        compiler_params=pltpu.CompilerParams(
            dimension_semantics=sems, vmem_limit_bytes=_VMEM_LIMIT),
    )(x, w, b)
    return out[:n]


def linear_dirs(hstack, wa, wb, bias, *, max_col_tile=2048):
    """hstack: (2, N, Hp) stacked (h_fwd, h_bwd). Returns (N, M) = h_f@wa + h_b@wb + bias."""
    _, n, kdim = hstack.shape
    m = wa.shape[1]
    tile_r = _row_tile(n)
    n_pad = _round_up(n, tile_r)
    if n_pad != n:
        hstack = jnp.pad(hstack, ((0, 0), (0, n_pad - n), (0, 0)))
    tn = _col_tile(m, max_col_tile)
    n_rt, n_ct = n_pad // tile_r, m // tn

    if n_ct == 1:
        grid = (n_rt,)
        in_specs = [pl.BlockSpec((None, tile_r, kdim), lambda i: (0, i, 0)),
                    pl.BlockSpec((None, tile_r, kdim), lambda i: (1, i, 0)),
                    _spec((kdim, m), lambda i: (0, 0), buffers=1),
                    _spec((kdim, m), lambda i: (0, 0), buffers=1),
                    _spec((1, m), lambda i: (0, 0), buffers=1)]
        out_specs = pl.BlockSpec((tile_r, m), lambda i: (i, 0))
        sems = ("parallel",)
    else:
        grid = (n_ct, n_rt)
        in_specs = [pl.BlockSpec((None, tile_r, kdim), lambda j, i: (0, i, 0)),
                    pl.BlockSpec((None, tile_r, kdim), lambda j, i: (1, i, 0)),
                    pl.BlockSpec((kdim, tn), lambda j, i: (0, j)),
                    pl.BlockSpec((kdim, tn), lambda j, i: (0, j)),
                    pl.BlockSpec((1, tn), lambda j, i: (0, j))]
        out_specs = pl.BlockSpec((tile_r, tn), lambda j, i: (i, j))
        sems = ("parallel", "parallel")

    out = pl.pallas_call(
        linear_dirs_kernel,
        out_shape=jax.ShapeDtypeStruct((n_pad, m), jnp.float32),
        grid_spec=pltpu.PrefetchScalarGridSpec(
            num_scalar_prefetch=0, grid=grid, in_specs=in_specs, out_specs=out_specs),
        compiler_params=pltpu.CompilerParams(
            dimension_semantics=sems, vmem_limit_bytes=_VMEM_LIMIT),
    )(hstack, hstack, wa, wb, bias)
    return out[:n]


def bilstm_layer(gx, whh, *, time_chunk=16):
    """gx: (T, B, 8*Hp) time-major precomputed gates_x; fwd gate cols [0:4Hp], bwd
    gate cols [4Hp:8Hp].  whh: (2, Hp, 4*Hp) stacked recurrent weights (fwd, bwd).

    Returns hdir: (2, T, B, Hp) — hdir[0]=forward, hdir[1]=backward, original time order.
    """
    T, B, g2 = gx.shape
    Gp = g2 // 2
    Hp = Gp // 4
    Tc = min(time_chunk, T)
    T_pad = _round_up(T, Tc)
    if T_pad != T:
        # Zero-padded timesteps keep the backward state exactly 0 until the real data
        # starts (gates=0 -> c=0, h=0); forward-direction garbage at the padded tail is
        # sliced off below.
        gx = jnp.pad(gx, ((0, T_pad - T), (0, 0), (0, 0)))
    nC = T_pad // Tc

    def gx_map(d, c):
        # forward reads chunk c of its gate columns; backward reads chunk nC-1-c
        # (time reversal purely via index arithmetic, no jnp flips).
        return (c + d * (nC - 1 - 2 * c), 0, d)

    def out_map(d, c):
        return (d, c + d * (nC - 1 - 2 * c), 0, 0)

    hdir = pl.pallas_call(
        lstm_dir_chunk_kernel,
        out_shape=jax.ShapeDtypeStruct((2, T_pad, B, Hp), jnp.float32),
        grid_spec=pltpu.PrefetchScalarGridSpec(
            num_scalar_prefetch=0,
            grid=(2, nC),
            in_specs=[
                _spec((Tc, B, Gp), gx_map, buffers=3 if nC >= 3 else None),
                _spec((None, Hp, Gp), lambda d, c: (d, 0, 0), buffers=1),
            ],
            out_specs=pl.BlockSpec((None, Tc, B, Hp), out_map),
            scratch_shapes=[pltpu.VMEM((B, Hp), jnp.float32),    # h carry
                            pltpu.VMEM((B, Hp), jnp.float32)],   # c carry
        ),
        compiler_params=pltpu.CompilerParams(
            dimension_semantics=("parallel", "arbitrary"),
            vmem_limit_bytes=_VMEM_LIMIT),
    )(gx, whh)
    if T_pad != T:
        hdir = hdir[:, :T]
    return hdir


# ----------------------------------------------------------------------------
# Forward pass
# ----------------------------------------------------------------------------
def phoneme_to_mel_forward(X, kp, *, time_chunk=16, max_col_tile=2048):
    """X: (B, T) int32 token ids. Returns (B, T, melBins) float32."""
    d = kp["dims"]
    Hp, Mp, M = d["Hp"], d["Mp"], d["M"]
    B, T = X.shape
    N = T * B

    # Embedding gather (plain JAX glue), directly into time-major layout.
    # TODO(synk): fuse this gather into the layer-0 gates GEMM via scalar-prefetched ids.
    emb = kp["embedding"][X.T]                       # (T, B, Ep)
    x_flat = emb.reshape(N, -1)

    hstack = None
    for li, lp in enumerate(kp["layers"]):
        # Hoisted input projection: one GEMM for all timesteps, both directions.
        if li == 0:
            gx = linear_embed(x_flat, lp["w_in"], lp["b_in"], max_col_tile=max_col_tile)
        else:
            gx = linear_dirs(hstack, lp["w_in_a"], lp["w_in_b"], lp["b_in"],
                             max_col_tile=max_col_tile)
        hdir = bilstm_layer(gx.reshape(T, B, -1), lp["whh"], time_chunk=time_chunk)
        hstack = hdir.reshape(2, N, Hp)

    # Final projection to (padded) mel bins, fused over both direction halves.
    mel = linear_dirs(hstack, kp["fc_wa"], kp["fc_wb"], kp["fc_b"],
                      max_col_tile=max_col_tile)     # (N, Mp)
    mel = mel.reshape(T, B, Mp)[:, :, :M]
    # TODO(synk): write the FC output batch-major from the kernel (index_map plumbing)
    # to drop this XLA transpose.
    return jnp.transpose(mel, (1, 0, 2))             # (B, T, melBins)


# ----------------------------------------------------------------------------
# Parameters: PyTorch-style init + lane-padded kernel layout
# ----------------------------------------------------------------------------
def init_torch_params(key, vocab, E, H, L, M):
    keys = iter(jax.random.split(key, 128))

    def rnd(shape, scale=0.1):
        return jax.random.normal(next(keys), shape, jnp.float32) * scale

    emb = rnd((vocab, E)).at[0].set(0.0)       # padding_idx=0 row zeros
    layers = []
    for layer in range(L):
        d_in = E if layer == 0 else 2 * H
        lp = {}
        for direction in ("fwd", "bwd"):
            lp[direction] = {
                "w_ih": rnd((4 * H, d_in)),    # PyTorch layout (4H, d_in)
                "w_hh": rnd((4 * H, H)),
                "b_ih": rnd((4 * H,)),
                "b_hh": rnd((4 * H,)),
            }
        layers.append(lp)
    return {"embedding": emb, "layers": layers,
            "fc_w": rnd((M, 2 * H)), "fc_b": rnd((M,))}


def prepare_kernel_params(tp, E, H, M):
    """Transpose + zero-pad PyTorch-layout params to the 128-lane-dense kernel layout.

    Padding is exact: padded gate entries get zero pre-activations, so padded hidden and
    cell units stay exactly 0 for every timestep (relies on the zero initial state).
    TODO(synk): for production H < 128 pack gates at width 4H instead of per-gate Hp
    padding to avoid the 128/H FLOP blow-up (production H=256 is unaffected).
    """
    Ep, Hp, Mp = _round_up(E, 128), _round_up(H, 128), _round_up(M, 128)
    Gp = 4 * Hp

    def gate_pack_w(w, col_slice, in_pad):
        w = np.asarray(w[:, col_slice])        # (4H, in_dim)
        in_dim = w.shape[1]
        out = np.zeros((in_pad, Gp), np.float32)
        for g in range(4):
            out[:in_dim, g * Hp:g * Hp + H] = w[g * H:(g + 1) * H, :].T
        return out

    def gate_pack_b(b):
        b = np.asarray(b)
        out = np.zeros((Gp,), np.float32)
        for g in range(4):
            out[g * Hp:g * Hp + H] = b[g * H:(g + 1) * H]
        return out

    emb = jnp.zeros((tp["embedding"].shape[0], Ep), jnp.float32)
    emb = emb.at[:, :E].set(tp["embedding"])

    layers = []
    for li, lp in enumerate(tp["layers"]):
        kl = {}
        bias = np.concatenate(
            [gate_pack_b(lp["fwd"]["b_ih"] + lp["fwd"]["b_hh"]),
             gate_pack_b(lp["bwd"]["b_ih"] + lp["bwd"]["b_hh"])])
        kl["b_in"] = jnp.asarray(bias).reshape(1, 2 * Gp)
        if li == 0:
            kl["w_in"] = jnp.asarray(np.concatenate(
                [gate_pack_w(lp["fwd"]["w_ih"], slice(0, E), Ep),
                 gate_pack_w(lp["bwd"]["w_ih"], slice(0, E), Ep)], axis=1))      # (Ep, 8Hp)
        else:
            kl["w_in_a"] = jnp.asarray(np.concatenate(
                [gate_pack_w(lp["fwd"]["w_ih"], slice(0, H), Hp),
                 gate_pack_w(lp["bwd"]["w_ih"], slice(0, H), Hp)], axis=1))      # h_fwd
            kl["w_in_b"] = jnp.asarray(np.concatenate(
                [gate_pack_w(lp["fwd"]["w_ih"], slice(H, 2 * H), Hp),
                 gate_pack_w(lp["bwd"]["w_ih"], slice(H, 2 * H), Hp)], axis=1))  # h_bwd
        kl["whh"] = jnp.asarray(np.stack(
            [gate_pack_w(lp["fwd"]["w_hh"], slice(0, H), Hp),
             gate_pack_w(lp["bwd"]["w_hh"], slice(0, H), Hp)]))                  # (2, Hp, 4Hp)
        layers.append(kl)

    fc_w = np.asarray(tp["fc_w"])              # (M, 2H)
    fc_wa = np.zeros((Hp, Mp), np.float32)
    fc_wa[:H, :M] = fc_w[:, 0:H].T
    fc_wb = np.zeros((Hp, Mp), np.float32)
    fc_wb[:H, :M] = fc_w[:, H:2 * H].T
    fc_b = np.zeros((1, Mp), np.float32)
    fc_b[0, :M] = np.asarray(tp["fc_b"])

    return {"embedding": emb, "layers": layers,
            "fc_wa": jnp.asarray(fc_wa), "fc_wb": jnp.asarray(fc_wb),
            "fc_b": jnp.asarray(fc_b),
            "dims": dict(E=E, H=H, M=M, Ep=Ep, Hp=Hp, Mp=Mp)}


# ----------------------------------------------------------------------------
# Pure-JAX reference (unpadded, lax.scan) for correctness check
# ----------------------------------------------------------------------------
def ref_lstm_dir(x, w_ih, w_hh, b_ih, b_hh):
    H = w_hh.shape[1]
    w_ih_t, w_hh_t = w_ih.T, w_hh.T
    b = (b_ih + b_hh)[None, :]

    def step(carry, x_t):
        h, c = carry
        g = x_t @ w_ih_t + h @ w_hh_t + b
        i = jax.nn.sigmoid(g[:, :H])
        f = jax.nn.sigmoid(g[:, H:2 * H])
        gg = jnp.tanh(g[:, 2 * H:3 * H])
        o = jax.nn.sigmoid(g[:, 3 * H:])
        c = f * c + i * gg
        h = o * jnp.tanh(c)
        return (h, c), h

    B = x.shape[1]
    init = (jnp.zeros((B, H), jnp.float32), jnp.zeros((B, H), jnp.float32))
    _, hs = lax.scan(step, init, x)
    return hs


def ref_forward(X, tp):
    emb = tp["embedding"][X]                   # (B, T, E)
    h = jnp.transpose(emb, (1, 0, 2))          # (T, B, E)
    for lp in tp["layers"]:
        hf = ref_lstm_dir(h, lp["fwd"]["w_ih"], lp["fwd"]["w_hh"],
                          lp["fwd"]["b_ih"], lp["fwd"]["b_hh"])
        hb = ref_lstm_dir(h[::-1], lp["bwd"]["w_ih"], lp["bwd"]["w_hh"],
                          lp["bwd"]["b_ih"], lp["bwd"]["b_hh"])[::-1]
        h = jnp.concatenate([hf, hb], axis=-1)
    mel = h @ tp["fc_w"].T + tp["fc_b"][None, :]
    return jnp.transpose(mel, (1, 0, 2))


# ----------------------------------------------------------------------------
if __name__ == "__main__":
    VOCAB, EMB, HID, LAYERS, MEL = 20, 32, 32, 2, 16
    B, T = 2, 16

    key = jax.random.PRNGKey(0)
    k_param, k_data = jax.random.split(key)
    torch_params = init_torch_params(k_param, VOCAB, EMB, HID, LAYERS, MEL)
    kernel_params = prepare_kernel_params(torch_params, EMB, HID, MEL)

    X = jax.random.randint(k_data, (B, T), 0, VOCAB, dtype=jnp.int32)

    # time_chunk=8 -> two chunks per direction (exercises the chunked recurrence carry);
    # max_col_tile=512 exercises the column-tiled GEMM path on the (128, 1024) weights.
    fwd = jax.jit(lambda x: phoneme_to_mel_forward(
        x, kernel_params, time_chunk=8, max_col_tile=512))
    out = jax.block_until_ready(fwd(X))
    assert out.shape == (B, T, MEL), out.shape

    ref = jax.block_until_ready(ref_forward(X, torch_params))
    np.testing.assert_allclose(np.asarray(out), np.asarray(ref), atol=5e-4, rtol=1e-3)

    print("KERNEL_OK")
</pallas_src>

<mosaic_0001>
module attributes {stable_mosaic.version = 11 : i64} {
  func.func @linear_dirs_kernel(%arg0: i32, %arg1: i32, %arg2: memref<1x32x128xf32, #tpu.memory_space<vmem>>, %arg3: memref<1x32x128xf32, #tpu.memory_space<vmem>>, %arg4: memref<128x512xf32, #tpu.memory_space<vmem>>, %arg5: memref<128x512xf32, #tpu.memory_space<vmem>>, %arg6: memref<1x512xf32, #tpu.memory_space<vmem>>, %arg7: memref<32x512xf32, #tpu.memory_space<vmem>>) attributes {dimension_semantics = [#tpu.dimension_semantics<parallel>, #tpu.dimension_semantics<parallel>], iteration_bounds = array<i64: 2, 1>, scalar_prefetch = 0 : i64, scratch_operands = 0 : i64, tpu.core_type = #tpu.core_type<tc>, window_params = [{transform_indices = @transform_0, window_bounds = array<i64: 1, 32, 128>}, {transform_indices = @transform_1, window_bounds = array<i64: 1, 32, 128>}, {transform_indices = @transform_2, window_bounds = array<i64: 128, 512>}, {transform_indices = @transform_3, window_bounds = array<i64: 128, 512>}, {transform_indices = @transform_4, window_bounds = array<i64: 1, 512>}, {transform_indices = @transform_5, window_bounds = array<i64: 32, 512>}]} {
    %c0 = arith.constant 0 : index
    %c0_0 = arith.constant 0 : index
    %c0_1 = arith.constant 0 : index
    %0 = vector.load %arg2[%c0, %c0_0, %c0_1] : memref<1x32x128xf32, #tpu.memory_space<vmem>>, vector<1x32x128xf32>
    %1 = vector.shape_cast %0 : vector<1x32x128xf32> to vector<32x128xf32>
    %c0_2 = arith.constant 0 : index
    %c0_3 = arith.constant 0 : index
    %2 = vector.load %arg4[%c0_2, %c0_3] : memref<128x512xf32, #tpu.memory_space<vmem>>, vector<128x512xf32>
    %cst = arith.constant dense<0.000000e+00> : vector<32x512xf32>
    %3 = tpu.matmul %1, %2, %cst {dimension_numbers = #tpu.dot_dimension_numbers<[1], [0], [0], [1], [0, 0, 1, 1], [], []>} : vector<32x128xf32>, vector<128x512xf32>, vector<32x512xf32> -> vector<32x512xf32>
    %c0_4 = arith.constant 0 : index
    %c0_5 = arith.constant 0 : index
    %c0_6 = arith.constant 0 : index
    %4 = vector.load %arg3[%c0_4, %c0_5, %c0_6] : memref<1x32x128xf32, #tpu.memory_space<vmem>>, vector<1x32x128xf32>
    %5 = vector.shape_cast %4 : vector<1x32x128xf32> to vector<32x128xf32>
    %c0_7 = arith.constant 0 : index
    %c0_8 = arith.constant 0 : index
    %6 = vector.load %arg5[%c0_7, %c0_8] : memref<128x512xf32, #tpu.memory_space<vmem>>, vector<128x512xf32>
    %cst_9 = arith.constant dense<0.000000e+00> : vector<32x512xf32>
    %7 = tpu.matmul %5, %6, %cst_9 {dimension_numbers = #tpu.dot_dimension_numbers<[1], [0], [0], [1], [0, 0, 1, 1], [], []>} : vector<32x128xf32>, vector<128x512xf32>, vector<32x512xf32> -> vector<32x512xf32>
    %8 = arith.addf %3, %7 : vector<32x512xf32>
    %c0_10 = arith.constant 0 : index
    %c0_11 = arith.constant 0 : index
    %9 = vector.load %arg6[%c0_10, %c0_11] : memref<1x512xf32, #tpu.memory_space<vmem>>, vector<1x512xf32>
    %10 = vector.broadcast %9 : vector<1x512xf32> to vector<32x512xf32>
    %11 = arith.addf %8, %10 : vector<32x512xf32>
    %c0_12 = arith.constant 0 : index
    %c0_13 = arith.constant 0 : index
    %12 = vector.load %arg7[%c0_12, %c0_13] : memref<32x512xf32, #tpu.memory_space<vmem>>, vector<32x512xf32>
    tpu.vector_store %arg7[%c0_12, %c0_13], %11 {strides = array<i32>} : memref<32x512xf32, #tpu.memory_space<vmem>>, vector<32x512xf32>,
    return
  }
  func.func @transform_0(%arg0: i32, %arg1: i32) -> (i32, i32, i32) {
    %c0_i32 = arith.constant 0 : i32
    %c0_i32_0 = arith.constant 0 : i32
    %c0_i32_1 = arith.constant 0 : i32
    return %c0_i32, %arg1, %c0_i32_0 : i32, i32, i32
  }
  func.func @transform_1(%arg0: i32, %arg1: i32) -> (i32, i32, i32) {
    %c1_i32 = arith.constant 1 : i32
    %c0_i32 = arith.constant 0 : i32
    %c0_i32_0 = arith.constant 0 : i32
    return %c1_i32, %arg1, %c0_i32 : i32, i32, i32
  }
  func.func @transform_2(%arg0: i32, %arg1: i32) -> (i32, i32) {
    %c0_i32 = arith.constant 0 : i32
    %c0_i32_0 = arith.constant 0 : i32
    return %c0_i32, %arg0 : i32, i32
  }
  func.func @transform_3(%arg0: i32, %arg1: i32) -> (i32, i32) {
    %c0_i32 = arith.constant 0 : i32
    %c0_i32_0 = arith.constant 0 : i32
    return %c0_i32, %arg0 : i32, i32
  }
  func.func @transform_4(%arg0: i32, %arg1: i32) -> (i32, i32) {
    %c0_i32 = arith.constant 0 : i32
    %c0_i32_0 = arith.constant 0 : i32
    return %c0_i32, %arg0 : i32, i32
  }
  func.func @transform_5(%arg0: i32, %arg1: i32) -> (i32, i32) {
    %c0_i32 = arith.constant 0 : i32
    return %arg1, %arg0 : i32, i32
  }
}

module attributes {stable_mosaic.version = 11 : i64} {
  func.func @linear_embed_kernel(%arg0: i32, %arg1: i32, %arg2: memref<32x128xf32, #tpu.memory_space<vmem>>, %arg3: memref<128x512xf32, #tpu.memory_space<vmem>>, %arg4: memref<1x512xf32, #tpu.memory_space<vmem>>, %arg5: memref<32x512xf32, #tpu.memory_space<vmem>>) attributes {dimension_semantics = [#tpu.dimension_semantics<parallel>, #tpu.dimension_semantics<parallel>], iteration_bounds = array<i64: 2, 1>, scalar_prefetch = 0 : i64, scratch_operands = 0 : i64, tpu.core_type = #tpu.core_type<tc>, window_params = [{transform_indices = @transform_0, window_bounds = array<i64: 32, 128>}, {transform_indices = @transform_1, window_bounds = array<i64: 128, 512>}, {transform_indices = @transform_2, window_bounds = array<i64: 1, 512>}, {transform_indices = @transform_3, window_bounds = array<i64: 32, 512>}]} {
    %c0 = arith.constant 0 : index
    %c0_0 = arith.constant 0 : index
    %0 = vector.load %arg2[%c0, %c0_0] : memref<32x128xf32, #tpu.memory_space<vmem>>, vector<32x128xf32>
    %c0_1 = arith.constant 0 : index
    %c0_2 = arith.constant 0 : index
    %1 = vector.load %arg3[%c0_1, %c0_2] : memref<128x512xf32, #tpu.memory_space<vmem>>, vector<128x512xf32>
    %cst = arith.constant dense<0.000000e+00> : vector<32x512xf32>
    %2 = tpu.matmul %0, %1, %cst {dimension_numbers = #tpu.dot_dimension_numbers<[1], [0], [0], [1], [0, 0, 1, 1], [], []>} : vector<32x128xf32>, vector<128x512xf32>, vector<32x512xf32> -> vector<32x512xf32>
    %c0_3 = arith.constant 0 : index
    %c0_4 = arith.constant 0 : index
    %3 = vector.load %arg4[%c0_3, %c0_4] : memref<1x512xf32, #tpu.memory_space<vmem>>, vector<1x512xf32>
    %4 = vector.broadcast %3 : vector<1x512xf32> to vector<32x512xf32>
    %5 = arith.addf %2, %4 : vector<32x512xf32>
    %c0_5 = arith.constant 0 : index
    %c0_6 = arith.constant 0 : index
    %6 = vector.load %arg5[%c0_5, %c0_6] : memref<32x512xf32, #tpu.memory_space<vmem>>, vector<32x512xf32>
    tpu.vector_store %arg5[%c0_5, %c0_6], %5 {strides = array<i32>} : memref<32x512xf32, #tpu.memory_space<vmem>>, vector<32x512xf32>,
    return
  }
  func.func @transform_0(%arg0: i32, %arg1: i32) -> (i32, i32) {
    %c0_i32 = arith.constant 0 : i32
    %c0_i32_0 = arith.constant 0 : i32
    return %arg1, %c0_i32 : i32, i32
  }
  func.func @transform_1(%arg0: i32, %arg1: i32) -> (i32, i32) {
    %c0_i32 = arith.constant 0 : i32
    %c0_i32_0 = arith.constant 0 : i32
    return %c0_i32, %arg0 : i32, i32
  }
  func.func @transform_2(%arg0: i32, %arg1: i32) -> (i32, i32) {
    %c0_i32 = arith.constant 0 : i32
    %c0_i32_0 = arith.constant 0 : i32
    return %c0_i32, %arg0 : i32, i32
  }
  func.func @transform_3(%arg0: i32, %arg1: i32) -> (i32, i32) {
    %c0_i32 = arith.constant 0 : i32
    return %arg1, %arg0 : i32, i32
  }
}

module attributes {stable_mosaic.version = 11 : i64} {
  func.func @lstm_dir_chunk_kernel(%arg0: i32, %arg1: i32, %arg2: memref<8x2x512xf32, #tpu.memory_space<vmem>>, %arg3: memref<1x128x512xf32, #tpu.memory_space<vmem>>, %arg4: memref<1x8x2x128xf32, #tpu.memory_space<vmem>>, %arg5: memref<2x128xf32, #tpu.memory_space<vmem>>, %arg6: memref<2x128xf32, #tpu.memory_space<vmem>>) attributes {dimension_semantics = [#tpu.dimension_semantics<parallel>, #tpu.dimension_semantics<arbitrary>], iteration_bounds = array<i64: 2, 2>, scalar_prefetch = 0 : i64, scratch_operands = 2 : i64, tpu.core_type = #tpu.core_type<tc>, window_params = [{transform_indices = @transform_0, window_bounds = array<i64: 8, 2, 512>}, {pipeline_mode = #tpu.pipeline_mode<synchronous>, transform_indices = @transform_1, window_bounds = array<i64: 1, 128, 512>}, {transform_indices = @transform_2, window_bounds = array<i64: 1, 8, 2, 128>}]} {
    %c0_i32 = arith.constant 0 : i32
    %0 = arith.cmpi eq, %arg1, %c0_i32 : i32
    %1 = arith.extui %0 : i1 to i32
    %c0_i32_0 = arith.constant 0 : i32
    %2 = arith.cmpi ne, %1, %c0_i32_0 : i32
    scf.if %2 {
      %cst_99 = arith.constant 0.000000e+00 : f32
      %313 = vector.broadcast %cst_99 : f32 to vector<2x128xf32>
      %c0_100 = arith.constant 0 : index
      %c0_101 = arith.constant 0 : index
      %314 = vector.load %arg5[%c0_100, %c0_101] : memref<2x128xf32, #tpu.memory_space<vmem>>, vector<2x128xf32>
      tpu.vector_store %arg5[%c0_100, %c0_101], %313 {strides = array<i32>} : memref<2x128xf32, #tpu.memory_space<vmem>>, vector<2x128xf32>,
      %cst_102 = arith.constant 0.000000e+00 : f32
      %315 = vector.broadcast %cst_102 : f32 to vector<2x128xf32>
      %c0_103 = arith.constant 0 : index
      %c0_104 = arith.constant 0 : index
      %316 = vector.load %arg6[%c0_103, %c0_104] : memref<2x128xf32, #tpu.memory_space<vmem>>, vector<2x128xf32>
      tpu.vector_store %arg6[%c0_103, %c0_104], %315 {strides = array<i32>} : memref<2x128xf32, #tpu.memory_space<vmem>>, vector<2x128xf32>,
    } else {
    }
    %c0 = arith.constant 0 : index
    %c0_1 = arith.constant 0 : index
    %c0_2 = arith.constant 0 : index
    %3 = vector.load %arg3[%c0, %c0_1, %c0_2] : memref<1x128x512xf32, #tpu.memory_space<vmem>>, vector<1x128x512xf32>
    %4 = vector.shape_cast %3 : vector<1x128x512xf32> to vector<128x512xf32>
    %c0_3 = arith.constant 0 : index
    %c0_4 = arith.constant 0 : index
    %5 = vector.load %arg5[%c0_3, %c0_4] : memref<2x128xf32, #tpu.memory_space<vmem>>, vector<2x128xf32>
    %c0_5 = arith.constant 0 : index
    %c0_6 = arith.constant 0 : index
    %6 = vector.load %arg6[%c0_5, %c0_6] : memref<2x128xf32, #tpu.memory_space<vmem>>, vector<2x128xf32>
    %c0_i32_7 = arith.constant 0 : i32
    %c2_i32 = arith.constant 2 : i32
    %7 = arith.muli %c2_i32, %c0_i32_7 : i32
    %c7_i32 = arith.constant 7 : i32
    %8 = arith.subi %c7_i32, %7 : i32
    %9 = arith.muli %arg0, %8 : i32
    %10 = arith.addi %c0_i32_7, %9 : i32
    %11 = arith.index_cast %10 : i32 to index
    %c0_8 = arith.constant 0 : index
    %c0_9 = arith.constant 0 : index
    %12 = vector.load %arg2[%11, %c0_8, %c0_9] : memref<8x2x512xf32, #tpu.memory_space<vmem>>, vector<1x2x512xf32>
    %13 = vector.shape_cast %12 : vector<1x2x512xf32> to vector<2x512xf32>
    %cst = arith.constant dense<0.000000e+00> : vector<2x512xf32>
    %14 = tpu.matmul %5, %4, %cst {dimension_numbers = #tpu.dot_dimension_numbers<[1], [0], [0], [1], [0, 0, 1, 1], [], []>} : vector<2x128xf32>, vector<128x512xf32>, vector<2x512xf32> -> vector<2x512xf32>
    %15 = arith.addf %13, %14 : vector<2x512xf32>
    %16 = vector.extract_strided_slice %15 {offsets = [0, 0], sizes = [2, 128], strides = [1, 1]} : vector<2x512xf32> to vector<2x128xf32>
    %17 = arith.negf %16 : vector<2x128xf32>
    %18 = math.exp %17 : vector<2x128xf32>
    %cst_10 = arith.constant 1.000000e+00 : f32
    %19 = vector.broadcast %cst_10 : f32 to vector<2x128xf32>
    %20 = arith.addf %19, %18 : vector<2x128xf32>
    %21 = arith.divf %19, %20 : vector<2x128xf32>
    %22 = vector.extract_strided_slice %15 {offsets = [0, 128], sizes = [2, 128], strides = [1, 1]} : vector<2x512xf32> to vector<2x128xf32>
    %23 = arith.negf %22 : vector<2x128xf32>
    %24 = math.exp %23 : vector<2x128xf32>
    %cst_11 = arith.constant 1.000000e+00 : f32
    %25 = vector.broadcast %cst_11 : f32 to vector<2x128xf32>
    %26 = arith.addf %25, %24 : vector<2x128xf32>
    %27 = arith.divf %25, %26 : vector<2x128xf32>
    %28 = vector.extract_strided_slice %15 {offsets = [0, 256], sizes = [2, 128], strides = [1, 1]} : vector<2x512xf32> to vector<2x128xf32>
    %29 = math.tanh %28 : vector<2x128xf32>
    %30 = vector.extract_strided_slice %15 {offsets = [0, 384], sizes = [2, 128], strides = [1, 1]} : vector<2x512xf32> to vector<2x128xf32>
    %31 = arith.negf %30 : vector<2x128xf32>
    %32 = math.exp %31 : vector<2x128xf32>
    %cst_12 = arith.constant 1.000000e+00 : f32
    %33 = vector.broadcast %cst_12 : f32 to vector<2x128xf32>
    %34 = arith.addf %33, %32 : vector<2x128xf32>
    %35 = arith.divf %33, %34 : vector<2x128xf32>
    %36 = arith.mulf %27, %6 : vector<2x128xf32>
    %37 = arith.mulf %21, %29 : vector<2x128xf32>
    %38 = arith.addf %36, %37 : vector<2x128xf32>
    %39 = math.tanh %38 : vector<2x128xf32>
    %40 = arith.mulf %35, %39 : vector<2x128xf32>
    %c0_13 = arith.constant 0 : index
    %41 = arith.index_cast %10 : i32 to index
    %c0_14 = arith.constant 0 : index
    %c0_15 = arith.constant 0 : index
    %42 = vector.load %arg4[%c0_13, %41, %c0_14, %c0_15] : memref<1x8x2x128xf32, #tpu.memory_space<vmem>>, vector<1x1x2x128xf32>
    %43 = vector.shape_cast %42 : vector<1x1x2x128xf32> to vector<2x128xf32>
    %44 = vector.shape_cast %40 : vector<2x128xf32> to vector<1x1x2x128xf32>
    tpu.vector_store %arg4[%c0_13, %41, %c0_14, %c0_15], %44 {strides = array<i32>} : memref<1x8x2x128xf32, #tpu.memory_space<vmem>>, vector<1x1x2x128xf32>,
    %c1_i32 = arith.constant 1 : i32
    %c2_i32_16 = arith.constant 2 : i32
    %45 = arith.muli %c2_i32_16, %c1_i32 : i32
    %c7_i32_17 = arith.constant 7 : i32
    %46 = arith.subi %c7_i32_17, %45 : i32
    %47 = arith.muli %arg0, %46 : i32
    %48 = arith.addi %c1_i32, %47 : i32
    %49 = arith.index_cast %48 : i32 to index
    %c0_18 = arith.constant 0 : index
    %c0_19 = arith.constant 0 : index
    %50 = vector.load %arg2[%49, %c0_18, %c0_19] : memref<8x2x512xf32, #tpu.memory_space<vmem>>, vector<1x2x512xf32>
    %51 = vector.shape_cast %50 : vector<1x2x512xf32> to vector<2x512xf32>
    %cst_20 = arith.constant dense<0.000000e+00> : vector<2x512xf32>
    %52 = tpu.matmul %40, %4, %cst_20 {dimension_numbers = #tpu.dot_dimension_numbers<[1], [0], [0], [1], [0, 0, 1, 1], [], []>} : vector<2x128xf32>, vector<128x512xf32>, vector<2x512xf32> -> vector<2x512xf32>
    %53 = arith.addf %51, %52 : vector<2x512xf32>
    %54 = vector.extract_strided_slice %53 {offsets = [0, 0], sizes = [2, 128], strides = [1, 1]} : vector<2x512xf32> to vector<2x128xf32>
    %55 = arith.negf %54 : vector<2x128xf32>
    %56 = math.exp %55 : vector<2x128xf32>
    %cst_21 = arith.constant 1.000000e+00 : f32
    %57 = vector.broadcast %cst_21 : f32 to vector<2x128xf32>
    %58 = arith.addf %57, %56 : vector<2x128xf32>
    %59 = arith.divf %57, %58 : vector<2x128xf32>
    %60 = vector.extract_strided_slice %53 {offsets = [0, 128], sizes = [2, 128], strides = [1, 1]} : vector<2x512xf32> to vector<2x128xf32>
    %61 = arith.negf %60 : vector<2x128xf32>
    %62 = math.exp %61 : vector<2x128xf32>
    %cst_22 = arith.constant 1.000000e+00 : f32
    %63 = vector.broadcast %cst_22 : f32 to vector<2x128xf32>
    %64 = arith.addf %63, %62 : vector<2x128xf32>
    %65 = arith.divf %63, %64 : vector<2x128xf32>
    %66 = vector.extract_strided_slice %53 {offsets = [0, 256], sizes = [2, 128], strides = [1, 1]} : vector<2x512xf32> to vector<2x128xf32>
    %67 = math.tanh %66 : vector<2x128xf32>
    %68 = vector.extract_strided_slice %53 {offsets = [0, 384], sizes = [2, 128], strides = [1, 1]} : vector<2x512xf32> to vector<2x128xf32>
    %69 = arith.negf %68 : vector<2x128xf32>
    %70 = math.exp %69 : vector<2x128xf32>
    %cst_23 = arith.constant 1.000000e+00 : f32
    %71 = vector.broadcast %cst_23 : f32 to vector<2x128xf32>
    %72 = arith.addf %71, %70 : vector<2x128xf32>
    %73 = arith.divf %71, %72 : vector<2x128xf32>
    %74 = arith.mulf %65, %38 : vector<2x128xf32>
    %75 = arith.mulf %59, %67 : vector<2x128xf32>
    %76 = arith.addf %74, %75 : vector<2x128xf32>
    %77 = math.tanh %76 : vector<2x128xf32>
    %78 = arith.mulf %73, %77 : vector<2x128xf32>
    %c0_24 = arith.constant 0 : index
    %79 = arith.index_cast %48 : i32 to index
    %c0_25 = arith.constant 0 : index
    %c0_26 = arith.constant 0 : index
    %80 = vector.load %arg4[%c0_24, %79, %c0_25, %c0_26] : memref<1x8x2x128xf32, #tpu.memory_space<vmem>>, vector<1x1x2x128xf32>
    %81 = vector.shape_cast %80 : vector<1x1x2x128xf32> to vector<2x128xf32>
    %82 = vector.shape_cast %78 : vector<2x128xf32> to vector<1x1x2x128xf32>
    tpu.vector_store %arg4[%c0_24, %79, %c0_25, %c0_26], %82 {strides = array<i32>} : memref<1x8x2x128xf32, #tpu.memory_space<vmem>>, vector<1x1x2x128xf32>,
    %c2_i32_27 = arith.constant 2 : i32
    %c2_i32_28 = arith.constant 2 : i32
    %83 = arith.muli %c2_i32_28, %c2_i32_27 : i32
    %c7_i32_29 = arith.constant 7 : i32
    %84 = arith.subi %c7_i32_29, %83 : i32
    %85 = arith.muli %arg0, %84 : i32
    %86 = arith.addi %c2_i32_27, %85 : i32
    %87 = arith.index_cast %86 : i32 to index
    %c0_30 = arith.constant 0 : index
    %c0_31 = arith.constant 0 : index
    %88 = vector.load %arg2[%87, %c0_30, %c0_31] : memref<8x2x512xf32, #tpu.memory_space<vmem>>, vector<1x2x512xf32>
    %89 = vector.shape_cast %88 : vector<1x2x512xf32> to vector<2x512xf32>
    %cst_32 = arith.constant dense<0.000000e+00> : vector<2x512xf32>
    %90 = tpu.matmul %78, %4, %cst_32 {dimension_numbers = #tpu.dot_dimension_numbers<[1], [0], [0], [1], [0, 0, 1, 1], [], []>} : vector<2x128xf32>, vector<128x512xf32>, vector<2x512xf32> -> vector<2x512xf32>
    %91 = arith.addf %89, %90 : vector<2x512xf32>
    %92 = vector.extract_strided_slice %91 {offsets = [0, 0], sizes = [2, 128], strides = [1, 1]} : vector<2x512xf32> to vector<2x128xf32>
    %93 = arith.negf %92 : vector<2x128xf32>
    %94 = math.exp %93 : vector<2x128xf32>
    %cst_33 = arith.constant 1.000000e+00 : f32
    %95 = vector.broadcast %cst_33 : f32 to vector<2x128xf32>
    %96 = arith.addf %95, %94 : vector<2x128xf32>
    %97 = arith.divf %95, %96 : vector<2x128xf32>
    %98 = vector.extract_strided_slice %91 {offsets = [0, 128], sizes = [2, 128], strides = [1, 1]} : vector<2x512xf32> to vector<2x128xf32>
    %99 = arith.negf %98 : vector<2x128xf32>
    %100 = math.exp %99 : vector<2x128xf32>
    %cst_34 = arith.constant 1.000000e+00 : f32
    %101 = vector.broadcast %cst_34 : f32 to vector<2x128xf32>
    %102 = arith.addf %101, %100 : vector<2x128xf32>
    %103 = arith.divf %101, %102 : vector<2x128xf32>
    %104 = vector.extract_strided_slice %91 {offsets = [0, 256], sizes = [2, 128], strides = [1, 1]} : vector<2x512xf32> to vector<2x128xf32>
    %105 = math.tanh %104 : vector<2x128xf32>
    %106 = vector.extract_strided_slice %91 {offsets = [0, 384], sizes = [2, 128], strides = [1, 1]} : vector<2x512xf32> to vector<2x128xf32>
    %107 = arith.negf %106 : vector<2x128xf32>
    %108 = math.exp %107 : vector<2x128xf32>
    %cst_35 = arith.constant 1.000000e+00 : f32
    %109 = vector.broadcast %cst_35 : f32 to vector<2x128xf32>
    %110 = arith.addf %109, %108 : vector<2x128xf32>
    %111 = arith.divf %109, %110 : vector<2x128xf32>
    %112 = arith.mulf %103, %76 : vector<2x128xf32>
    %113 = arith.mulf %97, %105 : vector<2x128xf32>
    %114 = arith.addf %112, %113 : vector<2x128xf32>
    %115 = math.tanh %114 : vector<2x128xf32>
    %116 = arith.mulf %111, %115 : vector<2x128xf32>
    %c0_36 = arith.constant 0 : index
    %117 = arith.index_cast %86 : i32 to index
    %c0_37 = arith.constant 0 : index
    %c0_38 = arith.constant 0 : index
    %118 = vector.load %arg4[%c0_36, %117, %c0_37, %c0_38] : memref<1x8x2x128xf32, #tpu.memory_space<vmem>>, vector<1x1x2x128xf32>
    %119 = vector.shape_cast %118 : vector<1x1x2x128xf32> to vector<2x128xf32>
    %120 = vector.shape_cast %116 : vector<2x128xf32> to vector<1x1x2x128xf32>
    tpu.vector_store %arg4[%c0_36, %117, %c0_37, %c0_38], %120 {strides = array<i32>} : memref<1x8x2x128xf32, #tpu.memory_space<vmem>>, vector<1x1x2x128xf32>,
    %c3_i32 = arith.constant 3 : i32
    %c2_i32_39 = arith.constant 2 : i32
    %121 = arith.muli %c2_i32_39, %c3_i32 : i32
    %c7_i32_40 = arith.constant 7 : i32
    %122 = arith.subi %c7_i32_40, %121 : i32
    %123 = arith.muli %arg0, %122 : i32
    %124 = arith.addi %c3_i32, %123 : i32
    %125 = arith.index_cast %124 : i32 to index
    %c0_41 = arith.constant 0 : index
    %c0_42 = arith.constant 0 : index
    %126 = vector.load %arg2[%125, %c0_41, %c0_42] : memref<8x2x512xf32, #tpu.memory_space<vmem>>, vector<1x2x512xf32>
    %127 = vector.shape_cast %126 : vector<1x2x512xf32> to vector<2x512xf32>
    %cst_43 = arith.constant dense<0.000000e+00> : vector<2x512xf32>
    %128 = tpu.matmul %116, %4, %cst_43 {dimension_numbers = #tpu.dot_dimension_numbers<[1], [0], [0], [1], [0, 0, 1, 1], [], []>} : vector<2x128xf32>, vector<128x512xf32>, vector<2x512xf32> -> vector<2x512xf32>
    %129 = arith.addf %127, %128 : vector<2x512xf32>
    %130 = vector.extract_strided_slice %129 {offsets = [0, 0], sizes = [2, 128], strides = [1, 1]} : vector<2x512xf32> to vector<2x128xf32>
    %131 = arith.negf %130 : vector<2x128xf32>
    %132 = math.exp %131 : vector<2x128xf32>
    %cst_44 = arith.constant 1.000000e+00 : f32
    %133 = vector.broadcast %cst_44 : f32 to vector<2x128xf32>
    %134 = arith.addf %133, %132 : vector<2x128xf32>
    %135 = arith.divf %133, %134 : vector<2x128xf32>
    %136 = vector.extract_strided_slice %129 {offsets = [0, 128], sizes = [2, 128], strides = [1, 1]} : vector<2x512xf32> to vector<2x128xf32>
    %137 = arith.negf %136 : vector<2x128xf32>
    %138 = math.exp %137 : vector<2x128xf32>
    %cst_45 = arith.constant 1.000000e+00 : f32
    %139 = vector.broadcast %cst_45 : f32 to vector<2x128xf32>
    %140 = arith.addf %139, %138 : vector<2x128xf32>
    %141 = arith.divf %139, %140 : vector<2x128xf32>
    %142 = vector.extract_strided_slice %129 {offsets = [0, 256], sizes = [2, 128], strides = [1, 1]} : vector<2x512xf32> to vector<2x128xf32>
    %143 = math.tanh %142 : vector<2x128xf32>
    %144 = vector.extract_strided_slice %129 {offsets = [0, 384], sizes = [2, 128], strides = [1, 1]} : vector<2x512xf32> to vector<2x128xf32>
    %145 = arith.negf %144 : vector<2x128xf32>
    %146 = math.exp %145 : vector<2x128xf32>
    %cst_46 = arith.constant 1.000000e+00 : f32
    %147 = vector.broadcast %cst_46 : f32 to vector<2x128xf32>
    %148 = arith.addf %147, %146 : vector<2x128xf32>
    %149 = arith.divf %147, %148 : vector<2x128xf32>
    %150 = arith.mulf %141, %114 : vector<2x128xf32>
    %151 = arith.mulf %135, %143 : vector<2x128xf32>
    %152 = arith.addf %150, %151 : vector<2x128xf32>
    %153 = math.tanh %152 : vector<2x128xf32>
    %154 = arith.mulf %149, %153 : vector<2x128xf32>
    %c0_47 = arith.constant 0 : index
    %155 = arith.index_cast %124 : i32 to index
    %c0_48 = arith.constant 0 : index
    %c0_49 = arith.constant 0 : index
    %156 = vector.load %arg4[%c0_47, %155, %c0_48, %c0_49] : memref<1x8x2x128xf32, #tpu.memory_space<vmem>>, vector<1x1x2x128xf32>
    %157 = vector.shape_cast %156 : vector<1x1x2x128xf32> to vector<2x128xf32>
    %158 = vector.shape_cast %154 : vector<2x128xf32> to vector<1x1x2x128xf32>
    tpu.vector_store %arg4[%c0_47, %155, %c0_48, %c0_49], %158 {strides = array<i32>} : memref<1x8x2x128xf32, #tpu.memory_space<vmem>>, vector<1x1x2x128xf32>,
    %c4_i32 = arith.constant 4 : i32
    %c2_i32_50 = arith.constant 2 : i32
    %159 = arith.muli %c2_i32_50, %c4_i32 : i32
    %c7_i32_51 = arith.constant 7 : i32
    %160 = arith.subi %c7_i32_51, %159 : i32
    %161 = arith.muli %arg0, %160 : i32
    %162 = arith.addi %c4_i32, %161 : i32
    %163 = arith.index_cast %162 : i32 to index
    %c0_52 = arith.constant 0 : index
    %c0_53 = arith.constant 0 : index
    %164 = vector.load %arg2[%163, %c0_52, %c0_53] : memref<8x2x512xf32, #tpu.memory_space<vmem>>, vector<1x2x512xf32>
    %165 = vector.shape_cast %164 : vector<1x2x512xf32> to vector<2x512xf32>
    %cst_54 = arith.constant dense<0.000000e+00> : vector<2x512xf32>
    %166 = tpu.matmul %154, %4, %cst_54 {dimension_numbers = #tpu.dot_dimension_numbers<[1], [0], [0], [1], [0, 0, 1, 1], [], []>} : vector<2x128xf32>, vector<128x512xf32>, vector<2x512xf32> -> vector<2x512xf32>
    %167 = arith.addf %165, %166 : vector<2x512xf32>
    %168 = vector.extract_strided_slice %167 {offsets = [0, 0], sizes = [2, 128], strides = [1, 1]} : vector<2x512xf32> to vector<2x128xf32>
    %169 = arith.negf %168 : vector<2x128xf32>
    %170 = math.exp %169 : vector<2x128xf32>
    %cst_55 = arith.constant 1.000000e+00 : f32
    %171 = vector.broadcast %cst_55 : f32 to vector<2x128xf32>
    %172 = arith.addf %171, %170 : vector<2x128xf32>
    %173 = arith.divf %171, %172 : vector<2x128xf32>
    %174 = vector.extract_strided_slice %167 {offsets = [0, 128], sizes = [2, 128], strides = [1, 1]} : vector<2x512xf32> to vector<2x128xf32>
    %175 = arith.negf %174 : vector<2x128xf32>
    %176 = math.exp %175 : vector<2x128xf32>
    %cst_56 = arith.constant 1.000000e+00 : f32
    %177 = vector.broadcast %cst_56 : f32 to vector<2x128xf32>
    %178 = arith.addf %177, %176 : vector<2x128xf32>
    %179 = arith.divf %177, %178 : vector<2x128xf32>
    %180 = vector.extract_strided_slice %167 {offsets = [0, 256], sizes = [2, 128], strides = [1, 1]} : vector<2x512xf32> to vector<2x128xf32>
    %181 = math.tanh %180 : vector<2x128xf32>
    %182 = vector.extract_strided_slice %167 {offsets = [0, 384], sizes = [2, 128], strides = [1, 1]} : vector<2x512xf32> to vector<2x128xf32>
    %183 = arith.negf %182 : vector<2x128xf32>
    %184 = math.exp %183 : vector<2x128xf32>
    %cst_57 = arith.constant 1.000000e+00 : f32
    %185 = vector.broadcast %cst_57 : f32 to vector<2x128xf32>
    %186 = arith.addf %185, %184 : vector<2x128xf32>
    %187 = arith.divf %185, %186 : vector<2x128xf32>
    %188 = arith.mulf %179, %152 : vector<2x128xf32>
    %189 = arith.mulf %173, %181 : vector<2x128xf32>
    %190 = arith.addf %188, %189 : vector<2x128xf32>
    %191 = math.tanh %190 : vector<2x128xf32>
    %192 = arith.mulf %187, %191 : vector<2x128xf32>
    %c0_58 = arith.constant 0 : index
    %193 = arith.index_cast %162 : i32 to index
    %c0_59 = arith.constant 0 : index
    %c0_60 = arith.constant 0 : index
    %194 = vector.load %arg4[%c0_58, %193, %c0_59, %c0_60] : memref<1x8x2x128xf32, #tpu.memory_space<vmem>>, vector<1x1x2x128xf32>
    %195 = vector.shape_cast %194 : vector<1x1x2x128xf32> to vector<2x128xf32>
    %196 = vector.shape_cast %192 : vector<2x128xf32> to vector<1x1x2x128xf32>
    tpu.vector_store %arg4[%c0_58, %193, %c0_59, %c0_60], %196 {strides = array<i32>} : memref<1x8x2x128xf32, #tpu.memory_space<vmem>>, vector<1x1x2x128xf32>,
    %c5_i32 = arith.constant 5 : i32
    %c2_i32_61 = arith.constant 2 : i32
    %197 = arith.muli %c2_i32_61, %c5_i32 : i32
    %c7_i32_62 = arith.constant 7 : i32
    %198 = arith.subi %c7_i32_62, %197 : i32
    %199 = arith.muli %arg0, %198 : i32
    %200 = arith.addi %c5_i32, %199 : i32
    %201 = arith.index_cast %200 : i32 to index
    %c0_63 = arith.constant 0 : index
    %c0_64 = arith.constant 0 : index
    %202 = vector.load %arg2[%201, %c0_63, %c0_64] : memref<8x2x512xf32, #tpu.memory_space<vmem>>, vector<1x2x512xf32>
    %203 = vector.shape_cast %202 : vector<1x2x512xf32> to vector<2x512xf32>
    %cst_65 = arith.constant dense<0.000000e+00> : vector<2x512xf32>
    %204 = tpu.matmul %192, %4, %cst_65 {dimension_numbers = #tpu.dot_dimension_numbers<[1], [0], [0], [1], [0, 0, 1, 1], [], []>} : vector<2x128xf32>, vector<128x512xf32>, vector<2x512xf32> -> vector<2x512xf32>
    %205 = arith.addf %203, %204 : vector<2x512xf32>
    %206 = vector.extract_strided_slice %205 {offsets = [0, 0], sizes = [2, 128], strides = [1, 1]} : vector<2x512xf32> to vector<2x128xf32>
    %207 = arith.negf %206 : vector<2x128xf32>
    %208 = math.exp %207 : vector<2x128xf32>
    %cst_66 = arith.constant 1.000000e+00 : f32
    %209 = vector.broadcast %cst_66 : f32 to vector<2x128xf32>
    %210 = arith.addf %209, %208 : vector<2x128xf32>
    %211 = arith.divf %209, %210 : vector<2x128xf32>
    %212 = vector.extract_strided_slice %205 {offsets = [0, 128], sizes = [2, 128], strides = [1, 1]} : vector<2x512xf32> to vector<2x128xf32>
    %213 = arith.negf %212 : vector<2x128xf32>
    %214 = math.exp %213 : vector<2x128xf32>
    %cst_67 = arith.constant 1.000000e+00 : f32
    %215 = vector.broadcast %cst_67 : f32 to vector<2x128xf32>
    %216 = arith.addf %215, %214 : vector<2x128xf32>
    %217 = arith.divf %215, %216 : vector<2x128xf32>
    %218 = vector.extract_strided_slice %205 {offsets = [0, 256], sizes = [2, 128], strides = [1, 1]} : vector<2x512xf32> to vector<2x128xf32>
    %219 = math.tanh %218 : vector<2x128xf32>
    %220 = vector.extract_strided_slice %205 {offsets = [0, 384], sizes = [2, 128], strides = [1, 1]} : vector<2x512xf32> to vector<2x128xf32>
    %221 = arith.negf %220 : vector<2x128xf32>
    %222 = math.exp %221 : vector<2x128xf32>
    %cst_68 = arith.constant 1.000000e+00 : f32
    %223 = vector.broadcast %cst_68 : f32 to vector<2x128xf32>
    %224 = arith.addf %223, %222 : vector<2x128xf32>
    %225 = arith.divf %223, %224 : vector<2x128xf32>
    %226 = arith.mulf %217, %190 : vector<2x128xf32>
    %227 = arith.mulf %211, %219 : vector<2x128xf32>
    %228 = arith.addf %226, %227 : vector<2x128xf32>
    %229 = math.tanh %228 : vector<2x128xf32>
    %230 = arith.mulf %225, %229 : vector<2x128xf32>
    %c0_69 = arith.constant 0 : index
    %231 = arith.index_cast %200 : i32 to index
    %c0_70 = arith.constant 0 : index
    %c0_71 = arith.constant 0 : index
    %232 = vector.load %arg4[%c0_69, %231, %c0_70, %c0_71] : memref<1x8x2x128xf32, #tpu.memory_space<vmem>>, vector<1x1x2x128xf32>
    %233 = vector.shape_cast %232 : vector<1x1x2x128xf32> to vector<2x128xf32>
    %234 = vector.shape_cast %230 : vector<2x128xf32> to vector<1x1x2x128xf32>
    tpu.vector_store %arg4[%c0_69, %231, %c0_70, %c0_71], %234 {strides = array<i32>} : memref<1x8x2x128xf32, #tpu.memory_space<vmem>>, vector<1x1x2x128xf32>,
    %c6_i32 = arith.constant 6 : i32
    %c2_i32_72 = arith.constant 2 : i32
    %235 = arith.muli %c2_i32_72, %c6_i32 : i32
    %c7_i32_73 = arith.constant 7 : i32
    %236 = arith.subi %c7_i32_73, %235 : i32
    %237 = arith.muli %arg0, %236 : i32
    %238 = arith.addi %c6_i32, %237 : i32
    %239 = arith.index_cast %238 : i32 to index
    %c0_74 = arith.constant 0 : index
    %c0_75 = arith.constant 0 : index
    %240 = vector.load %arg2[%239, %c0_74, %c0_75] : memref<8x2x512xf32, #tpu.memory_space<vmem>>, vector<1x2x512xf32>
    %241 = vector.shape_cast %240 : vector<1x2x512xf32> to vector<2x512xf32>
    %cst_76 = arith.constant dense<0.000000e+00> : vector<2x512xf32>
    %242 = tpu.matmul %230, %4, %cst_76 {dimension_numbers = #tpu.dot_dimension_numbers<[1], [0], [0], [1], [0, 0, 1, 1], [], []>} : vector<2x128xf32>, vector<128x512xf32>, vector<2x512xf32> -> vector<2x512xf32>
    %243 = arith.addf %241, %242 : vector<2x512xf32>
    %244 = vector.extract_strided_slice %243 {offsets = [0, 0], sizes = [2, 128], strides = [1, 1]} : vector<2x512xf32> to vector<2x128xf32>
    %245 = arith.negf %244 : vector<2x128xf32>
    %246 = math.exp %245 : vector<2x128xf32>
    %cst_77 = arith.constant 1.000000e+00 : f32
    %247 = vector.broadcast %cst_77 : f32 to vector<2x128xf32>
    %248 = arith.addf %247, %246 : vector<2x128xf32>
    %249 = arith.divf %247, %248 : vector<2x128xf32>
    %250 = vector.extract_strided_slice %243 {offsets = [0, 128], sizes = [2, 128], strides = [1, 1]} : vector<2x512xf32> to vector<2x128xf32>
    %251 = arith.negf %250 : vector<2x128xf32>
    %252 = math.exp %251 : vector<2x128xf32>
    %cst_78 = arith.constant 1.000000e+00 : f32
    %253 = vector.broadcast %cst_78 : f32 to vector<2x128xf32>
    %254 = arith.addf %253, %252 : vector<2x128xf32>
    %255 = arith.divf %253, %254 : vector<2x128xf32>
    %256 = vector.extract_strided_slice %243 {offsets = [0, 256], sizes = [2, 128], strides = [1, 1]} : vector<2x512xf32> to vector<2x128xf32>
    %257 = math.tanh %256 : vector<2x128xf32>
    %258 = vector.extract_strided_slice %243 {offsets = [0, 384], sizes = [2, 128], strides = [1, 1]} : vector<2x512xf32> to vector<2x128xf32>
    %259 = arith.negf %258 : vector<2x128xf32>
    %260 = math.exp %259 : vector<2x128xf32>
    %cst_79 = arith.constant 1.000000e+00 : f32
    %261 = vector.broadcast %cst_79 : f32 to vector<2x128xf32>
    %262 = arith.addf %261, %260 : vector<2x128xf32>
    %263 = arith.divf %261, %262 : vector<2x128xf32>
    %264 = arith.mulf %255, %228 : vector<2x128xf32>
    %265 = arith.mulf %249, %257 : vector<2x128xf32>
    %266 = arith.addf %264, %265 : vector<2x128xf32>
    %267 = math.tanh %266 : vector<2x128xf32>
    %268 = arith.mulf %263, %267 : vector<2x128xf32>
    %c0_80 = arith.constant 0 : index
    %269 = arith.index_cast %238 : i32 to index
    %c0_81 = arith.constant 0 : index
    %c0_82 = arith.constant 0 : index
    %270 = vector.load %arg4[%c0_80, %269, %c0_81, %c0_82] : memref<1x8x2x128xf32, #tpu.memory_space<vmem>>, vector<1x1x2x128xf32>
    %271 = vector.shape_cast %270 : vector<1x1x2x128xf32> to vector<2x128xf32>
    %272 = vector.shape_cast %268 : vector<2x128xf32> to vector<1x1x2x128xf32>
    tpu.vector_store %arg4[%c0_80, %269, %c0_81, %c0_82], %272 {strides = array<i32>} : memref<1x8x2x128xf32, #tpu.memory_space<vmem>>, vector<1x1x2x128xf32>,
    %c7_i32_83 = arith.constant 7 : i32
    %c2_i32_84 = arith.constant 2 : i32
    %273 = arith.muli %c2_i32_84, %c7_i32_83 : i32
    %c7_i32_85 = arith.constant 7 : i32
    %274 = arith.subi %c7_i32_85, %273 : i32
    %275 = arith.muli %arg0, %274 : i32
    %276 = arith.addi %c7_i32_83, %275 : i32
    %277 = arith.index_cast %276 : i32 to index
    %c0_86 = arith.constant 0 : index
    %c0_87 = arith.constant 0 : index
    %278 = vector.load %arg2[%277, %c0_86, %c0_87] : memref<8x2x512xf32, #tpu.memory_space<vmem>>, vector<1x2x512xf32>
    %279 = vector.shape_cast %278 : vector<1x2x512xf32> to vector<2x512xf32>
    %cst_88 = arith.constant dense<0.000000e+00> : vector<2x512xf32>
    %280 = tpu.matmul %268, %4, %cst_88 {dimension_numbers = #tpu.dot_dimension_numbers<[1], [0], [0], [1], [0, 0, 1, 1], [], []>} : vector<2x128xf32>, vector<128x512xf32>, vector<2x512xf32> -> vector<2x512xf32>
    %281 = arith.addf %279, %280 : vector<2x512xf32>
    %282 = vector.extract_strided_slice %281 {offsets = [0, 0], sizes = [2, 128], strides = [1, 1]} : vector<2x512xf32> to vector<2x128xf32>
    %283 = arith.negf %282 : vector<2x128xf32>
    %284 = math.exp %283 : vector<2x128xf32>
    %cst_89 = arith.constant 1.000000e+00 : f32
    %285 = vector.broadcast %cst_89 : f32 to vector<2x128xf32>
    %286 = arith.addf %285, %284 : vector<2x128xf32>
    %287 = arith.divf %285, %286 : vector<2x128xf32>
    %288 = vector.extract_strided_slice %281 {offsets = [0, 128], sizes = [2, 128], strides = [1, 1]} : vector<2x512xf32> to vector<2x128xf32>
    %289 = arith.negf %288 : vector<2x128xf32>
    %290 = math.exp %289 : vector<2x128xf32>
    %cst_90 = arith.constant 1.000000e+00 : f32
    %291 = vector.broadcast %cst_90 : f32 to vector<2x128xf32>
    %292 = arith.addf %291, %290 : vector<2x128xf32>
    %293 = arith.divf %291, %292 : vector<2x128xf32>
    %294 = vector.extract_strided_slice %281 {offsets = [0, 256], sizes = [2, 128], strides = [1, 1]} : vector<2x512xf32> to vector<2x128xf32>
    %295 = math.tanh %294 : vector<2x128xf32>
    %296 = vector.extract_strided_slice %281 {offsets = [0, 384], sizes = [2, 128], strides = [1, 1]} : vector<2x512xf32> to vector<2x128xf32>
    %297 = arith.negf %296 : vector<2x128xf32>
    %298 = math.exp %297 : vector<2x128xf32>
    %cst_91 = arith.constant 1.000000e+00 : f32
    %299 = vector.broadcast %cst_91 : f32 to vector<2x128xf32>
    %300 = arith.addf %299, %298 : vector<2x128xf32>
    %301 = arith.divf %299, %300 : vector<2x128xf32>
    %302 = arith.mulf %293, %266 : vector<2x128xf32>
    %303 = arith.mulf %287, %295 : vector<2x128xf32>
    %304 = arith.addf %302, %303 : vector<2x128xf32>
    %305 = math.tanh %304 : vector<2x128xf32>
    %306 = arith.mulf %301, %305 : vector<2x128xf32>
    %c0_92 = arith.constant 0 : index
    %307 = arith.index_cast %276 : i32 to index
    %c0_93 = arith.constant 0 : index
    %c0_94 = arith.constant 0 : index
    %308 = vector.load %arg4[%c0_92, %307, %c0_93, %c0_94] : memref<1x8x2x128xf32, #tpu.memory_space<vmem>>, vector<1x1x2x128xf32>
    %309 = vector.shape_cast %308 : vector<1x1x2x128xf32> to vector<2x128xf32>
    %310 = vector.shape_cast %306 : vector<2x128xf32> to vector<1x1x2x128xf32>
    tpu.vector_store %arg4[%c0_92, %307, %c0_93, %c0_94], %310 {strides = array<i32>} : memref<1x8x2x128xf32, #tpu.memory_space<vmem>>, vector<1x1x2x128xf32>,
    %c8_i32 = arith.constant 8 : i32
    %c0_95 = arith.constant 0 : index
    %c0_96 = arith.constant 0 : index
    %311 = vector.load %arg5[%c0_95, %c0_96] : memref<2x128xf32, #tpu.memory_space<vmem>>, vector<2x128xf32>
    tpu.vector_store %arg5[%c0_95, %c0_96], %306 {strides = array<i32>} : memref<2x128xf32, #tpu.memory_space<vmem>>, vector<2x128xf32>,
    %c0_97 = arith.constant 0 : index
    %c0_98 = arith.constant 0 : index
    %312 = vector.load %arg6[%c0_97, %c0_98] : memref<2x128xf32, #tpu.memory_space<vmem>>, vector<2x128xf32>
    tpu.vector_store %arg6[%c0_97, %c0_98], %304 {strides = array<i32>} : memref<2x128xf32, #tpu.memory_space<vmem>>, vector<2x128xf32>,
    return
  }
  func.func @transform_0(%arg0: i32, %arg1: i32) -> (i32, i32, i32) {
    %c2_i32 = arith.constant 2 : i32
    %0 = arith.muli %c2_i32, %arg1 : i32
    %c1_i32 = arith.constant 1 : i32
    %1 = arith.subi %c1_i32, %0 : i32
    %2 = arith.muli %arg0, %1 : i32
    %3 = arith.addi %arg1, %2 : i32
    %c0_i32 = arith.constant 0 : i32
    %c0_i32_0 = arith.constant 0 : i32
    return %3, %c0_i32, %arg0 : i32, i32, i32
  }
  func.func @transform_1(%arg0: i32, %arg1: i32) -> (i32, i32, i32) {
    %c0_i32 = arith.constant 0 : i32
    %c0_i32_0 = arith.constant 0 : i32
    %c0_i32_1 = arith.constant 0 : i32
    return %arg0, %c0_i32, %c0_i32_0 : i32, i32, i32
  }
  func.func @transform_2(%arg0: i32, %arg1: i32) -> (i32, i32, i32, i32) {
    %c2_i32 = arith.constant 2 : i32
    %0 = arith.muli %c2_i32, %arg1 : i32
    %c1_i32 = arith.constant 1 : i32
    %1 = arith.subi %c1_i32, %0 : i32
    %2 = arith.muli %arg0, %1 : i32
    %3 = arith.addi %arg1, %2 : i32
    %c0_i32 = arith.constant 0 : i32
    %c0_i32_0 = arith.constant 0 : i32
    %c0_i32_1 = arith.constant 0 : i32
    return %arg0, %3, %c0_i32, %c0_i32_0 : i32, i32, i32, i32
  }
}

module attributes {stable_mosaic.version = 11 : i64} {
  func.func @lstm_dir_chunk_kernel(%arg0: i32, %arg1: i32, %arg2: memref<8x2x512xf32, #tpu.memory_space<vmem>>, %arg3: memref<1x128x512xf32, #tpu.memory_space<vmem>>, %arg4: memref<1x8x2x128xf32, #tpu.memory_space<vmem>>, %arg5: memref<2x128xf32, #tpu.memory_space<vmem>>, %arg6: memref<2x128xf32, #tpu.memory_space<vmem>>) attributes {dimension_semantics = [#tpu.dimension_semantics<parallel>, #tpu.dimension_semantics<arbitrary>], iteration_bounds = array<i64: 2, 2>, scalar_prefetch = 0 : i64, scratch_operands = 2 : i64, tpu.core_type = #tpu.core_type<tc>, window_params = [{transform_indices = @transform_0, window_bounds = array<i64: 8, 2, 512>}, {pipeline_mode = #tpu.pipeline_mode<synchronous>, transform_indices = @transform_1, window_bounds = array<i64: 1, 128, 512>}, {transform_indices = @transform_2, window_bounds = array<i64: 1, 8, 2, 128>}]} {
    %c0_i32 = arith.constant 0 : i32
    %0 = arith.cmpi eq, %arg1, %c0_i32 : i32
    %1 = arith.extui %0 : i1 to i32
    %c0_i32_0 = arith.constant 0 : i32
    %2 = arith.cmpi ne, %1, %c0_i32_0 : i32
    scf.if %2 {
      %cst_99 = arith.constant 0.000000e+00 : f32
      %313 = vector.broadcast %cst_99 : f32 to vector<2x128xf32>
      %c0_100 = arith.constant 0 : index
      %c0_101 = arith.constant 0 : index
      %314 = vector.load %arg5[%c0_100, %c0_101] : memref<2x128xf32, #tpu.memory_space<vmem>>, vector<2x128xf32>
      tpu.vector_store %arg5[%c0_100, %c0_101], %313 {strides = array<i32>} : memref<2x128xf32, #tpu.memory_space<vmem>>, vector<2x128xf32>,
      %cst_102 = arith.constant 0.000000e+00 : f32
      %315 = vector.broadcast %cst_102 : f32 to vector<2x128xf32>
      %c0_103 = arith.constant 0 : index
      %c0_104 = arith.constant 0 : index
      %316 = vector.load %arg6[%c0_103, %c0_104] : memref<2x128xf32, #tpu.memory_space<vmem>>, vector<2x128xf32>
      tpu.vector_store %arg6[%c0_103, %c0_104], %315 {strides = array<i32>} : memref<2x128xf32, #tpu.memory_space<vmem>>, vector<2x128xf32>,
    } else {
    }
    %c0 = arith.constant 0 : index
    %c0_1 = arith.constant 0 : index
    %c0_2 = arith.constant 0 : index
    %3 = vector.load %arg3[%c0, %c0_1, %c0_2] : memref<1x128x512xf32, #tpu.memory_space<vmem>>, vector<1x128x512xf32>
    %4 = vector.shape_cast %3 : vector<1x128x512xf32> to vector<128x512xf32>
    %c0_3 = arith.constant 0 : index
    %c0_4 = arith.constant 0 : index
    %5 = vector.load %arg5[%c0_3, %c0_4] : memref<2x128xf32, #tpu.memory_space<vmem>>, vector<2x128xf32>
    %c0_5 = arith.constant 0 : index
    %c0_6 = arith.constant 0 : index
    %6 = vector.load %arg6[%c0_5, %c0_6] : memref<2x128xf32, #tpu.memory_space<vmem>>, vector<2x128xf32>
    %c0_i32_7 = arith.constant 0 : i32
    %c2_i32 = arith.constant 2 : i32
    %7 = arith.muli %c2_i32, %c0_i32_7 : i32
    %c7_i32 = arith.constant 7 : i32
    %8 = arith.subi %c7_i32, %7 : i32
    %9 = arith.muli %arg0, %8 : i32
    %10 = arith.addi %c0_i32_7, %9 : i32
    %11 = arith.index_cast %10 : i32 to index
    %c0_8 = arith.constant 0 : index
    %c0_9 = arith.constant 0 : index
    %12 = vector.load %arg2[%11, %c0_8, %c0_9] : memref<8x2x512xf32, #tpu.memory_space<vmem>>, vector<1x2x512xf32>
    %13 = vector.shape_cast %12 : vector<1x2x512xf32> to vector<2x512xf32>
    %cst = arith.constant dense<0.000000e+00> : vector<2x512xf32>
    %14 = tpu.matmul %5, %4, %cst {dimension_numbers = #tpu.dot_dimension_numbers<[1], [0], [0], [1], [0, 0, 1, 1], [], []>} : vector<2x128xf32>, vector<128x512xf32>, vector<2x512xf32> -> vector<2x512xf32>
    %15 = arith.addf %13, %14 : vector<2x512xf32>
    %16 = vector.extract_strided_slice %15 {offsets = [0, 0], sizes = [2, 128], strides = [1, 1]} : vector<2x512xf32> to vector<2x128xf32>
    %17 = arith.negf %16 : vector<2x128xf32>
    %18 = math.exp %17 : vector<2x128xf32>
    %cst_10 = arith.constant 1.000000e+00 : f32
    %19 = vector.broadcast %cst_10 : f32 to vector<2x128xf32>
    %20 = arith.addf %19, %18 : vector<2x128xf32>
    %21 = arith.divf %19, %20 : vector<2x128xf32>
    %22 = vector.extract_strided_slice %15 {offsets = [0, 128], sizes = [2, 128], strides = [1, 1]} : vector<2x512xf32> to vector<2x128xf32>
    %23 = arith.negf %22 : vector<2x128xf32>
    %24 = math.exp %23 : vector<2x128xf32>
    %cst_11 = arith.constant 1.000000e+00 : f32
    %25 = vector.broadcast %cst_11 : f32 to vector<2x128xf32>
    %26 = arith.addf %25, %24 : vector<2x128xf32>
    %27 = arith.divf %25, %26 : vector<2x128xf32>
    %28 = vector.extract_strided_slice %15 {offsets = [0, 256], sizes = [2, 128], strides = [1, 1]} : vector<2x512xf32> to vector<2x128xf32>
    %29 = math.tanh %28 : vector<2x128xf32>
    %30 = vector.extract_strided_slice %15 {offsets = [0, 384], sizes = [2, 128], strides = [1, 1]} : vector<2x512xf32> to vector<2x128xf32>
    %31 = arith.negf %30 : vector<2x128xf32>
    %32 = math.exp %31 : vector<2x128xf32>
    %cst_12 = arith.constant 1.000000e+00 : f32
    %33 = vector.broadcast %cst_12 : f32 to vector<2x128xf32>
    %34 = arith.addf %33, %32 : vector<2x128xf32>
    %35 = arith.divf %33, %34 : vector<2x128xf32>
    %36 = arith.mulf %27, %6 : vector<2x128xf32>
    %37 = arith.mulf %21, %29 : vector<2x128xf32>
    %38 = arith.addf %36, %37 : vector<2x128xf32>
    %39 = math.tanh %38 : vector<2x128xf32>
    %40 = arith.mulf %35, %39 : vector<2x128xf32>
    %c0_13 = arith.constant 0 : index
    %41 = arith.index_cast %10 : i32 to index
    %c0_14 = arith.constant 0 : index
    %c0_15 = arith.constant 0 : index
    %42 = vector.load %arg4[%c0_13, %41, %c0_14, %c0_15] : memref<1x8x2x128xf32, #tpu.memory_space<vmem>>, vector<1x1x2x128xf32>
    %43 = vector.shape_cast %42 : vector<1x1x2x128xf32> to vector<2x128xf32>
    %44 = vector.shape_cast %40 : vector<2x128xf32> to vector<1x1x2x128xf32>
    tpu.vector_store %arg4[%c0_13, %41, %c0_14, %c0_15], %44 {strides = array<i32>} : memref<1x8x2x128xf32, #tpu.memory_space<vmem>>, vector<1x1x2x128xf32>,
    %c1_i32 = arith.constant 1 : i32
    %c2_i32_16 = arith.constant 2 : i32
    %45 = arith.muli %c2_i32_16, %c1_i32 : i32
    %c7_i32_17 = arith.constant 7 : i32
    %46 = arith.subi %c7_i32_17, %45 : i32
    %47 = arith.muli %arg0, %46 : i32
    %48 = arith.addi %c1_i32, %47 : i32
    %49 = arith.index_cast %48 : i32 to index
    %c0_18 = arith.constant 0 : index
    %c0_19 = arith.constant 0 : index
    %50 = vector.load %arg2[%49, %c0_18, %c0_19] : memref<8x2x512xf32, #tpu.memory_space<vmem>>, vector<1x2x512xf32>
    %51 = vector.shape_cast %50 : vector<1x2x512xf32> to vector<2x512xf32>
    %cst_20 = arith.constant dense<0.000000e+00> : vector<2x512xf32>
    %52 = tpu.matmul %40, %4, %cst_20 {dimension_numbers = #tpu.dot_dimension_numbers<[1], [0], [0], [1], [0, 0, 1, 1], [], []>} : vector<2x128xf32>, vector<128x512xf32>, vector<2x512xf32> -> vector<2x512xf32>
    %53 = arith.addf %51, %52 : vector<2x512xf32>
    %54 = vector.extract_strided_slice %53 {offsets = [0, 0], sizes = [2, 128], strides = [1, 1]} : vector<2x512xf32> to vector<2x128xf32>
    %55 = arith.negf %54 : vector<2x128xf32>
    %56 = math.exp %55 : vector<2x128xf32>
    %cst_21 = arith.constant 1.000000e+00 : f32
    %57 = vector.broadcast %cst_21 : f32 to vector<2x128xf32>
    %58 = arith.addf %57, %56 : vector<2x128xf32>
    %59 = arith.divf %57, %58 : vector<2x128xf32>
    %60 = vector.extract_strided_slice %53 {offsets = [0, 128], sizes = [2, 128], strides = [1, 1]} : vector<2x512xf32> to vector<2x128xf32>
    %61 = arith.negf %60 : vector<2x128xf32>
    %62 = math.exp %61 : vector<2x128xf32>
    %cst_22 = arith.constant 1.000000e+00 : f32
    %63 = vector.broadcast %cst_22 : f32 to vector<2x128xf32>
    %64 = arith.addf %63, %62 : vector<2x128xf32>
    %65 = arith.divf %63, %64 : vector<2x128xf32>
    %66 = vector.extract_strided_slice %53 {offsets = [0, 256], sizes = [2, 128], strides = [1, 1]} : vector<2x512xf32> to vector<2x128xf32>
    %67 = math.tanh %66 : vector<2x128xf32>
    %68 = vector.extract_strided_slice %53 {offsets = [0, 384], sizes = [2, 128], strides = [1, 1]} : vector<2x512xf32> to vector<2x128xf32>
    %69 = arith.negf %68 : vector<2x128xf32>
    %70 = math.exp %69 : vector<2x128xf32>
    %cst_23 = arith.constant 1.000000e+00 : f32
    %71 = vector.broadcast %cst_23 : f32 to vector<2x128xf32>
    %72 = arith.addf %71, %70 : vector<2x128xf32>
    %73 = arith.divf %71, %72 : vector<2x128xf32>
    %74 = arith.mulf %65, %38 : vector<2x128xf32>
    %75 = arith.mulf %59, %67 : vector<2x128xf32>
    %76 = arith.addf %74, %75 : vector<2x128xf32>
    %77 = math.tanh %76 : vector<2x128xf32>
    %78 = arith.mulf %73, %77 : vector<2x128xf32>
    %c0_24 = arith.constant 0 : index
    %79 = arith.index_cast %48 : i32 to index
    %c0_25 = arith.constant 0 : index
    %c0_26 = arith.constant 0 : index
    %80 = vector.load %arg4[%c0_24, %79, %c0_25, %c0_26] : memref<1x8x2x128xf32, #tpu.memory_space<vmem>>, vector<1x1x2x128xf32>
    %81 = vector.shape_cast %80 : vector<1x1x2x128xf32> to vector<2x128xf32>
    %82 = vector.shape_cast %78 : vector<2x128xf32> to vector<1x1x2x128xf32>
    tpu.vector_store %arg4[%c0_24, %79, %c0_25, %c0_26], %82 {strides = array<i32>} : memref<1x8x2x128xf32, #tpu.memory_space<vmem>>, vector<1x1x2x128xf32>,
    %c2_i32_27 = arith.constant 2 : i32
    %c2_i32_28 = arith.constant 2 : i32
    %83 = arith.muli %c2_i32_28, %c2_i32_27 : i32
    %c7_i32_29 = arith.constant 7 : i32
    %84 = arith.subi %c7_i32_29, %83 : i32
    %85 = arith.muli %arg0, %84 : i32
    %86 = arith.addi %c2_i32_27, %85 : i32
    %87 = arith.index_cast %86 : i32 to index
    %c0_30 = arith.constant 0 : index
    %c0_31 = arith.constant 0 : index
    %88 = vector.load %arg2[%87, %c0_30, %c0_31] : memref<8x2x512xf32, #tpu.memory_space<vmem>>, vector<1x2x512xf32>
    %89 = vector.shape_cast %88 : vector<1x2x512xf32> to vector<2x512xf32>
    %cst_32 = arith.constant dense<0.000000e+00> : vector<2x512xf32>
    %90 = tpu.matmul %78, %4, %cst_32 {dimension_numbers = #tpu.dot_dimension_numbers<[1], [0], [0], [1], [0, 0, 1, 1], [], []>} : vector<2x128xf32>, vector<128x512xf32>, vector<2x512xf32> -> vector<2x512xf32>
    %91 = arith.addf %89, %90 : vector<2x512xf32>
    %92 = vector.extract_strided_slice %91 {offsets = [0, 0], sizes = [2, 128], strides = [1, 1]} : vector<2x512xf32> to vector<2x128xf32>
    %93 = arith.negf %92 : vector<2x128xf32>
    %94 = math.exp %93 : vector<2x128xf32>
    %cst_33 = arith.constant 1.000000e+00 : f32
    %95 = vector.broadcast %cst_33 : f32 to vector<2x128xf32>
    %96 = arith.addf %95, %94 : vector<2x128xf32>
    %97 = arith.divf %95, %96 : vector<2x128xf32>
    %98 = vector.extract_strided_slice %91 {offsets = [0, 128], sizes = [2, 128], strides = [1, 1]} : vector<2x512xf32> to vector<2x128xf32>
    %99 = arith.negf %98 : vector<2x128xf32>
    %100 = math.exp %99 : vector<2x128xf32>
    %cst_34 = arith.constant 1.000000e+00 : f32
    %101 = vector.broadcast %cst_34 : f32 to vector<2x128xf32>
    %102 = arith.addf %101, %100 : vector<2x128xf32>
    %103 = arith.divf %101, %102 : vector<2x128xf32>
    %104 = vector.extract_strided_slice %91 {offsets = [0, 256], sizes = [2, 128], strides = [1, 1]} : vector<2x512xf32> to vector<2x128xf32>
    %105 = math.tanh %104 : vector<2x128xf32>
    %106 = vector.extract_strided_slice %91 {offsets = [0, 384], sizes = [2, 128], strides = [1, 1]} : vector<2x512xf32> to vector<2x128xf32>
    %107 = arith.negf %106 : vector<2x128xf32>
    %108 = math.exp %107 : vector<2x128xf32>
    %cst_35 = arith.constant 1.000000e+00 : f32
    %109 = vector.broadcast %cst_35 : f32 to vector<2x128xf32>
    %110 = arith.addf %109, %108 : vector<2x128xf32>
    %111 = arith.divf %109, %110 : vector<2x128xf32>
    %112 = arith.mulf %103, %76 : vector<2x128xf32>
    %113 = arith.mulf %97, %105 : vector<2x128xf32>
    %114 = arith.addf %112, %113 : vector<2x128xf32>
    %115 = math.tanh %114 : vector<2x128xf32>
    %116 = arith.mulf %111, %115 : vector<2x128xf32>
    %c0_36 = arith.constant 0 : index
    %117 = arith.index_cast %86 : i32 to index
    %c0_37 = arith.constant 0 : index
    %c0_38 = arith.constant 0 : index
    %118 = vector.load %arg4[%c0_36, %117, %c0_37, %c0_38] : memref<1x8x2x128xf32, #tpu.memory_space<vmem>>, vector<1x1x2x128xf32>
    %119 = vector.shape_cast %118 : vector<1x1x2x128xf32> to vector<2x128xf32>
    %120 = vector.shape_cast %116 : vector<2x128xf32> to vector<1x1x2x128xf32>
    tpu.vector_store %arg4[%c0_36, %117, %c0_37, %c0_38], %120 {strides = array<i32>} : memref<1x8x2x128xf32, #tpu.memory_space<vmem>>, vector<1x1x2x128xf32>,
    %c3_i32 = arith.constant 3 : i32
    %c2_i32_39 = arith.constant 2 : i32
    %121 = arith.muli %c2_i32_39, %c3_i32 : i32
    %c7_i32_40 = arith.constant 7 : i32
    %122 = arith.subi %c7_i32_40, %121 : i32
    %123 = arith.muli %arg0, %122 : i32
    %124 = arith.addi %c3_i32, %123 : i32
    %125 = arith.index_cast %124 : i32 to index
    %c0_41 = arith.constant 0 : index
    %c0_42 = arith.constant 0 : index
    %126 = vector.load %arg2[%125, %c0_41, %c0_42] : memref<8x2x512xf32, #tpu.memory_space<vmem>>, vector<1x2x512xf32>
    %127 = vector.shape_cast %126 : vector<1x2x512xf32> to vector<2x512xf32>
    %cst_43 = arith.constant dense<0.000000e+00> : vector<2x512xf32>
    %128 = tpu.matmul %116, %4, %cst_43 {dimension_numbers = #tpu.dot_dimension_numbers<[1], [0], [0], [1], [0, 0, 1, 1], [], []>} : vector<2x128xf32>, vector<128x512xf32>, vector<2x512xf32> -> vector<2x512xf32>
    %129 = arith.addf %127, %128 : vector<2x512xf32>
    %130 = vector.extract_strided_slice %129 {offsets = [0, 0], sizes = [2, 128], strides = [1, 1]} : vector<2x512xf32> to vector<2x128xf32>
    %131 = arith.negf %130 : vector<2x128xf32>
    %132 = math.exp %131 : vector<2x128xf32>
    %cst_44 = arith.constant 1.000000e+00 : f32
    %133 = vector.broadcast %cst_44 : f32 to vector<2x128xf32>
    %134 = arith.addf %133, %132 : vector<2x128xf32>
    %135 = arith.divf %133, %134 : vector<2x128xf32>
    %136 = vector.extract_strided_slice %129 {offsets = [0, 128], sizes = [2, 128], strides = [1, 1]} : vector<2x512xf32> to vector<2x128xf32>
    %137 = arith.negf %136 : vector<2x128xf32>
    %138 = math.exp %137 : vector<2x128xf32>
    %cst_45 = arith.constant 1.000000e+00 : f32
    %139 = vector.broadcast %cst_45 : f32 to vector<2x128xf32>
    %140 = arith.addf %139, %138 : vector<2x128xf32>
    %141 = arith.divf %139, %140 : vector<2x128xf32>
    %142 = vector.extract_strided_slice %129 {offsets = [0, 256], sizes = [2, 128], strides = [1, 1]} : vector<2x512xf32> to vector<2x128xf32>
    %143 = math.tanh %142 : vector<2x128xf32>
    %144 = vector.extract_strided_slice %129 {offsets = [0, 384], sizes = [2, 128], strides = [1, 1]} : vector<2x512xf32> to vector<2x128xf32>
    %145 = arith.negf %144 : vector<2x128xf32>
    %146 = math.exp %145 : vector<2x128xf32>
    %cst_46 = arith.constant 1.000000e+00 : f32
    %147 = vector.broadcast %cst_46 : f32 to vector<2x128xf32>
    %148 = arith.addf %147, %146 : vector<2x128xf32>
    %149 = arith.divf %147, %148 : vector<2x128xf32>
    %150 = arith.mulf %141, %114 : vector<2x128xf32>
    %151 = arith.mulf %135, %143 : vector<2x128xf32>
    %152 = arith.addf %150, %151 : vector<2x128xf32>
    %153 = math.tanh %152 : vector<2x128xf32>
    %154 = arith.mulf %149, %153 : vector<2x128xf32>
    %c0_47 = arith.constant 0 : index
    %155 = arith.index_cast %124 : i32 to index
    %c0_48 = arith.constant 0 : index
    %c0_49 = arith.constant 0 : index
    %156 = vector.load %arg4[%c0_47, %155, %c0_48, %c0_49] : memref<1x8x2x128xf32, #tpu.memory_space<vmem>>, vector<1x1x2x128xf32>
    %157 = vector.shape_cast %156 : vector<1x1x2x128xf32> to vector<2x128xf32>
    %158 = vector.shape_cast %154 : vector<2x128xf32> to vector<1x1x2x128xf32>
    tpu.vector_store %arg4[%c0_47, %155, %c0_48, %c0_49], %158 {strides = array<i32>} : memref<1x8x2x128xf32, #tpu.memory_space<vmem>>, vector<1x1x2x128xf32>,
    %c4_i32 = arith.constant 4 : i32
    %c2_i32_50 = arith.constant 2 : i32
    %159 = arith.muli %c2_i32_50, %c4_i32 : i32
    %c7_i32_51 = arith.constant 7 : i32
    %160 = arith.subi %c7_i32_51, %159 : i32
    %161 = arith.muli %arg0, %160 : i32
    %162 = arith.addi %c4_i32, %161 : i32
    %163 = arith.index_cast %162 : i32 to index
    %c0_52 = arith.constant 0 : index
    %c0_53 = arith.constant 0 : index
    %164 = vector.load %arg2[%163, %c0_52, %c0_53] : memref<8x2x512xf32, #tpu.memory_space<vmem>>, vector<1x2x512xf32>
    %165 = vector.shape_cast %164 : vector<1x2x512xf32> to vector<2x512xf32>
    %cst_54 = arith.constant dense<0.000000e+00> : vector<2x512xf32>
    %166 = tpu.matmul %154, %4, %cst_54 {dimension_numbers = #tpu.dot_dimension_numbers<[1], [0], [0], [1], [0, 0, 1, 1], [], []>} : vector<2x128xf32>, vector<128x512xf32>, vector<2x512xf32> -> vector<2x512xf32>
    %167 = arith.addf %165, %166 : vector<2x512xf32>
    %168 = vector.extract_strided_slice %167 {offsets = [0, 0], sizes = [2, 128], strides = [1, 1]} : vector<2x512xf32> to vector<2x128xf32>
    %169 = arith.negf %168 : vector<2x128xf32>
    %170 = math.exp %169 : vector<2x128xf32>
    %cst_55 = arith.constant 1.000000e+00 : f32
    %171 = vector.broadcast %cst_55 : f32 to vector<2x128xf32>
    %172 = arith.addf %171, %170 : vector<2x128xf32>
    %173 = arith.divf %171, %172 : vector<2x128xf32>
    %174 = vector.extract_strided_slice %167 {offsets = [0, 128], sizes = [2, 128], strides = [1, 1]} : vector<2x512xf32> to vector<2x128xf32>
    %175 = arith.negf %174 : vector<2x128xf32>
    %176 = math.exp %175 : vector<2x128xf32>
    %cst_56 = arith.constant 1.000000e+00 : f32
    %177 = vector.broadcast %cst_56 : f32 to vector<2x128xf32>
    %178 = arith.addf %177, %176 : vector<2x128xf32>
    %179 = arith.divf %177, %178 : vector<2x128xf32>
    %180 = vector.extract_strided_slice %167 {offsets = [0, 256], sizes = [2, 128], strides = [1, 1]} : vector<2x512xf32> to vector<2x128xf32>
    %181 = math.tanh %180 : vector<2x128xf32>
    %182 = vector.extract_strided_slice %167 {offsets = [0, 384], sizes = [2, 128], strides = [1, 1]} : vector<2x512xf32> to vector<2x128xf32>
    %183 = arith.negf %182 : vector<2x128xf32>
    %184 = math.exp %183 : vector<2x128xf32>
    %cst_57 = arith.constant 1.000000e+00 : f32
    %185 = vector.broadcast %cst_57 : f32 to vector<2x128xf32>
    %186 = arith.addf %185, %184 : vector<2x128xf32>
    %187 = arith.divf %185, %186 : vector<2x128xf32>
    %188 = arith.mulf %179, %152 : vector<2x128xf32>
    %189 = arith.mulf %173, %181 : vector<2x128xf32>
    %190 = arith.addf %188, %189 : vector<2x128xf32>
    %191 = math.tanh %190 : vector<2x128xf32>
    %192 = arith.mulf %187, %191 : vector<2x128xf32>
    %c0_58 = arith.constant 0 : index
    %193 = arith.index_cast %162 : i32 to index
    %c0_59 = arith.constant 0 : index
    %c0_60 = arith.constant 0 : index
    %194 = vector.load %arg4[%c0_58, %193, %c0_59, %c0_60] : memref<1x8x2x128xf32, #tpu.memory_space<vmem>>, vector<1x1x2x128xf32>
    %195 = vector.shape_cast %194 : vector<1x1x2x128xf32> to vector<2x128xf32>
    %196 = vector.shape_cast %192 : vector<2x128xf32> to vector<1x1x2x128xf32>
    tpu.vector_store %arg4[%c0_58, %193, %c0_59, %c0_60], %196 {strides = array<i32>} : memref<1x8x2x128xf32, #tpu.memory_space<vmem>>, vector<1x1x2x128xf32>,
    %c5_i32 = arith.constant 5 : i32
    %c2_i32_61 = arith.constant 2 : i32
    %197 = arith.muli %c2_i32_61, %c5_i32 : i32
    %c7_i32_62 = arith.constant 7 : i32
    %198 = arith.subi %c7_i32_62, %197 : i32
    %199 = arith.muli %arg0, %198 : i32
    %200 = arith.addi %c5_i32, %199 : i32
    %201 = arith.index_cast %200 : i32 to index
    %c0_63 = arith.constant 0 : index
    %c0_64 = arith.constant 0 : index
    %202 = vector.load %arg2[%201, %c0_63, %c0_64] : memref<8x2x512xf32, #tpu.memory_space<vmem>>, vector<1x2x512xf32>
    %203 = vector.shape_cast %202 : vector<1x2x512xf32> to vector<2x512xf32>
    %cst_65 = arith.constant dense<0.000000e+00> : vector<2x512xf32>
    %204 = tpu.matmul %192, %4, %cst_65 {dimension_numbers = #tpu.dot_dimension_numbers<[1], [0], [0], [1], [0, 0, 1, 1], [], []>} : vector<2x128xf32>, vector<128x512xf32>, vector<2x512xf32> -> vector<2x512xf32>
    %205 = arith.addf %203, %204 : vector<2x512xf32>
    %206 = vector.extract_strided_slice %205 {offsets = [0, 0], sizes = [2, 128], strides = [1, 1]} : vector<2x512xf32> to vector<2x128xf32>
    %207 = arith.negf %206 : vector<2x128xf32>
    %208 = math.exp %207 : vector<2x128xf32>
    %cst_66 = arith.constant 1.000000e+00 : f32
    %209 = vector.broadcast %cst_66 : f32 to vector<2x128xf32>
    %210 = arith.addf %209, %208 : vector<2x128xf32>
    %211 = arith.divf %209, %210 : vector<2x128xf32>
    %212 = vector.extract_strided_slice %205 {offsets = [0, 128], sizes = [2, 128], strides = [1, 1]} : vector<2x512xf32> to vector<2x128xf32>
    %213 = arith.negf %212 : vector<2x128xf32>
    %214 = math.exp %213 : vector<2x128xf32>
    %cst_67 = arith.constant 1.000000e+00 : f32
    %215 = vector.broadcast %cst_67 : f32 to vector<2x128xf32>
    %216 = arith.addf %215, %214 : vector<2x128xf32>
    %217 = arith.divf %215, %216 : vector<2x128xf32>
    %218 = vector.extract_strided_slice %205 {offsets = [0, 256], sizes = [2, 128], strides = [1, 1]} : vector<2x512xf32> to vector<2x128xf32>
    %219 = math.tanh %218 : vector<2x128xf32>
    %220 = vector.extract_strided_slice %205 {offsets = [0, 384], sizes = [2, 128], strides = [1, 1]} : vector<2x512xf32> to vector<2x128xf32>
    %221 = arith.negf %220 : vector<2x128xf32>
    %222 = math.exp %221 : vector<2x128xf32>
    %cst_68 = arith.constant 1.000000e+00 : f32
    %223 = vector.broadcast %cst_68 : f32 to vector<2x128xf32>
    %224 = arith.addf %223, %222 : vector<2x128xf32>
    %225 = arith.divf %223, %224 : vector<2x128xf32>
    %226 = arith.mulf %217, %190 : vector<2x128xf32>
    %227 = arith.mulf %211, %219 : vector<2x128xf32>
    %228 = arith.addf %226, %227 : vector<2x128xf32>
    %229 = math.tanh %228 : vector<2x128xf32>
    %230 = arith.mulf %225, %229 : vector<2x128xf32>
    %c0_69 = arith.constant 0 : index
    %231 = arith.index_cast %200 : i32 to index
    %c0_70 = arith.constant 0 : index
    %c0_71 = arith.constant 0 : index
    %232 = vector.load %arg4[%c0_69, %231, %c0_70, %c0_71] : memref<1x8x2x128xf32, #tpu.memory_space<vmem>>, vector<1x1x2x128xf32>
    %233 = vector.shape_cast %232 : vector<1x1x2x128xf32> to vector<2x128xf32>
    %234 = vector.shape_cast %230 : vector<2x128xf32> to vector<1x1x2x128xf32>
    tpu.vector_store %arg4[%c0_69, %231, %c0_70, %c0_71], %234 {strides = array<i32>} : memref<1x8x2x128xf32, #tpu.memory_space<vmem>>, vector<1x1x2x128xf32>,
    %c6_i32 = arith.constant 6 : i32
    %c2_i32_72 = arith.constant 2 : i32
    %235 = arith.muli %c2_i32_72, %c6_i32 : i32
    %c7_i32_73 = arith.constant 7 : i32
    %236 = arith.subi %c7_i32_73, %235 : i32
    %237 = arith.muli %arg0, %236 : i32
    %238 = arith.addi %c6_i32, %237 : i32
    %239 = arith.index_cast %238 : i32 to index
    %c0_74 = arith.constant 0 : index
    %c0_75 = arith.constant 0 : index
    %240 = vector.load %arg2[%239, %c0_74, %c0_75] : memref<8x2x512xf32, #tpu.memory_space<vmem>>, vector<1x2x512xf32>
    %241 = vector.shape_cast %240 : vector<1x2x512xf32> to vector<2x512xf32>
    %cst_76 = arith.constant dense<0.000000e+00> : vector<2x512xf32>
    %242 = tpu.matmul %230, %4, %cst_76 {dimension_numbers = #tpu.dot_dimension_numbers<[1], [0], [0], [1], [0, 0, 1, 1], [], []>} : vector<2x128xf32>, vector<128x512xf32>, vector<2x512xf32> -> vector<2x512xf32>
    %243 = arith.addf %241, %242 : vector<2x512xf32>
    %244 = vector.extract_strided_slice %243 {offsets = [0, 0], sizes = [2, 128], strides = [1, 1]} : vector<2x512xf32> to vector<2x128xf32>
    %245 = arith.negf %244 : vector<2x128xf32>
    %246 = math.exp %245 : vector<2x128xf32>
    %cst_77 = arith.constant 1.000000e+00 : f32
    %247 = vector.broadcast %cst_77 : f32 to vector<2x128xf32>
    %248 = arith.addf %247, %246 : vector<2x128xf32>
    %249 = arith.divf %247, %248 : vector<2x128xf32>
    %250 = vector.extract_strided_slice %243 {offsets = [0, 128], sizes = [2, 128], strides = [1, 1]} : vector<2x512xf32> to vector<2x128xf32>
    %251 = arith.negf %250 : vector<2x128xf32>
    %252 = math.exp %251 : vector<2x128xf32>
    %cst_78 = arith.constant 1.000000e+00 : f32
    %253 = vector.broadcast %cst_78 : f32 to vector<2x128xf32>
    %254 = arith.addf %253, %252 : vector<2x128xf32>
    %255 = arith.divf %253, %254 : vector<2x128xf32>
    %256 = vector.extract_strided_slice %243 {offsets = [0, 256], sizes = [2, 128], strides = [1, 1]} : vector<2x512xf32> to vector<2x128xf32>
    %257 = math.tanh %256 : vector<2x128xf32>
    %258 = vector.extract_strided_slice %243 {offsets = [0, 384], sizes = [2, 128], strides = [1, 1]} : vector<2x512xf32> to vector<2x128xf32>
    %259 = arith.negf %258 : vector<2x128xf32>
    %260 = math.exp %259 : vector<2x128xf32>
    %cst_79 = arith.constant 1.000000e+00 : f32
    %261 = vector.broadcast %cst_79 : f32 to vector<2x128xf32>
    %262 = arith.addf %261, %260 : vector<2x128xf32>
    %263 = arith.divf %261, %262 : vector<2x128xf32>
    %264 = arith.mulf %255, %228 : vector<2x128xf32>
    %265 = arith.mulf %249, %257 : vector<2x128xf32>
    %266 = arith.addf %264, %265 : vector<2x128xf32>
    %267 = math.tanh %266 : vector<2x128xf32>
    %268 = arith.mulf %263, %267 : vector<2x128xf32>
    %c0_80 = arith.constant 0 : index
    %269 = arith.index_cast %238 : i32 to index
    %c0_81 = arith.constant 0 : index
    %c0_82 = arith.constant 0 : index
    %270 = vector.load %arg4[%c0_80, %269, %c0_81, %c0_82] : memref<1x8x2x128xf32, #tpu.memory_space<vmem>>, vector<1x1x2x128xf32>
    %271 = vector.shape_cast %270 : vector<1x1x2x128xf32> to vector<2x128xf32>
    %272 = vector.shape_cast %268 : vector<2x128xf32> to vector<1x1x2x128xf32>
    tpu.vector_store %arg4[%c0_80, %269, %c0_81, %c0_82], %272 {strides = array<i32>} : memref<1x8x2x128xf32, #tpu.memory_space<vmem>>, vector<1x1x2x128xf32>,
    %c7_i32_83 = arith.constant 7 : i32
    %c2_i32_84 = arith.constant 2 : i32
    %273 = arith.muli %c2_i32_84, %c7_i32_83 : i32
    %c7_i32_85 = arith.constant 7 : i32
    %274 = arith.subi %c7_i32_85, %273 : i32
    %275 = arith.muli %arg0, %274 : i32
    %276 = arith.addi %c7_i32_83, %275 : i32
    %277 = arith.index_cast %276 : i32 to index
    %c0_86 = arith.constant 0 : index
    %c0_87 = arith.constant 0 : index
    %278 = vector.load %arg2[%277, %c0_86, %c0_87] : memref<8x2x512xf32, #tpu.memory_space<vmem>>, vector<1x2x512xf32>
    %279 = vector.shape_cast %278 : vector<1x2x512xf32> to vector<2x512xf32>
    %cst_88 = arith.constant dense<0.000000e+00> : vector<2x512xf32>
    %280 = tpu.matmul %268, %4, %cst_88 {dimension_numbers = #tpu.dot_dimension_numbers<[1], [0], [0], [1], [0, 0, 1, 1], [], []>} : vector<2x128xf32>, vector<128x512xf32>, vector<2x512xf32> -> vector<2x512xf32>
    %281 = arith.addf %279, %280 : vector<2x512xf32>
    %282 = vector.extract_strided_slice %281 {offsets = [0, 0], sizes = [2, 128], strides = [1, 1]} : vector<2x512xf32> to vector<2x128xf32>
    %283 = arith.negf %282 : vector<2x128xf32>
    %284 = math.exp %283 : vector<2x128xf32>
    %cst_89 = arith.constant 1.000000e+00 : f32
    %285 = vector.broadcast %cst_89 : f32 to vector<2x128xf32>
    %286 = arith.addf %285, %284 : vector<2x128xf32>
    %287 = arith.divf %285, %286 : vector<2x128xf32>
    %288 = vector.extract_strided_slice %281 {offsets = [0, 128], sizes = [2, 128], strides = [1, 1]} : vector<2x512xf32> to vector<2x128xf32>
    %289 = arith.negf %288 : vector<2x128xf32>
    %290 = math.exp %289 : vector<2x128xf32>
    %cst_90 = arith.constant 1.000000e+00 : f32
    %291 = vector.broadcast %cst_90 : f32 to vector<2x128xf32>
    %292 = arith.addf %291, %290 : vector<2x128xf32>
    %293 = arith.divf %291, %292 : vector<2x128xf32>
    %294 = vector.extract_strided_slice %281 {offsets = [0, 256], sizes = [2, 128], strides = [1, 1]} : vector<2x512xf32> to vector<2x128xf32>
    %295 = math.tanh %294 : vector<2x128xf32>
    %296 = vector.extract_strided_slice %281 {offsets = [0, 384], sizes = [2, 128], strides = [1, 1]} : vector<2x512xf32> to vector<2x128xf32>
    %297 = arith.negf %296 : vector<2x128xf32>
    %298 = math.exp %297 : vector<2x128xf32>
    %cst_91 = arith.constant 1.000000e+00 : f32
    %299 = vector.broadcast %cst_91 : f32 to vector<2x128xf32>
    %300 = arith.addf %299, %298 : vector<2x128xf32>
    %301 = arith.divf %299, %300 : vector<2x128xf32>
    %302 = arith.mulf %293, %266 : vector<2x128xf32>
    %303 = arith.mulf %287, %295 : vector<2x128xf32>
    %304 = arith.addf %302, %303 : vector<2x128xf32>
    %305 = math.tanh %304 : vector<2x128xf32>
    %306 = arith.mulf %301, %305 : vector<2x128xf32>
    %c0_92 = arith.constant 0 : index
    %307 = arith.index_cast %276 : i32 to index
    %c0_93 = arith.constant 0 : index
    %c0_94 = arith.constant 0 : index
    %308 = vector.load %arg4[%c0_92, %307, %c0_93, %c0_94] : memref<1x8x2x128xf32, #tpu.memory_space<vmem>>, vector<1x1x2x128xf32>
    %309 = vector.shape_cast %308 : vector<1x1x2x128xf32> to vector<2x128xf32>
    %310 = vector.shape_cast %306 : vector<2x128xf32> to vector<1x1x2x128xf32>
    tpu.vector_store %arg4[%c0_92, %307, %c0_93, %c0_94], %310 {strides = array<i32>} : memref<1x8x2x128xf32, #tpu.memory_space<vmem>>, vector<1x1x2x128xf32>,
    %c8_i32 = arith.constant 8 : i32
    %c0_95 = arith.constant 0 : index
    %c0_96 = arith.constant 0 : index
    %311 = vector.load %arg5[%c0_95, %c0_96] : memref<2x128xf32, #tpu.memory_space<vmem>>, vector<2x128xf32>
    tpu.vector_store %arg5[%c0_95, %c0_96], %306 {strides = array<i32>} : memref<2x128xf32, #tpu.memory_space<vmem>>, vector<2x128xf32>,
    %c0_97 = arith.constant 0 : index
    %c0_98 = arith.constant 0 : index
    %312 = vector.load %arg6[%c0_97, %c0_98] : memref<2x128xf32, #tpu.memory_space<vmem>>, vector<2x128xf32>
    tpu.vector_store %arg6[%c0_97, %c0_98], %304 {strides = array<i32>} : memref<2x128xf32, #tpu.memory_space<vmem>>, vector<2x128xf32>,
    return
  }
  func.func @transform_0(%arg0: i32, %arg1: i32) -> (i32, i32, i32) {
    %c2_i32 = arith.constant 2 : i32
    %0 = arith.muli %c2_i32, %arg1 : i32
    %c1_i32 = arith.constant 1 : i32
    %1 = arith.subi %c1_i32, %0 : i32
    %2 = arith.muli %arg0, %1 : i32
    %3 = arith.addi %arg1, %2 : i32
    %c0_i32 = arith.constant 0 : i32
    %c0_i32_0 = arith.constant 0 : i32
    return %3, %c0_i32, %arg0 : i32, i32, i32
  }
  func.func @transform_1(%arg0: i32, %arg1: i32) -> (i32, i32, i32) {
    %c0_i32 = arith.constant 0 : i32
    %c0_i32_0 = arith.constant 0 : i32
    %c0_i32_1 = arith.constant 0 : i32
    return %arg0, %c0_i32, %c0_i32_0 : i32, i32, i32
  }
  func.func @transform_2(%arg0: i32, %arg1: i32) -> (i32, i32, i32, i32) {
    %c2_i32 = arith.constant 2 : i32
    %0 = arith.muli %c2_i32, %arg1 : i32
    %c1_i32 = arith.constant 1 : i32
    %1 = arith.subi %c1_i32, %0 : i32
    %2 = arith.muli %arg0, %1 : i32
    %3 = arith.addi %arg1, %2 : i32
    %c0_i32 = arith.constant 0 : i32
    %c0_i32_0 = arith.constant 0 : i32
    %c0_i32_1 = arith.constant 0 : i32
    return %arg0, %3, %c0_i32, %c0_i32_0 : i32, i32, i32, i32
  }
}

module attributes {stable_mosaic.version = 11 : i64} {
  func.func @linear_dirs_kernel(%arg0: i32, %arg1: memref<1x32x128xf32, #tpu.memory_space<vmem>>, %arg2: memref<1x32x128xf32, #tpu.memory_space<vmem>>, %arg3: memref<128x128xf32, #tpu.memory_space<vmem>>, %arg4: memref<128x128xf32, #tpu.memory_space<vmem>>, %arg5: memref<1x128xf32, #tpu.memory_space<vmem>>, %arg6: memref<32x128xf32, #tpu.memory_space<vmem>>) attributes {dimension_semantics = [#tpu.dimension_semantics<parallel>], iteration_bounds = array<i64: 1>, scalar_prefetch = 0 : i64, scratch_operands = 0 : i64, tpu.core_type = #tpu.core_type<tc>, window_params = [{transform_indices = @transform_0, window_bounds = array<i64: 1, 32, 128>}, {transform_indices = @transform_1, window_bounds = array<i64: 1, 32, 128>}, {pipeline_mode = #tpu.pipeline_mode<synchronous>, transform_indices = @transform_2, window_bounds = array<i64: 128, 128>}, {pipeline_mode = #tpu.pipeline_mode<synchronous>, transform_indices = @transform_3, window_bounds = array<i64: 128, 128>}, {pipeline_mode = #tpu.pipeline_mode<synchronous>, transform_indices = @transform_4, window_bounds = array<i64: 1, 128>}, {transform_indices = @transform_5, window_bounds = array<i64: 32, 128>}]} {
    %c0 = arith.constant 0 : index
    %c0_0 = arith.constant 0 : index
    %c0_1 = arith.constant 0 : index
    %0 = vector.load %arg1[%c0, %c0_0, %c0_1] : memref<1x32x128xf32, #tpu.memory_space<vmem>>, vector<1x32x128xf32>
    %1 = vector.shape_cast %0 : vector<1x32x128xf32> to vector<32x128xf32>
    %c0_2 = arith.constant 0 : index
    %c0_3 = arith.constant 0 : index
    %2 = vector.load %arg3[%c0_2, %c0_3] : memref<128x128xf32, #tpu.memory_space<vmem>>, vector<128x128xf32>
    %cst = arith.constant dense<0.000000e+00> : vector<32x128xf32>
    %3 = tpu.matmul %1, %2, %cst {dimension_numbers = #tpu.dot_dimension_numbers<[1], [0], [0], [1], [0, 0, 1, 1], [], []>} : vector<32x128xf32>, vector<128x128xf32>, vector<32x128xf32> -> vector<32x128xf32>
    %c0_4 = arith.constant 0 : index
    %c0_5 = arith.constant 0 : index
    %c0_6 = arith.constant 0 : index
    %4 = vector.load %arg2[%c0_4, %c0_5, %c0_6] : memref<1x32x128xf32, #tpu.memory_space<vmem>>, vector<1x32x128xf32>
    %5 = vector.shape_cast %4 : vector<1x32x128xf32> to vector<32x128xf32>
    %c0_7 = arith.constant 0 : index
    %c0_8 = arith.constant 0 : index
    %6 = vector.load %arg4[%c0_7, %c0_8] : memref<128x128xf32, #tpu.memory_space<vmem>>, vector<128x128xf32>
    %cst_9 = arith.constant dense<0.000000e+00> : vector<32x128xf32>
    %7 = tpu.matmul %5, %6, %cst_9 {dimension_numbers = #tpu.dot_dimension_numbers<[1], [0], [0], [1], [0, 0, 1, 1], [], []>} : vector<32x128xf32>, vector<128x128xf32>, vector<32x128xf32> -> vector<32x128xf32>
    %8 = arith.addf %3, %7 : vector<32x128xf32>
    %c0_10 = arith.constant 0 : index
    %c0_11 = arith.constant 0 : index
    %9 = vector.load %arg5[%c0_10, %c0_11] : memref<1x128xf32, #tpu.memory_space<vmem>>, vector<1x128xf32>
    %10 = vector.broadcast %9 : vector<1x128xf32> to vector<32x128xf32>
    %11 = arith.addf %8, %10 : vector<32x128xf32>
    %c0_12 = arith.constant 0 : index
    %c0_13 = arith.constant 0 : index
    %12 = vector.load %arg6[%c0_12, %c0_13] : memref<32x128xf32, #tpu.memory_space<vmem>>, vector<32x128xf32>
    tpu.vector_store %arg6[%c0_12, %c0_13], %11 {strides = array<i32>} : memref<32x128xf32, #tpu.memory_space<vmem>>, vector<32x128xf32>,
    return
  }
  func.func @transform_0(%arg0: i32) -> (i32, i32, i32) {
    %c0_i32 = arith.constant 0 : i32
    %c0_i32_0 = arith.constant 0 : i32
    %c0_i32_1 = arith.constant 0 : i32
    return %c0_i32, %arg0, %c0_i32_0 : i32, i32, i32
  }
  func.func @transform_1(%arg0: i32) -> (i32, i32, i32) {
    %c1_i32 = arith.constant 1 : i32
    %c0_i32 = arith.constant 0 : i32
    %c0_i32_0 = arith.constant 0 : i32
    return %c1_i32, %arg0, %c0_i32 : i32, i32, i32
  }
  func.func @transform_2(%arg0: i32) -> (i32, i32) {
    %c0_i32 = arith.constant 0 : i32
    %c0_i32_0 = arith.constant 0 : i32
    %c0_i32_1 = arith.constant 0 : i32
    return %c0_i32, %c0_i32_0 : i32, i32
  }
  func.func @transform_3(%arg0: i32) -> (i32, i32) {
    %c0_i32 = arith.constant 0 : i32
    %c0_i32_0 = arith.constant 0 : i32
    %c0_i32_1 = arith.constant 0 : i32
    return %c0_i32, %c0_i32_0 : i32, i32
  }
  func.func @transform_4(%arg0: i32) -> (i32, i32) {
    %c0_i32 = arith.constant 0 : i32
    %c0_i32_0 = arith.constant 0 : i32
    %c0_i32_1 = arith.constant 0 : i32
    return %c0_i32, %c0_i32_0 : i32, i32
  }
  func.func @transform_5(%arg0: i32) -> (i32, i32) {
    %c0_i32 = arith.constant 0 : i32
    %c0_i32_0 = arith.constant 0 : i32
    return %arg0, %c0_i32 : i32, i32
  }
}

</mosaic_0001>

<llo_original>
// kernel: _lambda_.5
$region0: #{_lambda_.5}
  #allocation0 [shape = 'u32[]', space=smem, size = 0x4, offset = 0x4, fixed_abs, tag = 'smem constant byte address 0x4 - core index']
  #allocation1 [shape = 'u32[72,128]{1,0:T(1,128)}', space=vmem, size = 0x9000, scoped, tag = 'internal scratch']
  %s0 = inlined_call_operand.vmem [shape: f32[32,128], index: 0, kind: input, shape index: {}]
  %s1 = inlined_call_operand.hbm [shape: f32[128,1024], index: 1, kind: input, shape index: {}]
  %s2 = inlined_call_operand.vmem [shape: f32[1,1024], index: 2, kind: input, shape index: {}]
  %s3 = inlined_call_operand.vmem [shape: f32[32,1024], index: 3, kind: output, shape index: {}]
  %s4 = sld [smem:[#allocation0]]
  $region68: #{_lambda_.5} parent=0
    _
  %s6 = ssub.s32 1, %s4
  %s7 = scalar_select 0, %s6, %s4
  $region1: #{_lambda_.5} parent=0
    #allocation2 [shape = 'u8[524288]{0}', space=vmem, size = 0x80000, scoped, tag = 'input window, operand 1']
    #allocation3 [shape = 's32[2]{0}', space=sflag, size = 0x8, scoped, tag = 'scoped memory for _lambda_.5']
    #allocation4 [shape = 'u8[131072]{0}', space=vmem, size = 0x20000, scoped, tag = 'output window, operand 0']
    %8 = vsyncpa [#allocation3], 0
    %s9 = scalar_lea.sflag [#allocation3], 1
    %10 = vsyncpa %s9, 0
    loop: start=0, step=1, limit=4
    $region2: #{_lambda_.5} parent=1 // loop_pre_header
      _
    $region3: #{_lambda_.5} parent=1 // loop_header
      %s12 = sphi 0, %s16
      %p13 = scmp.ge.s32.totalorder %s12, 4
      %s19 = sphi 0, %s31
      %s20 = sphi 0, %s27
      %s21 = sphi 0, %s19
      %s22 = sphi 0, %s20
      %s23 = sphi 0, %s21
      %s24 = sphi 0, %s22
      %s34 = sphi 0, %s36
      %s37 = sphi 0, %s34
      %s38 = sphi 0, %s37
      %s54 = sphi 0, %s38
      %s60 = sphi 0, %s62
      %s63 = sphi 0, %s60
      %s64 = sphi 0, %s63
      %s80 = sphi 0, %s64
      %s86 = sphi 0, %s88
      %s89 = sphi 0, %s86
      %s90 = sphi 0, %s89
      %s106 = sphi 0, %s90
      %s114 = sphi 0, %s116
      %s117 = sphi 0, %s114
      %s118 = sphi 0, %s117
      %s134 = sphi 0, %s118
    $region4: #{_lambda_.5} parent=1 // loop_header_branch
      %15 = sbr.rel (%p13) target = $region8
    $region5: #{_lambda_.5} parent=1 // loop_body
      %s17 = ssub.s32 %s12, 1
      %s18 = ssub.s32 %s12, 2
      %s25 = sadd.s32 1, %s20
      %p26 = scmp.ge.s32.totalorder %s25, 1
      %s27 = scalar_select %p26, 0, %s25
      %s28 = sadd.s32 1, %s19
      %s29 = scalar_select %p26, %s28, %s19
      %p30 = scmp.ge.s32.totalorder %s29, 2
      %s31 = scalar_select %p30, 0, %s29
      %s32 = ssub.s32 %s20, %s27
      %p33 = scmp.eq.s32.totalorder %s32, 0
      %s35 = sadd.s32 %s34, 1
      %s36 = scalar_select %p33, %s34, %s35
      %p39 = pneg %p33
      %p40 = scmp.eq.s32.totalorder %s12, 1
      %p41 = por %p39, %p40
      %p42 = scmp.ne.s32.totalorder %s34, %s37
      %p43 = scmp.eq.s32.totalorder %s12, 0
      %p44 = por %p42, %p43
      %p45 = scmp.ne.s32.totalorder %s34, %s37
      %p46 = scmp.eq.s32.totalorder %s17, 1
      %p47 = por %p45, %p46
      %p48 = scmp.ne.s32.totalorder %s37, %s38
      %p49 = scmp.eq.s32.totalorder %s17, 0
      %p50 = por %p48, %p49
      %p51 = scmp.ne.s32.totalorder %s37, %s38
      %p52 = scmp.eq.s32.totalorder %s18, 1
      %p53 = por %p51, %p52
      %p55 = scmp.ne.s32.totalorder %s38, %s54
      %p56 = scmp.eq.s32.totalorder %s18, 0
      %p57 = por %p55, %p56
      %s58 = ssub.s32 %s19, %s31
      %p59 = scmp.eq.s32.totalorder %s58, 0
      %s61 = sadd.s32 %s60, 1
      %s62 = scalar_select %p59, %s60, %s61
      %p65 = pneg %p59
      %p66 = scmp.eq.s32.totalorder %s12, 1
      %p67 = por %p65, %p66
      %p68 = scmp.ne.s32.totalorder %s60, %s63
      %p69 = scmp.eq.s32.totalorder %s12, 0
      %p70 = por %p68, %p69
      %p71 = scmp.ne.s32.totalorder %s60, %s63
      %p72 = scmp.eq.s32.totalorder %s17, 1
      %p73 = por %p71, %p72
      %p74 = scmp.ne.s32.totalorder %s63, %s64
      %p75 = scmp.eq.s32.totalorder %s17, 0
      %p76 = por %p74, %p75
      %p77 = scmp.ne.s32.totalorder %s63, %s64
      %p78 = scmp.eq.s32.totalorder %s18, 1
      %p79 = por %p77, %p78
      %p81 = scmp.ne.s32.totalorder %s64, %s80
      %p82 = scmp.eq.s32.totalorder %s18, 0
      %p83 = por %p81, %p82
      %s84 = ssub.s32 %s19, %s31
      %p85 = scmp.eq.s32.totalorder %s84, 0
      %s87 = sadd.s32 %s86, 1
      %s88 = scalar_select %p85, %s86, %s87
      %p91 = pneg %p85
      %p92 = scmp.eq.s32.totalorder %s12, 1
      %p93 = por %p91, %p92
      %p94 = scmp.ne.s32.totalorder %s86, %s89
      %p95 = scmp.eq.s32.totalorder %s12, 0
      %p96 = por %p94, %p95
      %p97 = scmp.ne.s32.totalorder %s86, %s89
      %p98 = scmp.eq.s32.totalorder %s17, 1
      %p99 = por %p97, %p98
      %p100 = scmp.ne.s32.totalorder %s89, %s90
      %p101 = scmp.eq.s32.totalorder %s17, 0
      %p102 = por %p100, %p101
      %p103 = scmp.ne.s32.totalorder %s89, %s90
      %p104 = scmp.eq.s32.totalorder %s18, 1
      %p105 = por %p103, %p104
      %p107 = scmp.ne.s32.totalorder %s90, %s106
      %p108 = scmp.eq.s32.totalorder %s18, 0
      %p109 = por %p107, %p108
      %s110 = ssub.s32 %s20, %s27
      %s111 = ssub.s32 %s19, %s31
      %s112 = sor.u32 %s110, %s111
      %p113 = scmp.eq.s32.totalorder %s112, 0
      %s115 = sadd.s32 %s114, 1
      %s116 = scalar_select %p113, %s114, %s115
      %p119 = pneg %p113
      %p120 = scmp.eq.s32.totalorder %s12, 1
      %p121 = por %p119, %p120
      %p122 = scmp.ne.s32.totalorder %s114, %s117
      %p123 = scmp.eq.s32.totalorder %s12, 0
      %p124 = por %p122, %p123
      %p125 = scmp.ne.s32.totalorder %s114, %s117
      %p126 = scmp.eq.s32.totalorder %s17, 1
      %p127 = por %p125, %p126
      %p128 = scmp.ne.s32.totalorder %s117, %s118
      %p129 = scmp.eq.s32.totalorder %s17, 0
      %p130 = por %p128, %p129
      %p131 = scmp.ne.s32.totalorder %s117, %s118
      %p132 = scmp.eq.s32.totalorder %s18, 1
      %p133 = por %p131, %p132
      %p135 = scmp.ne.s32.totalorder %s118, %s134
      %p136 = scmp.eq.s32.totalorder %s18, 0
      %p137 = por %p135, %p136
      %p138 = scmp.le.s32.totalorder 1, %s12
      %p139 = scmp.lt.s32.totalorder %s12, 3
      %p140 = pnand %p138, %p139
      %p141 = pneg %p140
      // Predicated region
      $region9: #{_lambda_.5} parent=5 // pred_check
        _
      $region10: #{_lambda_.5} parent=5 // pred_check_branch
        %143 = sbr.rel (%p140) target = $region12
      $region11: #{_lambda_.5} parent=5 // pred_region
        %s144 = ssub.s32 %s12, 1
        // Predicated region
        $region13: #{_lambda_.5} parent=11 // pred_check
          %p145 = pneg %p50
        $region14: #{_lambda_.5} parent=11 // pred_check_branch
          %147 = sbr.rel (%p145) target = $region16
        $region15: #{_lambda_.5} parent=11 // pred_region
          %s148 = smul.u32 4, %s22
          %p149 = scmp.lt.s32.totalorder %s148, 3
          %s150 = scalar_select %p149, %s148, 3
          %s151 = smul.addr %s150, 8
          %s152 = scalar_lea.vmem %s0, %s151
          %s153 = smul.u32 4, %s22
        $region16: #{_lambda_.5} parent=11 // pred_fallthru
          _
      $region12: #{_lambda_.5} parent=5 // pred_fallthru
        _
      %p154 = scmp.lt.s32.totalorder %s12, 2
      // Predicated region
      $region17: #{_lambda_.5} parent=5 // pred_check
        %p155 = pneg %p154
      $region18: #{_lambda_.5} parent=5 // pred_check_branch
        %157 = sbr.rel (%p155) target = $region20
      $region19: #{_lambda_.5} parent=5 // pred_region
        // Predicated region
        $region21: #{_lambda_.5} parent=19 // pred_check
          %p158 = pneg %p70
        $region22: #{_lambda_.5} parent=19 // pred_check_branch
          %160 = sbr.rel (%p158) target = $region24
        $region23: #{_lambda_.5} parent=19 // pred_region
          %s161 = sand.u32 %s60, 1
          %s162 = scalar_lea.sflag [#allocation3], %s161
          %s163 = sand.u32 %s60, 1
          %s164 = smul.addr %s163, 512
          %s165 = scalar_lea.vmem [#allocation2], %s164
          %s166 = smul.u32 4, %s19
          %168 = vsyncadd %s162, 0
          %s169 = smul.addr %s166, 8
          %s170 = scalar_lea.hbm %s1, %s169
          %s171 = sshll.u32 %s170, 4
          %s172 = int_to_ptr.hbm [resolvable:$true] %s171
          %s173 = sshll.u32 %s165, 4
          %s174 = int_to_ptr.vmem [resolvable:$true] %s173
          %179 = dma.hbm_to_vmem [thread:$0]  %s172, 8192, %s174, %s162, 1024, 512, 32
        $region24: #{_lambda_.5} parent=19 // pred_fallthru
          _
        // Predicated region
        $region25: #{_lambda_.5} parent=19 // pred_check
          %p180 = pneg %p96
        $region26: #{_lambda_.5} parent=19 // pred_check_branch
          %182 = sbr.rel (%p180) target = $region28
        $region27: #{_lambda_.5} parent=19 // pred_region
          %s183 = smul.u32 4, %s19
          %p184 = scmp.lt.s32.totalorder %s183, 7
          %s185 = scalar_select %p184, %s183, 7
          %s186 = scalar_lea.vmem %s2, %s185
          %s187 = smul.u32 4, %s19
        $region28: #{_lambda_.5} parent=19 // pred_fallthru
          _
      $region20: #{_lambda_.5} parent=5 // pred_fallthru
        _
      %p188 = scmp.le.s32.totalorder 1, %s12
      %p189 = scmp.lt.s32.totalorder %s12, 3
      %p190 = pnand %p188, %p189
      %p191 = pneg %p190
      // Predicated region
      $region29: #{_lambda_.5} parent=5 // pred_check
        _
      $region30: #{_lambda_.5} parent=5 // pred_check_branch
        %193 = sbr.rel (%p190) target = $region32
      $region31: #{_lambda_.5} parent=5 // pred_region
        %s194 = ssub.s32 %s12, 1
        %s195 = sand.u32 %s63, 1
        %s196 = scalar_lea.sflag [#allocation3], %s195
        %s197 = sand.u32 %s63, 1
        %s198 = smul.addr %s197, 512
        %s199 = scalar_lea.vmem [#allocation2], %s198
        // Predicated region
        $region33: #{_lambda_.5} parent=31 // pred_check
          %p200 = pneg %p76
        $region34: #{_lambda_.5} parent=31 // pred_check_branch
          %202 = sbr.rel (%p200) target = $region36
        $region35: #{_lambda_.5} parent=31 // pred_region
          %204 = dma.done %s196, 8192
        $region36: #{_lambda_.5} parent=31 // pred_fallthru
          _
        %s205 = smul.u32 4, %s22
        %p206 = scmp.lt.s32.totalorder %s205, 3
        %s207 = scalar_select %p206, %s205, 3
        %s208 = smul.addr %s207, 8
        %s209 = scalar_lea.vmem %s0, %s208
        %p210 = pneg %p50
        %p211 = pneg %p47
        %s212 = sand.u32 %s63, 1
        %s213 = scalar_lea.sflag [#allocation3], %s212
        %s214 = sand.u32 %s63, 1
        %s215 = smul.addr %s214, 512
        %s216 = scalar_lea.vmem [#allocation2], %s215
        %p217 = pneg %p76
        %p218 = pneg %p73
        %s219 = smul.u32 4, %s21
        %p220 = scmp.lt.s32.totalorder %s219, 7
        %s221 = scalar_select %p220, %s219, 7
        %s222 = scalar_lea.vmem %s2, %s221
        %p223 = pneg %p102
        %p224 = pneg %p99
        %p225 = pneg %p130
        %p226 = pneg %p127
        %s227 = sand.u32 %s117, 1
        %s228 = sand.u32 %s117, 1
        %s229 = smul.addr %s228, 128
        %s230 = scalar_lea.vmem [#allocation4], %s229
        %s231 = smul.u32 4, %s22
        %p232 = scmp.lt.s32.totalorder %s231, 3
        %s233 = scalar_select %p232, %s231, 3
        %s234 = smul.addr %s233, 8
        %s235 = scalar_lea.vmem %s0, %s234
        %s236 = smul.u32 4, %s22
        %s237 = smul.u32 4, %s21
        %s238 = smul.u32 4, %s21
        %p239 = scmp.lt.s32.totalorder %s238, 7
        %s240 = scalar_select %p239, %s238, 7
        %s241 = scalar_lea.vmem %s2, %s240
        %s242 = smul.u32 4, %s21
        %s243 = smul.u32 4, %s22
        %s244 = smul.u32 4, %s21
        %v245 = vld [vmem:[%s235] sm:$0xff]
        %v246 = vld [vmem:[%s235 + $0x8] sm:$0xff]
        %v247 = vld [vmem:[%s235 + $0x10] sm:$0xff]
        %v248 = vld [vmem:[%s235 + $0x18] sm:$0xff]
        %v249 = vld [vmem:[%s199] sm:$0xff]
        %v250 = vld [vmem:[%s199 + $0x8] sm:$0xff]
        %v251 = vld [vmem:[%s199 + $0x10] sm:$0xff]
        %v252 = vld [vmem:[%s199 + $0x18] sm:$0xff]
        %v253 = vld [vmem:[%s199 + $0x20] sm:$0xff]
        %v254 = vld [vmem:[%s199 + $0x28] sm:$0xff]
        %v255 = vld [vmem:[%s199 + $0x30] sm:$0xff]
        %v256 = vld [vmem:[%s199 + $0x38] sm:$0xff]
        %v257 = vld [vmem:[%s199 + $0x40] sm:$0xff]
        %v258 = vld [vmem:[%s199 + $0x48] sm:$0xff]
        %v259 = vld [vmem:[%s199 + $0x50] sm:$0xff]
        %v260 = vld [vmem:[%s199 + $0x58] sm:$0xff]
        %v261 = vld [vmem:[%s199 + $0x60] sm:$0xff]
        %v262 = vld [vmem:[%s199 + $0x68] sm:$0xff]
        %v263 = vld [vmem:[%s199 + $0x70] sm:$0xff]
        %v264 = vld [vmem:[%s199 + $0x78] sm:$0xff]
        %v265 = vld [vmem:[%s199 + $0x80] sm:$0xff]
        %v266 = vld [vmem:[%s199 + $0x88] sm:$0xff]
        %v267 = vld [vmem:[%s199 + $0x90] sm:$0xff]
        %v268 = vld [vmem:[%s199 + $0x98] sm:$0xff]
        %v269 = vld [vmem:[%s199 + $0xa0] sm:$0xff]
        %v270 = vld [vmem:[%s199 + $0xa8] sm:$0xff]
        %v271 = vld [vmem:[%s199 + $0xb0] sm:$0xff]
        %v272 = vld [vmem:[%s199 + $0xb8] sm:$0xff]
        %v273 = vld [vmem:[%s199 + $0xc0] sm:$0xff]
        %v274 = vld [vmem:[%s199 + $0xc8] sm:$0xff]
        %v275 = vld [vmem:[%s199 + $0xd0] sm:$0xff]
        %v276 = vld [vmem:[%s199 + $0xd8] sm:$0xff]
        %v277 = vld [vmem:[%s199 + $0xe0] sm:$0xff]
        %v278 = vld [vmem:[%s199 + $0xe8] sm:$0xff]
        %v279 = vld [vmem:[%s199 + $0xf0] sm:$0xff]
        %v280 = vld [vmem:[%s199 + $0xf8] sm:$0xff]
        %v281 = vld [vmem:[%s199 + $0x100] sm:$0xff]
        %v282 = vld [vmem:[%s199 + $0x108] sm:$0xff]
        %v283 = vld [vmem:[%s199 + $0x110] sm:$0xff]
        %v284 = vld [vmem:[%s199 + $0x118] sm:$0xff]
        %v285 = vld [vmem:[%s199 + $0x120] sm:$0xff]
        %v286 = vld [vmem:[%s199 + $0x128] sm:$0xff]
        %v287 = vld [vmem:[%s199 + $0x130] sm:$0xff]
        %v288 = vld [vmem:[%s199 + $0x138] sm:$0xff]
        %v289 = vld [vmem:[%s199 + $0x140] sm:$0xff]
        %v290 = vld [vmem:[%s199 + $0x148] sm:$0xff]
        %v291 = vld [vmem:[%s199 + $0x150] sm:$0xff]
        %v292 = vld [vmem:[%s199 + $0x158] sm:$0xff]
        %v293 = vld [vmem:[%s199 + $0x160] sm:$0xff]
        %v294 = vld [vmem:[%s199 + $0x168] sm:$0xff]
        %v295 = vld [vmem:[%s199 + $0x170] sm:$0xff]
        %v296 = vld [vmem:[%s199 + $0x178] sm:$0xff]
        %v297 = vld [vmem:[%s199 + $0x180] sm:$0xff]
        %v298 = vld [vmem:[%s199 + $0x188] sm:$0xff]
        %v299 = vld [vmem:[%s199 + $0x190] sm:$0xff]
        %v300 = vld [vmem:[%s199 + $0x198] sm:$0xff]
        %v301 = vld [vmem:[%s199 + $0x1a0] sm:$0xff]
        %v302 = vld [vmem:[%s199 + $0x1a8] sm:$0xff]
        %v303 = vld [vmem:[%s199 + $0x1b0] sm:$0xff]
        %v304 = vld [vmem:[%s199 + $0x1b8] sm:$0xff]
        %v305 = vld [vmem:[%s199 + $0x1c0] sm:$0xff]
        %v306 = vld [vmem:[%s199 + $0x1c8] sm:$0xff]
        %v307 = vld [vmem:[%s199 + $0x1d0] sm:$0xff]
        %v308 = vld [vmem:[%s199 + $0x1d8] sm:$0xff]
        %v309 = vld [vmem:[%s199 + $0x1e0] sm:$0xff]
        %v310 = vld [vmem:[%s199 + $0x1e8] sm:$0xff]
        %v311 = vld [vmem:[%s199 + $0x1f0] sm:$0xff]
        %v312 = vld [vmem:[%s199 + $0x1f8] sm:$0xff]
        %v313 = vld [vmem:[%s241] sm:$0xf]
        %v315 = vperm.slane %v313, 0
        %v316 = vperm.slane %v313, 1
        %v317 = vperm.slane %v313, 2
        %v318 = vperm.slane %v313, 3
        %323 = vmatpush.msra.mxu0 %v309
        %324 = vmatpush.msra.mxu0 %v305
        %325 = vmatpush.msra.mxu0 %v301
        %326 = vmatpush.msra.mxu0 %v297
        %327 = vmatpush.msra.mxu0 %v293
        %328 = vmatpush.msra.mxu0 %v289
        %329 = vmatpush.msra.mxu0 %v285
        %330 = vmatpush.msra.mxu0 %v281
        %331 = vmatpush.msra.mxu0 %v277
        %332 = vmatpush.msra.mxu0 %v273
        %333 = vmatpush.msra.mxu0 %v269
        %334 = vmatpush.msra.mxu0 %v265
        %335 = vmatpush.msra.mxu0 %v261
        %336 = vmatpush.msra.mxu0 %v257
        %337 = vmatpush.msra.mxu0 %v253
        %338 = vmatpush.msra.mxu0 %v249
        %339 = vmatmul.f32.gmra.mxu0 %v245
        %v340 = vpop.f32.mrf.mxu0
        %v341 = vadd.f32 %v315, %v340
        %342 = vmatmul.f32.gmra.mxu0 %v246
        %v343 = vpop.f32.mrf.mxu0
        %v344 = vadd.f32 %v315, %v343
        %345 = vmatmul.f32.gmra.mxu0 %v247
        %v346 = vpop.f32.mrf.mxu0
        %v347 = vadd.f32 %v315, %v346
        %348 = vmatmul.f32.gmra.mxu0 %v248
        %v349 = vpop.f32.mrf.mxu0
        %v350 = vadd.f32 %v315, %v349
        %351 = vdwg.mxu0
        %352 = vmatpush.msra.mxu0 %v310
        %353 = vmatpush.msra.mxu0 %v306
        %354 = vmatpush.msra.mxu0 %v302
        %355 = vmatpush.msra.mxu0 %v298
        %356 = vmatpush.msra.mxu0 %v294
        %357 = vmatpush.msra.mxu0 %v290
        %358 = vmatpush.msra.mxu0 %v286
        %359 = vmatpush.msra.mxu0 %v282
        %360 = vmatpush.msra.mxu0 %v278
        %361 = vmatpush.msra.mxu0 %v274
        %362 = vmatpush.msra.mxu0 %v270
        %363 = vmatpush.msra.mxu0 %v266
        %364 = vmatpush.msra.mxu0 %v262
        %365 = vmatpush.msra.mxu0 %v258
        %366 = vmatpush.msra.mxu0 %v254
        %367 = vmatpush.msra.mxu0 %v250
        %368 = vmatmul.f32.gmra.mxu0 %v245
        %v369 = vpop.f32.mrf.mxu0
        %v370 = vadd.f32 %v316, %v369
        %371 = vmatmul.f32.gmra.mxu0 %v246
        %v372 = vpop.f32.mrf.mxu0
        %v373 = vadd.f32 %v316, %v372
        %374 = vmatmul.f32.gmra.mxu0 %v247
        %v375 = vpop.f32.mrf.mxu0
        %v376 = vadd.f32 %v316, %v375
        %377 = vmatmul.f32.gmra.mxu0 %v248
        %v378 = vpop.f32.mrf.mxu0
        %v379 = vadd.f32 %v316, %v378
        %380 = vdwg.mxu0
        %381 = vmatpush.msra.mxu0 %v311
        %382 = vmatpush.msra.mxu0 %v307
        %383 = vmatpush.msra.mxu0 %v303
        %384 = vmatpush.msra.mxu0 %v299
        %385 = vmatpush.msra.mxu0 %v295
        %386 = vmatpush.msra.mxu0 %v291
        %387 = vmatpush.msra.mxu0 %v287
        %388 = vmatpush.msra.mxu0 %v283
        %389 = vmatpush.msra.mxu0 %v279
        %390 = vmatpush.msra.mxu0 %v275
        %391 = vmatpush.msra.mxu0 %v271
        %392 = vmatpush.msra.mxu0 %v267
        %393 = vmatpush.msra.mxu0 %v263
        %394 = vmatpush.msra.mxu0 %v259
        %395 = vmatpush.msra.mxu0 %v255
        %396 = vmatpush.msra.mxu0 %v251
        %397 = vmatmul.f32.gmra.mxu0 %v245
        %v398 = vpop.f32.mrf.mxu0
        %v399 = vadd.f32 %v317, %v398
        %400 = vmatmul.f32.gmra.mxu0 %v246
        %v401 = vpop.f32.mrf.mxu0
        %v402 = vadd.f32 %v317, %v401
        %403 = vmatmul.f32.gmra.mxu0 %v247
        %v404 = vpop.f32.mrf.mxu0
        %v405 = vadd.f32 %v317, %v404
        %406 = vmatmul.f32.gmra.mxu0 %v248
        %v407 = vpop.f32.mrf.mxu0
        %v408 = vadd.f32 %v317, %v407
        %409 = vdwg.mxu0
        %410 = vmatpush.msra.mxu0 %v312
        %411 = vmatpush.msra.mxu0 %v308
        %412 = vmatpush.msra.mxu0 %v304
        %413 = vmatpush.msra.mxu0 %v300
        %414 = vmatpush.msra.mxu0 %v296
        %415 = vmatpush.msra.mxu0 %v292
        %416 = vmatpush.msra.mxu0 %v288
        %417 = vmatpush.msra.mxu0 %v284
        %418 = vmatpush.msra.mxu0 %v280
        %419 = vmatpush.msra.mxu0 %v276
        %420 = vmatpush.msra.mxu0 %v272
        %421 = vmatpush.msra.mxu0 %v268
        %422 = vmatpush.msra.mxu0 %v264
        %423 = vmatpush.msra.mxu0 %v260
        %424 = vmatpush.msra.mxu0 %v256
        %425 = vmatpush.msra.mxu0 %v252
        %426 = vmatmul.f32.gmra.mxu0 %v245
        %v427 = vpop.f32.mrf.mxu0
        %v428 = vadd.f32 %v318, %v427
        %429 = vmatmul.f32.gmra.mxu0 %v246
        %v430 = vpop.f32.mrf.mxu0
        %v431 = vadd.f32 %v318, %v430
        %432 = vmatmul.f32.gmra.mxu0 %v247
        %v433 = vpop.f32.mrf.mxu0
        %v434 = vadd.f32 %v318, %v433
        %435 = vmatmul.f32.gmra.mxu0 %v248
        %v436 = vpop.f32.mrf.mxu0
        %v437 = vadd.f32 %v318, %v436
        %438 = vdwg.mxu0
        %439 = vst [vmem:[%s230] sm:$0xff] %v341
        %440 = vst [vmem:[%s230 + $0x8] sm:$0xff] %v370
        %441 = vst [vmem:[%s230 + $0x10] sm:$0xff] %v399
        %442 = vst [vmem:[%s230 + $0x18] sm:$0xff] %v428
        %443 = vst [vmem:[%s230 + $0x20] sm:$0xff] %v344
        %444 = vst [vmem:[%s230 + $0x28] sm:$0xff] %v373
        %445 = vst [vmem:[%s230 + $0x30] sm:$0xff] %v402
        %446 = vst [vmem:[%s230 + $0x38] sm:$0xff] %v431
        %447 = vst [vmem:[%s230 + $0x40] sm:$0xff] %v347
        %448 = vst [vmem:[%s230 + $0x48] sm:$0xff] %v376
        %449 = vst [vmem:[%s230 + $0x50] sm:$0xff] %v405
        %450 = vst [vmem:[%s230 + $0x58] sm:$0xff] %v434
        %451 = vst [vmem:[%s230 + $0x60] sm:$0xff] %v350
        %452 = vst [vmem:[%s230 + $0x68] sm:$0xff] %v379
        %453 = vst [vmem:[%s230 + $0x70] sm:$0xff] %v408
        %454 = vst [vmem:[%s230 + $0x78] sm:$0xff] %v437
        %s455 = sand.u32 %s117, 1
        %s456 = sand.u32 %s117, 1
        %s457 = smul.addr %s456, 128
        %s458 = scalar_lea.vmem [#allocation4], %s457
        // Predicated region
        $region37: #{_lambda_.5} parent=31 // pred_check
          %p459 = pneg %p127
        $region38: #{_lambda_.5} parent=31 // pred_check_branch
          %461 = sbr.rel (%p459) target = $region40
        $region39: #{_lambda_.5} parent=31 // pred_region
          %s462 = smul.u32 4, %s22
          %s463 = smul.u32 4, %s21
          %s464 = smul.addr %s462, 8
          %s465 = sadd.s32 %s463, %s464
          %s466 = smul.addr %s465, 8
          %s467 = scalar_lea.vmem %s3, %s466
          // Predicated region
          $region41: #{_lambda_.5} parent=39 // pred_check
            _
          $region42: #{_lambda_.5} parent=39 // pred_check_branch
            %469 = sbr.rel (0) target = $region44
          $region43: #{_lambda_.5} parent=39 // pred_region
            // Predicated region
            $region45: #{_lambda_.5} parent=43 // pred_check
              _
            $region46: #{_lambda_.5} parent=43 // pred_check_branch
              %471 = sbr.rel (0) target = $region48
            $region47: #{_lambda_.5} parent=43 // pred_region
              loop: start=0, step=1, limit=1
              $region49: #{_lambda_.5} parent=47 // loop_pre_header
                _
              $region50: #{_lambda_.5} parent=47 // loop_header
                %s473 = sphi 0, %s477
                %p474 = scmp.ge.s32.totalorder %s473, 1
                %s478 = sphi %s458, %s458
                %s479 = sphi %s467, %s467
              $region51: #{_lambda_.5} parent=47 // loop_header_branch
                %476 = sbr.rel (%p474) target = $region55
              $region52: #{_lambda_.5} parent=47 // loop_body
                %v480 = vld [vmem:[%s478] sm:$0xff]
                %481 = vst [vmem:[%s479] sm:$0xff] %v480
                %v482 = vld [vmem:[%s478 + $0x8] sm:$0xff]
                %483 = vst [vmem:[%s479 + $0x8] sm:$0xff] %v482
                %v484 = vld [vmem:[%s478 + $0x10] sm:$0xff]
                %485 = vst [vmem:[%s479 + $0x10] sm:$0xff] %v484
                %v486 = vld [vmem:[%s478 + $0x18] sm:$0xff]
                %487 = vst [vmem:[%s479 + $0x18] sm:$0xff] %v486
                %v488 = vld [vmem:[%s478 + $0x20] sm:$0xff]
                %489 = vst [vmem:[%s479 + $0x40] sm:$0xff] %v488
                %v490 = vld [vmem:[%s478 + $0x28] sm:$0xff]
                %491 = vst [vmem:[%s479 + $0x48] sm:$0xff] %v490
                %v492 = vld [vmem:[%s478 + $0x30] sm:$0xff]
                %493 = vst [vmem:[%s479 + $0x50] sm:$0xff] %v492
                %v494 = vld [vmem:[%s478 + $0x38] sm:$0xff]
                %495 = vst [vmem:[%s479 + $0x58] sm:$0xff] %v494
                %v496 = vld [vmem:[%s478 + $0x40] sm:$0xff]
                %497 = vst [vmem:[%s479 + $0x80] sm:$0xff] %v496
                %v498 = vld [vmem:[%s478 + $0x48] sm:$0xff]
                %499 = vst [vmem:[%s479 + $0x88] sm:$0xff] %v498
                %v500 = vld [vmem:[%s478 + $0x50] sm:$0xff]
                %501 = vst [vmem:[%s479 + $0x90] sm:$0xff] %v500
                %v502 = vld [vmem:[%s478 + $0x58] sm:$0xff]
                %503 = vst [vmem:[%s479 + $0x98] sm:$0xff] %v502
                %v504 = vld [vmem:[%s478 + $0x60] sm:$0xff]
                %505 = vst [vmem:[%s479 + $0xc0] sm:$0xff] %v504
                %v506 = vld [vmem:[%s478 + $0x68] sm:$0xff]
                %507 = vst [vmem:[%s479 + $0xc8] sm:$0xff] %v506
                %v508 = vld [vmem:[%s478 + $0x70] sm:$0xff]
                %509 = vst [vmem:[%s479 + $0xd0] sm:$0xff] %v508
                %v510 = vld [vmem:[%s478 + $0x78] sm:$0xff]
                %511 = vst [vmem:[%s479 + $0xd8] sm:$0xff] %v510
              $region53: #{_lambda_.5} parent=47 // loop_footer
                %s477 = sadd.s32 1, %s473
              $region54: #{_lambda_.5} parent=47 // loop_footer_branch
                %472 = sbr.rel target = $region50
              $region55: #{_lambda_.5} parent=47 // loop_exit
                _
            $region48: #{_lambda_.5} parent=43 // pred_fallthru
              _
            // Predicated region
            $region56: #{_lambda_.5} parent=43 // pred_check
              _
            $region57: #{_lambda_.5} parent=43 // pred_check_branch
              %513 = sbr.rel target = $region59
            $region58: #{_lambda_.5} parent=43 // pred_region
              _
            $region59: #{_lambda_.5} parent=43 // pred_fallthru
              _
          $region44: #{_lambda_.5} parent=39 // pred_fallthru
            _
          %514 = vnop
        $region40: #{_lambda_.5} parent=31 // pred_fallthru
          _
      $region32: #{_lambda_.5} parent=5 // pred_fallthru
        _
      %p515 = scmp.le.s32.totalorder 2, %s12
      // Predicated region
      $region60: #{_lambda_.5} parent=5 // pred_check
        %p516 = pneg %p515
      $region61: #{_lambda_.5} parent=5 // pred_check_branch
        %518 = sbr.rel (%p516) target = $region63
      $region62: #{_lambda_.5} parent=5 // pred_region
        %s519 = ssub.s32 %s12, 2
        // Predicated region
        $region64: #{_lambda_.5} parent=62 // pred_check
          %p520 = pneg %p133
        $region65: #{_lambda_.5} parent=62 // pred_check_branch
          %522 = sbr.rel (%p520) target = $region67
        $region66: #{_lambda_.5} parent=62 // pred_region
          %s523 = sand.u32 %s118, 1
          %s524 = sand.u32 %s118, 1
          %s525 = smul.addr %s524, 128
          %s526 = scalar_lea.vmem [#allocation4], %s525
        $region67: #{_lambda_.5} parent=62 // pred_fallthru
          _
      $region63: #{_lambda_.5} parent=5 // pred_fallthru
        _
    $region6: #{_lambda_.5} parent=1 // loop_footer
      %s16 = sadd.s32 1, %s12
    $region7: #{_lambda_.5} parent=1 // loop_footer_branch
      %11 = sbr.rel target = $region3
    $region8: #{_lambda_.5} parent=1 // loop_exit
      _
    %527 = vsyncpa [#allocation3], 1
    %s528 = scalar_lea.sflag [#allocation3], 1
    %529 = vsyncpa %s528, 1

// kernel: _lambda_.7
$region0: #{_lambda_.7}
  #allocation0 [shape = 'u32[]', space=smem, size = 0x4, offset = 0x4, fixed_abs, tag = 'smem constant byte address 0x4 - core index']
  #allocation1 [shape = 'u32[72,128]{1,0:T(1,128)}', space=vmem, size = 0x9000, scoped, tag = 'internal scratch']
  %s0 = inlined_call_operand.vmem [shape: f32[2,32,128], index: 0, kind: input, shape index: {}, may-alias: {0,1}]
  %s1 = inlined_call_operand.vmem [shape: f32[2,32,128], index: 1, kind: input, shape index: {}, may-alias: {0,1}]
  %s2 = inlined_call_operand.hbm [shape: f32[128,1024], index: 2, kind: input, shape index: {}]
  %s3 = inlined_call_operand.hbm [shape: f32[128,1024], index: 3, kind: input, shape index: {}]
  %s4 = inlined_call_operand.vmem [shape: f32[1,1024], index: 4, kind: input, shape index: {}]
  %s5 = inlined_call_operand.vmem [shape: f32[32,1024], index: 5, kind: output, shape index: {}]
  %s6 = sld [smem:[#allocation0]]
  $region80: #{_lambda_.7} parent=0
    _
  %s8 = ssub.s32 1, %s6
  %s9 = scalar_select 0, %s8, %s6
  $region1: #{_lambda_.7} parent=0
    #allocation2 [shape = 'u8[524288]{0}', space=vmem, size = 0x80000, scoped, tag = 'input window, operand 2']
    #allocation3 [shape = 's32[2]{0}', space=sflag, size = 0x8, scoped, tag = 'scoped memory for _lambda_.7']
    #allocation4 [shape = 'u8[524288]{0}', space=vmem, size = 0x80000, scoped, tag = 'input window, operand 3']
    #allocation5 [shape = 's32[2]{0}', space=sflag, size = 0x8, scoped, tag = 'scoped memory for _lambda_.7']
    #allocation6 [shape = 'u8[131072]{0}', space=vmem, size = 0x20000, scoped, tag = 'output window, operand 0']
    %10 = vsyncpa [#allocation3], 0
    %s11 = scalar_lea.sflag [#allocation3], 1
    %12 = vsyncpa %s11, 0
    %13 = vsyncpa [#allocation5], 0
    %s14 = scalar_lea.sflag [#allocation5], 1
    %15 = vsyncpa %s14, 0
    loop: start=0, step=1, limit=4
    $region2: #{_lambda_.7} parent=1 // loop_pre_header
      _
    $region3: #{_lambda_.7} parent=1 // loop_header
      %s17 = sphi 0, %s21
      %p18 = scmp.ge.s32.totalorder %s17, 4
      %s24 = sphi 0, %s36
      %s25 = sphi 0, %s32
      %s26 = sphi 0, %s24
      %s27 = sphi 0, %s25
      %s28 = sphi 0, %s26
      %s29 = sphi 0, %s27
      %s39 = sphi 0, %s41
      %s42 = sphi 0, %s39
      %s43 = sphi 0, %s42
      %s59 = sphi 0, %s43
      %s65 = sphi 0, %s67
      %s68 = sphi 0, %s65
      %s69 = sphi 0, %s68
      %s85 = sphi 0, %s69
      %s91 = sphi 0, %s93
      %s94 = sphi 0, %s91
      %s95 = sphi 0, %s94
      %s111 = sphi 0, %s95
      %s117 = sphi 0, %s119
      %s120 = sphi 0, %s117
      %s121 = sphi 0, %s120
      %s137 = sphi 0, %s121
      %s143 = sphi 0, %s145
      %s146 = sphi 0, %s143
      %s147 = sphi 0, %s146
      %s163 = sphi 0, %s147
      %s171 = sphi 0, %s173
      %s174 = sphi 0, %s171
      %s175 = sphi 0, %s174
      %s191 = sphi 0, %s175
    $region4: #{_lambda_.7} parent=1 // loop_header_branch
      %20 = sbr.rel (%p18) target = $region8
    $region5: #{_lambda_.7} parent=1 // loop_body
      %s22 = ssub.s32 %s17, 1
      %s23 = ssub.s32 %s17, 2
      %s30 = sadd.s32 1, %s25
      %p31 = scmp.ge.s32.totalorder %s30, 1
      %s32 = scalar_select %p31, 0, %s30
      %s33 = sadd.s32 1, %s24
      %s34 = scalar_select %p31, %s33, %s24
      %p35 = scmp.ge.s32.totalorder %s34, 2
      %s36 = scalar_select %p35, 0, %s34
      %s37 = ssub.s32 %s25, %s32
      %p38 = scmp.eq.s32.totalorder %s37, 0
      %s40 = sadd.s32 %s39, 1
      %s41 = scalar_select %p38, %s39, %s40
      %p44 = pneg %p38
      %p45 = scmp.eq.s32.totalorder %s17, 1
      %p46 = por %p44, %p45
      %p47 = scmp.ne.s32.totalorder %s39, %s42
      %p48 = scmp.eq.s32.totalorder %s17, 0
      %p49 = por %p47, %p48
      %p50 = scmp.ne.s32.totalorder %s39, %s42
      %p51 = scmp.eq.s32.totalorder %s22, 1
      %p52 = por %p50, %p51
      %p53 = scmp.ne.s32.totalorder %s42, %s43
      %p54 = scmp.eq.s32.totalorder %s22, 0
      %p55 = por %p53, %p54
      %p56 = scmp.ne.s32.totalorder %s42, %s43
      %p57 = scmp.eq.s32.totalorder %s23, 1
      %p58 = por %p56, %p57
      %p60 = scmp.ne.s32.totalorder %s43, %s59
      %p61 = scmp.eq.s32.totalorder %s23, 0
      %p62 = por %p60, %p61
      %s63 = ssub.s32 %s25, %s32
      %p64 = scmp.eq.s32.totalorder %s63, 0
      %s66 = sadd.s32 %s65, 1
      %s67 = scalar_select %p64, %s65, %s66
      %p70 = pneg %p64
      %p71 = scmp.eq.s32.totalorder %s17, 1
      %p72 = por %p70, %p71
      %p73 = scmp.ne.s32.totalorder %s65, %s68
      %p74 = scmp.eq.s32.totalorder %s17, 0
      %p75 = por %p73, %p74
      %p76 = scmp.ne.s32.totalorder %s65, %s68
      %p77 = scmp.eq.s32.totalorder %s22, 1
      %p78 = por %p76, %p77
      %p79 = scmp.ne.s32.totalorder %s68, %s69
      %p80 = scmp.eq.s32.totalorder %s22, 0
      %p81 = por %p79, %p80
      %p82 = scmp.ne.s32.totalorder %s68, %s69
      %p83 = scmp.eq.s32.totalorder %s23, 1
      %p84 = por %p82, %p83
      %p86 = scmp.ne.s32.totalorder %s69, %s85
      %p87 = scmp.eq.s32.totalorder %s23, 0
      %p88 = por %p86, %p87
      %s89 = ssub.s32 %s24, %s36
      %p90 = scmp.eq.s32.totalorder %s89, 0
      %s92 = sadd.s32 %s91, 1
      %s93 = scalar_select %p90, %s91, %s92
      %p96 = pneg %p90
      %p97 = scmp.eq.s32.totalorder %s17, 1
      %p98 = por %p96, %p97
      %p99 = scmp.ne.s32.totalorder %s91, %s94
      %p100 = scmp.eq.s32.totalorder %s17, 0
      %p101 = por %p99, %p100
      %p102 = scmp.ne.s32.totalorder %s91, %s94
      %p103 = scmp.eq.s32.totalorder %s22, 1
      %p104 = por %p102, %p103
      %p105 = scmp.ne.s32.totalorder %s94, %s95
      %p106 = scmp.eq.s32.totalorder %s22, 0
      %p107 = por %p105, %p106
      %p108 = scmp.ne.s32.totalorder %s94, %s95
      %p109 = scmp.eq.s32.totalorder %s23, 1
      %p110 = por %p108, %p109
      %p112 = scmp.ne.s32.totalorder %s95, %s111
      %p113 = scmp.eq.s32.totalorder %s23, 0
      %p114 = por %p112, %p113
      %s115 = ssub.s32 %s24, %s36
      %p116 = scmp.eq.s32.totalorder %s115, 0
      %s118 = sadd.s32 %s117, 1
      %s119 = scalar_select %p116, %s117, %s118
      %p122 = pneg %p116
      %p123 = scmp.eq.s32.totalorder %s17, 1
      %p124 = por %p122, %p123
      %p125 = scmp.ne.s32.totalorder %s117, %s120
      %p126 = scmp.eq.s32.totalorder %s17, 0
      %p127 = por %p125, %p126
      %p128 = scmp.ne.s32.totalorder %s117, %s120
      %p129 = scmp.eq.s32.totalorder %s22, 1
      %p130 = por %p128, %p129
      %p131 = scmp.ne.s32.totalorder %s120, %s121
      %p132 = scmp.eq.s32.totalorder %s22, 0
      %p133 = por %p131, %p132
      %p134 = scmp.ne.s32.totalorder %s120, %s121
      %p135 = scmp.eq.s32.totalorder %s23, 1
      %p136 = por %p134, %p135
      %p138 = scmp.ne.s32.totalorder %s121, %s137
      %p139 = scmp.eq.s32.totalorder %s23, 0
      %p140 = por %p138, %p139
      %s141 = ssub.s32 %s24, %s36
      %p142 = scmp.eq.s32.totalorder %s141, 0
      %s144 = sadd.s32 %s143, 1
      %s145 = scalar_select %p142, %s143, %s144
      %p148 = pneg %p142
      %p149 = scmp.eq.s32.totalorder %s17, 1
      %p150 = por %p148, %p149
      %p151 = scmp.ne.s32.totalorder %s143, %s146
      %p152 = scmp.eq.s32.totalorder %s17, 0
      %p153 = por %p151, %p152
      %p154 = scmp.ne.s32.totalorder %s143, %s146
      %p155 = scmp.eq.s32.totalorder %s22, 1
      %p156 = por %p154, %p155
      %p157 = scmp.ne.s32.totalorder %s146, %s147
      %p158 = scmp.eq.s32.totalorder %s22, 0
      %p159 = por %p157, %p158
      %p160 = scmp.ne.s32.totalorder %s146, %s147
      %p161 = scmp.eq.s32.totalorder %s23, 1
      %p162 = por %p160, %p161
      %p164 = scmp.ne.s32.totalorder %s147, %s163
      %p165 = scmp.eq.s32.totalorder %s23, 0
      %p166 = por %p164, %p165
      %s167 = ssub.s32 %s25, %s32
      %s168 = ssub.s32 %s24, %s36
      %s169 = sor.u32 %s167, %s168
      %p170 = scmp.eq.s32.totalorder %s169, 0
      %s172 = sadd.s32 %s171, 1
      %s173 = scalar_select %p170, %s171, %s172
      %p176 = pneg %p170
      %p177 = scmp.eq.s32.totalorder %s17, 1
      %p178 = por %p176, %p177
      %p179 = scmp.ne.s32.totalorder %s171, %s174
      %p180 = scmp.eq.s32.totalorder %s17, 0
      %p181 = por %p179, %p180
      %p182 = scmp.ne.s32.totalorder %s171, %s174
      %p183 = scmp.eq.s32.totalorder %s22, 1
      %p184 = por %p182, %p183
      %p185 = scmp.ne.s32.totalorder %s174, %s175
      %p186 = scmp.eq.s32.totalorder %s22, 0
      %p187 = por %p185, %p186
      %p188 = scmp.ne.s32.totalorder %s174, %s175
      %p189 = scmp.eq.s32.totalorder %s23, 1
      %p190 = por %p188, %p189
      %p192 = scmp.ne.s32.totalorder %s175, %s191
      %p193 = scmp.eq.s32.totalorder %s23, 0
      %p194 = por %p192, %p193
      %p195 = scmp.le.s32.totalorder 1, %s17
      %p196 = scmp.lt.s32.totalorder %s17, 3
      %p197 = pnand %p195, %p196
      %p198 = pneg %p197
      // Predicated region
      $region9: #{_lambda_.7} parent=5 // pred_check
        _
      $region10: #{_lambda_.7} parent=5 // pred_check_branch
        %200 = sbr.rel (%p197) target = $region12
      $region11: #{_lambda_.7} parent=5 // pred_region
        %s201 = ssub.s32 %s17, 1
        // Predicated region
        $region13: #{_lambda_.7} parent=11 // pred_check
          %p202 = pneg %p55
        $region14: #{_lambda_.7} parent=11 // pred_check_branch
          %204 = sbr.rel (%p202) target = $region16
        $region15: #{_lambda_.7} parent=11 // pred_region
          %s205 = smul.u32 4, %s27
          %p206 = scmp.lt.s32.totalorder %s205, 3
          %s207 = scalar_select %p206, %s205, 3
          %s208 = smul.addr %s207, 8
          %s209 = scalar_lea.vmem %s0, %s208
          %s210 = smul.u32 4, %s27
        $region16: #{_lambda_.7} parent=11 // pred_fallthru
          _
        // Predicated region
        $region17: #{_lambda_.7} parent=11 // pred_check
          %p211 = pneg %p81
        $region18: #{_lambda_.7} parent=11 // pred_check_branch
          %213 = sbr.rel (%p211) target = $region20
        $region19: #{_lambda_.7} parent=11 // pred_region
          %s214 = smul.u32 4, %s27
          %p215 = scmp.lt.s32.totalorder %s214, 3
          %s216 = scalar_select %p215, %s214, 3
          %s217 = sadd.s32 %s216, 4
          %s218 = smul.addr %s217, 8
          %s219 = scalar_lea.vmem %s1, %s218
          %s220 = smul.u32 4, %s27
        $region20: #{_lambda_.7} parent=11 // pred_fallthru
          _
      $region12: #{_lambda_.7} parent=5 // pred_fallthru
        _
      %p221 = scmp.lt.s32.totalorder %s17, 2
      // Predicated region
      $region21: #{_lambda_.7} parent=5 // pred_check
        %p222 = pneg %p221
      $region22: #{_lambda_.7} parent=5 // pred_check_branch
        %224 = sbr.rel (%p222) target = $region24
      $region23: #{_lambda_.7} parent=5 // pred_region
        // Predicated region
        $region25: #{_lambda_.7} parent=23 // pred_check
          %p225 = pneg %p101
        $region26: #{_lambda_.7} parent=23 // pred_check_branch
          %227 = sbr.rel (%p225) target = $region28
        $region27: #{_lambda_.7} parent=23 // pred_region
          %s228 = sand.u32 %s91, 1
          %s229 = scalar_lea.sflag [#allocation3], %s228
          %s230 = sand.u32 %s91, 1
          %s231 = smul.addr %s230, 512
          %s232 = scalar_lea.vmem [#allocation2], %s231
          %s233 = smul.u32 4, %s24
          %235 = vsyncadd %s229, 0
          %s236 = smul.addr %s233, 8
          %s237 = scalar_lea.hbm %s2, %s236
          %s238 = sshll.u32 %s237, 4
          %s239 = int_to_ptr.hbm [resolvable:$true] %s238
          %s240 = sshll.u32 %s232, 4
          %s241 = int_to_ptr.vmem [resolvable:$true] %s240
          %246 = dma.hbm_to_vmem [thread:$0]  %s239, 8192, %s241, %s229, 1024, 512, 32
        $region28: #{_lambda_.7} parent=23 // pred_fallthru
          _
        // Predicated region
        $region29: #{_lambda_.7} parent=23 // pred_check
          %p247 = pneg %p127
        $region30: #{_lambda_.7} parent=23 // pred_check_branch
          %249 = sbr.rel (%p247) target = $region32
        $region31: #{_lambda_.7} parent=23 // pred_region
          %s250 = sand.u32 %s117, 1
          %s251 = scalar_lea.sflag [#allocation5], %s250
          %s252 = sand.u32 %s117, 1
          %s253 = smul.addr %s252, 512
          %s254 = scalar_lea.vmem [#allocation4], %s253
          %s255 = smul.u32 4, %s24
          %257 = vsyncadd %s251, 0
          %s258 = smul.addr %s255, 8
          %s259 = scalar_lea.hbm %s3, %s258
          %s260 = sshll.u32 %s259, 4
          %s261 = int_to_ptr.hbm [resolvable:$true] %s260
          %s262 = sshll.u32 %s254, 4
          %s263 = int_to_ptr.vmem [resolvable:$true] %s262
          %268 = dma.hbm_to_vmem [thread:$0]  %s261, 8192, %s263, %s251, 1024, 512, 32
        $region32: #{_lambda_.7} parent=23 // pred_fallthru
          _
        // Predicated region
        $region33: #{_lambda_.7} parent=23 // pred_check
          %p269 = pneg %p153
        $region34: #{_lambda_.7} parent=23 // pred_check_branch
          %271 = sbr.rel (%p269) target = $region36
        $region35: #{_lambda_.7} parent=23 // pred_region
          %s272 = smul.u32 4, %s24
          %p273 = scmp.lt.s32.totalorder %s272, 7
          %s274 = scalar_select %p273, %s272, 7
          %s275 = scalar_lea.vmem %s4, %s274
          %s276 = smul.u32 4, %s24
        $region36: #{_lambda_.7} parent=23 // pred_fallthru
          _
      $region24: #{_lambda_.7} parent=5 // pred_fallthru
        _
      %p277 = scmp.le.s32.totalorder 1, %s17
      %p278 = scmp.lt.s32.totalorder %s17, 3
      %p279 = pnand %p277, %p278
      %p280 = pneg %p279
      // Predicated region
      $region37: #{_lambda_.7} parent=5 // pred_check
        _
      $region38: #{_lambda_.7} parent=5 // pred_check_branch
        %282 = sbr.rel (%p279) target = $region40
      $region39: #{_lambda_.7} parent=5 // pred_region
        %s283 = ssub.s32 %s17, 1
        %s284 = sand.u32 %s94, 1
        %s285 = scalar_lea.sflag [#allocation3], %s284
        %s286 = sand.u32 %s94, 1
        %s287 = smul.addr %s286, 512
        %s288 = scalar_lea.vmem [#allocation2], %s287
        // Predicated region
        $region41: #{_lambda_.7} parent=39 // pred_check
          %p289 = pneg %p107
        $region42: #{_lambda_.7} parent=39 // pred_check_branch
          %291 = sbr.rel (%p289) target = $region44
        $region43: #{_lambda_.7} parent=39 // pred_region
          %293 = dma.done %s285, 8192
        $region44: #{_lambda_.7} parent=39 // pred_fallthru
          _
        %s294 = sand.u32 %s120, 1
        %s295 = scalar_lea.sflag [#allocation5], %s294
        %s296 = sand.u32 %s120, 1
        %s297 = smul.addr %s296, 512
        %s298 = scalar_lea.vmem [#allocation4], %s297
        // Predicated region
        $region45: #{_lambda_.7} parent=39 // pred_check
          %p299 = pneg %p133
        $region46: #{_lambda_.7} parent=39 // pred_check_branch
          %301 = sbr.rel (%p299) target = $region48
        $region47: #{_lambda_.7} parent=39 // pred_region
          %303 = dma.done %s295, 8192
        $region48: #{_lambda_.7} parent=39 // pred_fallthru
          _
        %s304 = smul.u32 4, %s27
        %p305 = scmp.lt.s32.totalorder %s304, 3
        %s306 = scalar_select %p305, %s304, 3
        %s307 = smul.addr %s306, 8
        %s308 = scalar_lea.vmem %s0, %s307
        %p309 = pneg %p55
        %p310 = pneg %p52
        %s311 = smul.u32 4, %s27
        %p312 = scmp.lt.s32.totalorder %s311, 3
        %s313 = scalar_select %p312, %s311, 3
        %s314 = sadd.s32 %s313, 4
        %s315 = smul.addr %s314, 8
        %s316 = scalar_lea.vmem %s1, %s315
        %p317 = pneg %p81
        %p318 = pneg %p78
        %s319 = sand.u32 %s94, 1
        %s320 = scalar_lea.sflag [#allocation3], %s319
        %s321 = sand.u32 %s94, 1
        %s322 = smul.addr %s321, 512
        %s323 = scalar_lea.vmem [#allocation2], %s322
        %p324 = pneg %p107
        %p325 = pneg %p104
        %s326 = sand.u32 %s120, 1
        %s327 = scalar_lea.sflag [#allocation5], %s326
        %s328 = sand.u32 %s120, 1
        %s329 = smul.addr %s328, 512
        %s330 = scalar_lea.vmem [#allocation4], %s329
        %p331 = pneg %p133
        %p332 = pneg %p130
        %s333 = smul.u32 4, %s26
        %p334 = scmp.lt.s32.totalorder %s333, 7
        %s335 = scalar_select %p334, %s333, 7
        %s336 = scalar_lea.vmem %s4, %s335
        %p337 = pneg %p159
        %p338 = pneg %p156
        %p339 = pneg %p187
        %p340 = pneg %p184
        %s341 = sand.u32 %s174, 1
        %s342 = sand.u32 %s174, 1
        %s343 = smul.addr %s342, 128
        %s344 = scalar_lea.vmem [#allocation6], %s343
        %s345 = smul.u32 4, %s27
        %p346 = scmp.lt.s32.totalorder %s345, 3
        %s347 = scalar_select %p346, %s345, 3
        %s348 = smul.addr %s347, 8
        %s349 = scalar_lea.vmem %s0, %s348
        %s350 = smul.u32 4, %s27
        %s351 = smul.u32 4, %s27
        %p352 = scmp.lt.s32.totalorder %s351, 3
        %s353 = scalar_select %p352, %s351, 3
        %s354 = sadd.s32 %s353, 4
        %s355 = smul.addr %s354, 8
        %s356 = scalar_lea.vmem %s1, %s355
        %s357 = smul.u32 4, %s27
        %s358 = smul.u32 4, %s26
        %s359 = smul.u32 4, %s26
        %s360 = smul.u32 4, %s26
        %p361 = scmp.lt.s32.totalorder %s360, 7
        %s362 = scalar_select %p361, %s360, 7
        %s363 = scalar_lea.vmem %s4, %s362
        %s364 = smul.u32 4, %s26
        %s365 = smul.u32 4, %s27
        %s366 = smul.u32 4, %s26
        %v367 = vld [vmem:[%s349] sm:$0xff]
        %v368 = vld [vmem:[%s349 + $0x8] sm:$0xff]
        %v369 = vld [vmem:[%s349 + $0x10] sm:$0xff]
        %v370 = vld [vmem:[%s349 + $0x18] sm:$0xff]
        %v371 = vld [vmem:[%s288] sm:$0xff]
        %v372 = vld [vmem:[%s288 + $0x8] sm:$0xff]
        %v373 = vld [vmem:[%s288 + $0x10] sm:$0xff]
        %v374 = vld [vmem:[%s288 + $0x18] sm:$0xff]
        %v375 = vld [vmem:[%s288 + $0x20] sm:$0xff]
        %v376 = vld [vmem:[%s288 + $0x28] sm:$0xff]
        %v377 = vld [vmem:[%s288 + $0x30] sm:$0xff]
        %v378 = vld [vmem:[%s288 + $0x38] sm:$0xff]
        %v379 = vld [vmem:[%s288 + $0x40] sm:$0xff]
        %v380 = vld [vmem:[%s288 + $0x48] sm:$0xff]
        %v381 = vld [vmem:[%s288 + $0x50] sm:$0xff]
        %v382 = vld [vmem:[%s288 + $0x58] sm:$0xff]
        %v383 = vld [vmem:[%s288 + $0x60] sm:$0xff]
        %v384 = vld [vmem:[%s288 + $0x68] sm:$0xff]
        %v385 = vld [vmem:[%s288 + $0x70] sm:$0xff]
        %v386 = vld [vmem:[%s288 + $0x78] sm:$0xff]
        %v387 = vld [vmem:[%s288 + $0x80] sm:$0xff]
        %v388 = vld [vmem:[%s288 + $0x88] sm:$0xff]
        %v389 = vld [vmem:[%s288 + $0x90] sm:$0xff]
        %v390 = vld [vmem:[%s288 + $0x98] sm:$0xff]
        %v391 = vld [vmem:[%s288 + $0xa0] sm:$0xff]
        %v392 = vld [vmem:[%s288 + $0xa8] sm:$0xff]
        %v393 = vld [vmem:[%s288 + $0xb0] sm:$0xff]
        %v394 = vld [vmem:[%s288 + $0xb8] sm:$0xff]
        %v395 = vld [vmem:[%s288 + $0xc0] sm:$0xff]
        %v396 = vld [vmem:[%s288 + $0xc8] sm:$0xff]
        %v397 = vld [vmem:[%s288 + $0xd0] sm:$0xff]
        %v398 = vld [vmem:[%s288 + $0xd8] sm:$0xff]
        %v399 = vld [vmem:[%s288 + $0xe0] sm:$0xff]
        %v400 = vld [vmem:[%s288 + $0xe8] sm:$0xff]
        %v401 = vld [vmem:[%s288 + $0xf0] sm:$0xff]
        %v402 = vld [vmem:[%s288 + $0xf8] sm:$0xff]
        %v403 = vld [vmem:[%s288 + $0x100] sm:$0xff]
        %v404 = vld [vmem:[%s288 + $0x108] sm:$0xff]
        %v405 = vld [vmem:[%s288 + $0x110] sm:$0xff]
        %v406 = vld [vmem:[%s288 + $0x118] sm:$0xff]
        %v407 = vld [vmem:[%s288 + $0x120] sm:$0xff]
        %v408 = vld [vmem:[%s288 + $0x128] sm:$0xff]
        %v409 = vld [vmem:[%s288 + $0x130] sm:$0xff]
        %v410 = vld [vmem:[%s288 + $0x138] sm:$0xff]
        %v411 = vld [vmem:[%s288 + $0x140] sm:$0xff]
        %v412 = vld [vmem:[%s288 + $0x148] sm:$0xff]
        %v413 = vld [vmem:[%s288 + $0x150] sm:$0xff]
        %v414 = vld [vmem:[%s288 + $0x158] sm:$0xff]
        %v415 = vld [vmem:[%s288 + $0x160] sm:$0xff]
        %v416 = vld [vmem:[%s288 + $0x168] sm:$0xff]
        %v417 = vld [vmem:[%s288 + $0x170] sm:$0xff]
        %v418 = vld [vmem:[%s288 + $0x178] sm:$0xff]
        %v419 = vld [vmem:[%s288 + $0x180] sm:$0xff]
        %v420 = vld [vmem:[%s288 + $0x188] sm:$0xff]
        %v421 = vld [vmem:[%s288 + $0x190] sm:$0xff]
        %v422 = vld [vmem:[%s288 + $0x198] sm:$0xff]
        %v423 = vld [vmem:[%s288 + $0x1a0] sm:$0xff]
        %v424 = vld [vmem:[%s288 + $0x1a8] sm:$0xff]
        %v425 = vld [vmem:[%s288 + $0x1b0] sm:$0xff]
        %v426 = vld [vmem:[%s288 + $0x1b8] sm:$0xff]
        %v427 = vld [vmem:[%s288 + $0x1c0] sm:$0xff]
        %v428 = vld [vmem:[%s288 + $0x1c8] sm:$0xff]
        %v429 = vld [vmem:[%s288 + $0x1d0] sm:$0xff]
        %v430 = vld [vmem:[%s288 + $0x1d8] sm:$0xff]
        %v431 = vld [vmem:[%s288 + $0x1e0] sm:$0xff]
        %v432 = vld [vmem:[%s288 + $0x1e8] sm:$0xff]
        %v433 = vld [vmem:[%s288 + $0x1f0] sm:$0xff]
        %v434 = vld [vmem:[%s288 + $0x1f8] sm:$0xff]
        %v435 = vld [vmem:[%s356] sm:$0xff]
        %v436 = vld [vmem:[%s356 + $0x8] sm:$0xff]
        %v437 = vld [vmem:[%s356 + $0x10] sm:$0xff]
        %v438 = vld [vmem:[%s356 + $0x18] sm:$0xff]
        %v439 = vld [vmem:[%s298] sm:$0xff]
        %v440 = vld [vmem:[%s298 + $0x8] sm:$0xff]
        %v441 = vld [vmem:[%s298 + $0x10] sm:$0xff]
        %v442 = vld [vmem:[%s298 + $0x18] sm:$0xff]
        %v443 = vld [vmem:[%s298 + $0x20] sm:$0xff]
        %v444 = vld [vmem:[%s298 + $0x28] sm:$0xff]
        %v445 = vld [vmem:[%s298 + $0x30] sm:$0xff]
        %v446 = vld [vmem:[%s298 + $0x38] sm:$0xff]
        %v447 = vld [vmem:[%s298 + $0x40] sm:$0xff]
        %v448 = vld [vmem:[%s298 + $0x48] sm:$0xff]
        %v449 = vld [vmem:[%s298 + $0x50] sm:$0xff]
        %v450 = vld [vmem:[%s298 + $0x58] sm:$0xff]
        %v451 = vld [vmem:[%s298 + $0x60] sm:$0xff]
        %v452 = vld [vmem:[%s298 + $0x68] sm:$0xff]
        %v453 = vld [vmem:[%s298 + $0x70] sm:$0xff]
        %v454 = vld [vmem:[%s298 + $0x78] sm:$0xff]
        %v455 = vld [vmem:[%s298 + $0x80] sm:$0xff]
        %v456 = vld [vmem:[%s298 + $0x88] sm:$0xff]
        %v457 = vld [vmem:[%s298 + $0x90] sm:$0xff]
        %v458 = vld [vmem:[%s298 + $0x98] sm:$0xff]
        %v459 = vld [vmem:[%s298 + $0xa0] sm:$0xff]
        %v460 = vld [vmem:[%s298 + $0xa8] sm:$0xff]
        %v461 = vld [vmem:[%s298 + $0xb0] sm:$0xff]
        %v462 = vld [vmem:[%s298 + $0xb8] sm:$0xff]
        %v463 = vld [vmem:[%s298 + $0xc0] sm:$0xff]
        %v464 = vld [vmem:[%s298 + $0xc8] sm:$0xff]
        %v465 = vld [vmem:[%s298 + $0xd0] sm:$0xff]
        %v466 = vld [vmem:[%s298 + $0xd8] sm:$0xff]
        %v467 = vld [vmem:[%s298 + $0xe0] sm:$0xff]
        %v468 = vld [vmem:[%s298 + $0xe8] sm:$0xff]
        %v469 = vld [vmem:[%s298 + $0xf0] sm:$0xff]
        %v470 = vld [vmem:[%s298 + $0xf8] sm:$0xff]
        %v471 = vld [vmem:[%s298 + $0x100] sm:$0xff]
        %v472 = vld [vmem:[%s298 + $0x108] sm:$0xff]
        %v473 = vld [vmem:[%s298 + $0x110] sm:$0xff]
        %v474 = vld [vmem:[%s298 + $0x118] sm:$0xff]
        %v475 = vld [vmem:[%s298 + $0x120] sm:$0xff]
        %v476 = vld [vmem:[%s298 + $0x128] sm:$0xff]
        %v477 = vld [vmem:[%s298 + $0x130] sm:$0xff]
        %v478 = vld [vmem:[%s298 + $0x138] sm:$0xff]
        %v479 = vld [vmem:[%s298 + $0x140] sm:$0xff]
        %v480 = vld [vmem:[%s298 + $0x148] sm:$0xff]
        %v481 = vld [vmem:[%s298 + $0x150] sm:$0xff]
        %v482 = vld [vmem:[%s298 + $0x158] sm:$0xff]
        %v483 = vld [vmem:[%s298 + $0x160] sm:$0xff]
        %v484 = vld [vmem:[%s298 + $0x168] sm:$0xff]
        %v485 = vld [vmem:[%s298 + $0x170] sm:$0xff]
        %v486 = vld [vmem:[%s298 + $0x178] sm:$0xff]
        %v487 = vld [vmem:[%s298 + $0x180] sm:$0xff]
        %v488 = vld [vmem:[%s298 + $0x188] sm:$0xff]
        %v489 = vld [vmem:[%s298 + $0x190] sm:$0xff]
        %v490 = vld [vmem:[%s298 + $0x198] sm:$0xff]
        %v491 = vld [vmem:[%s298 + $0x1a0] sm:$0xff]
        %v492 = vld [vmem:[%s298 + $0x1a8] sm:$0xff]
        %v493 = vld [vmem:[%s298 + $0x1b0] sm:$0xff]
        %v494 = vld [vmem:[%s298 + $0x1b8] sm:$0xff]
        %v495 = vld [vmem:[%s298 + $0x1c0] sm:$0xff]
        %v496 = vld [vmem:[%s298 + $0x1c8] sm:$0xff]
        %v497 = vld [vmem:[%s298 + $0x1d0] sm:$0xff]
        %v498 = vld [vmem:[%s298 + $0x1d8] sm:$0xff]
        %v499 = vld [vmem:[%s298 + $0x1e0] sm:$0xff]
        %v500 = vld [vmem:[%s298 + $0x1e8] sm:$0xff]
        %v501 = vld [vmem:[%s298 + $0x1f0] sm:$0xff]
        %v502 = vld [vmem:[%s298 + $0x1f8] sm:$0xff]
        %503 = vmatpush.msra.mxu0 %v499
        %504 = vmatpush.msra.mxu0 %v495
        %505 = vmatpush.msra.mxu0 %v491
        %506 = vmatpush.msra.mxu0 %v487
        %507 = vmatpush.msra.mxu0 %v483
        %508 = vmatpush.msra.mxu0 %v479
        %509 = vmatpush.msra.mxu0 %v475
        %510 = vmatpush.msra.mxu0 %v471
        %511 = vmatpush.msra.mxu0 %v467
        %512 = vmatpush.msra.mxu0 %v463
        %513 = vmatpush.msra.mxu0 %v459
        %514 = vmatpush.msra.mxu0 %v455
        %515 = vmatpush.msra.mxu0 %v451
        %516 = vmatpush.msra.mxu0 %v447
        %517 = vmatpush.msra.mxu0 %v443
        %518 = vmatpush.msra.mxu0 %v439
        %519 = vmatmul.f32.gmra.mxu0 %v435
        %v520 = vpop.f32.mrf.mxu0
        %v521 = vadd.f32 0.0, %v520
        %522 = vmatmul.f32.gmra.mxu0 %v436
        %v523 = vpop.f32.mrf.mxu0
        %v524 = vadd.f32 0.0, %v523
        %525 = vmatmul.f32.gmra.mxu0 %v437
        %v526 = vpop.f32.mrf.mxu0
        %v527 = vadd.f32 0.0, %v526
        %528 = vmatmul.f32.gmra.mxu0 %v438
        %v529 = vpop.f32.mrf.mxu0
        %v530 = vadd.f32 0.0, %v529
        %531 = vdwg.mxu0
        %532 = vmatpush.msra.mxu0 %v500
        %533 = vmatpush.msra.mxu0 %v496
        %534 = vmatpush.msra.mxu0 %v492
        %535 = vmatpush.msra.mxu0 %v488
        %536 = vmatpush.msra.mxu0 %v484
        %537 = vmatpush.msra.mxu0 %v480
        %538 = vmatpush.msra.mxu0 %v476
        %539 = vmatpush.msra.mxu0 %v472
        %540 = vmatpush.msra.mxu0 %v468
        %541 = vmatpush.msra.mxu0 %v464
        %542 = vmatpush.msra.mxu0 %v460
        %543 = vmatpush.msra.mxu0 %v456
        %544 = vmatpush.msra.mxu0 %v452
        %545 = vmatpush.msra.mxu0 %v448
        %546 = vmatpush.msra.mxu0 %v444
        %547 = vmatpush.msra.mxu0 %v440
        %548 = vmatmul.f32.gmra.mxu0 %v435
        %v549 = vpop.f32.mrf.mxu0
        %v550 = vadd.f32 0.0, %v549
        %551 = vmatmul.f32.gmra.mxu0 %v436
        %v552 = vpop.f32.mrf.mxu0
        %v553 = vadd.f32 0.0, %v552
        %554 = vmatmul.f32.gmra.mxu0 %v437
        %v555 = vpop.f32.mrf.mxu0
        %v556 = vadd.f32 0.0, %v555
        %557 = vmatmul.f32.gmra.mxu0 %v438
        %v558 = vpop.f32.mrf.mxu0
        %v559 = vadd.f32 0.0, %v558
        %560 = vdwg.mxu0
        %561 = vmatpush.msra.mxu0 %v501
        %562 = vmatpush.msra.mxu0 %v497
        %563 = vmatpush.msra.mxu0 %v493
        %564 = vmatpush.msra.mxu0 %v489
        %565 = vmatpush.msra.mxu0 %v485
        %566 = vmatpush.msra.mxu0 %v481
        %567 = vmatpush.msra.mxu0 %v477
        %568 = vmatpush.msra.mxu0 %v473
        %569 = vmatpush.msra.mxu0 %v469
        %570 = vmatpush.msra.mxu0 %v465
        %571 = vmatpush.msra.mxu0 %v461
        %572 = vmatpush.msra.mxu0 %v457
        %573 = vmatpush.msra.mxu0 %v453
        %574 = vmatpush.msra.mxu0 %v449
        %575 = vmatpush.msra.mxu0 %v445
        %576 = vmatpush.msra.mxu0 %v441
        %577 = vmatmul.f32.gmra.mxu0 %v435
        %v578 = vpop.f32.mrf.mxu0
        %v579 = vadd.f32 0.0, %v578
        %580 = vmatmul.f32.gmra.mxu0 %v436
        %v581 = vpop.f32.mrf.mxu0
        %v582 = vadd.f32 0.0, %v581
        %583 = vmatmul.f32.gmra.mxu0 %v437
        %v584 = vpop.f32.mrf.mxu0
        %v585 = vadd.f32 0.0, %v584
        %586 = vmatmul.f32.gmra.mxu0 %v438
        %v587 = vpop.f32.mrf.mxu0
        %v588 = vadd.f32 0.0, %v587
        %589 = vdwg.mxu0
        %590 = vmatpush.msra.mxu0 %v502
        %591 = vmatpush.msra.mxu0 %v498
        %592 = vmatpush.msra.mxu0 %v494
        %593 = vmatpush.msra.mxu0 %v490
        %594 = vmatpush.msra.mxu0 %v486
        %595 = vmatpush.msra.mxu0 %v482
        %596 = vmatpush.msra.mxu0 %v478
        %597 = vmatpush.msra.mxu0 %v474
        %598 = vmatpush.msra.mxu0 %v470
        %599 = vmatpush.msra.mxu0 %v466
        %600 = vmatpush.msra.mxu0 %v462
        %601 = vmatpush.msra.mxu0 %v458
        %602 = vmatpush.msra.mxu0 %v454
        %603 = vmatpush.msra.mxu0 %v450
        %604 = vmatpush.msra.mxu0 %v446
        %605 = vmatpush.msra.mxu0 %v442
        %606 = vmatmul.f32.gmra.mxu0 %v435
        %v607 = vpop.f32.mrf.mxu0
        %v608 = vadd.f32 0.0, %v607
        %609 = vmatmul.f32.gmra.mxu0 %v436
        %v610 = vpop.f32.mrf.mxu0
        %v611 = vadd.f32 0.0, %v610
        %612 = vmatmul.f32.gmra.mxu0 %v437
        %v613 = vpop.f32.mrf.mxu0
        %v614 = vadd.f32 0.0, %v613
        %615 = vmatmul.f32.gmra.mxu0 %v438
        %v616 = vpop.f32.mrf.mxu0
        %v617 = vadd.f32 0.0, %v616
        %618 = vdwg.mxu0
        %619 = vmatpush.msra.mxu0 %v431
        %620 = vmatpush.msra.mxu0 %v427
        %621 = vmatpush.msra.mxu0 %v423
        %622 = vmatpush.msra.mxu0 %v419
        %623 = vmatpush.msra.mxu0 %v415
        %624 = vmatpush.msra.mxu0 %v411
        %625 = vmatpush.msra.mxu0 %v407
        %626 = vmatpush.msra.mxu0 %v403
        %627 = vmatpush.msra.mxu0 %v399
        %628 = vmatpush.msra.mxu0 %v395
        %629 = vmatpush.msra.mxu0 %v391
        %630 = vmatpush.msra.mxu0 %v387
        %631 = vmatpush.msra.mxu0 %v383
        %632 = vmatpush.msra.mxu0 %v379
        %633 = vmatpush.msra.mxu0 %v375
        %634 = vmatpush.msra.mxu0 %v371
        %635 = vmatmul.f32.gmra.mxu0 %v367
        %v636 = vpop.f32.mrf.mxu0
        %v637 = vadd.f32 %v521, %v636
        %638 = vmatmul.f32.gmra.mxu0 %v368
        %v639 = vpop.f32.mrf.mxu0
        %v640 = vadd.f32 %v524, %v639
        %641 = vmatmul.f32.gmra.mxu0 %v369
        %v642 = vpop.f32.mrf.mxu0
        %v643 = vadd.f32 %v527, %v642
        %644 = vmatmul.f32.gmra.mxu0 %v370
        %v645 = vpop.f32.mrf.mxu0
        %v646 = vadd.f32 %v530, %v645
        %647 = vdwg.mxu0
        %648 = vmatpush.msra.mxu0 %v432
        %649 = vmatpush.msra.mxu0 %v428
        %650 = vmatpush.msra.mxu0 %v424
        %651 = vmatpush.msra.mxu0 %v420
        %652 = vmatpush.msra.mxu0 %v416
        %653 = vmatpush.msra.mxu0 %v412
        %654 = vmatpush.msra.mxu0 %v408
        %655 = vmatpush.msra.mxu0 %v404
        %656 = vmatpush.msra.mxu0 %v400
        %657 = vmatpush.msra.mxu0 %v396
        %658 = vmatpush.msra.mxu0 %v392
        %659 = vmatpush.msra.mxu0 %v388
        %660 = vmatpush.msra.mxu0 %v384
        %661 = vmatpush.msra.mxu0 %v380
        %662 = vmatpush.msra.mxu0 %v376
        %663 = vmatpush.msra.mxu0 %v372
        %664 = vmatmul.f32.gmra.mxu0 %v367
        %v665 = vpop.f32.mrf.mxu0
        %v666 = vadd.f32 %v550, %v665
        %667 = vmatmul.f32.gmra.mxu0 %v368
        %v668 = vpop.f32.mrf.mxu0
        %v669 = vadd.f32 %v553, %v668
        %670 = vmatmul.f32.gmra.mxu0 %v369
        %v671 = vpop.f32.mrf.mxu0
        %v672 = vadd.f32 %v556, %v671
        %673 = vmatmul.f32.gmra.mxu0 %v370
        %v674 = vpop.f32.mrf.mxu0
        %v675 = vadd.f32 %v559, %v674
        %676 = vdwg.mxu0
        %677 = vmatpush.msra.mxu0 %v433
        %678 = vmatpush.msra.mxu0 %v429
        %679 = vmatpush.msra.mxu0 %v425
        %680 = vmatpush.msra.mxu0 %v421
        %681 = vmatpush.msra.mxu0 %v417
        %682 = vmatpush.msra.mxu0 %v413
        %683 = vmatpush.msra.mxu0 %v409
        %684 = vmatpush.msra.mxu0 %v405
        %685 = vmatpush.msra.mxu0 %v401
        %686 = vmatpush.msra.mxu0 %v397
        %687 = vmatpush.msra.mxu0 %v393
        %688 = vmatpush.msra.mxu0 %v389
        %689 = vmatpush.msra.mxu0 %v385
        %690 = vmatpush.msra.mxu0 %v381
        %691 = vmatpush.msra.mxu0 %v377
        %692 = vmatpush.msra.mxu0 %v373
        %693 = vmatmul.f32.gmra.mxu0 %v367
        %v694 = vpop.f32.mrf.mxu0
        %v695 = vadd.f32 %v579, %v694
        %696 = vmatmul.f32.gmra.mxu0 %v368
        %v697 = vpop.f32.mrf.mxu0
        %v698 = vadd.f32 %v582, %v697
        %699 = vmatmul.f32.gmra.mxu0 %v369
        %v700 = vpop.f32.mrf.mxu0
        %v701 = vadd.f32 %v585, %v700
        %702 = vmatmul.f32.gmra.mxu0 %v370
        %v703 = vpop.f32.mrf.mxu0
        %v704 = vadd.f32 %v588, %v703
        %705 = vdwg.mxu0
        %706 = vmatpush.msra.mxu0 %v434
        %707 = vmatpush.msra.mxu0 %v430
        %708 = vmatpush.msra.mxu0 %v426
        %709 = vmatpush.msra.mxu0 %v422
        %710 = vmatpush.msra.mxu0 %v418
        %711 = vmatpush.msra.mxu0 %v414
        %712 = vmatpush.msra.mxu0 %v410
        %713 = vmatpush.msra.mxu0 %v406
        %714 = vmatpush.msra.mxu0 %v402
        %715 = vmatpush.msra.mxu0 %v398
        %716 = vmatpush.msra.mxu0 %v394
        %717 = vmatpush.msra.mxu0 %v390
        %718 = vmatpush.msra.mxu0 %v386
        %719 = vmatpush.msra.mxu0 %v382
        %720 = vmatpush.msra.mxu0 %v378
        %721 = vmatpush.msra.mxu0 %v374
        %722 = vmatmul.f32.gmra.mxu0 %v367
        %v723 = vpop.f32.mrf.mxu0
        %v724 = vadd.f32 %v608, %v723
        %725 = vmatmul.f32.gmra.mxu0 %v368
        %v726 = vpop.f32.mrf.mxu0
        %v727 = vadd.f32 %v611, %v726
        %728 = vmatmul.f32.gmra.mxu0 %v369
        %v729 = vpop.f32.mrf.mxu0
        %v730 = vadd.f32 %v614, %v729
        %731 = vmatmul.f32.gmra.mxu0 %v370
        %v732 = vpop.f32.mrf.mxu0
        %v733 = vadd.f32 %v617, %v732
        %734 = vdwg.mxu0
        %v735 = vld [vmem:[%s363] sm:$0xf]
        %v737 = vperm.slane %v735, 0
        %v738 = vperm.slane %v735, 1
        %v739 = vperm.slane %v735, 2
        %v740 = vperm.slane %v735, 3
        %v745 = vadd.f32 %v637, %v737
        %v746 = vadd.f32 %v666, %v738
        %v747 = vadd.f32 %v695, %v739
        %v748 = vadd.f32 %v724, %v740
        %v749 = vadd.f32 %v640, %v737
        %v750 = vadd.f32 %v669, %v738
        %v751 = vadd.f32 %v698, %v739
        %v752 = vadd.f32 %v727, %v740
        %v753 = vadd.f32 %v643, %v737
        %v754 = vadd.f32 %v672, %v738
        %v755 = vadd.f32 %v701, %v739
        %v756 = vadd.f32 %v730, %v740
        %v757 = vadd.f32 %v646, %v737
        %v758 = vadd.f32 %v675, %v738
        %v759 = vadd.f32 %v704, %v739
        %v760 = vadd.f32 %v733, %v740
        %761 = vst [vmem:[%s344] sm:$0xff] %v745
        %762 = vst [vmem:[%s344 + $0x8] sm:$0xff] %v746
        %763 = vst [vmem:[%s344 + $0x10] sm:$0xff] %v747
        %764 = vst [vmem:[%s344 + $0x18] sm:$0xff] %v748
        %765 = vst [vmem:[%s344 + $0x20] sm:$0xff] %v749
        %766 = vst [vmem:[%s344 + $0x28] sm:$0xff] %v750
        %767 = vst [vmem:[%s344 + $0x30] sm:$0xff] %v751
        %768 = vst [vmem:[%s344 + $0x38] sm:$0xff] %v752
        %769 = vst [vmem:[%s344 + $0x40] sm:$0xff] %v753
        %770 = vst [vmem:[%s344 + $0x48] sm:$0xff] %v754
        %771 = vst [vmem:[%s344 + $0x50] sm:$0xff] %v755
        %772 = vst [vmem:[%s344 + $0x58] sm:$0xff] %v756
        %773 = vst [vmem:[%s344 + $0x60] sm:$0xff] %v757
        %774 = vst [vmem:[%s344 + $0x68] sm:$0xff] %v758
        %775 = vst [vmem:[%s344 + $0x70] sm:$0xff] %v759
        %776 = vst [vmem:[%s344 + $0x78] sm:$0xff] %v760
        %s777 = sand.u32 %s174, 1
        %s778 = sand.u32 %s174, 1
        %s779 = smul.addr %s778, 128
        %s780 = scalar_lea.vmem [#allocation6], %s779
        // Predicated region
        $region49: #{_lambda_.7} parent=39 // pred_check
          %p781 = pneg %p184
        $region50: #{_lambda_.7} parent=39 // pred_check_branch
          %783 = sbr.rel (%p781) target = $region52
        $region51: #{_lambda_.7} parent=39 // pred_region
          %s784 = smul.u32 4, %s27
          %s785 = smul.u32 4, %s26
          %s786 = smul.addr %s784, 8
          %s787 = sadd.s32 %s785, %s786
          %s788 = smul.addr %s787, 8
          %s789 = scalar_lea.vmem %s5, %s788
          // Predicated region
          $region53: #{_lambda_.7} parent=51 // pred_check
            _
          $region54: #{_lambda_.7} parent=51 // pred_check_branch
            %791 = sbr.rel (0) target = $region56
          $region55: #{_lambda_.7} parent=51 // pred_region
            // Predicated region
            $region57: #{_lambda_.7} parent=55 // pred_check
              _
            $region58: #{_lambda_.7} parent=55 // pred_check_branch
              %793 = sbr.rel (0) target = $region60
            $region59: #{_lambda_.7} parent=55 // pred_region
              loop: start=0, step=1, limit=1
              $region61: #{_lambda_.7} parent=59 // loop_pre_header
                _
              $region62: #{_lambda_.7} parent=59 // loop_header
                %s795 = sphi 0, %s799
                %p796 = scmp.ge.s32.totalorder %s795, 1
                %s800 = sphi %s780, %s780
                %s801 = sphi %s789, %s789
              $region63: #{_lambda_.7} parent=59 // loop_header_branch
                %798 = sbr.rel (%p796) target = $region67
              $region64: #{_lambda_.7} parent=59 // loop_body
                %v802 = vld [vmem:[%s800] sm:$0xff]
                %803 = vst [vmem:[%s801] sm:$0xff] %v802
                %v804 = vld [vmem:[%s800 + $0x8] sm:$0xff]
                %805 = vst [vmem:[%s801 + $0x8] sm:$0xff] %v804
                %v806 = vld [vmem:[%s800 + $0x10] sm:$0xff]
                %807 = vst [vmem:[%s801 + $0x10] sm:$0xff] %v806
                %v808 = vld [vmem:[%s800 + $0x18] sm:$0xff]
                %809 = vst [vmem:[%s801 + $0x18] sm:$0xff] %v808
                %v810 = vld [vmem:[%s800 + $0x20] sm:$0xff]
                %811 = vst [vmem:[%s801 + $0x40] sm:$0xff] %v810
                %v812 = vld [vmem:[%s800 + $0x28] sm:$0xff]
                %813 = vst [vmem:[%s801 + $0x48] sm:$0xff] %v812
                %v814 = vld [vmem:[%s800 + $0x30] sm:$0xff]
                %815 = vst [vmem:[%s801 + $0x50] sm:$0xff] %v814
                %v816 = vld [vmem:[%s800 + $0x38] sm:$0xff]
                %817 = vst [vmem:[%s801 + $0x58] sm:$0xff] %v816
                %v818 = vld [vmem:[%s800 + $0x40] sm:$0xff]
                %819 = vst [vmem:[%s801 + $0x80] sm:$0xff] %v818
                %v820 = vld [vmem:[%s800 + $0x48] sm:$0xff]
                %821 = vst [vmem:[%s801 + $0x88] sm:$0xff] %v820
                %v822 = vld [vmem:[%s800 + $0x50] sm:$0xff]
                %823 = vst [vmem:[%s801 + $0x90] sm:$0xff] %v822
                %v824 = vld [vmem:[%s800 + $0x58] sm:$0xff]
                %825 = vst [vmem:[%s801 + $0x98] sm:$0xff] %v824
                %v826 = vld [vmem:[%s800 + $0x60] sm:$0xff]
                %827 = vst [vmem:[%s801 + $0xc0] sm:$0xff] %v826
                %v828 = vld [vmem:[%s800 + $0x68] sm:$0xff]
                %829 = vst [vmem:[%s801 + $0xc8] sm:$0xff] %v828
                %v830 = vld [vmem:[%s800 + $0x70] sm:$0xff]
                %831 = vst [vmem:[%s801 + $0xd0] sm:$0xff] %v830
                %v832 = vld [vmem:[%s800 + $0x78] sm:$0xff]
                %833 = vst [vmem:[%s801 + $0xd8] sm:$0xff] %v832
              $region65: #{_lambda_.7} parent=59 // loop_footer
                %s799 = sadd.s32 1, %s795
              $region66: #{_lambda_.7} parent=59 // loop_footer_branch
                %794 = sbr.rel target = $region62
              $region67: #{_lambda_.7} parent=59 // loop_exit
                _
            $region60: #{_lambda_.7} parent=55 // pred_fallthru
              _
            // Predicated region
            $region68: #{_lambda_.7} parent=55 // pred_check
              _
            $region69: #{_lambda_.7} parent=55 // pred_check_branch
              %835 = sbr.rel target = $region71
            $region70: #{_lambda_.7} parent=55 // pred_region
              _
            $region71: #{_lambda_.7} parent=55 // pred_fallthru
              _
          $region56: #{_lambda_.7} parent=51 // pred_fallthru
            _
          %836 = vnop
        $region52: #{_lambda_.7} parent=39 // pred_fallthru
          _
      $region40: #{_lambda_.7} parent=5 // pred_fallthru
        _
      %p837 = scmp.le.s32.totalorder 2, %s17
      // Predicated region
      $region72: #{_lambda_.7} parent=5 // pred_check
        %p838 = pneg %p837
      $region73: #{_lambda_.7} parent=5 // pred_check_branch
        %840 = sbr.rel (%p838) target = $region75
      $region74: #{_lambda_.7} parent=5 // pred_region
        %s841 = ssub.s32 %s17, 2
        // Predicated region
        $region76: #{_lambda_.7} parent=74 // pred_check
          %p842 = pneg %p190
        $region77: #{_lambda_.7} parent=74 // pred_check_branch
          %844 = sbr.rel (%p842) target = $region79
        $region78: #{_lambda_.7} parent=74 // pred_region
          %s845 = sand.u32 %s175, 1
          %s846 = sand.u32 %s175, 1
          %s847 = smul.addr %s846, 128
          %s848 = scalar_lea.vmem [#allocation6], %s847
        $region79: #{_lambda_.7} parent=74 // pred_fallthru
          _
      $region75: #{_lambda_.7} parent=5 // pred_fallthru
        _
    $region6: #{_lambda_.7} parent=1 // loop_footer
      %s21 = sadd.s32 1, %s17
    $region7: #{_lambda_.7} parent=1 // loop_footer_branch
      %16 = sbr.rel target = $region3
    $region8: #{_lambda_.7} parent=1 // loop_exit
      _
    %849 = vsyncpa [#allocation3], 1
    %s850 = scalar_lea.sflag [#allocation3], 1
    %851 = vsyncpa %s850, 1
    %852 = vsyncpa [#allocation5], 1
    %s853 = scalar_lea.sflag [#allocation5], 1
    %854 = vsyncpa %s853, 1

// kernel: _lambda_.6
$region0: #{_lambda_.6}
  #allocation0 [shape = 'u32[]', space=smem, size = 0x4, offset = 0x4, fixed_abs, tag = 'smem constant byte address 0x4 - core index']
  #allocation1 [shape = 'u32[72,128]{1,0:T(1,128)}', space=vmem, size = 0x9000, scoped, tag = 'internal scratch']
  #allocation2 [shape = 'f32[2,128]{1,0:T(2,128)}', space=vmem, size = 0x400, scoped, tag = 'scratch operand']
  #allocation3 [shape = 'f32[2,128]{1,0:T(2,128)}', space=vmem, size = 0x400, scoped, tag = 'scratch operand']
  %s0 = inlined_call_operand.vmem [shape: f32[16,2,1024], index: 0, kind: input, shape index: {}]
  %s1 = inlined_call_operand.hbm [shape: f32[2,128,512], index: 1, kind: input, shape index: {}]
  %s2 = inlined_call_operand.vmem [shape: f32[2,16,2,128], index: 2, kind: output, shape index: {}]
  %s3 = sld [smem:[#allocation0]]
  $region87: #{_lambda_.6} parent=0
    _
  %s5 = ssub.s32 1, %s3
  %s6 = scalar_select 0, %s5, %s3
  $region1: #{_lambda_.6} parent=0
    #allocation4 [shape = 'u8[65536]{0}', space=vmem, size = 0x10000, scoped, tag = 'input window, operand 0']
    #allocation5 [shape = 'u8[262144]{0}', space=vmem, size = 0x40000, scoped, tag = 'input window, operand 1, single buffered']
    #allocation6 [shape = 's32[2]{0}', space=sflag, size = 0x8, scoped, tag = 'scoped memory for _lambda_.6']
    %7 = vsyncpa [#allocation6], 0
    loop: start=0, step=1, limit=6
    $region2: #{_lambda_.6} parent=1 // loop_pre_header
      _
    $region3: #{_lambda_.6} parent=1 // loop_header
      %s9 = sphi 0, %s13
      %p10 = scmp.ge.s32.totalorder %s9, 6
      %s16 = sphi 0, %s28
      %s17 = sphi 0, %s24
      %s18 = sphi 0, %s16
      %s19 = sphi 0, %s17
      %s20 = sphi 0, %s18
      %s21 = sphi 0, %s19
      %s41 = sphi 0, %s43
      %s44 = sphi 0, %s41
      %s45 = sphi 0, %s44
      %s61 = sphi 0, %s45
      %s67 = sphi 0, %s69
      %s70 = sphi 0, %s67
      %s71 = sphi 0, %s70
      %s87 = sphi 0, %s71
      %s103 = sphi 0, %s105
      %s106 = sphi 0, %s103
      %s107 = sphi 0, %s106
      %s123 = sphi 0, %s107
    $region4: #{_lambda_.6} parent=1 // loop_header_branch
      %12 = sbr.rel (%p10) target = $region8
    $region5: #{_lambda_.6} parent=1 // loop_body
      %s14 = ssub.s32 %s9, 1
      %s15 = ssub.s32 %s9, 2
      %s22 = sadd.s32 1, %s17
      %p23 = scmp.ge.s32.totalorder %s22, 2
      %s24 = scalar_select %p23, 0, %s22
      %s25 = sadd.s32 1, %s16
      %s26 = scalar_select %p23, %s25, %s16
      %p27 = scmp.ge.s32.totalorder %s26, 2
      %s28 = scalar_select %p27, 0, %s26
      %s29 = smul.u32 %s17, 2
      %s30 = ssub.s32 1, %s29
      %s31 = smul.u32 %s16, %s30
      %s32 = sadd.s32 %s17, %s31
      %s33 = smul.u32 %s24, 2
      %s34 = ssub.s32 1, %s33
      %s35 = smul.u32 %s28, %s34
      %s36 = sadd.s32 %s24, %s35
      %s37 = ssub.s32 %s32, %s36
      %s38 = ssub.s32 %s16, %s28
      %s39 = sor.u32 %s37, %s38
      %p40 = scmp.eq.s32.totalorder %s39, 0
      %s42 = sadd.s32 %s41, 1
      %s43 = scalar_select %p40, %s41, %s42
      %p46 = pneg %p40
      %p47 = scmp.eq.s32.totalorder %s9, 3
      %p48 = por %p46, %p47
      %p49 = scmp.ne.s32.totalorder %s41, %s44
      %p50 = scmp.eq.s32.totalorder %s9, 0
      %p51 = por %p49, %p50
      %p52 = scmp.ne.s32.totalorder %s41, %s44
      %p53 = scmp.eq.s32.totalorder %s14, 3
      %p54 = por %p52, %p53
      %p55 = scmp.ne.s32.totalorder %s44, %s45
      %p56 = scmp.eq.s32.totalorder %s14, 0
      %p57 = por %p55, %p56
      %p58 = scmp.ne.s32.totalorder %s44, %s45
      %p59 = scmp.eq.s32.totalorder %s15, 3
      %p60 = por %p58, %p59
      %p62 = scmp.ne.s32.totalorder %s45, %s61
      %p63 = scmp.eq.s32.totalorder %s15, 0
      %p64 = por %p62, %p63
      %s65 = ssub.s32 %s16, %s28
      %p66 = scmp.eq.s32.totalorder %s65, 0
      %s68 = sadd.s32 %s67, 1
      %s69 = scalar_select %p66, %s67, %s68
      %p72 = pneg %p66
      %p73 = scmp.eq.s32.totalorder %s9, 3
      %p74 = por %p72, %p73
      %p75 = scmp.ne.s32.totalorder %s67, %s70
      %p76 = scmp.eq.s32.totalorder %s9, 0
      %p77 = por %p75, %p76
      %p78 = scmp.ne.s32.totalorder %s67, %s70
      %p79 = scmp.eq.s32.totalorder %s14, 3
      %p80 = por %p78, %p79
      %p81 = scmp.ne.s32.totalorder %s70, %s71
      %p82 = scmp.eq.s32.totalorder %s14, 0
      %p83 = por %p81, %p82
      %p84 = scmp.ne.s32.totalorder %s70, %s71
      %p85 = scmp.eq.s32.totalorder %s15, 3
      %p86 = por %p84, %p85
      %p88 = scmp.ne.s32.totalorder %s71, %s87
      %p89 = scmp.eq.s32.totalorder %s15, 0
      %p90 = por %p88, %p89
      %s91 = smul.u32 %s17, 2
      %s92 = ssub.s32 1, %s91
      %s93 = smul.u32 %s16, %s92
      %s94 = sadd.s32 %s17, %s93
      %s95 = smul.u32 %s24, 2
      %s96 = ssub.s32 1, %s95
      %s97 = smul.u32 %s28, %s96
      %s98 = sadd.s32 %s24, %s97
      %s99 = ssub.s32 %s16, %s28
      %s100 = ssub.s32 %s94, %s98
      %s101 = sor.u32 %s99, %s100
      %p102 = scmp.eq.s32.totalorder %s101, 0
      %s104 = sadd.s32 %s103, 1
      %s105 = scalar_select %p102, %s103, %s104
      %p108 = pneg %p102
      %p109 = scmp.eq.s32.totalorder %s9, 3
      %p110 = por %p108, %p109
      %p111 = scmp.ne.s32.totalorder %s103, %s106
      %p112 = scmp.eq.s32.totalorder %s9, 0
      %p113 = por %p111, %p112
      %p114 = scmp.ne.s32.totalorder %s103, %s106
      %p115 = scmp.eq.s32.totalorder %s14, 3
      %p116 = por %p114, %p115
      %p117 = scmp.ne.s32.totalorder %s106, %s107
      %p118 = scmp.eq.s32.totalorder %s14, 0
      %p119 = por %p117, %p118
      %p120 = scmp.ne.s32.totalorder %s106, %s107
      %p121 = scmp.eq.s32.totalorder %s15, 3
      %p122 = por %p120, %p121
      %p124 = scmp.ne.s32.totalorder %s107, %s123
      %p125 = scmp.eq.s32.totalorder %s15, 0
      %p126 = por %p124, %p125
      %p127 = scmp.le.s32.totalorder 1, %s9
      %p128 = scmp.lt.s32.totalorder %s9, 5
      %p129 = pnand %p127, %p128
      %p130 = pneg %p129
      // Predicated region
      $region9: #{_lambda_.6} parent=5 // pred_check
        _
      $region10: #{_lambda_.6} parent=5 // pred_check_branch
        %132 = sbr.rel (%p129) target = $region12
      $region11: #{_lambda_.6} parent=5 // pred_region
        %s133 = ssub.s32 %s9, 1
        // Predicated region
        $region13: #{_lambda_.6} parent=11 // pred_check
          %p134 = pneg %p83
        $region14: #{_lambda_.6} parent=11 // pred_check_branch
          %136 = sbr.rel (%p134) target = $region16
        $region15: #{_lambda_.6} parent=11 // pred_region
          %138 = vsyncadd [#allocation6], 0
          %s139 = smul.addr %s18, 64
          %s140 = smul.addr %s139, 8
          %s141 = scalar_lea.hbm %s1, %s140
          %s142 = sshll.u32 %s141, 4
          %s143 = int_to_ptr.hbm [resolvable:$true] %s142
          %s144 = sshll.u32 [#allocation5], 4
          %s145 = int_to_ptr.vmem [resolvable:$true] %s144
          %150 = dma.hbm_to_vmem [thread:$0]  %s143, 8192, %s145, [#allocation6], 512, 512, 32
        $region16: #{_lambda_.6} parent=11 // pred_fallthru
          _
      $region12: #{_lambda_.6} parent=5 // pred_fallthru
        _
      %p151 = scmp.lt.s32.totalorder %s9, 4
      // Predicated region
      $region17: #{_lambda_.6} parent=5 // pred_check
        %p152 = pneg %p151
      $region18: #{_lambda_.6} parent=5 // pred_check_branch
        %154 = sbr.rel (%p152) target = $region20
      $region19: #{_lambda_.6} parent=5 // pred_region
        // Predicated region
        $region21: #{_lambda_.6} parent=19 // pred_check
          %p155 = pneg %p51
        $region22: #{_lambda_.6} parent=19 // pred_check_branch
          %157 = sbr.rel (%p155) target = $region24
        $region23: #{_lambda_.6} parent=19 // pred_region
          %s158 = sand.u32 %s41, 1
          %s159 = sand.u32 %s41, 1
          %s160 = smul.addr %s159, 64
          %s161 = scalar_lea.vmem [#allocation4], %s160
          %s162 = smul.u32 %s17, 2
          %s163 = ssub.s32 1, %s162
          %s164 = smul.u32 %s16, %s163
          %s165 = sadd.s32 %s17, %s164
          %s166 = smul.u32 8, %s165
          %s167 = smul.u32 4, %s16
          %s168 = smul.addr %s166, 8
          %s169 = sadd.s32 %s167, %s168
          %s170 = smul.addr %s169, 2
          %s171 = scalar_lea.vmem %s0, %s170
          // Predicated region
          $region25: #{_lambda_.6} parent=23 // pred_check
            _
          $region26: #{_lambda_.6} parent=23 // pred_check_branch
            %173 = sbr.rel (0) target = $region28
          $region27: #{_lambda_.6} parent=23 // pred_region
            // Predicated region
            $region29: #{_lambda_.6} parent=27 // pred_check
              _
            $region30: #{_lambda_.6} parent=27 // pred_check_branch
              %175 = sbr.rel (0) target = $region32
            $region31: #{_lambda_.6} parent=27 // pred_region
              // Predicated region
              $region44: #{_lambda_.6} parent=31 // pred_check
                _
              $region45: #{_lambda_.6} parent=31 // pred_check_branch
                %205 = sbr.rel (0) target = $region47
              $region46: #{_lambda_.6} parent=31 // pred_region
                loop: start=0, step=1, limit=1
                $region48: #{_lambda_.6} parent=46 // loop_pre_header
                  _
                $region49: #{_lambda_.6} parent=46 // loop_header
                  %s207 = sphi 0, %s211
                  %p208 = scmp.ge.s32.totalorder %s207, 1
                  %s212 = sphi %s171, %s171
                  %s213 = sphi %s161, %s161
                $region50: #{_lambda_.6} parent=46 // loop_header_branch
                  %210 = sbr.rel (%p208) target = $region54
                $region51: #{_lambda_.6} parent=46 // loop_body
                  %v214 = vld [vmem:[%s212] sm:$0xff]
                  %215 = vst [vmem:[%s213] sm:$0xff] %v214
                  %v216 = vld [vmem:[%s212 + $0x10] sm:$0xff]
                  %217 = vst [vmem:[%s213 + $0x8] sm:$0xff] %v216
                  %v218 = vld [vmem:[%s212 + $0x20] sm:$0xff]
                  %219 = vst [vmem:[%s213 + $0x10] sm:$0xff] %v218
                  %v220 = vld [vmem:[%s212 + $0x30] sm:$0xff]
                  %221 = vst [vmem:[%s213 + $0x18] sm:$0xff] %v220
                  %v222 = vld [vmem:[%s212 + $0x40] sm:$0xff]
                  %223 = vst [vmem:[%s213 + $0x20] sm:$0xff] %v222
                  %v224 = vld [vmem:[%s212 + $0x50] sm:$0xff]
                  %225 = vst [vmem:[%s213 + $0x28] sm:$0xff] %v224
                  %v226 = vld [vmem:[%s212 + $0x60] sm:$0xff]
                  %227 = vst [vmem:[%s213 + $0x30] sm:$0xff] %v226
                  %v228 = vld [vmem:[%s212 + $0x70] sm:$0xff]
                  %229 = vst [vmem:[%s213 + $0x38] sm:$0xff] %v228
                $region52: #{_lambda_.6} parent=46 // loop_footer
                  %s211 = sadd.s32 1, %s207
                $region53: #{_lambda_.6} parent=46 // loop_footer_branch
                  %206 = sbr.rel target = $region49
                $region54: #{_lambda_.6} parent=46 // loop_exit
                  _
              $region47: #{_lambda_.6} parent=31 // pred_fallthru
                _
              // Predicated region
              $region55: #{_lambda_.6} parent=31 // pred_check
                _
              $region56: #{_lambda_.6} parent=31 // pred_check_branch
                %231 = sbr.rel target = $region58
              $region57: #{_lambda_.6} parent=31 // pred_region
                _
              $region58: #{_lambda_.6} parent=31 // pred_fallthru
                _
            $region32: #{_lambda_.6} parent=27 // pred_fallthru
              _
            // Predicated region
            $region33: #{_lambda_.6} parent=27 // pred_check
              _
            $region34: #{_lambda_.6} parent=27 // pred_check_branch
              %177 = sbr.rel target = $region36
            $region35: #{_lambda_.6} parent=27 // pred_region
              %s179 = ssub.s32 256, 1
              loop: start=0, step=1, limit=1
              $region37: #{_lambda_.6} parent=35 // loop_pre_header
                _
              $region38: #{_lambda_.6} parent=35 // loop_header
                %s181 = sphi 0, %s185
                %p182 = scmp.ge.s32.totalorder %s181, 1
                %s186 = sphi %s171, %s171
                %s187 = sphi %s161, %s161
              $region39: #{_lambda_.6} parent=35 // loop_header_branch
                %184 = sbr.rel (%p182) target = $region43
              $region40: #{_lambda_.6} parent=35 // loop_body
                %v188 = vld [vmem:[%s186] sm:%s179]
                %189 = vst [vmem:[%s187] sm:%s179] %v188
                %v190 = vld [vmem:[%s186 + $0x10] sm:%s179]
                %191 = vst [vmem:[%s187 + $0x8] sm:%s179] %v190
                %v192 = vld [vmem:[%s186 + $0x20] sm:%s179]
                %193 = vst [vmem:[%s187 + $0x10] sm:%s179] %v192
                %v194 = vld [vmem:[%s186 + $0x30] sm:%s179]
                %195 = vst [vmem:[%s187 + $0x18] sm:%s179] %v194
                %v196 = vld [vmem:[%s186 + $0x40] sm:%s179]
                %197 = vst [vmem:[%s187 + $0x20] sm:%s179] %v196
                %v198 = vld [vmem:[%s186 + $0x50] sm:%s179]
                %199 = vst [vmem:[%s187 + $0x28] sm:%s179] %v198
                %v200 = vld [vmem:[%s186 + $0x60] sm:%s179]
                %201 = vst [vmem:[%s187 + $0x30] sm:%s179] %v200
                %v202 = vld [vmem:[%s186 + $0x70] sm:%s179]
                %203 = vst [vmem:[%s187 + $0x38] sm:%s179] %v202
              $region41: #{_lambda_.6} parent=35 // loop_footer
                %s185 = sadd.s32 1, %s181
              $region42: #{_lambda_.6} parent=35 // loop_footer_branch
                %180 = sbr.rel target = $region38
              $region43: #{_lambda_.6} parent=35 // loop_exit
                _
            $region36: #{_lambda_.6} parent=27 // pred_fallthru
              _
          $region28: #{_lambda_.6} parent=23 // pred_fallthru
            _
          %232 = vnop
        $region24: #{_lambda_.6} parent=19 // pred_fallthru
          _
      $region20: #{_lambda_.6} parent=5 // pred_fallthru
        _
      %p233 = scmp.le.s32.totalorder 1, %s9
      %p234 = scmp.lt.s32.totalorder %s9, 5
      %p235 = pnand %p233, %p234
      %p236 = pneg %p235
      // Predicated region
      $region59: #{_lambda_.6} parent=5 // pred_check
        _
      $region60: #{_lambda_.6} parent=5 // pred_check_branch
        %238 = sbr.rel (%p235) target = $region62
      $region61: #{_lambda_.6} parent=5 // pred_region
        %s239 = ssub.s32 %s9, 1
        %s240 = sand.u32 %s44, 1
        %s241 = sand.u32 %s44, 1
        %s242 = smul.addr %s241, 64
        %s243 = scalar_lea.vmem [#allocation4], %s242
        // Predicated region
        $region63: #{_lambda_.6} parent=61 // pred_check
          %p244 = pneg %p57
        $region64: #{_lambda_.6} parent=61 // pred_check_branch
          %246 = sbr.rel (%p244) target = $region66
        $region65: #{_lambda_.6} parent=61 // pred_region
          _
        $region66: #{_lambda_.6} parent=61 // pred_fallthru
          _
        // Predicated region
        $region67: #{_lambda_.6} parent=61 // pred_check
          %p247 = pneg %p83
        $region68: #{_lambda_.6} parent=61 // pred_check_branch
          %249 = sbr.rel (%p247) target = $region70
        $region69: #{_lambda_.6} parent=61 // pred_region
          %251 = dma.done [#allocation6], 8192
        $region70: #{_lambda_.6} parent=61 // pred_fallthru
          _
        %s252 = sand.u32 %s44, 1
        %s253 = sand.u32 %s44, 1
        %s254 = smul.addr %s253, 64
        %s255 = scalar_lea.vmem [#allocation4], %s254
        %p256 = pneg %p57
        %p257 = pneg %p54
        %p258 = pneg %p83
        %p259 = pneg %p80
        %p260 = pneg %p119
        %p261 = pneg %p116
        %s262 = smul.u32 %s19, 2
        %s263 = ssub.s32 1, %s262
        %s264 = smul.u32 %s18, %s263
        %s265 = sadd.s32 %s19, %s264
        %s266 = smul.u32 8, %s265
        %p267 = scmp.lt.s32.totalorder %s18, 1
        %s268 = scalar_select %p267, %s18, 1
        %p269 = scmp.lt.s32.totalorder %s266, 15
        %s270 = scalar_select %p269, %s266, 15
        %s271 = smul.addr %s268, 16
        %s272 = sadd.s32 %s270, %s271
        %s273 = smul.addr %s272, 2
        %s274 = scalar_lea.vmem %s2, %s273
        %s275 = smul.u32 %s19, 2
        %s276 = ssub.s32 1, %s275
        %s277 = smul.u32 %s18, %s276
        %s278 = sadd.s32 %s19, %s277
        %s279 = smul.u32 8, %s278
        %s280 = smul.u32 4, %s18
        %s281 = smul.u32 %s19, 2
        %s282 = ssub.s32 1, %s281
        %s283 = smul.u32 %s18, %s282
        %s284 = sadd.s32 %s19, %s283
        %s285 = smul.u32 8, %s284
        %p286 = scmp.lt.s32.totalorder %s18, 1
        %s287 = scalar_select %p286, %s18, 1
        %p288 = scmp.lt.s32.totalorder %s285, 15
        %s289 = scalar_select %p288, %s285, 15
        %s290 = smul.addr %s287, 16
        %s291 = sadd.s32 %s289, %s290
        %s292 = smul.addr %s291, 2
        %s293 = scalar_lea.vmem %s2, %s292
        %s294 = smul.u32 %s19, 2
        %s295 = ssub.s32 1, %s294
        %s296 = smul.u32 %s18, %s295
        %s297 = sadd.s32 %s19, %s296
        %s298 = smul.u32 8, %s297
        %p299 = scmp.eq.s32.totalorder %s19, 0
        // Predicated region
        $region71: #{_lambda_.6} parent=61 // pred_check
          %p300 = pneg %p299
        $region72: #{_lambda_.6} parent=61 // pred_check_branch
          %302 = sbr.rel (%p300) target = $region74
        $region73: #{_lambda_.6} parent=61 // pred_region
          %303 = vst [vmem:[#allocation2] sm:$0x3] 0.0
          %304 = vst [vmem:[#allocation3] sm:$0x3] 0.0
        $region74: #{_lambda_.6} parent=61 // pred_fallthru
          _
        %v305 = vld [vmem:[#allocation5] sm:$0xff]
        %v306 = vld [vmem:[#allocation5 + $0x8] sm:$0xff]
        %v307 = vld [vmem:[#allocation5 + $0x10] sm:$0xff]
        %v308 = vld [vmem:[#allocation5 + $0x18] sm:$0xff]
        %v309 = vld [vmem:[#allocation5 + $0x20] sm:$0xff]
        %v310 = vld [vmem:[#allocation5 + $0x28] sm:$0xff]
        %v311 = vld [vmem:[#allocation5 + $0x30] sm:$0xff]
        %v312 = vld [vmem:[#allocation5 + $0x38] sm:$0xff]
        %v313 = vld [vmem:[#allocation5 + $0x40] sm:$0xff]
        %v314 = vld [vmem:[#allocation5 + $0x48] sm:$0xff]
        %v315 = vld [vmem:[#allocation5 + $0x50] sm:$0xff]
        %v316 = vld [vmem:[#allocation5 + $0x58] sm:$0xff]
        %v317 = vld [vmem:[#allocation5 + $0x60] sm:$0xff]
        %v318 = vld [vmem:[#allocation5 + $0x68] sm:$0xff]
        %v319 = vld [vmem:[#allocation5 + $0x70] sm:$0xff]
        %v320 = vld [vmem:[#allocation5 + $0x78] sm:$0xff]
        %v321 = vld [vmem:[#allocation5 + $0x80] sm:$0xff]
        %v322 = vld [vmem:[#allocation5 + $0x88] sm:$0xff]
        %v323 = vld [vmem:[#allocation5 + $0x90] sm:$0xff]
        %v324 = vld [vmem:[#allocation5 + $0x98] sm:$0xff]
        %v325 = vld [vmem:[#allocation5 + $0xa0] sm:$0xff]
        %v326 = vld [vmem:[#allocation5 + $0xa8] sm:$0xff]
        %v327 = vld [vmem:[#allocation5 + $0xb0] sm:$0xff]
        %v328 = vld [vmem:[#allocation5 + $0xb8] sm:$0xff]
        %v329 = vld [vmem:[#allocation5 + $0xc0] sm:$0xff]
        %v330 = vld [vmem:[#allocation5 + $0xc8] sm:$0xff]
        %v331 = vld [vmem:[#allocation5 + $0xd0] sm:$0xff]
        %v332 = vld [vmem:[#allocation5 + $0xd8] sm:$0xff]
        %v333 = vld [vmem:[#allocation5 + $0xe0] sm:$0xff]
        %v334 = vld [vmem:[#allocation5 + $0xe8] sm:$0xff]
        %v335 = vld [vmem:[#allocation5 + $0xf0] sm:$0xff]
        %v336 = vld [vmem:[#allocation5 + $0xf8] sm:$0xff]
        %v337 = vld [vmem:[#allocation5 + $0x100] sm:$0xff]
        %v338 = vld [vmem:[#allocation5 + $0x108] sm:$0xff]
        %v339 = vld [vmem:[#allocation5 + $0x110] sm:$0xff]
        %v340 = vld [vmem:[#allocation5 + $0x118] sm:$0xff]
        %v341 = vld [vmem:[#allocation5 + $0x120] sm:$0xff]
        %v342 = vld [vmem:[#allocation5 + $0x128] sm:$0xff]
        %v343 = vld [vmem:[#allocation5 + $0x130] sm:$0xff]
        %v344 = vld [vmem:[#allocation5 + $0x138] sm:$0xff]
        %v345 = vld [vmem:[#allocation5 + $0x140] sm:$0xff]
        %v346 = vld [vmem:[#allocation5 + $0x148] sm:$0xff]
        %v347 = vld [vmem:[#allocation5 + $0x150] sm:$0xff]
        %v348 = vld [vmem:[#allocation5 + $0x158] sm:$0xff]
        %v349 = vld [vmem:[#allocation5 + $0x160] sm:$0xff]
        %v350 = vld [vmem:[#allocation5 + $0x168] sm:$0xff]
        %v351 = vld [vmem:[#allocation5 + $0x170] sm:$0xff]
        %v352 = vld [vmem:[#allocation5 + $0x178] sm:$0xff]
        %v353 = vld [vmem:[#allocation5 + $0x180] sm:$0xff]
        %v354 = vld [vmem:[#allocation5 + $0x188] sm:$0xff]
        %v355 = vld [vmem:[#allocation5 + $0x190] sm:$0xff]
        %v356 = vld [vmem:[#allocation5 + $0x198] sm:$0xff]
        %v357 = vld [vmem:[#allocation5 + $0x1a0] sm:$0xff]
        %v358 = vld [vmem:[#allocation5 + $0x1a8] sm:$0xff]
        %v359 = vld [vmem:[#allocation5 + $0x1b0] sm:$0xff]
        %v360 = vld [vmem:[#allocation5 + $0x1b8] sm:$0xff]
        %v361 = vld [vmem:[#allocation5 + $0x1c0] sm:$0xff]
        %v362 = vld [vmem:[#allocation5 + $0x1c8] sm:$0xff]
        %v363 = vld [vmem:[#allocation5 + $0x1d0] sm:$0xff]
        %v364 = vld [vmem:[#allocation5 + $0x1d8] sm:$0xff]
        %v365 = vld [vmem:[#allocation5 + $0x1e0] sm:$0xff]
        %v366 = vld [vmem:[#allocation5 + $0x1e8] sm:$0xff]
        %v367 = vld [vmem:[#allocation5 + $0x1f0] sm:$0xff]
        %v368 = vld [vmem:[#allocation5 + $0x1f8] sm:$0xff]
        %v369 = vld [vmem:[#allocation2] sm:$0x3]
        %v370 = vld [vmem:[#allocation3] sm:$0x3]
        %s371 = smul.u32 %s18, 7
        %s372 = smul.u32 %s371, 4
        %s373 = smul.addr %s372, 2
        %s374 = scalar_lea.vmem %s243, %s373 [#allocation4]
        %v375 = vld [vmem:[%s374] sm:$0xff]
        %376 = vmatpush.msra.mxu0 %v365
        %377 = vmatpush.msra.mxu0 %v361
        %378 = vmatpush.msra.mxu0 %v357
        %379 = vmatpush.msra.mxu0 %v353
        %380 = vmatpush.msra.mxu0 %v349
        %381 = vmatpush.msra.mxu0 %v345
        %382 = vmatpush.msra.mxu0 %v341
        %383 = vmatpush.msra.mxu0 %v337
        %384 = vmatpush.msra.mxu0 %v333
        %385 = vmatpush.msra.mxu0 %v329
        %386 = vmatpush.msra.mxu0 %v325
        %387 = vmatpush.msra.mxu0 %v321
        %388 = vmatpush.msra.mxu0 %v317
        %389 = vmatpush.msra.mxu0 %v313
        %390 = vmatpush.msra.mxu0 %v309
        %391 = vmatpush.msra.mxu0 %v305
        %392 = vmatmul.f32.gmra.mxu0 %v369
        %v393 = vpop.f32.mrf.mxu0
        %v394 = vadd.f32 0.0, %v393
        %395 = vdwg.mxu0
        %396 = vmatpush.msra.mxu0 %v366
        %397 = vmatpush.msra.mxu0 %v362
        %398 = vmatpush.msra.mxu0 %v358
        %399 = vmatpush.msra.mxu0 %v354
        %400 = vmatpush.msra.mxu0 %v350
        %401 = vmatpush.msra.mxu0 %v346
        %402 = vmatpush.msra.mxu0 %v342
        %403 = vmatpush.msra.mxu0 %v338
        %404 = vmatpush.msra.mxu0 %v334
        %405 = vmatpush.msra.mxu0 %v330
        %406 = vmatpush.msra.mxu0 %v326
        %407 = vmatpush.msra.mxu0 %v322
        %408 = vmatpush.msra.mxu0 %v318
        %409 = vmatpush.msra.mxu0 %v314
        %410 = vmatpush.msra.mxu0 %v310
        %411 = vmatpush.msra.mxu0 %v306
        %412 = vmatmul.f32.gmra.mxu0 %v369
        %v413 = vpop.f32.mrf.mxu0
        %v414 = vadd.f32 0.0, %v413
        %415 = vdwg.mxu0
        %416 = vmatpush.msra.mxu0 %v367
        %417 = vmatpush.msra.mxu0 %v363
        %418 = vmatpush.msra.mxu0 %v359
        %419 = vmatpush.msra.mxu0 %v355
        %420 = vmatpush.msra.mxu0 %v351
        %421 = vmatpush.msra.mxu0 %v347
        %422 = vmatpush.msra.mxu0 %v343
        %423 = vmatpush.msra.mxu0 %v339
        %424 = vmatpush.msra.mxu0 %v335
        %425 = vmatpush.msra.mxu0 %v331
        %426 = vmatpush.msra.mxu0 %v327
        %427 = vmatpush.msra.mxu0 %v323
        %428 = vmatpush.msra.mxu0 %v319
        %429 = vmatpush.msra.mxu0 %v315
        %430 = vmatpush.msra.mxu0 %v311
        %431 = vmatpush.msra.mxu0 %v307
        %432 = vmatmul.f32.gmra.mxu0 %v369
        %v433 = vpop.f32.mrf.mxu0
        %v434 = vadd.f32 0.0, %v433
        %435 = vdwg.mxu0
        %436 = vmatpush.msra.mxu0 %v368
        %437 = vmatpush.msra.mxu0 %v364
        %438 = vmatpush.msra.mxu0 %v360
        %439 = vmatpush.msra.mxu0 %v356
        %440 = vmatpush.msra.mxu0 %v352
        %441 = vmatpush.msra.mxu0 %v348
        %442 = vmatpush.msra.mxu0 %v344
        %443 = vmatpush.msra.mxu0 %v340
        %444 = vmatpush.msra.mxu0 %v336
        %445 = vmatpush.msra.mxu0 %v332
        %446 = vmatpush.msra.mxu0 %v328
        %447 = vmatpush.msra.mxu0 %v324
        %448 = vmatpush.msra.mxu0 %v320
        %449 = vmatpush.msra.mxu0 %v316
        %450 = vmatpush.msra.mxu0 %v312
        %451 = vmatpush.msra.mxu0 %v308
        %452 = vmatmul.f32.gmra.mxu0 %v369
        %v453 = vpop.f32.mrf.mxu0
        %v454 = vadd.f32 0.0, %v453
        %455 = vdwg.mxu0
        %v460 = vrot.slane %v414, 6
        %v461 = vrot.slane %v434, 4
        %v462 = vrot.slane %v454, 2
        %vm463 = vcmask 1041408
        %v464 = vsel %vm463, %v394, %v460
        %vm465 = vcmask 1045508
        %v466 = vsel %vm465, %v461, %v462
        %vm467 = vcmask 1043456
        %v468 = vsel %vm467, %v464, %v466
        %v470 = vadd.f32 %v375, %v468
        %v471 = vxor.u32 %v470, 2147483648
        %v472 = vmul.f32 %v471, 1.442695
        %v473 = vpow.pop %v472
        %v474 = vadd.f32 %v473, 1.0
        %v475 = vrcp.pop %v474
        %v476 = vmul.f32 %v474, %v475
        %v477 = vsub.f32 1.0, %v476
        %v478 = vmul.f32 %v475, %v477
        %v479 = vadd.f32 %v475, %v478
        %vm480 = vweird.f32 %v474
        %vm481 = vweird.f32 %v475
        %vm482 = vmor %vm480, %vm481
        %v483 = vsel %vm482, %v475, %v479
        %v484 = vand.u32 2147483647, %v474
        %vm485 = vcmp.eq.f32.partialorder %v484, 8.507059e+37
        %v486 = vand.u32 %v474, 2147483648
        %v487 = vor.u32 1.1754944e-38, %v486
        %v488 = vsel %vm485, %v487, %v483
        %v489 = vmul.f32 1.0, %v488
        %v491 = vrot.slane %v470, 2
        %v493 = vxor.u32 %v491, 2147483648
        %v494 = vmul.f32 %v493, 1.442695
        %v495 = vpow.pop %v494
        %v496 = vadd.f32 %v495, 1.0
        %v497 = vrcp.pop %v496
        %v498 = vmul.f32 %v496, %v497
        %v499 = vsub.f32 1.0, %v498
        %v500 = vmul.f32 %v497, %v499
        %v501 = vadd.f32 %v497, %v500
        %vm502 = vweird.f32 %v496
        %vm503 = vweird.f32 %v497
        %vm504 = vmor %vm502, %vm503
        %v505 = vsel %vm504, %v497, %v501
        %v506 = vand.u32 2147483647, %v496
        %vm507 = vcmp.eq.f32.partialorder %v506, 8.507059e+37
        %v508 = vand.u32 %v496, 2147483648
        %v509 = vor.u32 1.1754944e-38, %v508
        %v510 = vsel %vm507, %v509, %v505
        %v511 = vmul.f32 1.0, %v510
        %v512 = vrot.slane %v470, 4
        %v514 = vtanh.pop %v512
        %v515 = vrot.slane %v470, 6
        %v517 = vxor.u32 %v515, 2147483648
        %v518 = vmul.f32 %v517, 1.442695
        %v519 = vpow.pop %v518
        %v520 = vadd.f32 %v519, 1.0
        %v521 = vrcp.pop %v520
        %v522 = vmul.f32 %v520, %v521
        %v523 = vsub.f32 1.0, %v522
        %v524 = vmul.f32 %v521, %v523
        %v525 = vadd.f32 %v521, %v524
        %vm526 = vweird.f32 %v520
        %vm527 = vweird.f32 %v521
        %vm528 = vmor %vm526, %vm527
        %v529 = vsel %vm528, %v521, %v525
        %v530 = vand.u32 2147483647, %v520
        %vm531 = vcmp.eq.f32.partialorder %v530, 8.507059e+37
        %v532 = vand.u32 %v520, 2147483648
        %v533 = vor.u32 1.1754944e-38, %v532
        %v534 = vsel %vm531, %v533, %v529
        %v535 = vmul.f32 1.0, %v534
        %v536 = vmul.f32 %v511, %v370
        %v537 = vmul.f32 %v489, %v514
        %v538 = vadd.f32 %v536, %v537
        %v539 = vtanh.pop %v538
        %v540 = vmul.f32 %v535, %v539
        %s541 = smul.u32 %s371, 2
        %s542 = scalar_lea.vmem %s293, %s541
        %543 = vst [vmem:[%s542] sm:$0x3] %v540
        %s544 = smul.u32 %s18, 5
        %s545 = sadd.s32 %s544, 1
        %s546 = smul.u32 %s545, 4
        %s547 = smul.addr %s546, 2
        %s548 = scalar_lea.vmem %s243, %s547 [#allocation4]
        %v549 = vld [vmem:[%s548] sm:$0xff]
        %550 = vmatpush.msra.mxu0 %v365
        %551 = vmatpush.msra.mxu0 %v361
        %552 = vmatpush.msra.mxu0 %v357
        %553 = vmatpush.msra.mxu0 %v353
        %554 = vmatpush.msra.mxu0 %v349
        %555 = vmatpush.msra.mxu0 %v345
        %556 = vmatpush.msra.mxu0 %v341
        %557 = vmatpush.msra.mxu0 %v337
        %558 = vmatpush.msra.mxu0 %v333
        %559 = vmatpush.msra.mxu0 %v329
        %560 = vmatpush.msra.mxu0 %v325
        %561 = vmatpush.msra.mxu0 %v321
        %562 = vmatpush.msra.mxu0 %v317
        %563 = vmatpush.msra.mxu0 %v313
        %564 = vmatpush.msra.mxu0 %v309
        %565 = vmatpush.msra.mxu0 %v305
        %566 = vmatmul.f32.gmra.mxu0 %v540
        %v567 = vpop.f32.mrf.mxu0
        %v568 = vadd.f32 0.0, %v567
        %569 = vdwg.mxu0
        %570 = vmatpush.msra.mxu0 %v366
        %571 = vmatpush.msra.mxu0 %v362
        %572 = vmatpush.msra.mxu0 %v358
        %573 = vmatpush.msra.mxu0 %v354
        %574 = vmatpush.msra.mxu0 %v350
        %575 = vmatpush.msra.mxu0 %v346
        %576 = vmatpush.msra.mxu0 %v342
        %577 = vmatpush.msra.mxu0 %v338
        %578 = vmatpush.msra.mxu0 %v334
        %579 = vmatpush.msra.mxu0 %v330
        %580 = vmatpush.msra.mxu0 %v326
        %581 = vmatpush.msra.mxu0 %v322
        %582 = vmatpush.msra.mxu0 %v318
        %583 = vmatpush.msra.mxu0 %v314
        %584 = vmatpush.msra.mxu0 %v310
        %585 = vmatpush.msra.mxu0 %v306
        %586 = vmatmul.f32.gmra.mxu0 %v540
        %v587 = vpop.f32.mrf.mxu0
        %v588 = vadd.f32 0.0, %v587
        %589 = vdwg.mxu0
        %590 = vmatpush.msra.mxu0 %v367
        %591 = vmatpush.msra.mxu0 %v363
        %592 = vmatpush.msra.mxu0 %v359
        %593 = vmatpush.msra.mxu0 %v355
        %594 = vmatpush.msra.mxu0 %v351
        %595 = vmatpush.msra.mxu0 %v347
        %596 = vmatpush.msra.mxu0 %v343
        %597 = vmatpush.msra.mxu0 %v339
        %598 = vmatpush.msra.mxu0 %v335
        %599 = vmatpush.msra.mxu0 %v331
        %600 = vmatpush.msra.mxu0 %v327
        %601 = vmatpush.msra.mxu0 %v323
        %602 = vmatpush.msra.mxu0 %v319
        %603 = vmatpush.msra.mxu0 %v315
        %604 = vmatpush.msra.mxu0 %v311
        %605 = vmatpush.msra.mxu0 %v307
        %606 = vmatmul.f32.gmra.mxu0 %v540
        %v607 = vpop.f32.mrf.mxu0
        %v608 = vadd.f32 0.0, %v607
        %609 = vdwg.mxu0
        %610 = vmatpush.msra.mxu0 %v368
        %611 = vmatpush.msra.mxu0 %v364
        %612 = vmatpush.msra.mxu0 %v360
        %613 = vmatpush.msra.mxu0 %v356
        %614 = vmatpush.msra.mxu0 %v352
        %615 = vmatpush.msra.mxu0 %v348
        %616 = vmatpush.msra.mxu0 %v344
        %617 = vmatpush.msra.mxu0 %v340
        %618 = vmatpush.msra.mxu0 %v336
        %619 = vmatpush.msra.mxu0 %v332
        %620 = vmatpush.msra.mxu0 %v328
        %621 = vmatpush.msra.mxu0 %v324
        %622 = vmatpush.msra.mxu0 %v320
        %623 = vmatpush.msra.mxu0 %v316
        %624 = vmatpush.msra.mxu0 %v312
        %625 = vmatpush.msra.mxu0 %v308
        %626 = vmatmul.f32.gmra.mxu0 %v540
        %v627 = vpop.f32.mrf.mxu0
        %v628 = vadd.f32 0.0, %v627
        %629 = vdwg.mxu0
        %v634 = vrot.slane %v588, 6
        %v635 = vrot.slane %v608, 4
        %v636 = vrot.slane %v628, 2
        %v637 = vsel %vm463, %v568, %v634
        %v638 = vsel %vm465, %v635, %v636
        %v639 = vsel %vm467, %v637, %v638
        %v641 = vadd.f32 %v549, %v639
        %v642 = vxor.u32 %v641, 2147483648
        %v643 = vmul.f32 %v642, 1.442695
        %v644 = vpow.pop %v643
        %v645 = vadd.f32 %v644, 1.0
        %v646 = vrcp.pop %v645
        %v647 = vmul.f32 %v645, %v646
        %v648 = vsub.f32 1.0, %v647
        %v649 = vmul.f32 %v646, %v648
        %v650 = vadd.f32 %v646, %v649
        %vm651 = vweird.f32 %v645
        %vm652 = vweird.f32 %v646
        %vm653 = vmor %vm651, %vm652
        %v654 = vsel %vm653, %v646, %v650
        %v655 = vand.u32 2147483647, %v645
        %vm656 = vcmp.eq.f32.partialorder %v655, 8.507059e+37
        %v657 = vand.u32 %v645, 2147483648
        %v658 = vor.u32 1.1754944e-38, %v657
        %v659 = vsel %vm656, %v658, %v654
        %v660 = vmul.f32 1.0, %v659
        %v662 = vrot.slane %v641, 2
        %v664 = vxor.u32 %v662, 2147483648
        %v665 = vmul.f32 %v664, 1.442695
        %v666 = vpow.pop %v665
        %v667 = vadd.f32 %v666, 1.0
        %v668 = vrcp.pop %v667
        %v669 = vmul.f32 %v667, %v668
        %v670 = vsub.f32 1.0, %v669
        %v671 = vmul.f32 %v668, %v670
        %v672 = vadd.f32 %v668, %v671
        %vm673 = vweird.f32 %v667
        %vm674 = vweird.f32 %v668
        %vm675 = vmor %vm673, %vm674
        %v676 = vsel %vm675, %v668, %v672
        %v677 = vand.u32 2147483647, %v667
        %vm678 = vcmp.eq.f32.partialorder %v677, 8.507059e+37
        %v679 = vand.u32 %v667, 2147483648
        %v680 = vor.u32 1.1754944e-38, %v679
        %v681 = vsel %vm678, %v680, %v676
        %v682 = vmul.f32 1.0, %v681
        %v683 = vrot.slane %v641, 4
        %v685 = vtanh.pop %v683
        %v686 = vrot.slane %v641, 6
        %v688 = vxor.u32 %v686, 2147483648
        %v689 = vmul.f32 %v688, 1.442695
        %v690 = vpow.pop %v689
        %v691 = vadd.f32 %v690, 1.0
        %v692 = vrcp.pop %v691
        %v693 = vmul.f32 %v691, %v692
        %v694 = vsub.f32 1.0, %v693
        %v695 = vmul.f32 %v692, %v694
        %v696 = vadd.f32 %v692, %v695
        %vm697 = vweird.f32 %v691
        %vm698 = vweird.f32 %v692
        %vm699 = vmor %vm697, %vm698
        %v700 = vsel %vm699, %v692, %v696
        %v701 = vand.u32 2147483647, %v691
        %vm702 = vcmp.eq.f32.partialorder %v701, 8.507059e+37
        %v703 = vand.u32 %v691, 2147483648
        %v704 = vor.u32 1.1754944e-38, %v703
        %v705 = vsel %vm702, %v704, %v700
        %v706 = vmul.f32 1.0, %v705
        %v707 = vmul.f32 %v682, %v538
        %v708 = vmul.f32 %v660, %v685
        %v709 = vadd.f32 %v707, %v708
        %v710 = vtanh.pop %v709
        %v711 = vmul.f32 %v706, %v710
        %s712 = smul.u32 %s545, 2
        %s713 = scalar_lea.vmem %s293, %s712
        %714 = vst [vmem:[%s713] sm:$0x3] %v711
        %s715 = smul.u32 %s18, 3
        %s716 = sadd.s32 %s715, 2
        %s717 = smul.u32 %s716, 4
        %s718 = smul.addr %s717, 2
        %s719 = scalar_lea.vmem %s243, %s718 [#allocation4]
        %v720 = vld [vmem:[%s719] sm:$0xff]
        %721 = vmatpush.msra.mxu0 %v365
        %722 = vmatpush.msra.mxu0 %v361
        %723 = vmatpush.msra.mxu0 %v357
        %724 = vmatpush.msra.mxu0 %v353
        %725 = vmatpush.msra.mxu0 %v349
        %726 = vmatpush.msra.mxu0 %v345
        %727 = vmatpush.msra.mxu0 %v341
        %728 = vmatpush.msra.mxu0 %v337
        %729 = vmatpush.msra.mxu0 %v333
        %730 = vmatpush.msra.mxu0 %v329
        %731 = vmatpush.msra.mxu0 %v325
        %732 = vmatpush.msra.mxu0 %v321
        %733 = vmatpush.msra.mxu0 %v317
        %734 = vmatpush.msra.mxu0 %v313
        %735 = vmatpush.msra.mxu0 %v309
        %736 = vmatpush.msra.mxu0 %v305
        %737 = vmatmul.f32.gmra.mxu0 %v711
        %v738 = vpop.f32.mrf.mxu0
        %v739 = vadd.f32 0.0, %v738
        %740 = vdwg.mxu0
        %741 = vmatpush.msra.mxu0 %v366
        %742 = vmatpush.msra.mxu0 %v362
        %743 = vmatpush.msra.mxu0 %v358
        %744 = vmatpush.msra.mxu0 %v354
        %745 = vmatpush.msra.mxu0 %v350
        %746 = vmatpush.msra.mxu0 %v346
        %747 = vmatpush.msra.mxu0 %v342
        %748 = vmatpush.msra.mxu0 %v338
        %749 = vmatpush.msra.mxu0 %v334
        %750 = vmatpush.msra.mxu0 %v330
        %751 = vmatpush.msra.mxu0 %v326
        %752 = vmatpush.msra.mxu0 %v322
        %753 = vmatpush.msra.mxu0 %v318
        %754 = vmatpush.msra.mxu0 %v314
        %755 = vmatpush.msra.mxu0 %v310
        %756 = vmatpush.msra.mxu0 %v306
        %757 = vmatmul.f32.gmra.mxu0 %v711
        %v758 = vpop.f32.mrf.mxu0
        %v759 = vadd.f32 0.0, %v758
        %760 = vdwg.mxu0
        %761 = vmatpush.msra.mxu0 %v367
        %762 = vmatpush.msra.mxu0 %v363
        %763 = vmatpush.msra.mxu0 %v359
        %764 = vmatpush.msra.mxu0 %v355
        %765 = vmatpush.msra.mxu0 %v351
        %766 = vmatpush.msra.mxu0 %v347
        %767 = vmatpush.msra.mxu0 %v343
        %768 = vmatpush.msra.mxu0 %v339
        %769 = vmatpush.msra.mxu0 %v335
        %770 = vmatpush.msra.mxu0 %v331
        %771 = vmatpush.msra.mxu0 %v327
        %772 = vmatpush.msra.mxu0 %v323
        %773 = vmatpush.msra.mxu0 %v319
        %774 = vmatpush.msra.mxu0 %v315
        %775 = vmatpush.msra.mxu0 %v311
        %776 = vmatpush.msra.mxu0 %v307
        %777 = vmatmul.f32.gmra.mxu0 %v711
        %v778 = vpop.f32.mrf.mxu0
        %v779 = vadd.f32 0.0, %v778
        %780 = vdwg.mxu0
        %781 = vmatpush.msra.mxu0 %v368
        %782 = vmatpush.msra.mxu0 %v364
        %783 = vmatpush.msra.mxu0 %v360
        %784 = vmatpush.msra.mxu0 %v356
        %785 = vmatpush.msra.mxu0 %v352
        %786 = vmatpush.msra.mxu0 %v348
        %787 = vmatpush.msra.mxu0 %v344
        %788 = vmatpush.msra.mxu0 %v340
        %789 = vmatpush.msra.mxu0 %v336
        %790 = vmatpush.msra.mxu0 %v332
        %791 = vmatpush.msra.mxu0 %v328
        %792 = vmatpush.msra.mxu0 %v324
        %793 = vmatpush.msra.mxu0 %v320
        %794 = vmatpush.msra.mxu0 %v316
        %795 = vmatpush.msra.mxu0 %v312
        %796 = vmatpush.msra.mxu0 %v308
        %797 = vmatmul.f32.gmra.mxu0 %v711
        %v798 = vpop.f32.mrf.mxu0
        %v799 = vadd.f32 0.0, %v798
        %800 = vdwg.mxu0
        %v805 = vrot.slane %v759, 6
        %v806 = vrot.slane %v779, 4
        %v807 = vrot.slane %v799, 2
        %v808 = vsel %vm463, %v739, %v805
        %v809 = vsel %vm465, %v806, %v807
        %v810 = vsel %vm467, %v808, %v809
        %v812 = vadd.f32 %v720, %v810
        %v813 = vxor.u32 %v812, 2147483648
        %v814 = vmul.f32 %v813, 1.442695
        %v815 = vpow.pop %v814
        %v816 = vadd.f32 %v815, 1.0
        %v817 = vrcp.pop %v816
        %v818 = vmul.f32 %v816, %v817
        %v819 = vsub.f32 1.0, %v818
        %v820 = vmul.f32 %v817, %v819
        %v821 = vadd.f32 %v817, %v820
        %vm822 = vweird.f32 %v816
        %vm823 = vweird.f32 %v817
        %vm824 = vmor %vm822, %vm823
        %v825 = vsel %vm824, %v817, %v821
        %v826 = vand.u32 2147483647, %v816
        %vm827 = vcmp.eq.f32.partialorder %v826, 8.507059e+37
        %v828 = vand.u32 %v816, 2147483648
        %v829 = vor.u32 1.1754944e-38, %v828
        %v830 = vsel %vm827, %v829, %v825
        %v831 = vmul.f32 1.0, %v830
        %v833 = vrot.slane %v812, 2
        %v835 = vxor.u32 %v833, 2147483648
        %v836 = vmul.f32 %v835, 1.442695
        %v837 = vpow.pop %v836
        %v838 = vadd.f32 %v837, 1.0
        %v839 = vrcp.pop %v838
        %v840 = vmul.f32 %v838, %v839
        %v841 = vsub.f32 1.0, %v840
        %v842 = vmul.f32 %v839, %v841
        %v843 = vadd.f32 %v839, %v842
        %vm844 = vweird.f32 %v838
        %vm845 = vweird.f32 %v839
        %vm846 = vmor %vm844, %vm845
        %v847 = vsel %vm846, %v839, %v843
        %v848 = vand.u32 2147483647, %v838
        %vm849 = vcmp.eq.f32.partialorder %v848, 8.507059e+37
        %v850 = vand.u32 %v838, 2147483648
        %v851 = vor.u32 1.1754944e-38, %v850
        %v852 = vsel %vm849, %v851, %v847
        %v853 = vmul.f32 1.0, %v852
        %v854 = vrot.slane %v812, 4
        %v856 = vtanh.pop %v854
        %v857 = vrot.slane %v812, 6
        %v859 = vxor.u32 %v857, 2147483648
        %v860 = vmul.f32 %v859, 1.442695
        %v861 = vpow.pop %v860
        %v862 = vadd.f32 %v861, 1.0
        %v863 = vrcp.pop %v862
        %v864 = vmul.f32 %v862, %v863
        %v865 = vsub.f32 1.0, %v864
        %v866 = vmul.f32 %v863, %v865
        %v867 = vadd.f32 %v863, %v866
        %vm868 = vweird.f32 %v862
        %vm869 = vweird.f32 %v863
        %vm870 = vmor %vm868, %vm869
        %v871 = vsel %vm870, %v863, %v867
        %v872 = vand.u32 2147483647, %v862
        %vm873 = vcmp.eq.f32.partialorder %v872, 8.507059e+37
        %v874 = vand.u32 %v862, 2147483648
        %v875 = vor.u32 1.1754944e-38, %v874
        %v876 = vsel %vm873, %v875, %v871
        %v877 = vmul.f32 1.0, %v876
        %v878 = vmul.f32 %v853, %v709
        %v879 = vmul.f32 %v831, %v856
        %v880 = vadd.f32 %v878, %v879
        %v881 = vtanh.pop %v880
        %v882 = vmul.f32 %v877, %v881
        %s883 = smul.u32 %s716, 2
        %s884 = scalar_lea.vmem %s293, %s883
        %885 = vst [vmem:[%s884] sm:$0x3] %v882
        %s886 = sadd.s32 %s18, 3
        %s887 = smul.u32 %s886, 4
        %s888 = smul.addr %s887, 2
        %s889 = scalar_lea.vmem %s243, %s888 [#allocation4]
        %v890 = vld [vmem:[%s889] sm:$0xff]
        %891 = vmatpush.msra.mxu0 %v365
        %892 = vmatpush.msra.mxu0 %v361
        %893 = vmatpush.msra.mxu0 %v357
        %894 = vmatpush.msra.mxu0 %v353
        %895 = vmatpush.msra.mxu0 %v349
        %896 = vmatpush.msra.mxu0 %v345
        %897 = vmatpush.msra.mxu0 %v341
        %898 = vmatpush.msra.mxu0 %v337
        %899 = vmatpush.msra.mxu0 %v333
        %900 = vmatpush.msra.mxu0 %v329
        %901 = vmatpush.msra.mxu0 %v325
        %902 = vmatpush.msra.mxu0 %v321
        %903 = vmatpush.msra.mxu0 %v317
        %904 = vmatpush.msra.mxu0 %v313
        %905 = vmatpush.msra.mxu0 %v309
        %906 = vmatpush.msra.mxu0 %v305
        %907 = vmatmul.f32.gmra.mxu0 %v882
        %v908 = vpop.f32.mrf.mxu0
        %v909 = vadd.f32 0.0, %v908
        %910 = vdwg.mxu0
        %911 = vmatpush.msra.mxu0 %v366
        %912 = vmatpush.msra.mxu0 %v362
        %913 = vmatpush.msra.mxu0 %v358
        %914 = vmatpush.msra.mxu0 %v354
        %915 = vmatpush.msra.mxu0 %v350
        %916 = vmatpush.msra.mxu0 %v346
        %917 = vmatpush.msra.mxu0 %v342
        %918 = vmatpush.msra.mxu0 %v338
        %919 = vmatpush.msra.mxu0 %v334
        %920 = vmatpush.msra.mxu0 %v330
        %921 = vmatpush.msra.mxu0 %v326
        %922 = vmatpush.msra.mxu0 %v322
        %923 = vmatpush.msra.mxu0 %v318
        %924 = vmatpush.msra.mxu0 %v314
        %925 = vmatpush.msra.mxu0 %v310
        %926 = vmatpush.msra.mxu0 %v306
        %927 = vmatmul.f32.gmra.mxu0 %v882
        %v928 = vpop.f32.mrf.mxu0
        %v929 = vadd.f32 0.0, %v928
        %930 = vdwg.mxu0
        %931 = vmatpush.msra.mxu0 %v367
        %932 = vmatpush.msra.mxu0 %v363
        %933 = vmatpush.msra.mxu0 %v359
        %934 = vmatpush.msra.mxu0 %v355
        %935 = vmatpush.msra.mxu0 %v351
        %936 = vmatpush.msra.mxu0 %v347
        %937 = vmatpush.msra.mxu0 %v343
        %938 = vmatpush.msra.mxu0 %v339
        %939 = vmatpush.msra.mxu0 %v335
        %940 = vmatpush.msra.mxu0 %v331
        %941 = vmatpush.msra.mxu0 %v327
        %942 = vmatpush.msra.mxu0 %v323
        %943 = vmatpush.msra.mxu0 %v319
        %944 = vmatpush.msra.mxu0 %v315
        %945 = vmatpush.msra.mxu0 %v311
        %946 = vmatpush.msra.mxu0 %v307
        %947 = vmatmul.f32.gmra.mxu0 %v882
        %v948 = vpop.f32.mrf.mxu0
        %v949 = vadd.f32 0.0, %v948
        %950 = vdwg.mxu0
        %951 = vmatpush.msra.mxu0 %v368
        %952 = vmatpush.msra.mxu0 %v364
        %953 = vmatpush.msra.mxu0 %v360
        %954 = vmatpush.msra.mxu0 %v356
        %955 = vmatpush.msra.mxu0 %v352
        %956 = vmatpush.msra.mxu0 %v348
        %957 = vmatpush.msra.mxu0 %v344
        %958 = vmatpush.msra.mxu0 %v340
        %959 = vmatpush.msra.mxu0 %v336
        %960 = vmatpush.msra.mxu0 %v332
        %961 = vmatpush.msra.mxu0 %v328
        %962 = vmatpush.msra.mxu0 %v324
        %963 = vmatpush.msra.mxu0 %v320
        %964 = vmatpush.msra.mxu0 %v316
        %965 = vmatpush.msra.mxu0 %v312
        %966 = vmatpush.msra.mxu0 %v308
        %967 = vmatmul.f32.gmra.mxu0 %v882
        %v968 = vpop.f32.mrf.mxu0
        %v969 = vadd.f32 0.0, %v968
        %970 = vdwg.mxu0
        %v975 = vrot.slane %v929, 6
        %v976 = vrot.slane %v949, 4
        %v977 = vrot.slane %v969, 2
        %v978 = vsel %vm463, %v909, %v975
        %v979 = vsel %vm465, %v976, %v977
        %v980 = vsel %vm467, %v978, %v979
        %v982 = vadd.f32 %v890, %v980
        %v983 = vxor.u32 %v982, 2147483648
        %v984 = vmul.f32 %v983, 1.442695
        %v985 = vpow.pop %v984
        %v986 = vadd.f32 %v985, 1.0
        %v987 = vrcp.pop %v986
        %v988 = vmul.f32 %v986, %v987
        %v989 = vsub.f32 1.0, %v988
        %v990 = vmul.f32 %v987, %v989
        %v991 = vadd.f32 %v987, %v990
        %vm992 = vweird.f32 %v986
        %vm993 = vweird.f32 %v987
        %vm994 = vmor %vm992, %vm993
        %v995 = vsel %vm994, %v987, %v991
        %v996 = vand.u32 2147483647, %v986
        %vm997 = vcmp.eq.f32.partialorder %v996, 8.507059e+37
        %v998 = vand.u32 %v986, 2147483648
        %v999 = vor.u32 1.1754944e-38, %v998
        %v1000 = vsel %vm997, %v999, %v995
        %v1001 = vmul.f32 1.0, %v1000
        %v1003 = vrot.slane %v982, 2
        %v1005 = vxor.u32 %v1003, 2147483648
        %v1006 = vmul.f32 %v1005, 1.442695
        %v1007 = vpow.pop %v1006
        %v1008 = vadd.f32 %v1007, 1.0
        %v1009 = vrcp.pop %v1008
        %v1010 = vmul.f32 %v1008, %v1009
        %v1011 = vsub.f32 1.0, %v1010
        %v1012 = vmul.f32 %v1009, %v1011
        %v1013 = vadd.f32 %v1009, %v1012
        %vm1014 = vweird.f32 %v1008
        %vm1015 = vweird.f32 %v1009
        %vm1016 = vmor %vm1014, %vm1015
        %v1017 = vsel %vm1016, %v1009, %v1013
        %v1018 = vand.u32 2147483647, %v1008
        %vm1019 = vcmp.eq.f32.partialorder %v1018, 8.507059e+37
        %v1020 = vand.u32 %v1008, 2147483648
        %v1021 = vor.u32 1.1754944e-38, %v1020
        %v1022 = vsel %vm1019, %v1021, %v1017
        %v1023 = vmul.f32 1.0, %v1022
        %v1024 = vrot.slane %v982, 4
        %v1026 = vtanh.pop %v1024
        %v1027 = vrot.slane %v982, 6
        %v1029 = vxor.u32 %v1027, 2147483648
        %v1030 = vmul.f32 %v1029, 1.442695
        %v1031 = vpow.pop %v1030
        %v1032 = vadd.f32 %v1031, 1.0
        %v1033 = vrcp.pop %v1032
        %v1034 = vmul.f32 %v1032, %v1033
        %v1035 = vsub.f32 1.0, %v1034
        %v1036 = vmul.f32 %v1033, %v1035
        %v1037 = vadd.f32 %v1033, %v1036
        %vm1038 = vweird.f32 %v1032
        %vm1039 = vweird.f32 %v1033
        %vm1040 = vmor %vm1038, %vm1039
        %v1041 = vsel %vm1040, %v1033, %v1037
        %v1042 = vand.u32 2147483647, %v1032
        %vm1043 = vcmp.eq.f32.partialorder %v1042, 8.507059e+37
        %v1044 = vand.u32 %v1032, 2147483648
        %v1045 = vor.u32 1.1754944e-38, %v1044
        %v1046 = vsel %vm1043, %v1045, %v1041
        %v1047 = vmul.f32 1.0, %v1046
        %v1048 = vmul.f32 %v1023, %v880
        %v1049 = vmul.f32 %v1001, %v1026
        %v1050 = vadd.f32 %v1048, %v1049
        %v1051 = vtanh.pop %v1050
        %v1052 = vmul.f32 %v1047, %v1051
        %s1053 = smul.u32 %s886, 2
        %s1054 = scalar_lea.vmem %s293, %s1053
        %1055 = vst [vmem:[%s1054] sm:$0x3] %v1052
        %s1056 = ssub.s32 4, %s18
        %s1057 = smul.u32 %s1056, 4
        %s1058 = smul.addr %s1057, 2
        %s1059 = scalar_lea.vmem %s243, %s1058 [#allocation4]
        %v1060 = vld [vmem:[%s1059] sm:$0xff]
        %1061 = vmatpush.msra.mxu0 %v365
        %1062 = vmatpush.msra.mxu0 %v361
        %1063 = vmatpush.msra.mxu0 %v357
        %1064 = vmatpush.msra.mxu0 %v353
        %1065 = vmatpush.msra.mxu0 %v349
        %1066 = vmatpush.msra.mxu0 %v345
        %1067 = vmatpush.msra.mxu0 %v341
        %1068 = vmatpush.msra.mxu0 %v337
        %1069 = vmatpush.msra.mxu0 %v333
        %1070 = vmatpush.msra.mxu0 %v329
        %1071 = vmatpush.msra.mxu0 %v325
        %1072 = vmatpush.msra.mxu0 %v321
        %1073 = vmatpush.msra.mxu0 %v317
        %1074 = vmatpush.msra.mxu0 %v313
        %1075 = vmatpush.msra.mxu0 %v309
        %1076 = vmatpush.msra.mxu0 %v305
        %1077 = vmatmul.f32.gmra.mxu0 %v1052
        %v1078 = vpop.f32.mrf.mxu0
        %v1079 = vadd.f32 0.0, %v1078
        %1080 = vdwg.mxu0
        %1081 = vmatpush.msra.mxu0 %v366
        %1082 = vmatpush.msra.mxu0 %v362
        %1083 = vmatpush.msra.mxu0 %v358
        %1084 = vmatpush.msra.mxu0 %v354
        %1085 = vmatpush.msra.mxu0 %v350
        %1086 = vmatpush.msra.mxu0 %v346
        %1087 = vmatpush.msra.mxu0 %v342
        %1088 = vmatpush.msra.mxu0 %v338
        %1089 = vmatpush.msra.mxu0 %v334
        %1090 = vmatpush.msra.mxu0 %v330
        %1091 = vmatpush.msra.mxu0 %v326
        %1092 = vmatpush.msra.mxu0 %v322
        %1093 = vmatpush.msra.mxu0 %v318
        %1094 = vmatpush.msra.mxu0 %v314
        %1095 = vmatpush.msra.mxu0 %v310
        %1096 = vmatpush.msra.mxu0 %v306
        %1097 = vmatmul.f32.gmra.mxu0 %v1052
        %v1098 = vpop.f32.mrf.mxu0
        %v1099 = vadd.f32 0.0, %v1098
        %1100 = vdwg.mxu0
        %1101 = vmatpush.msra.mxu0 %v367
        %1102 = vmatpush.msra.mxu0 %v363
        %1103 = vmatpush.msra.mxu0 %v359
        %1104 = vmatpush.msra.mxu0 %v355
        %1105 = vmatpush.msra.mxu0 %v351
        %1106 = vmatpush.msra.mxu0 %v347
        %1107 = vmatpush.msra.mxu0 %v343
        %1108 = vmatpush.msra.mxu0 %v339
        %1109 = vmatpush.msra.mxu0 %v335
        %1110 = vmatpush.msra.mxu0 %v331
        %1111 = vmatpush.msra.mxu0 %v327
        %1112 = vmatpush.msra.mxu0 %v323
        %1113 = vmatpush.msra.mxu0 %v319
        %1114 = vmatpush.msra.mxu0 %v315
        %1115 = vmatpush.msra.mxu0 %v311
        %1116 = vmatpush.msra.mxu0 %v307
        %1117 = vmatmul.f32.gmra.mxu0 %v1052
        %v1118 = vpop.f32.mrf.mxu0
        %v1119 = vadd.f32 0.0, %v1118
        %1120 = vdwg.mxu0
        %1121 = vmatpush.msra.mxu0 %v368
        %1122 = vmatpush.msra.mxu0 %v364
        %1123 = vmatpush.msra.mxu0 %v360
        %1124 = vmatpush.msra.mxu0 %v356
        %1125 = vmatpush.msra.mxu0 %v352
        %1126 = vmatpush.msra.mxu0 %v348
        %1127 = vmatpush.msra.mxu0 %v344
        %1128 = vmatpush.msra.mxu0 %v340
        %1129 = vmatpush.msra.mxu0 %v336
        %1130 = vmatpush.msra.mxu0 %v332
        %1131 = vmatpush.msra.mxu0 %v328
        %1132 = vmatpush.msra.mxu0 %v324
        %1133 = vmatpush.msra.mxu0 %v320
        %1134 = vmatpush.msra.mxu0 %v316
        %1135 = vmatpush.msra.mxu0 %v312
        %1136 = vmatpush.msra.mxu0 %v308
        %1137 = vmatmul.f32.gmra.mxu0 %v1052
        %v1138 = vpop.f32.mrf.mxu0
        %v1139 = vadd.f32 0.0, %v1138
        %1140 = vdwg.mxu0
        %v1145 = vrot.slane %v1099, 6
        %v1146 = vrot.slane %v1119, 4
        %v1147 = vrot.slane %v1139, 2
        %v1148 = vsel %vm463, %v1079, %v1145
        %v1149 = vsel %vm465, %v1146, %v1147
        %v1150 = vsel %vm467, %v1148, %v1149
        %v1152 = vadd.f32 %v1060, %v1150
        %v1153 = vxor.u32 %v1152, 2147483648
        %v1154 = vmul.f32 %v1153, 1.442695
        %v1155 = vpow.pop %v1154
        %v1156 = vadd.f32 %v1155, 1.0
        %v1157 = vrcp.pop %v1156
        %v1158 = vmul.f32 %v1156, %v1157
        %v1159 = vsub.f32 1.0, %v1158
        %v1160 = vmul.f32 %v1157, %v1159
        %v1161 = vadd.f32 %v1157, %v1160
        %vm1162 = vweird.f32 %v1156
        %vm1163 = vweird.f32 %v1157
        %vm1164 = vmor %vm1162, %vm1163
        %v1165 = vsel %vm1164, %v1157, %v1161
        %v1166 = vand.u32 2147483647, %v1156
        %vm1167 = vcmp.eq.f32.partialorder %v1166, 8.507059e+37
        %v1168 = vand.u32 %v1156, 2147483648
        %v1169 = vor.u32 1.1754944e-38, %v1168
        %v1170 = vsel %vm1167, %v1169, %v1165
        %v1171 = vmul.f32 1.0, %v1170
        %v1173 = vrot.slane %v1152, 2
        %v1175 = vxor.u32 %v1173, 2147483648
        %v1176 = vmul.f32 %v1175, 1.442695
        %v1177 = vpow.pop %v1176
        %v1178 = vadd.f32 %v1177, 1.0
        %v1179 = vrcp.pop %v1178
        %v1180 = vmul.f32 %v1178, %v1179
        %v1181 = vsub.f32 1.0, %v1180
        %v1182 = vmul.f32 %v1179, %v1181
        %v1183 = vadd.f32 %v1179, %v1182
        %vm1184 = vweird.f32 %v1178
        %vm1185 = vweird.f32 %v1179
        %vm1186 = vmor %vm1184, %vm1185
        %v1187 = vsel %vm1186, %v1179, %v1183
        %v1188 = vand.u32 2147483647, %v1178
        %vm1189 = vcmp.eq.f32.partialorder %v1188, 8.507059e+37
        %v1190 = vand.u32 %v1178, 2147483648
        %v1191 = vor.u32 1.1754944e-38, %v1190
        %v1192 = vsel %vm1189, %v1191, %v1187
        %v1193 = vmul.f32 1.0, %v1192
        %v1194 = vrot.slane %v1152, 4
        %v1196 = vtanh.pop %v1194
        %v1197 = vrot.slane %v1152, 6
        %v1199 = vxor.u32 %v1197, 2147483648
        %v1200 = vmul.f32 %v1199, 1.442695
        %v1201 = vpow.pop %v1200
        %v1202 = vadd.f32 %v1201, 1.0
        %v1203 = vrcp.pop %v1202
        %v1204 = vmul.f32 %v1202, %v1203
        %v1205 = vsub.f32 1.0, %v1204
        %v1206 = vmul.f32 %v1203, %v1205
        %v1207 = vadd.f32 %v1203, %v1206
        %vm1208 = vweird.f32 %v1202
        %vm1209 = vweird.f32 %v1203
        %vm1210 = vmor %vm1208, %vm1209
        %v1211 = vsel %vm1210, %v1203, %v1207
        %v1212 = vand.u32 2147483647, %v1202
        %vm1213 = vcmp.eq.f32.partialorder %v1212, 8.507059e+37
        %v1214 = vand.u32 %v1202, 2147483648
        %v1215 = vor.u32 1.1754944e-38, %v1214
        %v1216 = vsel %vm1213, %v1215, %v1211
        %v1217 = vmul.f32 1.0, %v1216
        %v1218 = vmul.f32 %v1193, %v1050
        %v1219 = vmul.f32 %v1171, %v1196
        %v1220 = vadd.f32 %v1218, %v1219
        %v1221 = vtanh.pop %v1220
        %v1222 = vmul.f32 %v1217, %v1221
        %s1223 = smul.u32 %s1056, 2
        %s1224 = scalar_lea.vmem %s293, %s1223
        %1225 = vst [vmem:[%s1224] sm:$0x3] %v1222
        %s1226 = smul.u32 %s18, 4294967293
        %s1227 = sadd.s32 %s1226, 5
        %s1228 = smul.u32 %s1227, 4
        %s1229 = smul.addr %s1228, 2
        %s1230 = scalar_lea.vmem %s243, %s1229 [#allocation4]
        %v1231 = vld [vmem:[%s1230] sm:$0xff]
        %1232 = vmatpush.msra.mxu0 %v365
        %1233 = vmatpush.msra.mxu0 %v361
        %1234 = vmatpush.msra.mxu0 %v357
        %1235 = vmatpush.msra.mxu0 %v353
        %1236 = vmatpush.msra.mxu0 %v349
        %1237 = vmatpush.msra.mxu0 %v345
        %1238 = vmatpush.msra.mxu0 %v341
        %1239 = vmatpush.msra.mxu0 %v337
        %1240 = vmatpush.msra.mxu0 %v333
        %1241 = vmatpush.msra.mxu0 %v329
        %1242 = vmatpush.msra.mxu0 %v325
        %1243 = vmatpush.msra.mxu0 %v321
        %1244 = vmatpush.msra.mxu0 %v317
        %1245 = vmatpush.msra.mxu0 %v313
        %1246 = vmatpush.msra.mxu0 %v309
        %1247 = vmatpush.msra.mxu0 %v305
        %1248 = vmatmul.f32.gmra.mxu0 %v1222
        %v1249 = vpop.f32.mrf.mxu0
        %v1250 = vadd.f32 0.0, %v1249
        %1251 = vdwg.mxu0
        %1252 = vmatpush.msra.mxu0 %v366
        %1253 = vmatpush.msra.mxu0 %v362
        %1254 = vmatpush.msra.mxu0 %v358
        %1255 = vmatpush.msra.mxu0 %v354
        %1256 = vmatpush.msra.mxu0 %v350
        %1257 = vmatpush.msra.mxu0 %v346
        %1258 = vmatpush.msra.mxu0 %v342
        %1259 = vmatpush.msra.mxu0 %v338
        %1260 = vmatpush.msra.mxu0 %v334
        %1261 = vmatpush.msra.mxu0 %v330
        %1262 = vmatpush.msra.mxu0 %v326
        %1263 = vmatpush.msra.mxu0 %v322
        %1264 = vmatpush.msra.mxu0 %v318
        %1265 = vmatpush.msra.mxu0 %v314
        %1266 = vmatpush.msra.mxu0 %v310
        %1267 = vmatpush.msra.mxu0 %v306
        %1268 = vmatmul.f32.gmra.mxu0 %v1222
        %v1269 = vpop.f32.mrf.mxu0
        %v1270 = vadd.f32 0.0, %v1269
        %1271 = vdwg.mxu0
        %1272 = vmatpush.msra.mxu0 %v367
        %1273 = vmatpush.msra.mxu0 %v363
        %1274 = vmatpush.msra.mxu0 %v359
        %1275 = vmatpush.msra.mxu0 %v355
        %1276 = vmatpush.msra.mxu0 %v351
        %1277 = vmatpush.msra.mxu0 %v347
        %1278 = vmatpush.msra.mxu0 %v343
        %1279 = vmatpush.msra.mxu0 %v339
        %1280 = vmatpush.msra.mxu0 %v335
        %1281 = vmatpush.msra.mxu0 %v331
        %1282 = vmatpush.msra.mxu0 %v327
        %1283 = vmatpush.msra.mxu0 %v323
        %1284 = vmatpush.msra.mxu0 %v319
        %1285 = vmatpush.msra.mxu0 %v315
        %1286 = vmatpush.msra.mxu0 %v311
        %1287 = vmatpush.msra.mxu0 %v307
        %1288 = vmatmul.f32.gmra.mxu0 %v1222
        %v1289 = vpop.f32.mrf.mxu0
        %v1290 = vadd.f32 0.0, %v1289
        %1291 = vdwg.mxu0
        %1292 = vmatpush.msra.mxu0 %v368
        %1293 = vmatpush.msra.mxu0 %v364
        %1294 = vmatpush.msra.mxu0 %v360
        %1295 = vmatpush.msra.mxu0 %v356
        %1296 = vmatpush.msra.mxu0 %v352
        %1297 = vmatpush.msra.mxu0 %v348
        %1298 = vmatpush.msra.mxu0 %v344
        %1299 = vmatpush.msra.mxu0 %v340
        %1300 = vmatpush.msra.mxu0 %v336
        %1301 = vmatpush.msra.mxu0 %v332
        %1302 = vmatpush.msra.mxu0 %v328
        %1303 = vmatpush.msra.mxu0 %v324
        %1304 = vmatpush.msra.mxu0 %v320
        %1305 = vmatpush.msra.mxu0 %v316
        %1306 = vmatpush.msra.mxu0 %v312
        %1307 = vmatpush.msra.mxu0 %v308
        %1308 = vmatmul.f32.gmra.mxu0 %v1222
        %v1309 = vpop.f32.mrf.mxu0
        %v1310 = vadd.f32 0.0, %v1309
        %1311 = vdwg.mxu0
        %v1316 = vrot.slane %v1270, 6
        %v1317 = vrot.slane %v1290, 4
        %v1318 = vrot.slane %v1310, 2
        %v1319 = vsel %vm463, %v1250, %v1316
        %v1320 = vsel %vm465, %v1317, %v1318
        %v1321 = vsel %vm467, %v1319, %v1320
        %v1323 = vadd.f32 %v1231, %v1321
        %v1324 = vxor.u32 %v1323, 2147483648
        %v1325 = vmul.f32 %v1324, 1.442695
        %v1326 = vpow.pop %v1325
        %v1327 = vadd.f32 %v1326, 1.0
        %v1328 = vrcp.pop %v1327
        %v1329 = vmul.f32 %v1327, %v1328
        %v1330 = vsub.f32 1.0, %v1329
        %v1331 = vmul.f32 %v1328, %v1330
        %v1332 = vadd.f32 %v1328, %v1331
        %vm1333 = vweird.f32 %v1327
        %vm1334 = vweird.f32 %v1328
        %vm1335 = vmor %vm1333, %vm1334
        %v1336 = vsel %vm1335, %v1328, %v1332
        %v1337 = vand.u32 2147483647, %v1327
        %vm1338 = vcmp.eq.f32.partialorder %v1337, 8.507059e+37
        %v1339 = vand.u32 %v1327, 2147483648
        %v1340 = vor.u32 1.1754944e-38, %v1339
        %v1341 = vsel %vm1338, %v1340, %v1336
        %v1342 = vmul.f32 1.0, %v1341
        %v1344 = vrot.slane %v1323, 2
        %v1346 = vxor.u32 %v1344, 2147483648
        %v1347 = vmul.f32 %v1346, 1.442695
        %v1348 = vpow.pop %v1347
        %v1349 = vadd.f32 %v1348, 1.0
        %v1350 = vrcp.pop %v1349
        %v1351 = vmul.f32 %v1349, %v1350
        %v1352 = vsub.f32 1.0, %v1351
        %v1353 = vmul.f32 %v1350, %v1352
        %v1354 = vadd.f32 %v1350, %v1353
        %vm1355 = vweird.f32 %v1349
        %vm1356 = vweird.f32 %v1350
        %vm1357 = vmor %vm1355, %vm1356
        %v1358 = vsel %vm1357, %v1350, %v1354
        %v1359 = vand.u32 2147483647, %v1349
        %vm1360 = vcmp.eq.f32.partialorder %v1359, 8.507059e+37
        %v1361 = vand.u32 %v1349, 2147483648
        %v1362 = vor.u32 1.1754944e-38, %v1361
        %v1363 = vsel %vm1360, %v1362, %v1358
        %v1364 = vmul.f32 1.0, %v1363
        %v1365 = vrot.slane %v1323, 4
        %v1367 = vtanh.pop %v1365
        %v1368 = vrot.slane %v1323, 6
        %v1370 = vxor.u32 %v1368, 2147483648
        %v1371 = vmul.f32 %v1370, 1.442695
        %v1372 = vpow.pop %v1371
        %v1373 = vadd.f32 %v1372, 1.0
        %v1374 = vrcp.pop %v1373
        %v1375 = vmul.f32 %v1373, %v1374
        %v1376 = vsub.f32 1.0, %v1375
        %v1377 = vmul.f32 %v1374, %v1376
        %v1378 = vadd.f32 %v1374, %v1377
        %vm1379 = vweird.f32 %v1373
        %vm1380 = vweird.f32 %v1374
        %vm1381 = vmor %vm1379, %vm1380
        %v1382 = vsel %vm1381, %v1374, %v1378
        %v1383 = vand.u32 2147483647, %v1373
        %vm1384 = vcmp.eq.f32.partialorder %v1383, 8.507059e+37
        %v1385 = vand.u32 %v1373, 2147483648
        %v1386 = vor.u32 1.1754944e-38, %v1385
        %v1387 = vsel %vm1384, %v1386, %v1382
        %v1388 = vmul.f32 1.0, %v1387
        %v1389 = vmul.f32 %v1364, %v1220
        %v1390 = vmul.f32 %v1342, %v1367
        %v1391 = vadd.f32 %v1389, %v1390
        %v1392 = vtanh.pop %v1391
        %v1393 = vmul.f32 %v1388, %v1392
        %s1394 = smul.u32 %s1227, 2
        %s1395 = scalar_lea.vmem %s293, %s1394
        %1396 = vst [vmem:[%s1395] sm:$0x3] %v1393
        %s1397 = smul.u32 %s18, 4294967291
        %s1398 = sadd.s32 %s1397, 6
        %s1399 = smul.u32 %s1398, 4
        %s1400 = smul.addr %s1399, 2
        %s1401 = scalar_lea.vmem %s243, %s1400 [#allocation4]
        %v1402 = vld [vmem:[%s1401] sm:$0xff]
        %1403 = vmatpush.msra.mxu0 %v365
        %1404 = vmatpush.msra.mxu0 %v361
        %1405 = vmatpush.msra.mxu0 %v357
        %1406 = vmatpush.msra.mxu0 %v353
        %1407 = vmatpush.msra.mxu0 %v349
        %1408 = vmatpush.msra.mxu0 %v345
        %1409 = vmatpush.msra.mxu0 %v341
        %1410 = vmatpush.msra.mxu0 %v337
        %1411 = vmatpush.msra.mxu0 %v333
        %1412 = vmatpush.msra.mxu0 %v329
        %1413 = vmatpush.msra.mxu0 %v325
        %1414 = vmatpush.msra.mxu0 %v321
        %1415 = vmatpush.msra.mxu0 %v317
        %1416 = vmatpush.msra.mxu0 %v313
        %1417 = vmatpush.msra.mxu0 %v309
        %1418 = vmatpush.msra.mxu0 %v305
        %1419 = vmatmul.f32.gmra.mxu0 %v1393
        %v1420 = vpop.f32.mrf.mxu0
        %v1421 = vadd.f32 0.0, %v1420
        %1422 = vdwg.mxu0
        %1423 = vmatpush.msra.mxu0 %v366
        %1424 = vmatpush.msra.mxu0 %v362
        %1425 = vmatpush.msra.mxu0 %v358
        %1426 = vmatpush.msra.mxu0 %v354
        %1427 = vmatpush.msra.mxu0 %v350
        %1428 = vmatpush.msra.mxu0 %v346
        %1429 = vmatpush.msra.mxu0 %v342
        %1430 = vmatpush.msra.mxu0 %v338
        %1431 = vmatpush.msra.mxu0 %v334
        %1432 = vmatpush.msra.mxu0 %v330
        %1433 = vmatpush.msra.mxu0 %v326
        %1434 = vmatpush.msra.mxu0 %v322
        %1435 = vmatpush.msra.mxu0 %v318
        %1436 = vmatpush.msra.mxu0 %v314
        %1437 = vmatpush.msra.mxu0 %v310
        %1438 = vmatpush.msra.mxu0 %v306
        %1439 = vmatmul.f32.gmra.mxu0 %v1393
        %v1440 = vpop.f32.mrf.mxu0
        %v1441 = vadd.f32 0.0, %v1440
        %1442 = vdwg.mxu0
        %1443 = vmatpush.msra.mxu0 %v367
        %1444 = vmatpush.msra.mxu0 %v363
        %1445 = vmatpush.msra.mxu0 %v359
        %1446 = vmatpush.msra.mxu0 %v355
        %1447 = vmatpush.msra.mxu0 %v351
        %1448 = vmatpush.msra.mxu0 %v347
        %1449 = vmatpush.msra.mxu0 %v343
        %1450 = vmatpush.msra.mxu0 %v339
        %1451 = vmatpush.msra.mxu0 %v335
        %1452 = vmatpush.msra.mxu0 %v331
        %1453 = vmatpush.msra.mxu0 %v327
        %1454 = vmatpush.msra.mxu0 %v323
        %1455 = vmatpush.msra.mxu0 %v319
        %1456 = vmatpush.msra.mxu0 %v315
        %1457 = vmatpush.msra.mxu0 %v311
        %1458 = vmatpush.msra.mxu0 %v307
        %1459 = vmatmul.f32.gmra.mxu0 %v1393
        %v1460 = vpop.f32.mrf.mxu0
        %v1461 = vadd.f32 0.0, %v1460
        %1462 = vdwg.mxu0
        %1463 = vmatpush.msra.mxu0 %v368
        %1464 = vmatpush.msra.mxu0 %v364
        %1465 = vmatpush.msra.mxu0 %v360
        %1466 = vmatpush.msra.mxu0 %v356
        %1467 = vmatpush.msra.mxu0 %v352
        %1468 = vmatpush.msra.mxu0 %v348
        %1469 = vmatpush.msra.mxu0 %v344
        %1470 = vmatpush.msra.mxu0 %v340
        %1471 = vmatpush.msra.mxu0 %v336
        %1472 = vmatpush.msra.mxu0 %v332
        %1473 = vmatpush.msra.mxu0 %v328
        %1474 = vmatpush.msra.mxu0 %v324
        %1475 = vmatpush.msra.mxu0 %v320
        %1476 = vmatpush.msra.mxu0 %v316
        %1477 = vmatpush.msra.mxu0 %v312
        %1478 = vmatpush.msra.mxu0 %v308
        %1479 = vmatmul.f32.gmra.mxu0 %v1393
        %v1480 = vpop.f32.mrf.mxu0
        %v1481 = vadd.f32 0.0, %v1480
        %1482 = vdwg.mxu0
        %v1487 = vrot.slane %v1441, 6
        %v1488 = vrot.slane %v1461, 4
        %v1489 = vrot.slane %v1481, 2
        %v1490 = vsel %vm463, %v1421, %v1487
        %v1491 = vsel %vm465, %v1488, %v1489
        %v1492 = vsel %vm467, %v1490, %v1491
        %v1494 = vadd.f32 %v1402, %v1492
        %v1495 = vxor.u32 %v1494, 2147483648
        %v1496 = vmul.f32 %v1495, 1.442695
        %v1497 = vpow.pop %v1496
        %v1498 = vadd.f32 %v1497, 1.0
        %v1499 = vrcp.pop %v1498
        %v1500 = vmul.f32 %v1498, %v1499
        %v1501 = vsub.f32 1.0, %v1500
        %v1502 = vmul.f32 %v1499, %v1501
        %v1503 = vadd.f32 %v1499, %v1502
        %vm1504 = vweird.f32 %v1498
        %vm1505 = vweird.f32 %v1499
        %vm1506 = vmor %vm1504, %vm1505
        %v1507 = vsel %vm1506, %v1499, %v1503
        %v1508 = vand.u32 2147483647, %v1498
        %vm1509 = vcmp.eq.f32.partialorder %v1508, 8.507059e+37
        %v1510 = vand.u32 %v1498, 2147483648
        %v1511 = vor.u32 1.1754944e-38, %v1510
        %v1512 = vsel %vm1509, %v1511, %v1507
        %v1513 = vmul.f32 1.0, %v1512
        %v1515 = vrot.slane %v1494, 2
        %v1517 = vxor.u32 %v1515, 2147483648
        %v1518 = vmul.f32 %v1517, 1.442695
        %v1519 = vpow.pop %v1518
        %v1520 = vadd.f32 %v1519, 1.0
        %v1521 = vrcp.pop %v1520
        %v1522 = vmul.f32 %v1520, %v1521
        %v1523 = vsub.f32 1.0, %v1522
        %v1524 = vmul.f32 %v1521, %v1523
        %v1525 = vadd.f32 %v1521, %v1524
        %vm1526 = vweird.f32 %v1520
        %vm1527 = vweird.f32 %v1521
        %vm1528 = vmor %vm1526, %vm1527
        %v1529 = vsel %vm1528, %v1521, %v1525
        %v1530 = vand.u32 2147483647, %v1520
        %vm1531 = vcmp.eq.f32.partialorder %v1530, 8.507059e+37
        %v1532 = vand.u32 %v1520, 2147483648
        %v1533 = vor.u32 1.1754944e-38, %v1532
        %v1534 = vsel %vm1531, %v1533, %v1529
        %v1535 = vmul.f32 1.0, %v1534
        %v1536 = vrot.slane %v1494, 4
        %v1538 = vtanh.pop %v1536
        %v1539 = vrot.slane %v1494, 6
        %v1541 = vxor.u32 %v1539, 2147483648
        %v1542 = vmul.f32 %v1541, 1.442695
        %v1543 = vpow.pop %v1542
        %v1544 = vadd.f32 %v1543, 1.0
        %v1545 = vrcp.pop %v1544
        %v1546 = vmul.f32 %v1544, %v1545
        %v1547 = vsub.f32 1.0, %v1546
        %v1548 = vmul.f32 %v1545, %v1547
        %v1549 = vadd.f32 %v1545, %v1548
        %vm1550 = vweird.f32 %v1544
        %vm1551 = vweird.f32 %v1545
        %vm1552 = vmor %vm1550, %vm1551
        %v1553 = vsel %vm1552, %v1545, %v1549
        %v1554 = vand.u32 2147483647, %v1544
        %vm1555 = vcmp.eq.f32.partialorder %v1554, 8.507059e+37
        %v1556 = vand.u32 %v1544, 2147483648
        %v1557 = vor.u32 1.1754944e-38, %v1556
        %v1558 = vsel %vm1555, %v1557, %v1553
        %v1559 = vmul.f32 1.0, %v1558
        %v1560 = vmul.f32 %v1535, %v1391
        %v1561 = vmul.f32 %v1513, %v1538
        %v1562 = vadd.f32 %v1560, %v1561
        %v1563 = vtanh.pop %v1562
        %v1564 = vmul.f32 %v1559, %v1563
        %s1565 = smul.u32 %s1398, 2
        %s1566 = scalar_lea.vmem %s293, %s1565
        %1567 = vst [vmem:[%s1566] sm:$0x3] %v1564
        %s1568 = smul.u32 %s18, 4294967289
        %s1569 = sadd.s32 %s1568, 7
        %s1570 = smul.u32 %s1569, 4
        %s1571 = smul.addr %s1570, 2
        %s1572 = scalar_lea.vmem %s243, %s1571 [#allocation4]
        %v1573 = vld [vmem:[%s1572] sm:$0xff]
        %1574 = vmatpush.msra.mxu0 %v365
        %1575 = vmatpush.msra.mxu0 %v361
        %1576 = vmatpush.msra.mxu0 %v357
        %1577 = vmatpush.msra.mxu0 %v353
        %1578 = vmatpush.msra.mxu0 %v349
        %1579 = vmatpush.msra.mxu0 %v345
        %1580 = vmatpush.msra.mxu0 %v341
        %1581 = vmatpush.msra.mxu0 %v337
        %1582 = vmatpush.msra.mxu0 %v333
        %1583 = vmatpush.msra.mxu0 %v329
        %1584 = vmatpush.msra.mxu0 %v325
        %1585 = vmatpush.msra.mxu0 %v321
        %1586 = vmatpush.msra.mxu0 %v317
        %1587 = vmatpush.msra.mxu0 %v313
        %1588 = vmatpush.msra.mxu0 %v309
        %1589 = vmatpush.msra.mxu0 %v305
        %1590 = vmatmul.f32.gmra.mxu0 %v1564
        %v1591 = vpop.f32.mrf.mxu0
        %v1592 = vadd.f32 0.0, %v1591
        %1593 = vdwg.mxu0
        %1594 = vmatpush.msra.mxu0 %v366
        %1595 = vmatpush.msra.mxu0 %v362
        %1596 = vmatpush.msra.mxu0 %v358
        %1597 = vmatpush.msra.mxu0 %v354
        %1598 = vmatpush.msra.mxu0 %v350
        %1599 = vmatpush.msra.mxu0 %v346
        %1600 = vmatpush.msra.mxu0 %v342
        %1601 = vmatpush.msra.mxu0 %v338
        %1602 = vmatpush.msra.mxu0 %v334
        %1603 = vmatpush.msra.mxu0 %v330
        %1604 = vmatpush.msra.mxu0 %v326
        %1605 = vmatpush.msra.mxu0 %v322
        %1606 = vmatpush.msra.mxu0 %v318
        %1607 = vmatpush.msra.mxu0 %v314
        %1608 = vmatpush.msra.mxu0 %v310
        %1609 = vmatpush.msra.mxu0 %v306
        %1610 = vmatmul.f32.gmra.mxu0 %v1564
        %v1611 = vpop.f32.mrf.mxu0
        %v1612 = vadd.f32 0.0, %v1611
        %1613 = vdwg.mxu0
        %1614 = vmatpush.msra.mxu0 %v367
        %1615 = vmatpush.msra.mxu0 %v363
        %1616 = vmatpush.msra.mxu0 %v359
        %1617 = vmatpush.msra.mxu0 %v355
        %1618 = vmatpush.msra.mxu0 %v351
        %1619 = vmatpush.msra.mxu0 %v347
        %1620 = vmatpush.msra.mxu0 %v343
        %1621 = vmatpush.msra.mxu0 %v339
        %1622 = vmatpush.msra.mxu0 %v335
        %1623 = vmatpush.msra.mxu0 %v331
        %1624 = vmatpush.msra.mxu0 %v327
        %1625 = vmatpush.msra.mxu0 %v323
        %1626 = vmatpush.msra.mxu0 %v319
        %1627 = vmatpush.msra.mxu0 %v315
        %1628 = vmatpush.msra.mxu0 %v311
        %1629 = vmatpush.msra.mxu0 %v307
        %1630 = vmatmul.f32.gmra.mxu0 %v1564
        %v1631 = vpop.f32.mrf.mxu0
        %v1632 = vadd.f32 0.0, %v1631
        %1633 = vdwg.mxu0
        %1634 = vmatpush.msra.mxu0 %v368
        %1635 = vmatpush.msra.mxu0 %v364
        %1636 = vmatpush.msra.mxu0 %v360
        %1637 = vmatpush.msra.mxu0 %v356
        %1638 = vmatpush.msra.mxu0 %v352
        %1639 = vmatpush.msra.mxu0 %v348
        %1640 = vmatpush.msra.mxu0 %v344
        %1641 = vmatpush.msra.mxu0 %v340
        %1642 = vmatpush.msra.mxu0 %v336
        %1643 = vmatpush.msra.mxu0 %v332
        %1644 = vmatpush.msra.mxu0 %v328
        %1645 = vmatpush.msra.mxu0 %v324
        %1646 = vmatpush.msra.mxu0 %v320
        %1647 = vmatpush.msra.mxu0 %v316
        %1648 = vmatpush.msra.mxu0 %v312
        %1649 = vmatpush.msra.mxu0 %v308
        %1650 = vmatmul.f32.gmra.mxu0 %v1564
        %v1651 = vpop.f32.mrf.mxu0
        %v1652 = vadd.f32 0.0, %v1651
        %1653 = vdwg.mxu0
        %v1658 = vrot.slane %v1612, 6
        %v1659 = vrot.slane %v1632, 4
        %v1660 = vrot.slane %v1652, 2
        %v1661 = vsel %vm463, %v1592, %v1658
        %v1662 = vsel %vm465, %v1659, %v1660
        %v1663 = vsel %vm467, %v1661, %v1662
        %v1665 = vadd.f32 %v1573, %v1663
        %v1666 = vxor.u32 %v1665, 2147483648
        %v1667 = vmul.f32 %v1666, 1.442695
        %v1668 = vpow.pop %v1667
        %v1669 = vadd.f32 %v1668, 1.0
        %v1670 = vrcp.pop %v1669
        %v1671 = vmul.f32 %v1669, %v1670
        %v1672 = vsub.f32 1.0, %v1671
        %v1673 = vmul.f32 %v1670, %v1672
        %v1674 = vadd.f32 %v1670, %v1673
        %vm1675 = vweird.f32 %v1669
        %vm1676 = vweird.f32 %v1670
        %vm1677 = vmor %vm1675, %vm1676
        %v1678 = vsel %vm1677, %v1670, %v1674
        %v1679 = vand.u32 2147483647, %v1669
        %vm1680 = vcmp.eq.f32.partialorder %v1679, 8.507059e+37
        %v1681 = vand.u32 %v1669, 2147483648
        %v1682 = vor.u32 1.1754944e-38, %v1681
        %v1683 = vsel %vm1680, %v1682, %v1678
        %v1684 = vmul.f32 1.0, %v1683
        %v1686 = vrot.slane %v1665, 2
        %v1688 = vxor.u32 %v1686, 2147483648
        %v1689 = vmul.f32 %v1688, 1.442695
        %v1690 = vpow.pop %v1689
        %v1691 = vadd.f32 %v1690, 1.0
        %v1692 = vrcp.pop %v1691
        %v1693 = vmul.f32 %v1691, %v1692
        %v1694 = vsub.f32 1.0, %v1693
        %v1695 = vmul.f32 %v1692, %v1694
        %v1696 = vadd.f32 %v1692, %v1695
        %vm1697 = vweird.f32 %v1691
        %vm1698 = vweird.f32 %v1692
        %vm1699 = vmor %vm1697, %vm1698
        %v1700 = vsel %vm1699, %v1692, %v1696
        %v1701 = vand.u32 2147483647, %v1691
        %vm1702 = vcmp.eq.f32.partialorder %v1701, 8.507059e+37
        %v1703 = vand.u32 %v1691, 2147483648
        %v1704 = vor.u32 1.1754944e-38, %v1703
        %v1705 = vsel %vm1702, %v1704, %v1700
        %v1706 = vmul.f32 1.0, %v1705
        %v1707 = vrot.slane %v1665, 4
        %v1709 = vtanh.pop %v1707
        %v1710 = vrot.slane %v1665, 6
        %v1712 = vxor.u32 %v1710, 2147483648
        %v1713 = vmul.f32 %v1712, 1.442695
        %v1714 = vpow.pop %v1713
        %v1715 = vadd.f32 %v1714, 1.0
        %v1716 = vrcp.pop %v1715
        %v1717 = vmul.f32 %v1715, %v1716
        %v1718 = vsub.f32 1.0, %v1717
        %v1719 = vmul.f32 %v1716, %v1718
        %v1720 = vadd.f32 %v1716, %v1719
        %vm1721 = vweird.f32 %v1715
        %vm1722 = vweird.f32 %v1716
        %vm1723 = vmor %vm1721, %vm1722
        %v1724 = vsel %vm1723, %v1716, %v1720
        %v1725 = vand.u32 2147483647, %v1715
        %vm1726 = vcmp.eq.f32.partialorder %v1725, 8.507059e+37
        %v1727 = vand.u32 %v1715, 2147483648
        %v1728 = vor.u32 1.1754944e-38, %v1727
        %v1729 = vsel %vm1726, %v1728, %v1724
        %v1730 = vmul.f32 1.0, %v1729
        %v1731 = vmul.f32 %v1706, %v1562
        %v1732 = vmul.f32 %v1684, %v1709
        %v1733 = vadd.f32 %v1731, %v1732
        %v1734 = vtanh.pop %v1733
        %v1735 = vmul.f32 %v1730, %v1734
        %s1736 = smul.u32 %s1569, 2
        %s1737 = scalar_lea.vmem %s293, %s1736
        %1738 = vst [vmem:[%s1737] sm:$0x3] %v1735
        %1739 = vst [vmem:[#allocation2] sm:$0x3] %v1735
        %1740 = vst [vmem:[#allocation3] sm:$0x3] %v1733
        %s1741 = smul.u32 %s19, 2
        %s1742 = ssub.s32 1, %s1741
        %s1743 = smul.u32 %s18, %s1742
        %s1744 = sadd.s32 %s19, %s1743
        %s1745 = smul.u32 8, %s1744
        %p1746 = scmp.lt.s32.totalorder %s18, 1
        %s1747 = scalar_select %p1746, %s18, 1
        %p1748 = scmp.lt.s32.totalorder %s1745, 15
        %s1749 = scalar_select %p1748, %s1745, 15
        %s1750 = smul.addr %s1747, 16
        %s1751 = sadd.s32 %s1749, %s1750
        %s1752 = smul.addr %s1751, 2
        %s1753 = scalar_lea.vmem %s2, %s1752
        // Predicated region
        $region75: #{_lambda_.6} parent=61 // pred_check
          %p1754 = pneg %p116
        $region76: #{_lambda_.6} parent=61 // pred_check_branch
          %1756 = sbr.rel (%p1754) target = $region78
        $region77: #{_lambda_.6} parent=61 // pred_region
          %s1757 = smul.u32 %s19, 2
          %s1758 = ssub.s32 1, %s1757
          %s1759 = smul.u32 %s18, %s1758
          %s1760 = sadd.s32 %s19, %s1759
          %s1761 = smul.u32 8, %s1760
        $region78: #{_lambda_.6} parent=61 // pred_fallthru
          _
      $region62: #{_lambda_.6} parent=5 // pred_fallthru
        _
      %p1762 = scmp.le.s32.totalorder 2, %s9
      // Predicated region
      $region79: #{_lambda_.6} parent=5 // pred_check
        %p1763 = pneg %p1762
      $region80: #{_lambda_.6} parent=5 // pred_check_branch
        %1765 = sbr.rel (%p1763) target = $region82
      $region81: #{_lambda_.6} parent=5 // pred_region
        %s1766 = ssub.s32 %s9, 2
        // Predicated region
        $region83: #{_lambda_.6} parent=81 // pred_check
          %p1767 = pneg %p122
        $region84: #{_lambda_.6} parent=81 // pred_check_branch
          %1769 = sbr.rel (%p1767) target = $region86
        $region85: #{_lambda_.6} parent=81 // pred_region
          %s1770 = smul.u32 %s21, 2
          %s1771 = ssub.s32 1, %s1770
          %s1772 = smul.u32 %s20, %s1771
          %s1773 = sadd.s32 %s21, %s1772
          %s1774 = smul.u32 8, %s1773
          %p1775 = scmp.lt.s32.totalorder %s20, 1
          %s1776 = scalar_select %p1775, %s20, 1
          %p1777 = scmp.lt.s32.totalorder %s1774, 15
          %s1778 = scalar_select %p1777, %s1774, 15
          %s1779 = smul.addr %s1776, 16
          %s1780 = sadd.s32 %s1778, %s1779
          %s1781 = smul.addr %s1780, 2
          %s1782 = scalar_lea.vmem %s2, %s1781
        $region86: #{_lambda_.6} parent=81 // pred_fallthru
          _
      $region82: #{_lambda_.6} parent=5 // pred_fallthru
        _
    $region6: #{_lambda_.6} parent=1 // loop_footer
      %s13 = sadd.s32 1, %s9
    $region7: #{_lambda_.6} parent=1 // loop_footer_branch
      %8 = sbr.rel target = $region3
    $region8: #{_lambda_.6} parent=1 // loop_exit
      _
    %1783 = vsyncpa [#allocation6], 1
    %s1784 = scalar_lea.sflag [#allocation6], 1
    %1785 = vsyncpa %s1784, 1

// kernel: _lambda_.8
$region0: #{_lambda_.8}
  #allocation0 [shape = 'u32[]', space=smem, size = 0x4, offset = 0x4, fixed_abs, tag = 'smem constant byte address 0x4 - core index']
  #allocation1 [shape = 'u32[72,128]{1,0:T(1,128)}', space=vmem, size = 0x9000, scoped, tag = 'internal scratch']
  #allocation2 [shape = 'f32[2,128]{1,0:T(2,128)}', space=vmem, size = 0x400, scoped, tag = 'scratch operand']
  #allocation3 [shape = 'f32[2,128]{1,0:T(2,128)}', space=vmem, size = 0x400, scoped, tag = 'scratch operand']
  %s0 = inlined_call_operand.vmem [shape: f32[16,2,1024], index: 0, kind: input, shape index: {}]
  %s1 = inlined_call_operand.vmem [shape: f32[2,128,512], index: 1, kind: input, shape index: {}]
  %s2 = inlined_call_operand.vmem [shape: f32[2,16,2,128], index: 2, kind: output, shape index: {}]
  %s3 = sld [smem:[#allocation0]]
  $region83: #{_lambda_.8} parent=0
    _
  %s5 = ssub.s32 1, %s3
  %s6 = scalar_select 0, %s5, %s3
  $region1: #{_lambda_.8} parent=0
    #allocation4 [shape = 'u8[65536]{0}', space=vmem, size = 0x10000, scoped, tag = 'input window, operand 0']
    loop: start=0, step=1, limit=6
    $region2: #{_lambda_.8} parent=1 // loop_pre_header
      _
    $region3: #{_lambda_.8} parent=1 // loop_header
      %s8 = sphi 0, %s12
      %p9 = scmp.ge.s32.totalorder %s8, 6
      %s15 = sphi 0, %s27
      %s16 = sphi 0, %s23
      %s17 = sphi 0, %s15
      %s18 = sphi 0, %s16
      %s19 = sphi 0, %s17
      %s20 = sphi 0, %s18
      %s40 = sphi 0, %s42
      %s43 = sphi 0, %s40
      %s44 = sphi 0, %s43
      %s60 = sphi 0, %s44
      %s66 = sphi 0, %s68
      %s69 = sphi 0, %s66
      %s70 = sphi 0, %s69
      %s86 = sphi 0, %s70
      %s102 = sphi 0, %s104
      %s105 = sphi 0, %s102
      %s106 = sphi 0, %s105
      %s122 = sphi 0, %s106
    $region4: #{_lambda_.8} parent=1 // loop_header_branch
      %11 = sbr.rel (%p9) target = $region8
    $region5: #{_lambda_.8} parent=1 // loop_body
      %s13 = ssub.s32 %s8, 1
      %s14 = ssub.s32 %s8, 2
      %s21 = sadd.s32 1, %s16
      %p22 = scmp.ge.s32.totalorder %s21, 2
      %s23 = scalar_select %p22, 0, %s21
      %s24 = sadd.s32 1, %s15
      %s25 = scalar_select %p22, %s24, %s15
      %p26 = scmp.ge.s32.totalorder %s25, 2
      %s27 = scalar_select %p26, 0, %s25
      %s28 = smul.u32 %s16, 2
      %s29 = ssub.s32 1, %s28
      %s30 = smul.u32 %s15, %s29
      %s31 = sadd.s32 %s16, %s30
      %s32 = smul.u32 %s23, 2
      %s33 = ssub.s32 1, %s32
      %s34 = smul.u32 %s27, %s33
      %s35 = sadd.s32 %s23, %s34
      %s36 = ssub.s32 %s31, %s35
      %s37 = ssub.s32 %s15, %s27
      %s38 = sor.u32 %s36, %s37
      %p39 = scmp.eq.s32.totalorder %s38, 0
      %s41 = sadd.s32 %s40, 1
      %s42 = scalar_select %p39, %s40, %s41
      %p45 = pneg %p39
      %p46 = scmp.eq.s32.totalorder %s8, 3
      %p47 = por %p45, %p46
      %p48 = scmp.ne.s32.totalorder %s40, %s43
      %p49 = scmp.eq.s32.totalorder %s8, 0
      %p50 = por %p48, %p49
      %p51 = scmp.ne.s32.totalorder %s40, %s43
      %p52 = scmp.eq.s32.totalorder %s13, 3
      %p53 = por %p51, %p52
      %p54 = scmp.ne.s32.totalorder %s43, %s44
      %p55 = scmp.eq.s32.totalorder %s13, 0
      %p56 = por %p54, %p55
      %p57 = scmp.ne.s32.totalorder %s43, %s44
      %p58 = scmp.eq.s32.totalorder %s14, 3
      %p59 = por %p57, %p58
      %p61 = scmp.ne.s32.totalorder %s44, %s60
      %p62 = scmp.eq.s32.totalorder %s14, 0
      %p63 = por %p61, %p62
      %s64 = ssub.s32 %s15, %s27
      %p65 = scmp.eq.s32.totalorder %s64, 0
      %s67 = sadd.s32 %s66, 1
      %s68 = scalar_select %p65, %s66, %s67
      %p71 = pneg %p65
      %p72 = scmp.eq.s32.totalorder %s8, 3
      %p73 = por %p71, %p72
      %p74 = scmp.ne.s32.totalorder %s66, %s69
      %p75 = scmp.eq.s32.totalorder %s8, 0
      %p76 = por %p74, %p75
      %p77 = scmp.ne.s32.totalorder %s66, %s69
      %p78 = scmp.eq.s32.totalorder %s13, 3
      %p79 = por %p77, %p78
      %p80 = scmp.ne.s32.totalorder %s69, %s70
      %p81 = scmp.eq.s32.totalorder %s13, 0
      %p82 = por %p80, %p81
      %p83 = scmp.ne.s32.totalorder %s69, %s70
      %p84 = scmp.eq.s32.totalorder %s14, 3
      %p85 = por %p83, %p84
      %p87 = scmp.ne.s32.totalorder %s70, %s86
      %p88 = scmp.eq.s32.totalorder %s14, 0
      %p89 = por %p87, %p88
      %s90 = smul.u32 %s16, 2
      %s91 = ssub.s32 1, %s90
      %s92 = smul.u32 %s15, %s91
      %s93 = sadd.s32 %s16, %s92
      %s94 = smul.u32 %s23, 2
      %s95 = ssub.s32 1, %s94
      %s96 = smul.u32 %s27, %s95
      %s97 = sadd.s32 %s23, %s96
      %s98 = ssub.s32 %s15, %s27
      %s99 = ssub.s32 %s93, %s97
      %s100 = sor.u32 %s98, %s99
      %p101 = scmp.eq.s32.totalorder %s100, 0
      %s103 = sadd.s32 %s102, 1
      %s104 = scalar_select %p101, %s102, %s103
      %p107 = pneg %p101
      %p108 = scmp.eq.s32.totalorder %s8, 3
      %p109 = por %p107, %p108
      %p110 = scmp.ne.s32.totalorder %s102, %s105
      %p111 = scmp.eq.s32.totalorder %s8, 0
      %p112 = por %p110, %p111
      %p113 = scmp.ne.s32.totalorder %s102, %s105
      %p114 = scmp.eq.s32.totalorder %s13, 3
      %p115 = por %p113, %p114
      %p116 = scmp.ne.s32.totalorder %s105, %s106
      %p117 = scmp.eq.s32.totalorder %s13, 0
      %p118 = por %p116, %p117
      %p119 = scmp.ne.s32.totalorder %s105, %s106
      %p120 = scmp.eq.s32.totalorder %s14, 3
      %p121 = por %p119, %p120
      %p123 = scmp.ne.s32.totalorder %s106, %s122
      %p124 = scmp.eq.s32.totalorder %s14, 0
      %p125 = por %p123, %p124
      %p126 = scmp.le.s32.totalorder 1, %s8
      %p127 = scmp.lt.s32.totalorder %s8, 5
      %p128 = pnand %p126, %p127
      %p129 = pneg %p128
      // Predicated region
      $region9: #{_lambda_.8} parent=5 // pred_check
        _
      $region10: #{_lambda_.8} parent=5 // pred_check_branch
        %131 = sbr.rel (%p128) target = $region12
      $region11: #{_lambda_.8} parent=5 // pred_region
        %s132 = ssub.s32 %s8, 1
        // Predicated region
        $region13: #{_lambda_.8} parent=11 // pred_check
          %p133 = pneg %p82
        $region14: #{_lambda_.8} parent=11 // pred_check_branch
          %135 = sbr.rel (%p133) target = $region16
        $region15: #{_lambda_.8} parent=11 // pred_region
          %p136 = scmp.lt.s32.totalorder %s17, 1
          %s137 = scalar_select %p136, %s17, 1
          %s138 = smul.addr %s137, 64
          %s139 = smul.addr %s138, 8
          %s140 = scalar_lea.vmem %s1, %s139
        $region16: #{_lambda_.8} parent=11 // pred_fallthru
          _
      $region12: #{_lambda_.8} parent=5 // pred_fallthru
        _
      %p141 = scmp.lt.s32.totalorder %s8, 4
      // Predicated region
      $region17: #{_lambda_.8} parent=5 // pred_check
        %p142 = pneg %p141
      $region18: #{_lambda_.8} parent=5 // pred_check_branch
        %144 = sbr.rel (%p142) target = $region20
      $region19: #{_lambda_.8} parent=5 // pred_region
        // Predicated region
        $region21: #{_lambda_.8} parent=19 // pred_check
          %p145 = pneg %p50
        $region22: #{_lambda_.8} parent=19 // pred_check_branch
          %147 = sbr.rel (%p145) target = $region24
        $region23: #{_lambda_.8} parent=19 // pred_region
          %s148 = sand.u32 %s40, 1
          %s149 = sand.u32 %s40, 1
          %s150 = smul.addr %s149, 64
          %s151 = scalar_lea.vmem [#allocation4], %s150
          %s152 = smul.u32 %s16, 2
          %s153 = ssub.s32 1, %s152
          %s154 = smul.u32 %s15, %s153
          %s155 = sadd.s32 %s16, %s154
          %s156 = smul.u32 8, %s155
          %s157 = smul.u32 4, %s15
          %s158 = smul.addr %s156, 8
          %s159 = sadd.s32 %s157, %s158
          %s160 = smul.addr %s159, 2
          %s161 = scalar_lea.vmem %s0, %s160
          // Predicated region
          $region25: #{_lambda_.8} parent=23 // pred_check
            _
          $region26: #{_lambda_.8} parent=23 // pred_check_branch
            %163 = sbr.rel (0) target = $region28
          $region27: #{_lambda_.8} parent=23 // pred_region
            // Predicated region
            $region29: #{_lambda_.8} parent=27 // pred_check
              _
            $region30: #{_lambda_.8} parent=27 // pred_check_branch
              %165 = sbr.rel (0) target = $region32
            $region31: #{_lambda_.8} parent=27 // pred_region
              // Predicated region
              $region44: #{_lambda_.8} parent=31 // pred_check
                _
              $region45: #{_lambda_.8} parent=31 // pred_check_branch
                %195 = sbr.rel (0) target = $region47
              $region46: #{_lambda_.8} parent=31 // pred_region
                loop: start=0, step=1, limit=1
                $region48: #{_lambda_.8} parent=46 // loop_pre_header
                  _
                $region49: #{_lambda_.8} parent=46 // loop_header
                  %s197 = sphi 0, %s201
                  %p198 = scmp.ge.s32.totalorder %s197, 1
                  %s202 = sphi %s161, %s161
                  %s203 = sphi %s151, %s151
                $region50: #{_lambda_.8} parent=46 // loop_header_branch
                  %200 = sbr.rel (%p198) target = $region54
                $region51: #{_lambda_.8} parent=46 // loop_body
                  %v204 = vld [vmem:[%s202] sm:$0xff]
                  %205 = vst [vmem:[%s203] sm:$0xff] %v204
                  %v206 = vld [vmem:[%s202 + $0x10] sm:$0xff]
                  %207 = vst [vmem:[%s203 + $0x8] sm:$0xff] %v206
                  %v208 = vld [vmem:[%s202 + $0x20] sm:$0xff]
                  %209 = vst [vmem:[%s203 + $0x10] sm:$0xff] %v208
                  %v210 = vld [vmem:[%s202 + $0x30] sm:$0xff]
                  %211 = vst [vmem:[%s203 + $0x18] sm:$0xff] %v210
                  %v212 = vld [vmem:[%s202 + $0x40] sm:$0xff]
                  %213 = vst [vmem:[%s203 + $0x20] sm:$0xff] %v212
                  %v214 = vld [vmem:[%s202 + $0x50] sm:$0xff]
                  %215 = vst [vmem:[%s203 + $0x28] sm:$0xff] %v214
                  %v216 = vld [vmem:[%s202 + $0x60] sm:$0xff]
                  %217 = vst [vmem:[%s203 + $0x30] sm:$0xff] %v216
                  %v218 = vld [vmem:[%s202 + $0x70] sm:$0xff]
                  %219 = vst [vmem:[%s203 + $0x38] sm:$0xff] %v218
                $region52: #{_lambda_.8} parent=46 // loop_footer
                  %s201 = sadd.s32 1, %s197
                $region53: #{_lambda_.8} parent=46 // loop_footer_branch
                  %196 = sbr.rel target = $region49
                $region54: #{_lambda_.8} parent=46 // loop_exit
                  _
              $region47: #{_lambda_.8} parent=31 // pred_fallthru
                _
              // Predicated region
              $region55: #{_lambda_.8} parent=31 // pred_check
                _
              $region56: #{_lambda_.8} parent=31 // pred_check_branch
                %221 = sbr.rel target = $region58
              $region57: #{_lambda_.8} parent=31 // pred_region
                _
              $region58: #{_lambda_.8} parent=31 // pred_fallthru
                _
            $region32: #{_lambda_.8} parent=27 // pred_fallthru
              _
            // Predicated region
            $region33: #{_lambda_.8} parent=27 // pred_check
              _
            $region34: #{_lambda_.8} parent=27 // pred_check_branch
              %167 = sbr.rel target = $region36
            $region35: #{_lambda_.8} parent=27 // pred_region
              %s169 = ssub.s32 256, 1
              loop: start=0, step=1, limit=1
              $region37: #{_lambda_.8} parent=35 // loop_pre_header
                _
              $region38: #{_lambda_.8} parent=35 // loop_header
                %s171 = sphi 0, %s175
                %p172 = scmp.ge.s32.totalorder %s171, 1
                %s176 = sphi %s161, %s161
                %s177 = sphi %s151, %s151
              $region39: #{_lambda_.8} parent=35 // loop_header_branch
                %174 = sbr.rel (%p172) target = $region43
              $region40: #{_lambda_.8} parent=35 // loop_body
                %v178 = vld [vmem:[%s176] sm:%s169]
                %179 = vst [vmem:[%s177] sm:%s169] %v178
                %v180 = vld [vmem:[%s176 + $0x10] sm:%s169]
                %181 = vst [vmem:[%s177 + $0x8] sm:%s169] %v180
                %v182 = vld [vmem:[%s176 + $0x20] sm:%s169]
                %183 = vst [vmem:[%s177 + $0x10] sm:%s169] %v182
                %v184 = vld [vmem:[%s176 + $0x30] sm:%s169]
                %185 = vst [vmem:[%s177 + $0x18] sm:%s169] %v184
                %v186 = vld [vmem:[%s176 + $0x40] sm:%s169]
                %187 = vst [vmem:[%s177 + $0x20] sm:%s169] %v186
                %v188 = vld [vmem:[%s176 + $0x50] sm:%s169]
                %189 = vst [vmem:[%s177 + $0x28] sm:%s169] %v188
                %v190 = vld [vmem:[%s176 + $0x60] sm:%s169]
                %191 = vst [vmem:[%s177 + $0x30] sm:%s169] %v190
                %v192 = vld [vmem:[%s176 + $0x70] sm:%s169]
                %193 = vst [vmem:[%s177 + $0x38] sm:%s169] %v192
              $region41: #{_lambda_.8} parent=35 // loop_footer
                %s175 = sadd.s32 1, %s171
              $region42: #{_lambda_.8} parent=35 // loop_footer_branch
                %170 = sbr.rel target = $region38
              $region43: #{_lambda_.8} parent=35 // loop_exit
                _
            $region36: #{_lambda_.8} parent=27 // pred_fallthru
              _
          $region28: #{_lambda_.8} parent=23 // pred_fallthru
            _
          %222 = vnop
        $region24: #{_lambda_.8} parent=19 // pred_fallthru
          _
      $region20: #{_lambda_.8} parent=5 // pred_fallthru
        _
      %p223 = scmp.le.s32.totalorder 1, %s8
      %p224 = scmp.lt.s32.totalorder %s8, 5
      %p225 = pnand %p223, %p224
      %p226 = pneg %p225
      // Predicated region
      $region59: #{_lambda_.8} parent=5 // pred_check
        _
      $region60: #{_lambda_.8} parent=5 // pred_check_branch
        %228 = sbr.rel (%p225) target = $region62
      $region61: #{_lambda_.8} parent=5 // pred_region
        %s229 = ssub.s32 %s8, 1
        %s230 = sand.u32 %s43, 1
        %s231 = sand.u32 %s43, 1
        %s232 = smul.addr %s231, 64
        %s233 = scalar_lea.vmem [#allocation4], %s232
        // Predicated region
        $region63: #{_lambda_.8} parent=61 // pred_check
          %p234 = pneg %p56
        $region64: #{_lambda_.8} parent=61 // pred_check_branch
          %236 = sbr.rel (%p234) target = $region66
        $region65: #{_lambda_.8} parent=61 // pred_region
          _
        $region66: #{_lambda_.8} parent=61 // pred_fallthru
          _
        %s237 = sand.u32 %s43, 1
        %s238 = sand.u32 %s43, 1
        %s239 = smul.addr %s238, 64
        %s240 = scalar_lea.vmem [#allocation4], %s239
        %p241 = pneg %p56
        %p242 = pneg %p53
        %p243 = scmp.lt.s32.totalorder %s17, 1
        %s244 = scalar_select %p243, %s17, 1
        %s245 = smul.addr %s244, 64
        %s246 = smul.addr %s245, 8
        %s247 = scalar_lea.vmem %s1, %s246
        %p248 = pneg %p82
        %p249 = pneg %p79
        %p250 = pneg %p118
        %p251 = pneg %p115
        %s252 = smul.u32 %s18, 2
        %s253 = ssub.s32 1, %s252
        %s254 = smul.u32 %s17, %s253
        %s255 = sadd.s32 %s18, %s254
        %s256 = smul.u32 8, %s255
        %p257 = scmp.lt.s32.totalorder %s17, 1
        %s258 = scalar_select %p257, %s17, 1
        %p259 = scmp.lt.s32.totalorder %s256, 15
        %s260 = scalar_select %p259, %s256, 15
        %s261 = smul.addr %s258, 16
        %s262 = sadd.s32 %s260, %s261
        %s263 = smul.addr %s262, 2
        %s264 = scalar_lea.vmem %s2, %s263
        %s265 = smul.u32 %s18, 2
        %s266 = ssub.s32 1, %s265
        %s267 = smul.u32 %s17, %s266
        %s268 = sadd.s32 %s18, %s267
        %s269 = smul.u32 8, %s268
        %s270 = smul.u32 4, %s17
        %p271 = scmp.lt.s32.totalorder %s17, 1
        %s272 = scalar_select %p271, %s17, 1
        %s273 = smul.addr %s272, 64
        %s274 = smul.addr %s273, 8
        %s275 = scalar_lea.vmem %s1, %s274
        %s276 = smul.u32 %s18, 2
        %s277 = ssub.s32 1, %s276
        %s278 = smul.u32 %s17, %s277
        %s279 = sadd.s32 %s18, %s278
        %s280 = smul.u32 8, %s279
        %p281 = scmp.lt.s32.totalorder %s17, 1
        %s282 = scalar_select %p281, %s17, 1
        %p283 = scmp.lt.s32.totalorder %s280, 15
        %s284 = scalar_select %p283, %s280, 15
        %s285 = smul.addr %s282, 16
        %s286 = sadd.s32 %s284, %s285
        %s287 = smul.addr %s286, 2
        %s288 = scalar_lea.vmem %s2, %s287
        %s289 = smul.u32 %s18, 2
        %s290 = ssub.s32 1, %s289
        %s291 = smul.u32 %s17, %s290
        %s292 = sadd.s32 %s18, %s291
        %s293 = smul.u32 8, %s292
        %p294 = scmp.eq.s32.totalorder %s18, 0
        // Predicated region
        $region67: #{_lambda_.8} parent=61 // pred_check
          %p295 = pneg %p294
        $region68: #{_lambda_.8} parent=61 // pred_check_branch
          %297 = sbr.rel (%p295) target = $region70
        $region69: #{_lambda_.8} parent=61 // pred_region
          %298 = vst [vmem:[#allocation2] sm:$0x3] 0.0
          %299 = vst [vmem:[#allocation3] sm:$0x3] 0.0
        $region70: #{_lambda_.8} parent=61 // pred_fallthru
          _
        %v300 = vld [vmem:[%s275] sm:$0xff]
        %v301 = vld [vmem:[%s275 + $0x8] sm:$0xff]
        %v302 = vld [vmem:[%s275 + $0x10] sm:$0xff]
        %v303 = vld [vmem:[%s275 + $0x18] sm:$0xff]
        %v304 = vld [vmem:[%s275 + $0x20] sm:$0xff]
        %v305 = vld [vmem:[%s275 + $0x28] sm:$0xff]
        %v306 = vld [vmem:[%s275 + $0x30] sm:$0xff]
        %v307 = vld [vmem:[%s275 + $0x38] sm:$0xff]
        %v308 = vld [vmem:[%s275 + $0x40] sm:$0xff]
        %v309 = vld [vmem:[%s275 + $0x48] sm:$0xff]
        %v310 = vld [vmem:[%s275 + $0x50] sm:$0xff]
        %v311 = vld [vmem:[%s275 + $0x58] sm:$0xff]
        %v312 = vld [vmem:[%s275 + $0x60] sm:$0xff]
        %v313 = vld [vmem:[%s275 + $0x68] sm:$0xff]
        %v314 = vld [vmem:[%s275 + $0x70] sm:$0xff]
        %v315 = vld [vmem:[%s275 + $0x78] sm:$0xff]
        %v316 = vld [vmem:[%s275 + $0x80] sm:$0xff]
        %v317 = vld [vmem:[%s275 + $0x88] sm:$0xff]
        %v318 = vld [vmem:[%s275 + $0x90] sm:$0xff]
        %v319 = vld [vmem:[%s275 + $0x98] sm:$0xff]
        %v320 = vld [vmem:[%s275 + $0xa0] sm:$0xff]
        %v321 = vld [vmem:[%s275 + $0xa8] sm:$0xff]
        %v322 = vld [vmem:[%s275 + $0xb0] sm:$0xff]
        %v323 = vld [vmem:[%s275 + $0xb8] sm:$0xff]
        %v324 = vld [vmem:[%s275 + $0xc0] sm:$0xff]
        %v325 = vld [vmem:[%s275 + $0xc8] sm:$0xff]
        %v326 = vld [vmem:[%s275 + $0xd0] sm:$0xff]
        %v327 = vld [vmem:[%s275 + $0xd8] sm:$0xff]
        %v328 = vld [vmem:[%s275 + $0xe0] sm:$0xff]
        %v329 = vld [vmem:[%s275 + $0xe8] sm:$0xff]
        %v330 = vld [vmem:[%s275 + $0xf0] sm:$0xff]
        %v331 = vld [vmem:[%s275 + $0xf8] sm:$0xff]
        %v332 = vld [vmem:[%s275 + $0x100] sm:$0xff]
        %v333 = vld [vmem:[%s275 + $0x108] sm:$0xff]
        %v334 = vld [vmem:[%s275 + $0x110] sm:$0xff]
        %v335 = vld [vmem:[%s275 + $0x118] sm:$0xff]
        %v336 = vld [vmem:[%s275 + $0x120] sm:$0xff]
        %v337 = vld [vmem:[%s275 + $0x128] sm:$0xff]
        %v338 = vld [vmem:[%s275 + $0x130] sm:$0xff]
        %v339 = vld [vmem:[%s275 + $0x138] sm:$0xff]
        %v340 = vld [vmem:[%s275 + $0x140] sm:$0xff]
        %v341 = vld [vmem:[%s275 + $0x148] sm:$0xff]
        %v342 = vld [vmem:[%s275 + $0x150] sm:$0xff]
        %v343 = vld [vmem:[%s275 + $0x158] sm:$0xff]
        %v344 = vld [vmem:[%s275 + $0x160] sm:$0xff]
        %v345 = vld [vmem:[%s275 + $0x168] sm:$0xff]
        %v346 = vld [vmem:[%s275 + $0x170] sm:$0xff]
        %v347 = vld [vmem:[%s275 + $0x178] sm:$0xff]
        %v348 = vld [vmem:[%s275 + $0x180] sm:$0xff]
        %v349 = vld [vmem:[%s275 + $0x188] sm:$0xff]
        %v350 = vld [vmem:[%s275 + $0x190] sm:$0xff]
        %v351 = vld [vmem:[%s275 + $0x198] sm:$0xff]
        %v352 = vld [vmem:[%s275 + $0x1a0] sm:$0xff]
        %v353 = vld [vmem:[%s275 + $0x1a8] sm:$0xff]
        %v354 = vld [vmem:[%s275 + $0x1b0] sm:$0xff]
        %v355 = vld [vmem:[%s275 + $0x1b8] sm:$0xff]
        %v356 = vld [vmem:[%s275 + $0x1c0] sm:$0xff]
        %v357 = vld [vmem:[%s275 + $0x1c8] sm:$0xff]
        %v358 = vld [vmem:[%s275 + $0x1d0] sm:$0xff]
        %v359 = vld [vmem:[%s275 + $0x1d8] sm:$0xff]
        %v360 = vld [vmem:[%s275 + $0x1e0] sm:$0xff]
        %v361 = vld [vmem:[%s275 + $0x1e8] sm:$0xff]
        %v362 = vld [vmem:[%s275 + $0x1f0] sm:$0xff]
        %v363 = vld [vmem:[%s275 + $0x1f8] sm:$0xff]
        %v364 = vld [vmem:[#allocation2] sm:$0x3]
        %v365 = vld [vmem:[#allocation3] sm:$0x3]
        %s366 = smul.u32 %s17, 7
        %s367 = smul.u32 %s366, 4
        %s368 = smul.addr %s367, 2
        %s369 = scalar_lea.vmem %s233, %s368 [#allocation4]
        %v370 = vld [vmem:[%s369] sm:$0xff]
        %371 = vmatpush.msra.mxu0 %v360
        %372 = vmatpush.msra.mxu0 %v356
        %373 = vmatpush.msra.mxu0 %v352
        %374 = vmatpush.msra.mxu0 %v348
        %375 = vmatpush.msra.mxu0 %v344
        %376 = vmatpush.msra.mxu0 %v340
        %377 = vmatpush.msra.mxu0 %v336
        %378 = vmatpush.msra.mxu0 %v332
        %379 = vmatpush.msra.mxu0 %v328
        %380 = vmatpush.msra.mxu0 %v324
        %381 = vmatpush.msra.mxu0 %v320
        %382 = vmatpush.msra.mxu0 %v316
        %383 = vmatpush.msra.mxu0 %v312
        %384 = vmatpush.msra.mxu0 %v308
        %385 = vmatpush.msra.mxu0 %v304
        %386 = vmatpush.msra.mxu0 %v300
        %387 = vmatmul.f32.gmra.mxu0 %v364
        %v388 = vpop.f32.mrf.mxu0
        %v389 = vadd.f32 0.0, %v388
        %390 = vdwg.mxu0
        %391 = vmatpush.msra.mxu0 %v361
        %392 = vmatpush.msra.mxu0 %v357
        %393 = vmatpush.msra.mxu0 %v353
        %394 = vmatpush.msra.mxu0 %v349
        %395 = vmatpush.msra.mxu0 %v345
        %396 = vmatpush.msra.mxu0 %v341
        %397 = vmatpush.msra.mxu0 %v337
        %398 = vmatpush.msra.mxu0 %v333
        %399 = vmatpush.msra.mxu0 %v329
        %400 = vmatpush.msra.mxu0 %v325
        %401 = vmatpush.msra.mxu0 %v321
        %402 = vmatpush.msra.mxu0 %v317
        %403 = vmatpush.msra.mxu0 %v313
        %404 = vmatpush.msra.mxu0 %v309
        %405 = vmatpush.msra.mxu0 %v305
        %406 = vmatpush.msra.mxu0 %v301
        %407 = vmatmul.f32.gmra.mxu0 %v364
        %v408 = vpop.f32.mrf.mxu0
        %v409 = vadd.f32 0.0, %v408
        %410 = vdwg.mxu0
        %411 = vmatpush.msra.mxu0 %v362
        %412 = vmatpush.msra.mxu0 %v358
        %413 = vmatpush.msra.mxu0 %v354
        %414 = vmatpush.msra.mxu0 %v350
        %415 = vmatpush.msra.mxu0 %v346
        %416 = vmatpush.msra.mxu0 %v342
        %417 = vmatpush.msra.mxu0 %v338
        %418 = vmatpush.msra.mxu0 %v334
        %419 = vmatpush.msra.mxu0 %v330
        %420 = vmatpush.msra.mxu0 %v326
        %421 = vmatpush.msra.mxu0 %v322
        %422 = vmatpush.msra.mxu0 %v318
        %423 = vmatpush.msra.mxu0 %v314
        %424 = vmatpush.msra.mxu0 %v310
        %425 = vmatpush.msra.mxu0 %v306
        %426 = vmatpush.msra.mxu0 %v302
        %427 = vmatmul.f32.gmra.mxu0 %v364
        %v428 = vpop.f32.mrf.mxu0
        %v429 = vadd.f32 0.0, %v428
        %430 = vdwg.mxu0
        %431 = vmatpush.msra.mxu0 %v363
        %432 = vmatpush.msra.mxu0 %v359
        %433 = vmatpush.msra.mxu0 %v355
        %434 = vmatpush.msra.mxu0 %v351
        %435 = vmatpush.msra.mxu0 %v347
        %436 = vmatpush.msra.mxu0 %v343
        %437 = vmatpush.msra.mxu0 %v339
        %438 = vmatpush.msra.mxu0 %v335
        %439 = vmatpush.msra.mxu0 %v331
        %440 = vmatpush.msra.mxu0 %v327
        %441 = vmatpush.msra.mxu0 %v323
        %442 = vmatpush.msra.mxu0 %v319
        %443 = vmatpush.msra.mxu0 %v315
        %444 = vmatpush.msra.mxu0 %v311
        %445 = vmatpush.msra.mxu0 %v307
        %446 = vmatpush.msra.mxu0 %v303
        %447 = vmatmul.f32.gmra.mxu0 %v364
        %v448 = vpop.f32.mrf.mxu0
        %v449 = vadd.f32 0.0, %v448
        %450 = vdwg.mxu0
        %v455 = vrot.slane %v409, 6
        %v456 = vrot.slane %v429, 4
        %v457 = vrot.slane %v449, 2
        %vm458 = vcmask 1041408
        %v459 = vsel %vm458, %v389, %v455
        %vm460 = vcmask 1045508
        %v461 = vsel %vm460, %v456, %v457
        %vm462 = vcmask 1043456
        %v463 = vsel %vm462, %v459, %v461
        %v465 = vadd.f32 %v370, %v463
        %v466 = vxor.u32 %v465, 2147483648
        %v467 = vmul.f32 %v466, 1.442695
        %v468 = vpow.pop %v467
        %v469 = vadd.f32 %v468, 1.0
        %v470 = vrcp.pop %v469
        %v471 = vmul.f32 %v469, %v470
        %v472 = vsub.f32 1.0, %v471
        %v473 = vmul.f32 %v470, %v472
        %v474 = vadd.f32 %v470, %v473
        %vm475 = vweird.f32 %v469
        %vm476 = vweird.f32 %v470
        %vm477 = vmor %vm475, %vm476
        %v478 = vsel %vm477, %v470, %v474
        %v479 = vand.u32 2147483647, %v469
        %vm480 = vcmp.eq.f32.partialorder %v479, 8.507059e+37
        %v481 = vand.u32 %v469, 2147483648
        %v482 = vor.u32 1.1754944e-38, %v481
        %v483 = vsel %vm480, %v482, %v478
        %v484 = vmul.f32 1.0, %v483
        %v486 = vrot.slane %v465, 2
        %v488 = vxor.u32 %v486, 2147483648
        %v489 = vmul.f32 %v488, 1.442695
        %v490 = vpow.pop %v489
        %v491 = vadd.f32 %v490, 1.0
        %v492 = vrcp.pop %v491
        %v493 = vmul.f32 %v491, %v492
        %v494 = vsub.f32 1.0, %v493
        %v495 = vmul.f32 %v492, %v494
        %v496 = vadd.f32 %v492, %v495
        %vm497 = vweird.f32 %v491
        %vm498 = vweird.f32 %v492
        %vm499 = vmor %vm497, %vm498
        %v500 = vsel %vm499, %v492, %v496
        %v501 = vand.u32 2147483647, %v491
        %vm502 = vcmp.eq.f32.partialorder %v501, 8.507059e+37
        %v503 = vand.u32 %v491, 2147483648
        %v504 = vor.u32 1.1754944e-38, %v503
        %v505 = vsel %vm502, %v504, %v500
        %v506 = vmul.f32 1.0, %v505
        %v507 = vrot.slane %v465, 4
        %v509 = vtanh.pop %v507
        %v510 = vrot.slane %v465, 6
        %v512 = vxor.u32 %v510, 2147483648
        %v513 = vmul.f32 %v512, 1.442695
        %v514 = vpow.pop %v513
        %v515 = vadd.f32 %v514, 1.0
        %v516 = vrcp.pop %v515
        %v517 = vmul.f32 %v515, %v516
        %v518 = vsub.f32 1.0, %v517
        %v519 = vmul.f32 %v516, %v518
        %v520 = vadd.f32 %v516, %v519
        %vm521 = vweird.f32 %v515
        %vm522 = vweird.f32 %v516
        %vm523 = vmor %vm521, %vm522
        %v524 = vsel %vm523, %v516, %v520
        %v525 = vand.u32 2147483647, %v515
        %vm526 = vcmp.eq.f32.partialorder %v525, 8.507059e+37
        %v527 = vand.u32 %v515, 2147483648
        %v528 = vor.u32 1.1754944e-38, %v527
        %v529 = vsel %vm526, %v528, %v524
        %v530 = vmul.f32 1.0, %v529
        %v531 = vmul.f32 %v506, %v365
        %v532 = vmul.f32 %v484, %v509
        %v533 = vadd.f32 %v531, %v532
        %v534 = vtanh.pop %v533
        %v535 = vmul.f32 %v530, %v534
        %s536 = smul.u32 %s366, 2
        %s537 = scalar_lea.vmem %s288, %s536
        %538 = vst [vmem:[%s537] sm:$0x3] %v535
        %s539 = smul.u32 %s17, 5
        %s540 = sadd.s32 %s539, 1
        %s541 = smul.u32 %s540, 4
        %s542 = smul.addr %s541, 2
        %s543 = scalar_lea.vmem %s233, %s542 [#allocation4]
        %v544 = vld [vmem:[%s543] sm:$0xff]
        %545 = vmatpush.msra.mxu0 %v360
        %546 = vmatpush.msra.mxu0 %v356
        %547 = vmatpush.msra.mxu0 %v352
        %548 = vmatpush.msra.mxu0 %v348
        %549 = vmatpush.msra.mxu0 %v344
        %550 = vmatpush.msra.mxu0 %v340
        %551 = vmatpush.msra.mxu0 %v336
        %552 = vmatpush.msra.mxu0 %v332
        %553 = vmatpush.msra.mxu0 %v328
        %554 = vmatpush.msra.mxu0 %v324
        %555 = vmatpush.msra.mxu0 %v320
        %556 = vmatpush.msra.mxu0 %v316
        %557 = vmatpush.msra.mxu0 %v312
        %558 = vmatpush.msra.mxu0 %v308
        %559 = vmatpush.msra.mxu0 %v304
        %560 = vmatpush.msra.mxu0 %v300
        %561 = vmatmul.f32.gmra.mxu0 %v535
        %v562 = vpop.f32.mrf.mxu0
        %v563 = vadd.f32 0.0, %v562
        %564 = vdwg.mxu0
        %565 = vmatpush.msra.mxu0 %v361
        %566 = vmatpush.msra.mxu0 %v357
        %567 = vmatpush.msra.mxu0 %v353
        %568 = vmatpush.msra.mxu0 %v349
        %569 = vmatpush.msra.mxu0 %v345
        %570 = vmatpush.msra.mxu0 %v341
        %571 = vmatpush.msra.mxu0 %v337
        %572 = vmatpush.msra.mxu0 %v333
        %573 = vmatpush.msra.mxu0 %v329
        %574 = vmatpush.msra.mxu0 %v325
        %575 = vmatpush.msra.mxu0 %v321
        %576 = vmatpush.msra.mxu0 %v317
        %577 = vmatpush.msra.mxu0 %v313
        %578 = vmatpush.msra.mxu0 %v309
        %579 = vmatpush.msra.mxu0 %v305
        %580 = vmatpush.msra.mxu0 %v301
        %581 = vmatmul.f32.gmra.mxu0 %v535
        %v582 = vpop.f32.mrf.mxu0
        %v583 = vadd.f32 0.0, %v582
        %584 = vdwg.mxu0
        %585 = vmatpush.msra.mxu0 %v362
        %586 = vmatpush.msra.mxu0 %v358
        %587 = vmatpush.msra.mxu0 %v354
        %588 = vmatpush.msra.mxu0 %v350
        %589 = vmatpush.msra.mxu0 %v346
        %590 = vmatpush.msra.mxu0 %v342
        %591 = vmatpush.msra.mxu0 %v338
        %592 = vmatpush.msra.mxu0 %v334
        %593 = vmatpush.msra.mxu0 %v330
        %594 = vmatpush.msra.mxu0 %v326
        %595 = vmatpush.msra.mxu0 %v322
        %596 = vmatpush.msra.mxu0 %v318
        %597 = vmatpush.msra.mxu0 %v314
        %598 = vmatpush.msra.mxu0 %v310
        %599 = vmatpush.msra.mxu0 %v306
        %600 = vmatpush.msra.mxu0 %v302
        %601 = vmatmul.f32.gmra.mxu0 %v535
        %v602 = vpop.f32.mrf.mxu0
        %v603 = vadd.f32 0.0, %v602
        %604 = vdwg.mxu0
        %605 = vmatpush.msra.mxu0 %v363
        %606 = vmatpush.msra.mxu0 %v359
        %607 = vmatpush.msra.mxu0 %v355
        %608 = vmatpush.msra.mxu0 %v351
        %609 = vmatpush.msra.mxu0 %v347
        %610 = vmatpush.msra.mxu0 %v343
        %611 = vmatpush.msra.mxu0 %v339
        %612 = vmatpush.msra.mxu0 %v335
        %613 = vmatpush.msra.mxu0 %v331
        %614 = vmatpush.msra.mxu0 %v327
        %615 = vmatpush.msra.mxu0 %v323
        %616 = vmatpush.msra.mxu0 %v319
        %617 = vmatpush.msra.mxu0 %v315
        %618 = vmatpush.msra.mxu0 %v311
        %619 = vmatpush.msra.mxu0 %v307
        %620 = vmatpush.msra.mxu0 %v303
        %621 = vmatmul.f32.gmra.mxu0 %v535
        %v622 = vpop.f32.mrf.mxu0
        %v623 = vadd.f32 0.0, %v622
        %624 = vdwg.mxu0
        %v629 = vrot.slane %v583, 6
        %v630 = vrot.slane %v603, 4
        %v631 = vrot.slane %v623, 2
        %v632 = vsel %vm458, %v563, %v629
        %v633 = vsel %vm460, %v630, %v631
        %v634 = vsel %vm462, %v632, %v633
        %v636 = vadd.f32 %v544, %v634
        %v637 = vxor.u32 %v636, 2147483648
        %v638 = vmul.f32 %v637, 1.442695
        %v639 = vpow.pop %v638
        %v640 = vadd.f32 %v639, 1.0
        %v641 = vrcp.pop %v640
        %v642 = vmul.f32 %v640, %v641
        %v643 = vsub.f32 1.0, %v642
        %v644 = vmul.f32 %v641, %v643
        %v645 = vadd.f32 %v641, %v644
        %vm646 = vweird.f32 %v640
        %vm647 = vweird.f32 %v641
        %vm648 = vmor %vm646, %vm647
        %v649 = vsel %vm648, %v641, %v645
        %v650 = vand.u32 2147483647, %v640
        %vm651 = vcmp.eq.f32.partialorder %v650, 8.507059e+37
        %v652 = vand.u32 %v640, 2147483648
        %v653 = vor.u32 1.1754944e-38, %v652
        %v654 = vsel %vm651, %v653, %v649
        %v655 = vmul.f32 1.0, %v654
        %v657 = vrot.slane %v636, 2
        %v659 = vxor.u32 %v657, 2147483648
        %v660 = vmul.f32 %v659, 1.442695
        %v661 = vpow.pop %v660
        %v662 = vadd.f32 %v661, 1.0
        %v663 = vrcp.pop %v662
        %v664 = vmul.f32 %v662, %v663
        %v665 = vsub.f32 1.0, %v664
        %v666 = vmul.f32 %v663, %v665
        %v667 = vadd.f32 %v663, %v666
        %vm668 = vweird.f32 %v662
        %vm669 = vweird.f32 %v663
        %vm670 = vmor %vm668, %vm669
        %v671 = vsel %vm670, %v663, %v667
        %v672 = vand.u32 2147483647, %v662
        %vm673 = vcmp.eq.f32.partialorder %v672, 8.507059e+37
        %v674 = vand.u32 %v662, 2147483648
        %v675 = vor.u32 1.1754944e-38, %v674
        %v676 = vsel %vm673, %v675, %v671
        %v677 = vmul.f32 1.0, %v676
        %v678 = vrot.slane %v636, 4
        %v680 = vtanh.pop %v678
        %v681 = vrot.slane %v636, 6
        %v683 = vxor.u32 %v681, 2147483648
        %v684 = vmul.f32 %v683, 1.442695
        %v685 = vpow.pop %v684
        %v686 = vadd.f32 %v685, 1.0
        %v687 = vrcp.pop %v686
        %v688 = vmul.f32 %v686, %v687
        %v689 = vsub.f32 1.0, %v688
        %v690 = vmul.f32 %v687, %v689
        %v691 = vadd.f32 %v687, %v690
        %vm692 = vweird.f32 %v686
        %vm693 = vweird.f32 %v687
        %vm694 = vmor %vm692, %vm693
        %v695 = vsel %vm694, %v687, %v691
        %v696 = vand.u32 2147483647, %v686
        %vm697 = vcmp.eq.f32.partialorder %v696, 8.507059e+37
        %v698 = vand.u32 %v686, 2147483648
        %v699 = vor.u32 1.1754944e-38, %v698
        %v700 = vsel %vm697, %v699, %v695
        %v701 = vmul.f32 1.0, %v700
        %v702 = vmul.f32 %v677, %v533
        %v703 = vmul.f32 %v655, %v680
        %v704 = vadd.f32 %v702, %v703
        %v705 = vtanh.pop %v704
        %v706 = vmul.f32 %v701, %v705
        %s707 = smul.u32 %s540, 2
        %s708 = scalar_lea.vmem %s288, %s707
        %709 = vst [vmem:[%s708] sm:$0x3] %v706
        %s710 = smul.u32 %s17, 3
        %s711 = sadd.s32 %s710, 2
        %s712 = smul.u32 %s711, 4
        %s713 = smul.addr %s712, 2
        %s714 = scalar_lea.vmem %s233, %s713 [#allocation4]
        %v715 = vld [vmem:[%s714] sm:$0xff]
        %716 = vmatpush.msra.mxu0 %v360
        %717 = vmatpush.msra.mxu0 %v356
        %718 = vmatpush.msra.mxu0 %v352
        %719 = vmatpush.msra.mxu0 %v348
        %720 = vmatpush.msra.mxu0 %v344
        %721 = vmatpush.msra.mxu0 %v340
        %722 = vmatpush.msra.mxu0 %v336
        %723 = vmatpush.msra.mxu0 %v332
        %724 = vmatpush.msra.mxu0 %v328
        %725 = vmatpush.msra.mxu0 %v324
        %726 = vmatpush.msra.mxu0 %v320
        %727 = vmatpush.msra.mxu0 %v316
        %728 = vmatpush.msra.mxu0 %v312
        %729 = vmatpush.msra.mxu0 %v308
        %730 = vmatpush.msra.mxu0 %v304
        %731 = vmatpush.msra.mxu0 %v300
        %732 = vmatmul.f32.gmra.mxu0 %v706
        %v733 = vpop.f32.mrf.mxu0
        %v734 = vadd.f32 0.0, %v733
        %735 = vdwg.mxu0
        %736 = vmatpush.msra.mxu0 %v361
        %737 = vmatpush.msra.mxu0 %v357
        %738 = vmatpush.msra.mxu0 %v353
        %739 = vmatpush.msra.mxu0 %v349
        %740 = vmatpush.msra.mxu0 %v345
        %741 = vmatpush.msra.mxu0 %v341
        %742 = vmatpush.msra.mxu0 %v337
        %743 = vmatpush.msra.mxu0 %v333
        %744 = vmatpush.msra.mxu0 %v329
        %745 = vmatpush.msra.mxu0 %v325
        %746 = vmatpush.msra.mxu0 %v321
        %747 = vmatpush.msra.mxu0 %v317
        %748 = vmatpush.msra.mxu0 %v313
        %749 = vmatpush.msra.mxu0 %v309
        %750 = vmatpush.msra.mxu0 %v305
        %751 = vmatpush.msra.mxu0 %v301
        %752 = vmatmul.f32.gmra.mxu0 %v706
        %v753 = vpop.f32.mrf.mxu0
        %v754 = vadd.f32 0.0, %v753
        %755 = vdwg.mxu0
        %756 = vmatpush.msra.mxu0 %v362
        %757 = vmatpush.msra.mxu0 %v358
        %758 = vmatpush.msra.mxu0 %v354
        %759 = vmatpush.msra.mxu0 %v350
        %760 = vmatpush.msra.mxu0 %v346
        %761 = vmatpush.msra.mxu0 %v342
        %762 = vmatpush.msra.mxu0 %v338
        %763 = vmatpush.msra.mxu0 %v334
        %764 = vmatpush.msra.mxu0 %v330
        %765 = vmatpush.msra.mxu0 %v326
        %766 = vmatpush.msra.mxu0 %v322
        %767 = vmatpush.msra.mxu0 %v318
        %768 = vmatpush.msra.mxu0 %v314
        %769 = vmatpush.msra.mxu0 %v310
        %770 = vmatpush.msra.mxu0 %v306
        %771 = vmatpush.msra.mxu0 %v302
        %772 = vmatmul.f32.gmra.mxu0 %v706
        %v773 = vpop.f32.mrf.mxu0
        %v774 = vadd.f32 0.0, %v773
        %775 = vdwg.mxu0
        %776 = vmatpush.msra.mxu0 %v363
        %777 = vmatpush.msra.mxu0 %v359
        %778 = vmatpush.msra.mxu0 %v355
        %779 = vmatpush.msra.mxu0 %v351
        %780 = vmatpush.msra.mxu0 %v347
        %781 = vmatpush.msra.mxu0 %v343
        %782 = vmatpush.msra.mxu0 %v339
        %783 = vmatpush.msra.mxu0 %v335
        %784 = vmatpush.msra.mxu0 %v331
        %785 = vmatpush.msra.mxu0 %v327
        %786 = vmatpush.msra.mxu0 %v323
        %787 = vmatpush.msra.mxu0 %v319
        %788 = vmatpush.msra.mxu0 %v315
        %789 = vmatpush.msra.mxu0 %v311
        %790 = vmatpush.msra.mxu0 %v307
        %791 = vmatpush.msra.mxu0 %v303
        %792 = vmatmul.f32.gmra.mxu0 %v706
        %v793 = vpop.f32.mrf.mxu0
        %v794 = vadd.f32 0.0, %v793
        %795 = vdwg.mxu0
        %v800 = vrot.slane %v754, 6
        %v801 = vrot.slane %v774, 4
        %v802 = vrot.slane %v794, 2
        %v803 = vsel %vm458, %v734, %v800
        %v804 = vsel %vm460, %v801, %v802
        %v805 = vsel %vm462, %v803, %v804
        %v807 = vadd.f32 %v715, %v805
        %v808 = vxor.u32 %v807, 2147483648
        %v809 = vmul.f32 %v808, 1.442695
        %v810 = vpow.pop %v809
        %v811 = vadd.f32 %v810, 1.0
        %v812 = vrcp.pop %v811
        %v813 = vmul.f32 %v811, %v812
        %v814 = vsub.f32 1.0, %v813
        %v815 = vmul.f32 %v812, %v814
        %v816 = vadd.f32 %v812, %v815
        %vm817 = vweird.f32 %v811
        %vm818 = vweird.f32 %v812
        %vm819 = vmor %vm817, %vm818
        %v820 = vsel %vm819, %v812, %v816
        %v821 = vand.u32 2147483647, %v811
        %vm822 = vcmp.eq.f32.partialorder %v821, 8.507059e+37
        %v823 = vand.u32 %v811, 2147483648
        %v824 = vor.u32 1.1754944e-38, %v823
        %v825 = vsel %vm822, %v824, %v820
        %v826 = vmul.f32 1.0, %v825
        %v828 = vrot.slane %v807, 2
        %v830 = vxor.u32 %v828, 2147483648
        %v831 = vmul.f32 %v830, 1.442695
        %v832 = vpow.pop %v831
        %v833 = vadd.f32 %v832, 1.0
        %v834 = vrcp.pop %v833
        %v835 = vmul.f32 %v833, %v834
        %v836 = vsub.f32 1.0, %v835
        %v837 = vmul.f32 %v834, %v836
        %v838 = vadd.f32 %v834, %v837
        %vm839 = vweird.f32 %v833
        %vm840 = vweird.f32 %v834
        %vm841 = vmor %vm839, %vm840
        %v842 = vsel %vm841, %v834, %v838
        %v843 = vand.u32 2147483647, %v833
        %vm844 = vcmp.eq.f32.partialorder %v843, 8.507059e+37
        %v845 = vand.u32 %v833, 2147483648
        %v846 = vor.u32 1.1754944e-38, %v845
        %v847 = vsel %vm844, %v846, %v842
        %v848 = vmul.f32 1.0, %v847
        %v849 = vrot.slane %v807, 4
        %v851 = vtanh.pop %v849
        %v852 = vrot.slane %v807, 6
        %v854 = vxor.u32 %v852, 2147483648
        %v855 = vmul.f32 %v854, 1.442695
        %v856 = vpow.pop %v855
        %v857 = vadd.f32 %v856, 1.0
        %v858 = vrcp.pop %v857
        %v859 = vmul.f32 %v857, %v858
        %v860 = vsub.f32 1.0, %v859
        %v861 = vmul.f32 %v858, %v860
        %v862 = vadd.f32 %v858, %v861
        %vm863 = vweird.f32 %v857
        %vm864 = vweird.f32 %v858
        %vm865 = vmor %vm863, %vm864
        %v866 = vsel %vm865, %v858, %v862
        %v867 = vand.u32 2147483647, %v857
        %vm868 = vcmp.eq.f32.partialorder %v867, 8.507059e+37
        %v869 = vand.u32 %v857, 2147483648
        %v870 = vor.u32 1.1754944e-38, %v869
        %v871 = vsel %vm868, %v870, %v866
        %v872 = vmul.f32 1.0, %v871
        %v873 = vmul.f32 %v848, %v704
        %v874 = vmul.f32 %v826, %v851
        %v875 = vadd.f32 %v873, %v874
        %v876 = vtanh.pop %v875
        %v877 = vmul.f32 %v872, %v876
        %s878 = smul.u32 %s711, 2
        %s879 = scalar_lea.vmem %s288, %s878
        %880 = vst [vmem:[%s879] sm:$0x3] %v877
        %s881 = sadd.s32 %s17, 3
        %s882 = smul.u32 %s881, 4
        %s883 = smul.addr %s882, 2
        %s884 = scalar_lea.vmem %s233, %s883 [#allocation4]
        %v885 = vld [vmem:[%s884] sm:$0xff]
        %886 = vmatpush.msra.mxu0 %v360
        %887 = vmatpush.msra.mxu0 %v356
        %888 = vmatpush.msra.mxu0 %v352
        %889 = vmatpush.msra.mxu0 %v348
        %890 = vmatpush.msra.mxu0 %v344
        %891 = vmatpush.msra.mxu0 %v340
        %892 = vmatpush.msra.mxu0 %v336
        %893 = vmatpush.msra.mxu0 %v332
        %894 = vmatpush.msra.mxu0 %v328
        %895 = vmatpush.msra.mxu0 %v324
        %896 = vmatpush.msra.mxu0 %v320
        %897 = vmatpush.msra.mxu0 %v316
        %898 = vmatpush.msra.mxu0 %v312
        %899 = vmatpush.msra.mxu0 %v308
        %900 = vmatpush.msra.mxu0 %v304
        %901 = vmatpush.msra.mxu0 %v300
        %902 = vmatmul.f32.gmra.mxu0 %v877
        %v903 = vpop.f32.mrf.mxu0
        %v904 = vadd.f32 0.0, %v903
        %905 = vdwg.mxu0
        %906 = vmatpush.msra.mxu0 %v361
        %907 = vmatpush.msra.mxu0 %v357
        %908 = vmatpush.msra.mxu0 %v353
        %909 = vmatpush.msra.mxu0 %v349
        %910 = vmatpush.msra.mxu0 %v345
        %911 = vmatpush.msra.mxu0 %v341
        %912 = vmatpush.msra.mxu0 %v337
        %913 = vmatpush.msra.mxu0 %v333
        %914 = vmatpush.msra.mxu0 %v329
        %915 = vmatpush.msra.mxu0 %v325
        %916 = vmatpush.msra.mxu0 %v321
        %917 = vmatpush.msra.mxu0 %v317
        %918 = vmatpush.msra.mxu0 %v313
        %919 = vmatpush.msra.mxu0 %v309
        %920 = vmatpush.msra.mxu0 %v305
        %921 = vmatpush.msra.mxu0 %v301
        %922 = vmatmul.f32.gmra.mxu0 %v877
        %v923 = vpop.f32.mrf.mxu0
        %v924 = vadd.f32 0.0, %v923
        %925 = vdwg.mxu0
        %926 = vmatpush.msra.mxu0 %v362
        %927 = vmatpush.msra.mxu0 %v358
        %928 = vmatpush.msra.mxu0 %v354
        %929 = vmatpush.msra.mxu0 %v350
        %930 = vmatpush.msra.mxu0 %v346
        %931 = vmatpush.msra.mxu0 %v342
        %932 = vmatpush.msra.mxu0 %v338
        %933 = vmatpush.msra.mxu0 %v334
        %934 = vmatpush.msra.mxu0 %v330
        %935 = vmatpush.msra.mxu0 %v326
        %936 = vmatpush.msra.mxu0 %v322
        %937 = vmatpush.msra.mxu0 %v318
        %938 = vmatpush.msra.mxu0 %v314
        %939 = vmatpush.msra.mxu0 %v310
        %940 = vmatpush.msra.mxu0 %v306
        %941 = vmatpush.msra.mxu0 %v302
        %942 = vmatmul.f32.gmra.mxu0 %v877
        %v943 = vpop.f32.mrf.mxu0
        %v944 = vadd.f32 0.0, %v943
        %945 = vdwg.mxu0
        %946 = vmatpush.msra.mxu0 %v363
        %947 = vmatpush.msra.mxu0 %v359
        %948 = vmatpush.msra.mxu0 %v355
        %949 = vmatpush.msra.mxu0 %v351
        %950 = vmatpush.msra.mxu0 %v347
        %951 = vmatpush.msra.mxu0 %v343
        %952 = vmatpush.msra.mxu0 %v339
        %953 = vmatpush.msra.mxu0 %v335
        %954 = vmatpush.msra.mxu0 %v331
        %955 = vmatpush.msra.mxu0 %v327
        %956 = vmatpush.msra.mxu0 %v323
        %957 = vmatpush.msra.mxu0 %v319
        %958 = vmatpush.msra.mxu0 %v315
        %959 = vmatpush.msra.mxu0 %v311
        %960 = vmatpush.msra.mxu0 %v307
        %961 = vmatpush.msra.mxu0 %v303
        %962 = vmatmul.f32.gmra.mxu0 %v877
        %v963 = vpop.f32.mrf.mxu0
        %v964 = vadd.f32 0.0, %v963
        %965 = vdwg.mxu0
        %v970 = vrot.slane %v924, 6
        %v971 = vrot.slane %v944, 4
        %v972 = vrot.slane %v964, 2
        %v973 = vsel %vm458, %v904, %v970
        %v974 = vsel %vm460, %v971, %v972
        %v975 = vsel %vm462, %v973, %v974
        %v977 = vadd.f32 %v885, %v975
        %v978 = vxor.u32 %v977, 2147483648
        %v979 = vmul.f32 %v978, 1.442695
        %v980 = vpow.pop %v979
        %v981 = vadd.f32 %v980, 1.0
        %v982 = vrcp.pop %v981
        %v983 = vmul.f32 %v981, %v982
        %v984 = vsub.f32 1.0, %v983
        %v985 = vmul.f32 %v982, %v984
        %v986 = vadd.f32 %v982, %v985
        %vm987 = vweird.f32 %v981
        %vm988 = vweird.f32 %v982
        %vm989 = vmor %vm987, %vm988
        %v990 = vsel %vm989, %v982, %v986
        %v991 = vand.u32 2147483647, %v981
        %vm992 = vcmp.eq.f32.partialorder %v991, 8.507059e+37
        %v993 = vand.u32 %v981, 2147483648
        %v994 = vor.u32 1.1754944e-38, %v993
        %v995 = vsel %vm992, %v994, %v990
        %v996 = vmul.f32 1.0, %v995
        %v998 = vrot.slane %v977, 2
        %v1000 = vxor.u32 %v998, 2147483648
        %v1001 = vmul.f32 %v1000, 1.442695
        %v1002 = vpow.pop %v1001
        %v1003 = vadd.f32 %v1002, 1.0
        %v1004 = vrcp.pop %v1003
        %v1005 = vmul.f32 %v1003, %v1004
        %v1006 = vsub.f32 1.0, %v1005
        %v1007 = vmul.f32 %v1004, %v1006
        %v1008 = vadd.f32 %v1004, %v1007
        %vm1009 = vweird.f32 %v1003
        %vm1010 = vweird.f32 %v1004
        %vm1011 = vmor %vm1009, %vm1010
        %v1012 = vsel %vm1011, %v1004, %v1008
        %v1013 = vand.u32 2147483647, %v1003
        %vm1014 = vcmp.eq.f32.partialorder %v1013, 8.507059e+37
        %v1015 = vand.u32 %v1003, 2147483648
        %v1016 = vor.u32 1.1754944e-38, %v1015
        %v1017 = vsel %vm1014, %v1016, %v1012
        %v1018 = vmul.f32 1.0, %v1017
        %v1019 = vrot.slane %v977, 4
        %v1021 = vtanh.pop %v1019
        %v1022 = vrot.slane %v977, 6
        %v1024 = vxor.u32 %v1022, 2147483648
        %v1025 = vmul.f32 %v1024, 1.442695
        %v1026 = vpow.pop %v1025
        %v1027 = vadd.f32 %v1026, 1.0
        %v1028 = vrcp.pop %v1027
        %v1029 = vmul.f32 %v1027, %v1028
        %v1030 = vsub.f32 1.0, %v1029
        %v1031 = vmul.f32 %v1028, %v1030
        %v1032 = vadd.f32 %v1028, %v1031
        %vm1033 = vweird.f32 %v1027
        %vm1034 = vweird.f32 %v1028
        %vm1035 = vmor %vm1033, %vm1034
        %v1036 = vsel %vm1035, %v1028, %v1032
        %v1037 = vand.u32 2147483647, %v1027
        %vm1038 = vcmp.eq.f32.partialorder %v1037, 8.507059e+37
        %v1039 = vand.u32 %v1027, 2147483648
        %v1040 = vor.u32 1.1754944e-38, %v1039
        %v1041 = vsel %vm1038, %v1040, %v1036
        %v1042 = vmul.f32 1.0, %v1041
        %v1043 = vmul.f32 %v1018, %v875
        %v1044 = vmul.f32 %v996, %v1021
        %v1045 = vadd.f32 %v1043, %v1044
        %v1046 = vtanh.pop %v1045
        %v1047 = vmul.f32 %v1042, %v1046
        %s1048 = smul.u32 %s881, 2
        %s1049 = scalar_lea.vmem %s288, %s1048
        %1050 = vst [vmem:[%s1049] sm:$0x3] %v1047
        %s1051 = ssub.s32 4, %s17
        %s1052 = smul.u32 %s1051, 4
        %s1053 = smul.addr %s1052, 2
        %s1054 = scalar_lea.vmem %s233, %s1053 [#allocation4]
        %v1055 = vld [vmem:[%s1054] sm:$0xff]
        %1056 = vmatpush.msra.mxu0 %v360
        %1057 = vmatpush.msra.mxu0 %v356
        %1058 = vmatpush.msra.mxu0 %v352
        %1059 = vmatpush.msra.mxu0 %v348
        %1060 = vmatpush.msra.mxu0 %v344
        %1061 = vmatpush.msra.mxu0 %v340
        %1062 = vmatpush.msra.mxu0 %v336
        %1063 = vmatpush.msra.mxu0 %v332
        %1064 = vmatpush.msra.mxu0 %v328
        %1065 = vmatpush.msra.mxu0 %v324
        %1066 = vmatpush.msra.mxu0 %v320
        %1067 = vmatpush.msra.mxu0 %v316
        %1068 = vmatpush.msra.mxu0 %v312
        %1069 = vmatpush.msra.mxu0 %v308
        %1070 = vmatpush.msra.mxu0 %v304
        %1071 = vmatpush.msra.mxu0 %v300
        %1072 = vmatmul.f32.gmra.mxu0 %v1047
        %v1073 = vpop.f32.mrf.mxu0
        %v1074 = vadd.f32 0.0, %v1073
        %1075 = vdwg.mxu0
        %1076 = vmatpush.msra.mxu0 %v361
        %1077 = vmatpush.msra.mxu0 %v357
        %1078 = vmatpush.msra.mxu0 %v353
        %1079 = vmatpush.msra.mxu0 %v349
        %1080 = vmatpush.msra.mxu0 %v345
        %1081 = vmatpush.msra.mxu0 %v341
        %1082 = vmatpush.msra.mxu0 %v337
        %1083 = vmatpush.msra.mxu0 %v333
        %1084 = vmatpush.msra.mxu0 %v329
        %1085 = vmatpush.msra.mxu0 %v325
        %1086 = vmatpush.msra.mxu0 %v321
        %1087 = vmatpush.msra.mxu0 %v317
        %1088 = vmatpush.msra.mxu0 %v313
        %1089 = vmatpush.msra.mxu0 %v309
        %1090 = vmatpush.msra.mxu0 %v305
        %1091 = vmatpush.msra.mxu0 %v301
        %1092 = vmatmul.f32.gmra.mxu0 %v1047
        %v1093 = vpop.f32.mrf.mxu0
        %v1094 = vadd.f32 0.0, %v1093
        %1095 = vdwg.mxu0
        %1096 = vmatpush.msra.mxu0 %v362
        %1097 = vmatpush.msra.mxu0 %v358
        %1098 = vmatpush.msra.mxu0 %v354
        %1099 = vmatpush.msra.mxu0 %v350
        %1100 = vmatpush.msra.mxu0 %v346
        %1101 = vmatpush.msra.mxu0 %v342
        %1102 = vmatpush.msra.mxu0 %v338
        %1103 = vmatpush.msra.mxu0 %v334
        %1104 = vmatpush.msra.mxu0 %v330
        %1105 = vmatpush.msra.mxu0 %v326
        %1106 = vmatpush.msra.mxu0 %v322
        %1107 = vmatpush.msra.mxu0 %v318
        %1108 = vmatpush.msra.mxu0 %v314
        %1109 = vmatpush.msra.mxu0 %v310
        %1110 = vmatpush.msra.mxu0 %v306
        %1111 = vmatpush.msra.mxu0 %v302
        %1112 = vmatmul.f32.gmra.mxu0 %v1047
        %v1113 = vpop.f32.mrf.mxu0
        %v1114 = vadd.f32 0.0, %v1113
        %1115 = vdwg.mxu0
        %1116 = vmatpush.msra.mxu0 %v363
        %1117 = vmatpush.msra.mxu0 %v359
        %1118 = vmatpush.msra.mxu0 %v355
        %1119 = vmatpush.msra.mxu0 %v351
        %1120 = vmatpush.msra.mxu0 %v347
        %1121 = vmatpush.msra.mxu0 %v343
        %1122 = vmatpush.msra.mxu0 %v339
        %1123 = vmatpush.msra.mxu0 %v335
        %1124 = vmatpush.msra.mxu0 %v331
        %1125 = vmatpush.msra.mxu0 %v327
        %1126 = vmatpush.msra.mxu0 %v323
        %1127 = vmatpush.msra.mxu0 %v319
        %1128 = vmatpush.msra.mxu0 %v315
        %1129 = vmatpush.msra.mxu0 %v311
        %1130 = vmatpush.msra.mxu0 %v307
        %1131 = vmatpush.msra.mxu0 %v303
        %1132 = vmatmul.f32.gmra.mxu0 %v1047
        %v1133 = vpop.f32.mrf.mxu0
        %v1134 = vadd.f32 0.0, %v1133
        %1135 = vdwg.mxu0
        %v1140 = vrot.slane %v1094, 6
        %v1141 = vrot.slane %v1114, 4
        %v1142 = vrot.slane %v1134, 2
        %v1143 = vsel %vm458, %v1074, %v1140
        %v1144 = vsel %vm460, %v1141, %v1142
        %v1145 = vsel %vm462, %v1143, %v1144
        %v1147 = vadd.f32 %v1055, %v1145
        %v1148 = vxor.u32 %v1147, 2147483648
        %v1149 = vmul.f32 %v1148, 1.442695
        %v1150 = vpow.pop %v1149
        %v1151 = vadd.f32 %v1150, 1.0
        %v1152 = vrcp.pop %v1151
        %v1153 = vmul.f32 %v1151, %v1152
        %v1154 = vsub.f32 1.0, %v1153
        %v1155 = vmul.f32 %v1152, %v1154
        %v1156 = vadd.f32 %v1152, %v1155
        %vm1157 = vweird.f32 %v1151
        %vm1158 = vweird.f32 %v1152
        %vm1159 = vmor %vm1157, %vm1158
        %v1160 = vsel %vm1159, %v1152, %v1156
        %v1161 = vand.u32 2147483647, %v1151
        %vm1162 = vcmp.eq.f32.partialorder %v1161, 8.507059e+37
        %v1163 = vand.u32 %v1151, 2147483648
        %v1164 = vor.u32 1.1754944e-38, %v1163
        %v1165 = vsel %vm1162, %v1164, %v1160
        %v1166 = vmul.f32 1.0, %v1165
        %v1168 = vrot.slane %v1147, 2
        %v1170 = vxor.u32 %v1168, 2147483648
        %v1171 = vmul.f32 %v1170, 1.442695
        %v1172 = vpow.pop %v1171
        %v1173 = vadd.f32 %v1172, 1.0
        %v1174 = vrcp.pop %v1173
        %v1175 = vmul.f32 %v1173, %v1174
        %v1176 = vsub.f32 1.0, %v1175
        %v1177 = vmul.f32 %v1174, %v1176
        %v1178 = vadd.f32 %v1174, %v1177
        %vm1179 = vweird.f32 %v1173
        %vm1180 = vweird.f32 %v1174
        %vm1181 = vmor %vm1179, %vm1180
        %v1182 = vsel %vm1181, %v1174, %v1178
        %v1183 = vand.u32 2147483647, %v1173
        %vm1184 = vcmp.eq.f32.partialorder %v1183, 8.507059e+37
        %v1185 = vand.u32 %v1173, 2147483648
        %v1186 = vor.u32 1.1754944e-38, %v1185
        %v1187 = vsel %vm1184, %v1186, %v1182
        %v1188 = vmul.f32 1.0, %v1187
        %v1189 = vrot.slane %v1147, 4
        %v1191 = vtanh.pop %v1189
        %v1192 = vrot.slane %v1147, 6
        %v1194 = vxor.u32 %v1192, 2147483648
        %v1195 = vmul.f32 %v1194, 1.442695
        %v1196 = vpow.pop %v1195
        %v1197 = vadd.f32 %v1196, 1.0
        %v1198 = vrcp.pop %v1197
        %v1199 = vmul.f32 %v1197, %v1198
        %v1200 = vsub.f32 1.0, %v1199
        %v1201 = vmul.f32 %v1198, %v1200
        %v1202 = vadd.f32 %v1198, %v1201
        %vm1203 = vweird.f32 %v1197
        %vm1204 = vweird.f32 %v1198
        %vm1205 = vmor %vm1203, %vm1204
        %v1206 = vsel %vm1205, %v1198, %v1202
        %v1207 = vand.u32 2147483647, %v1197
        %vm1208 = vcmp.eq.f32.partialorder %v1207, 8.507059e+37
        %v1209 = vand.u32 %v1197, 2147483648
        %v1210 = vor.u32 1.1754944e-38, %v1209
        %v1211 = vsel %vm1208, %v1210, %v1206
        %v1212 = vmul.f32 1.0, %v1211
        %v1213 = vmul.f32 %v1188, %v1045
        %v1214 = vmul.f32 %v1166, %v1191
        %v1215 = vadd.f32 %v1213, %v1214
        %v1216 = vtanh.pop %v1215
        %v1217 = vmul.f32 %v1212, %v1216
        %s1218 = smul.u32 %s1051, 2
        %s1219 = scalar_lea.vmem %s288, %s1218
        %1220 = vst [vmem:[%s1219] sm:$0x3] %v1217
        %s1221 = smul.u32 %s17, 4294967293
        %s1222 = sadd.s32 %s1221, 5
        %s1223 = smul.u32 %s1222, 4
        %s1224 = smul.addr %s1223, 2
        %s1225 = scalar_lea.vmem %s233, %s1224 [#allocation4]
        %v1226 = vld [vmem:[%s1225] sm:$0xff]
        %1227 = vmatpush.msra.mxu0 %v360
        %1228 = vmatpush.msra.mxu0 %v356
        %1229 = vmatpush.msra.mxu0 %v352
        %1230 = vmatpush.msra.mxu0 %v348
        %1231 = vmatpush.msra.mxu0 %v344
        %1232 = vmatpush.msra.mxu0 %v340
        %1233 = vmatpush.msra.mxu0 %v336
        %1234 = vmatpush.msra.mxu0 %v332
        %1235 = vmatpush.msra.mxu0 %v328
        %1236 = vmatpush.msra.mxu0 %v324
        %1237 = vmatpush.msra.mxu0 %v320
        %1238 = vmatpush.msra.mxu0 %v316
        %1239 = vmatpush.msra.mxu0 %v312
        %1240 = vmatpush.msra.mxu0 %v308
        %1241 = vmatpush.msra.mxu0 %v304
        %1242 = vmatpush.msra.mxu0 %v300
        %1243 = vmatmul.f32.gmra.mxu0 %v1217
        %v1244 = vpop.f32.mrf.mxu0
        %v1245 = vadd.f32 0.0, %v1244
        %1246 = vdwg.mxu0
        %1247 = vmatpush.msra.mxu0 %v361
        %1248 = vmatpush.msra.mxu0 %v357
        %1249 = vmatpush.msra.mxu0 %v353
        %1250 = vmatpush.msra.mxu0 %v349
        %1251 = vmatpush.msra.mxu0 %v345
        %1252 = vmatpush.msra.mxu0 %v341
        %1253 = vmatpush.msra.mxu0 %v337
        %1254 = vmatpush.msra.mxu0 %v333
        %1255 = vmatpush.msra.mxu0 %v329
        %1256 = vmatpush.msra.mxu0 %v325
        %1257 = vmatpush.msra.mxu0 %v321
        %1258 = vmatpush.msra.mxu0 %v317
        %1259 = vmatpush.msra.mxu0 %v313
        %1260 = vmatpush.msra.mxu0 %v309
        %1261 = vmatpush.msra.mxu0 %v305
        %1262 = vmatpush.msra.mxu0 %v301
        %1263 = vmatmul.f32.gmra.mxu0 %v1217
        %v1264 = vpop.f32.mrf.mxu0
        %v1265 = vadd.f32 0.0, %v1264
        %1266 = vdwg.mxu0
        %1267 = vmatpush.msra.mxu0 %v362
        %1268 = vmatpush.msra.mxu0 %v358
        %1269 = vmatpush.msra.mxu0 %v354
        %1270 = vmatpush.msra.mxu0 %v350
        %1271 = vmatpush.msra.mxu0 %v346
        %1272 = vmatpush.msra.mxu0 %v342
        %1273 = vmatpush.msra.mxu0 %v338
        %1274 = vmatpush.msra.mxu0 %v334
        %1275 = vmatpush.msra.mxu0 %v330
        %1276 = vmatpush.msra.mxu0 %v326
        %1277 = vmatpush.msra.mxu0 %v322
        %1278 = vmatpush.msra.mxu0 %v318
        %1279 = vmatpush.msra.mxu0 %v314
        %1280 = vmatpush.msra.mxu0 %v310
        %1281 = vmatpush.msra.mxu0 %v306
        %1282 = vmatpush.msra.mxu0 %v302
        %1283 = vmatmul.f32.gmra.mxu0 %v1217
        %v1284 = vpop.f32.mrf.mxu0
        %v1285 = vadd.f32 0.0, %v1284
        %1286 = vdwg.mxu0
        %1287 = vmatpush.msra.mxu0 %v363
        %1288 = vmatpush.msra.mxu0 %v359
        %1289 = vmatpush.msra.mxu0 %v355
        %1290 = vmatpush.msra.mxu0 %v351
        %1291 = vmatpush.msra.mxu0 %v347
        %1292 = vmatpush.msra.mxu0 %v343
        %1293 = vmatpush.msra.mxu0 %v339
        %1294 = vmatpush.msra.mxu0 %v335
        %1295 = vmatpush.msra.mxu0 %v331
        %1296 = vmatpush.msra.mxu0 %v327
        %1297 = vmatpush.msra.mxu0 %v323
        %1298 = vmatpush.msra.mxu0 %v319
        %1299 = vmatpush.msra.mxu0 %v315
        %1300 = vmatpush.msra.mxu0 %v311
        %1301 = vmatpush.msra.mxu0 %v307
        %1302 = vmatpush.msra.mxu0 %v303
        %1303 = vmatmul.f32.gmra.mxu0 %v1217
        %v1304 = vpop.f32.mrf.mxu0
        %v1305 = vadd.f32 0.0, %v1304
        %1306 = vdwg.mxu0
        %v1311 = vrot.slane %v1265, 6
        %v1312 = vrot.slane %v1285, 4
        %v1313 = vrot.slane %v1305, 2
        %v1314 = vsel %vm458, %v1245, %v1311
        %v1315 = vsel %vm460, %v1312, %v1313
        %v1316 = vsel %vm462, %v1314, %v1315
        %v1318 = vadd.f32 %v1226, %v1316
        %v1319 = vxor.u32 %v1318, 2147483648
        %v1320 = vmul.f32 %v1319, 1.442695
        %v1321 = vpow.pop %v1320
        %v1322 = vadd.f32 %v1321, 1.0
        %v1323 = vrcp.pop %v1322
        %v1324 = vmul.f32 %v1322, %v1323
        %v1325 = vsub.f32 1.0, %v1324
        %v1326 = vmul.f32 %v1323, %v1325
        %v1327 = vadd.f32 %v1323, %v1326
        %vm1328 = vweird.f32 %v1322
        %vm1329 = vweird.f32 %v1323
        %vm1330 = vmor %vm1328, %vm1329
        %v1331 = vsel %vm1330, %v1323, %v1327
        %v1332 = vand.u32 2147483647, %v1322
        %vm1333 = vcmp.eq.f32.partialorder %v1332, 8.507059e+37
        %v1334 = vand.u32 %v1322, 2147483648
        %v1335 = vor.u32 1.1754944e-38, %v1334
        %v1336 = vsel %vm1333, %v1335, %v1331
        %v1337 = vmul.f32 1.0, %v1336
        %v1339 = vrot.slane %v1318, 2
        %v1341 = vxor.u32 %v1339, 2147483648
        %v1342 = vmul.f32 %v1341, 1.442695
        %v1343 = vpow.pop %v1342
        %v1344 = vadd.f32 %v1343, 1.0
        %v1345 = vrcp.pop %v1344
        %v1346 = vmul.f32 %v1344, %v1345
        %v1347 = vsub.f32 1.0, %v1346
        %v1348 = vmul.f32 %v1345, %v1347
        %v1349 = vadd.f32 %v1345, %v1348
        %vm1350 = vweird.f32 %v1344
        %vm1351 = vweird.f32 %v1345
        %vm1352 = vmor %vm1350, %vm1351
        %v1353 = vsel %vm1352, %v1345, %v1349
        %v1354 = vand.u32 2147483647, %v1344
        %vm1355 = vcmp.eq.f32.partialorder %v1354, 8.507059e+37
        %v1356 = vand.u32 %v1344, 2147483648
        %v1357 = vor.u32 1.1754944e-38, %v1356
        %v1358 = vsel %vm1355, %v1357, %v1353
        %v1359 = vmul.f32 1.0, %v1358
        %v1360 = vrot.slane %v1318, 4
        %v1362 = vtanh.pop %v1360
        %v1363 = vrot.slane %v1318, 6
        %v1365 = vxor.u32 %v1363, 2147483648
        %v1366 = vmul.f32 %v1365, 1.442695
        %v1367 = vpow.pop %v1366
        %v1368 = vadd.f32 %v1367, 1.0
        %v1369 = vrcp.pop %v1368
        %v1370 = vmul.f32 %v1368, %v1369
        %v1371 = vsub.f32 1.0, %v1370
        %v1372 = vmul.f32 %v1369, %v1371
        %v1373 = vadd.f32 %v1369, %v1372
        %vm1374 = vweird.f32 %v1368
        %vm1375 = vweird.f32 %v1369
        %vm1376 = vmor %vm1374, %vm1375
        %v1377 = vsel %vm1376, %v1369, %v1373
        %v1378 = vand.u32 2147483647, %v1368
        %vm1379 = vcmp.eq.f32.partialorder %v1378, 8.507059e+37
        %v1380 = vand.u32 %v1368, 2147483648
        %v1381 = vor.u32 1.1754944e-38, %v1380
        %v1382 = vsel %vm1379, %v1381, %v1377
        %v1383 = vmul.f32 1.0, %v1382
        %v1384 = vmul.f32 %v1359, %v1215
        %v1385 = vmul.f32 %v1337, %v1362
        %v1386 = vadd.f32 %v1384, %v1385
        %v1387 = vtanh.pop %v1386
        %v1388 = vmul.f32 %v1383, %v1387
        %s1389 = smul.u32 %s1222, 2
        %s1390 = scalar_lea.vmem %s288, %s1389
        %1391 = vst [vmem:[%s1390] sm:$0x3] %v1388
        %s1392 = smul.u32 %s17, 4294967291
        %s1393 = sadd.s32 %s1392, 6
        %s1394 = smul.u32 %s1393, 4
        %s1395 = smul.addr %s1394, 2
        %s1396 = scalar_lea.vmem %s233, %s1395 [#allocation4]
        %v1397 = vld [vmem:[%s1396] sm:$0xff]
        %1398 = vmatpush.msra.mxu0 %v360
        %1399 = vmatpush.msra.mxu0 %v356
        %1400 = vmatpush.msra.mxu0 %v352
        %1401 = vmatpush.msra.mxu0 %v348
        %1402 = vmatpush.msra.mxu0 %v344
        %1403 = vmatpush.msra.mxu0 %v340
        %1404 = vmatpush.msra.mxu0 %v336
        %1405 = vmatpush.msra.mxu0 %v332
        %1406 = vmatpush.msra.mxu0 %v328
        %1407 = vmatpush.msra.mxu0 %v324
        %1408 = vmatpush.msra.mxu0 %v320
        %1409 = vmatpush.msra.mxu0 %v316
        %1410 = vmatpush.msra.mxu0 %v312
        %1411 = vmatpush.msra.mxu0 %v308
        %1412 = vmatpush.msra.mxu0 %v304
        %1413 = vmatpush.msra.mxu0 %v300
        %1414 = vmatmul.f32.gmra.mxu0 %v1388
        %v1415 = vpop.f32.mrf.mxu0
        %v1416 = vadd.f32 0.0, %v1415
        %1417 = vdwg.mxu0
        %1418 = vmatpush.msra.mxu0 %v361
        %1419 = vmatpush.msra.mxu0 %v357
        %1420 = vmatpush.msra.mxu0 %v353
        %1421 = vmatpush.msra.mxu0 %v349
        %1422 = vmatpush.msra.mxu0 %v345
        %1423 = vmatpush.msra.mxu0 %v341
        %1424 = vmatpush.msra.mxu0 %v337
        %1425 = vmatpush.msra.mxu0 %v333
        %1426 = vmatpush.msra.mxu0 %v329
        %1427 = vmatpush.msra.mxu0 %v325
        %1428 = vmatpush.msra.mxu0 %v321
        %1429 = vmatpush.msra.mxu0 %v317
        %1430 = vmatpush.msra.mxu0 %v313
        %1431 = vmatpush.msra.mxu0 %v309
        %1432 = vmatpush.msra.mxu0 %v305
        %1433 = vmatpush.msra.mxu0 %v301
        %1434 = vmatmul.f32.gmra.mxu0 %v1388
        %v1435 = vpop.f32.mrf.mxu0
        %v1436 = vadd.f32 0.0, %v1435
        %1437 = vdwg.mxu0
        %1438 = vmatpush.msra.mxu0 %v362
        %1439 = vmatpush.msra.mxu0 %v358
        %1440 = vmatpush.msra.mxu0 %v354
        %1441 = vmatpush.msra.mxu0 %v350
        %1442 = vmatpush.msra.mxu0 %v346
        %1443 = vmatpush.msra.mxu0 %v342
        %1444 = vmatpush.msra.mxu0 %v338
        %1445 = vmatpush.msra.mxu0 %v334
        %1446 = vmatpush.msra.mxu0 %v330
        %1447 = vmatpush.msra.mxu0 %v326
        %1448 = vmatpush.msra.mxu0 %v322
        %1449 = vmatpush.msra.mxu0 %v318
        %1450 = vmatpush.msra.mxu0 %v314
        %1451 = vmatpush.msra.mxu0 %v310
        %1452 = vmatpush.msra.mxu0 %v306
        %1453 = vmatpush.msra.mxu0 %v302
        %1454 = vmatmul.f32.gmra.mxu0 %v1388
        %v1455 = vpop.f32.mrf.mxu0
        %v1456 = vadd.f32 0.0, %v1455
        %1457 = vdwg.mxu0
        %1458 = vmatpush.msra.mxu0 %v363
        %1459 = vmatpush.msra.mxu0 %v359
        %1460 = vmatpush.msra.mxu0 %v355
        %1461 = vmatpush.msra.mxu0 %v351
        %1462 = vmatpush.msra.mxu0 %v347
        %1463 = vmatpush.msra.mxu0 %v343
        %1464 = vmatpush.msra.mxu0 %v339
        %1465 = vmatpush.msra.mxu0 %v335
        %1466 = vmatpush.msra.mxu0 %v331
        %1467 = vmatpush.msra.mxu0 %v327
        %1468 = vmatpush.msra.mxu0 %v323
        %1469 = vmatpush.msra.mxu0 %v319
        %1470 = vmatpush.msra.mxu0 %v315
        %1471 = vmatpush.msra.mxu0 %v311
        %1472 = vmatpush.msra.mxu0 %v307
        %1473 = vmatpush.msra.mxu0 %v303
        %1474 = vmatmul.f32.gmra.mxu0 %v1388
        %v1475 = vpop.f32.mrf.mxu0
        %v1476 = vadd.f32 0.0, %v1475
        %1477 = vdwg.mxu0
        %v1482 = vrot.slane %v1436, 6
        %v1483 = vrot.slane %v1456, 4
        %v1484 = vrot.slane %v1476, 2
        %v1485 = vsel %vm458, %v1416, %v1482
        %v1486 = vsel %vm460, %v1483, %v1484
        %v1487 = vsel %vm462, %v1485, %v1486
        %v1489 = vadd.f32 %v1397, %v1487
        %v1490 = vxor.u32 %v1489, 2147483648
        %v1491 = vmul.f32 %v1490, 1.442695
        %v1492 = vpow.pop %v1491
        %v1493 = vadd.f32 %v1492, 1.0
        %v1494 = vrcp.pop %v1493
        %v1495 = vmul.f32 %v1493, %v1494
        %v1496 = vsub.f32 1.0, %v1495
        %v1497 = vmul.f32 %v1494, %v1496
        %v1498 = vadd.f32 %v1494, %v1497
        %vm1499 = vweird.f32 %v1493
        %vm1500 = vweird.f32 %v1494
        %vm1501 = vmor %vm1499, %vm1500
        %v1502 = vsel %vm1501, %v1494, %v1498
        %v1503 = vand.u32 2147483647, %v1493
        %vm1504 = vcmp.eq.f32.partialorder %v1503, 8.507059e+37
        %v1505 = vand.u32 %v1493, 2147483648
        %v1506 = vor.u32 1.1754944e-38, %v1505
        %v1507 = vsel %vm1504, %v1506, %v1502
        %v1508 = vmul.f32 1.0, %v1507
        %v1510 = vrot.slane %v1489, 2
        %v1512 = vxor.u32 %v1510, 2147483648
        %v1513 = vmul.f32 %v1512, 1.442695
        %v1514 = vpow.pop %v1513
        %v1515 = vadd.f32 %v1514, 1.0
        %v1516 = vrcp.pop %v1515
        %v1517 = vmul.f32 %v1515, %v1516
        %v1518 = vsub.f32 1.0, %v1517
        %v1519 = vmul.f32 %v1516, %v1518
        %v1520 = vadd.f32 %v1516, %v1519
        %vm1521 = vweird.f32 %v1515
        %vm1522 = vweird.f32 %v1516
        %vm1523 = vmor %vm1521, %vm1522
        %v1524 = vsel %vm1523, %v1516, %v1520
        %v1525 = vand.u32 2147483647, %v1515
        %vm1526 = vcmp.eq.f32.partialorder %v1525, 8.507059e+37
        %v1527 = vand.u32 %v1515, 2147483648
        %v1528 = vor.u32 1.1754944e-38, %v1527
        %v1529 = vsel %vm1526, %v1528, %v1524
        %v1530 = vmul.f32 1.0, %v1529
        %v1531 = vrot.slane %v1489, 4
        %v1533 = vtanh.pop %v1531
        %v1534 = vrot.slane %v1489, 6
        %v1536 = vxor.u32 %v1534, 2147483648
        %v1537 = vmul.f32 %v1536, 1.442695
        %v1538 = vpow.pop %v1537
        %v1539 = vadd.f32 %v1538, 1.0
        %v1540 = vrcp.pop %v1539
        %v1541 = vmul.f32 %v1539, %v1540
        %v1542 = vsub.f32 1.0, %v1541
        %v1543 = vmul.f32 %v1540, %v1542
        %v1544 = vadd.f32 %v1540, %v1543
        %vm1545 = vweird.f32 %v1539
        %vm1546 = vweird.f32 %v1540
        %vm1547 = vmor %vm1545, %vm1546
        %v1548 = vsel %vm1547, %v1540, %v1544
        %v1549 = vand.u32 2147483647, %v1539
        %vm1550 = vcmp.eq.f32.partialorder %v1549, 8.507059e+37
        %v1551 = vand.u32 %v1539, 2147483648
        %v1552 = vor.u32 1.1754944e-38, %v1551
        %v1553 = vsel %vm1550, %v1552, %v1548
        %v1554 = vmul.f32 1.0, %v1553
        %v1555 = vmul.f32 %v1530, %v1386
        %v1556 = vmul.f32 %v1508, %v1533
        %v1557 = vadd.f32 %v1555, %v1556
        %v1558 = vtanh.pop %v1557
        %v1559 = vmul.f32 %v1554, %v1558
        %s1560 = smul.u32 %s1393, 2
        %s1561 = scalar_lea.vmem %s288, %s1560
        %1562 = vst [vmem:[%s1561] sm:$0x3] %v1559
        %s1563 = smul.u32 %s17, 4294967289
        %s1564 = sadd.s32 %s1563, 7
        %s1565 = smul.u32 %s1564, 4
        %s1566 = smul.addr %s1565, 2
        %s1567 = scalar_lea.vmem %s233, %s1566 [#allocation4]
        %v1568 = vld [vmem:[%s1567] sm:$0xff]
        %1569 = vmatpush.msra.mxu0 %v360
        %1570 = vmatpush.msra.mxu0 %v356
        %1571 = vmatpush.msra.mxu0 %v352
        %1572 = vmatpush.msra.mxu0 %v348
        %1573 = vmatpush.msra.mxu0 %v344
        %1574 = vmatpush.msra.mxu0 %v340
        %1575 = vmatpush.msra.mxu0 %v336
        %1576 = vmatpush.msra.mxu0 %v332
        %1577 = vmatpush.msra.mxu0 %v328
        %1578 = vmatpush.msra.mxu0 %v324
        %1579 = vmatpush.msra.mxu0 %v320
        %1580 = vmatpush.msra.mxu0 %v316
        %1581 = vmatpush.msra.mxu0 %v312
        %1582 = vmatpush.msra.mxu0 %v308
        %1583 = vmatpush.msra.mxu0 %v304
        %1584 = vmatpush.msra.mxu0 %v300
        %1585 = vmatmul.f32.gmra.mxu0 %v1559
        %v1586 = vpop.f32.mrf.mxu0
        %v1587 = vadd.f32 0.0, %v1586
        %1588 = vdwg.mxu0
        %1589 = vmatpush.msra.mxu0 %v361
        %1590 = vmatpush.msra.mxu0 %v357
        %1591 = vmatpush.msra.mxu0 %v353
        %1592 = vmatpush.msra.mxu0 %v349
        %1593 = vmatpush.msra.mxu0 %v345
        %1594 = vmatpush.msra.mxu0 %v341
        %1595 = vmatpush.msra.mxu0 %v337
        %1596 = vmatpush.msra.mxu0 %v333
        %1597 = vmatpush.msra.mxu0 %v329
        %1598 = vmatpush.msra.mxu0 %v325
        %1599 = vmatpush.msra.mxu0 %v321
        %1600 = vmatpush.msra.mxu0 %v317
        %1601 = vmatpush.msra.mxu0 %v313
        %1602 = vmatpush.msra.mxu0 %v309
        %1603 = vmatpush.msra.mxu0 %v305
        %1604 = vmatpush.msra.mxu0 %v301
        %1605 = vmatmul.f32.gmra.mxu0 %v1559
        %v1606 = vpop.f32.mrf.mxu0
        %v1607 = vadd.f32 0.0, %v1606
        %1608 = vdwg.mxu0
        %1609 = vmatpush.msra.mxu0 %v362
        %1610 = vmatpush.msra.mxu0 %v358
        %1611 = vmatpush.msra.mxu0 %v354
        %1612 = vmatpush.msra.mxu0 %v350
        %1613 = vmatpush.msra.mxu0 %v346
        %1614 = vmatpush.msra.mxu0 %v342
        %1615 = vmatpush.msra.mxu0 %v338
        %1616 = vmatpush.msra.mxu0 %v334
        %1617 = vmatpush.msra.mxu0 %v330
        %1618 = vmatpush.msra.mxu0 %v326
        %1619 = vmatpush.msra.mxu0 %v322
        %1620 = vmatpush.msra.mxu0 %v318
        %1621 = vmatpush.msra.mxu0 %v314
        %1622 = vmatpush.msra.mxu0 %v310
        %1623 = vmatpush.msra.mxu0 %v306
        %1624 = vmatpush.msra.mxu0 %v302
        %1625 = vmatmul.f32.gmra.mxu0 %v1559
        %v1626 = vpop.f32.mrf.mxu0
        %v1627 = vadd.f32 0.0, %v1626
        %1628 = vdwg.mxu0
        %1629 = vmatpush.msra.mxu0 %v363
        %1630 = vmatpush.msra.mxu0 %v359
        %1631 = vmatpush.msra.mxu0 %v355
        %1632 = vmatpush.msra.mxu0 %v351
        %1633 = vmatpush.msra.mxu0 %v347
        %1634 = vmatpush.msra.mxu0 %v343
        %1635 = vmatpush.msra.mxu0 %v339
        %1636 = vmatpush.msra.mxu0 %v335
        %1637 = vmatpush.msra.mxu0 %v331
        %1638 = vmatpush.msra.mxu0 %v327
        %1639 = vmatpush.msra.mxu0 %v323
        %1640 = vmatpush.msra.mxu0 %v319
        %1641 = vmatpush.msra.mxu0 %v315
        %1642 = vmatpush.msra.mxu0 %v311
        %1643 = vmatpush.msra.mxu0 %v307
        %1644 = vmatpush.msra.mxu0 %v303
        %1645 = vmatmul.f32.gmra.mxu0 %v1559
        %v1646 = vpop.f32.mrf.mxu0
        %v1647 = vadd.f32 0.0, %v1646
        %1648 = vdwg.mxu0
        %v1653 = vrot.slane %v1607, 6
        %v1654 = vrot.slane %v1627, 4
        %v1655 = vrot.slane %v1647, 2
        %v1656 = vsel %vm458, %v1587, %v1653
        %v1657 = vsel %vm460, %v1654, %v1655
        %v1658 = vsel %vm462, %v1656, %v1657
        %v1660 = vadd.f32 %v1568, %v1658
        %v1661 = vxor.u32 %v1660, 2147483648
        %v1662 = vmul.f32 %v1661, 1.442695
        %v1663 = vpow.pop %v1662
        %v1664 = vadd.f32 %v1663, 1.0
        %v1665 = vrcp.pop %v1664
        %v1666 = vmul.f32 %v1664, %v1665
        %v1667 = vsub.f32 1.0, %v1666
        %v1668 = vmul.f32 %v1665, %v1667
        %v1669 = vadd.f32 %v1665, %v1668
        %vm1670 = vweird.f32 %v1664
        %vm1671 = vweird.f32 %v1665
        %vm1672 = vmor %vm1670, %vm1671
        %v1673 = vsel %vm1672, %v1665, %v1669
        %v1674 = vand.u32 2147483647, %v1664
        %vm1675 = vcmp.eq.f32.partialorder %v1674, 8.507059e+37
        %v1676 = vand.u32 %v1664, 2147483648
        %v1677 = vor.u32 1.1754944e-38, %v1676
        %v1678 = vsel %vm1675, %v1677, %v1673
        %v1679 = vmul.f32 1.0, %v1678
        %v1681 = vrot.slane %v1660, 2
        %v1683 = vxor.u32 %v1681, 2147483648
        %v1684 = vmul.f32 %v1683, 1.442695
        %v1685 = vpow.pop %v1684
        %v1686 = vadd.f32 %v1685, 1.0
        %v1687 = vrcp.pop %v1686
        %v1688 = vmul.f32 %v1686, %v1687
        %v1689 = vsub.f32 1.0, %v1688
        %v1690 = vmul.f32 %v1687, %v1689
        %v1691 = vadd.f32 %v1687, %v1690
        %vm1692 = vweird.f32 %v1686
        %vm1693 = vweird.f32 %v1687
        %vm1694 = vmor %vm1692, %vm1693
        %v1695 = vsel %vm1694, %v1687, %v1691
        %v1696 = vand.u32 2147483647, %v1686
        %vm1697 = vcmp.eq.f32.partialorder %v1696, 8.507059e+37
        %v1698 = vand.u32 %v1686, 2147483648
        %v1699 = vor.u32 1.1754944e-38, %v1698
        %v1700 = vsel %vm1697, %v1699, %v1695
        %v1701 = vmul.f32 1.0, %v1700
        %v1702 = vrot.slane %v1660, 4
        %v1704 = vtanh.pop %v1702
        %v1705 = vrot.slane %v1660, 6
        %v1707 = vxor.u32 %v1705, 2147483648
        %v1708 = vmul.f32 %v1707, 1.442695
        %v1709 = vpow.pop %v1708
        %v1710 = vadd.f32 %v1709, 1.0
        %v1711 = vrcp.pop %v1710
        %v1712 = vmul.f32 %v1710, %v1711
        %v1713 = vsub.f32 1.0, %v1712
        %v1714 = vmul.f32 %v1711, %v1713
        %v1715 = vadd.f32 %v1711, %v1714
        %vm1716 = vweird.f32 %v1710
        %vm1717 = vweird.f32 %v1711
        %vm1718 = vmor %vm1716, %vm1717
        %v1719 = vsel %vm1718, %v1711, %v1715
        %v1720 = vand.u32 2147483647, %v1710
        %vm1721 = vcmp.eq.f32.partialorder %v1720, 8.507059e+37
        %v1722 = vand.u32 %v1710, 2147483648
        %v1723 = vor.u32 1.1754944e-38, %v1722
        %v1724 = vsel %vm1721, %v1723, %v1719
        %v1725 = vmul.f32 1.0, %v1724
        %v1726 = vmul.f32 %v1701, %v1557
        %v1727 = vmul.f32 %v1679, %v1704
        %v1728 = vadd.f32 %v1726, %v1727
        %v1729 = vtanh.pop %v1728
        %v1730 = vmul.f32 %v1725, %v1729
        %s1731 = smul.u32 %s1564, 2
        %s1732 = scalar_lea.vmem %s288, %s1731
        %1733 = vst [vmem:[%s1732] sm:$0x3] %v1730
        %1734 = vst [vmem:[#allocation2] sm:$0x3] %v1730
        %1735 = vst [vmem:[#allocation3] sm:$0x3] %v1728
        %s1736 = smul.u32 %s18, 2
        %s1737 = ssub.s32 1, %s1736
        %s1738 = smul.u32 %s17, %s1737
        %s1739 = sadd.s32 %s18, %s1738
        %s1740 = smul.u32 8, %s1739
        %p1741 = scmp.lt.s32.totalorder %s17, 1
        %s1742 = scalar_select %p1741, %s17, 1
        %p1743 = scmp.lt.s32.totalorder %s1740, 15
        %s1744 = scalar_select %p1743, %s1740, 15
        %s1745 = smul.addr %s1742, 16
        %s1746 = sadd.s32 %s1744, %s1745
        %s1747 = smul.addr %s1746, 2
        %s1748 = scalar_lea.vmem %s2, %s1747
        // Predicated region
        $region71: #{_lambda_.8} parent=61 // pred_check
          %p1749 = pneg %p115
        $region72: #{_lambda_.8} parent=61 // pred_check_branch
          %1751 = sbr.rel (%p1749) target = $region74
        $region73: #{_lambda_.8} parent=61 // pred_region
          %s1752 = smul.u32 %s18, 2
          %s1753 = ssub.s32 1, %s1752
          %s1754 = smul.u32 %s17, %s1753
          %s1755 = sadd.s32 %s18, %s1754
          %s1756 = smul.u32 8, %s1755
        $region74: #{_lambda_.8} parent=61 // pred_fallthru
          _
      $region62: #{_lambda_.8} parent=5 // pred_fallthru
        _
      %p1757 = scmp.le.s32.totalorder 2, %s8
      // Predicated region
      $region75: #{_lambda_.8} parent=5 // pred_check
        %p1758 = pneg %p1757
      $region76: #{_lambda_.8} parent=5 // pred_check_branch
        %1760 = sbr.rel (%p1758) target = $region78
      $region77: #{_lambda_.8} parent=5 // pred_region
        %s1761 = ssub.s32 %s8, 2
        // Predicated region
        $region79: #{_lambda_.8} parent=77 // pred_check
          %p1762 = pneg %p121
        $region80: #{_lambda_.8} parent=77 // pred_check_branch
          %1764 = sbr.rel (%p1762) target = $region82
        $region81: #{_lambda_.8} parent=77 // pred_region
          %s1765 = smul.u32 %s20, 2
          %s1766 = ssub.s32 1, %s1765
          %s1767 = smul.u32 %s19, %s1766
          %s1768 = sadd.s32 %s20, %s1767
          %s1769 = smul.u32 8, %s1768
          %p1770 = scmp.lt.s32.totalorder %s19, 1
          %s1771 = scalar_select %p1770, %s19, 1
          %p1772 = scmp.lt.s32.totalorder %s1769, 15
          %s1773 = scalar_select %p1772, %s1769, 15
          %s1774 = smul.addr %s1771, 16
          %s1775 = sadd.s32 %s1773, %s1774
          %s1776 = smul.addr %s1775, 2
          %s1777 = scalar_lea.vmem %s2, %s1776
        $region82: #{_lambda_.8} parent=77 // pred_fallthru
          _
      $region78: #{_lambda_.8} parent=5 // pred_fallthru
        _
    $region6: #{_lambda_.8} parent=1 // loop_footer
      %s12 = sadd.s32 1, %s8
    $region7: #{_lambda_.8} parent=1 // loop_footer_branch
      %7 = sbr.rel target = $region3
    $region8: #{_lambda_.8} parent=1 // loop_exit
      _

// kernel: _lambda_.9
$region0: #{_lambda_.9}
  #allocation0 [shape = 'u32[]', space=smem, size = 0x4, offset = 0x4, fixed_abs, tag = 'smem constant byte address 0x4 - core index']
  #allocation1 [shape = 'u32[72,128]{1,0:T(1,128)}', space=vmem, size = 0x9000, scoped, tag = 'internal scratch']
  %s0 = inlined_call_operand.vmem [shape: f32[2,32,128], index: 0, kind: input, shape index: {}, may-alias: {0,1}]
  %s1 = inlined_call_operand.vmem [shape: f32[2,32,128], index: 1, kind: input, shape index: {}, may-alias: {0,1}]
  %s2 = inlined_call_operand.vmem [shape: f32[128,128], index: 2, kind: input, shape index: {}]
  %s3 = inlined_call_operand.vmem [shape: f32[128,128], index: 3, kind: input, shape index: {}]
  %s4 = inlined_call_operand.vmem [shape: f32[1,128], index: 4, kind: input, shape index: {}]
  %s5 = inlined_call_operand.vmem [shape: f32[32,128], index: 5, kind: output, shape index: {}]
  %s6 = sld [smem:[#allocation0]]
  $region30: #{_lambda_.9} parent=0
    _
  %s8 = ssub.s32 1, %s6
  %s9 = scalar_select 0, %s8, %s6
  // Predicated region
  $region2: #{_lambda_.9} parent=0 // pred_check
    _
  $region3: #{_lambda_.9} parent=0 // pred_check_branch
    %11 = sbr.rel (0) target = $region5
  $region4: #{_lambda_.9} parent=0 // pred_region
    _
  $region5: #{_lambda_.9} parent=0 // pred_fallthru
    _
  // Predicated region
  $region6: #{_lambda_.9} parent=0 // pred_check
    _
  $region7: #{_lambda_.9} parent=0 // pred_check_branch
    %13 = sbr.rel (0) target = $region9
  $region8: #{_lambda_.9} parent=0 // pred_region
    %s14 = scalar_lea.vmem %s1, 32
  $region9: #{_lambda_.9} parent=0 // pred_fallthru
    _
  // Predicated region
  $region10: #{_lambda_.9} parent=0 // pred_check
    _
  $region11: #{_lambda_.9} parent=0 // pred_check_branch
    %16 = sbr.rel (0) target = $region13
  $region12: #{_lambda_.9} parent=0 // pred_region
    _
  $region13: #{_lambda_.9} parent=0 // pred_fallthru
    _
  // Predicated region
  $region14: #{_lambda_.9} parent=0 // pred_check
    _
  $region15: #{_lambda_.9} parent=0 // pred_check_branch
    %18 = sbr.rel (0) target = $region17
  $region16: #{_lambda_.9} parent=0 // pred_region
    _
  $region17: #{_lambda_.9} parent=0 // pred_fallthru
    _
  // Predicated region
  $region18: #{_lambda_.9} parent=0 // pred_check
    _
  $region19: #{_lambda_.9} parent=0 // pred_check_branch
    %20 = sbr.rel (0) target = $region21
  $region20: #{_lambda_.9} parent=0 // pred_region
    _
  $region21: #{_lambda_.9} parent=0 // pred_fallthru
    _
  %s21 = scalar_lea.vmem %s1, 32
  %s22 = scalar_lea.vmem %s1, 32
  %v23 = vld [vmem:[%s0] sm:$0xff]
  %v24 = vld [vmem:[%s0 + $0x8] sm:$0xff]
  %v25 = vld [vmem:[%s0 + $0x10] sm:$0xff]
  %v26 = vld [vmem:[%s0 + $0x18] sm:$0xff]
  %v27 = vld [vmem:[%s2] sm:$0xff]
  %v28 = vld [vmem:[%s2 + $0x8] sm:$0xff]
  %v29 = vld [vmem:[%s2 + $0x10] sm:$0xff]
  %v30 = vld [vmem:[%s2 + $0x18] sm:$0xff]
  %v31 = vld [vmem:[%s2 + $0x20] sm:$0xff]
  %v32 = vld [vmem:[%s2 + $0x28] sm:$0xff]
  %v33 = vld [vmem:[%s2 + $0x30] sm:$0xff]
  %v34 = vld [vmem:[%s2 + $0x38] sm:$0xff]
  %v35 = vld [vmem:[%s2 + $0x40] sm:$0xff]
  %v36 = vld [vmem:[%s2 + $0x48] sm:$0xff]
  %v37 = vld [vmem:[%s2 + $0x50] sm:$0xff]
  %v38 = vld [vmem:[%s2 + $0x58] sm:$0xff]
  %v39 = vld [vmem:[%s2 + $0x60] sm:$0xff]
  %v40 = vld [vmem:[%s2 + $0x68] sm:$0xff]
  %v41 = vld [vmem:[%s2 + $0x70] sm:$0xff]
  %v42 = vld [vmem:[%s2 + $0x78] sm:$0xff]
  %v43 = vld [vmem:[%s22] sm:$0xff]
  %v44 = vld [vmem:[%s22 + $0x8] sm:$0xff]
  %v45 = vld [vmem:[%s22 + $0x10] sm:$0xff]
  %v46 = vld [vmem:[%s22 + $0x18] sm:$0xff]
  %v47 = vld [vmem:[%s3] sm:$0xff]
  %v48 = vld [vmem:[%s3 + $0x8] sm:$0xff]
  %v49 = vld [vmem:[%s3 + $0x10] sm:$0xff]
  %v50 = vld [vmem:[%s3 + $0x18] sm:$0xff]
  %v51 = vld [vmem:[%s3 + $0x20] sm:$0xff]
  %v52 = vld [vmem:[%s3 + $0x28] sm:$0xff]
  %v53 = vld [vmem:[%s3 + $0x30] sm:$0xff]
  %v54 = vld [vmem:[%s3 + $0x38] sm:$0xff]
  %v55 = vld [vmem:[%s3 + $0x40] sm:$0xff]
  %v56 = vld [vmem:[%s3 + $0x48] sm:$0xff]
  %v57 = vld [vmem:[%s3 + $0x50] sm:$0xff]
  %v58 = vld [vmem:[%s3 + $0x58] sm:$0xff]
  %v59 = vld [vmem:[%s3 + $0x60] sm:$0xff]
  %v60 = vld [vmem:[%s3 + $0x68] sm:$0xff]
  %v61 = vld [vmem:[%s3 + $0x70] sm:$0xff]
  %v62 = vld [vmem:[%s3 + $0x78] sm:$0xff]
  %63 = vmatpush.msra.mxu0 %v62
  %64 = vmatpush.msra.mxu0 %v61
  %65 = vmatpush.msra.mxu0 %v60
  %66 = vmatpush.msra.mxu0 %v59
  %67 = vmatpush.msra.mxu0 %v58
  %68 = vmatpush.msra.mxu0 %v57
  %69 = vmatpush.msra.mxu0 %v56
  %70 = vmatpush.msra.mxu0 %v55
  %71 = vmatpush.msra.mxu0 %v54
  %72 = vmatpush.msra.mxu0 %v53
  %73 = vmatpush.msra.mxu0 %v52
  %74 = vmatpush.msra.mxu0 %v51
  %75 = vmatpush.msra.mxu0 %v50
  %76 = vmatpush.msra.mxu0 %v49
  %77 = vmatpush.msra.mxu0 %v48
  %78 = vmatpush.msra.mxu0 %v47
  %79 = vmatmul.f32.gmra.mxu0 %v43
  %v80 = vpop.f32.mrf.mxu0
  %v81 = vadd.f32 0.0, %v80
  %82 = vmatmul.f32.gmra.mxu0 %v44
  %v83 = vpop.f32.mrf.mxu0
  %v84 = vadd.f32 0.0, %v83
  %85 = vmatmul.f32.gmra.mxu0 %v45
  %v86 = vpop.f32.mrf.mxu0
  %v87 = vadd.f32 0.0, %v86
  %88 = vmatmul.f32.gmra.mxu0 %v46
  %v89 = vpop.f32.mrf.mxu0
  %v90 = vadd.f32 0.0, %v89
  %91 = vdwg.mxu0
  %92 = vmatpush.msra.mxu0 %v42
  %93 = vmatpush.msra.mxu0 %v41
  %94 = vmatpush.msra.mxu0 %v40
  %95 = vmatpush.msra.mxu0 %v39
  %96 = vmatpush.msra.mxu0 %v38
  %97 = vmatpush.msra.mxu0 %v37
  %98 = vmatpush.msra.mxu0 %v36
  %99 = vmatpush.msra.mxu0 %v35
  %100 = vmatpush.msra.mxu0 %v34
  %101 = vmatpush.msra.mxu0 %v33
  %102 = vmatpush.msra.mxu0 %v32
  %103 = vmatpush.msra.mxu0 %v31
  %104 = vmatpush.msra.mxu0 %v30
  %105 = vmatpush.msra.mxu0 %v29
  %106 = vmatpush.msra.mxu0 %v28
  %107 = vmatpush.msra.mxu0 %v27
  %108 = vmatmul.f32.gmra.mxu0 %v23
  %v109 = vpop.f32.mrf.mxu0
  %v110 = vadd.f32 %v81, %v109
  %111 = vmatmul.f32.gmra.mxu0 %v24
  %v112 = vpop.f32.mrf.mxu0
  %v113 = vadd.f32 %v84, %v112
  %114 = vmatmul.f32.gmra.mxu0 %v25
  %v115 = vpop.f32.mrf.mxu0
  %v116 = vadd.f32 %v87, %v115
  %117 = vmatmul.f32.gmra.mxu0 %v26
  %v118 = vpop.f32.mrf.mxu0
  %v119 = vadd.f32 %v90, %v118
  %120 = vdwg.mxu0
  %v121 = vld [vmem:[%s4] sm:$0x1]
  %v123 = vperm.slane %v121, 0
  %v125 = vadd.f32 %v110, %v123
  %v126 = vadd.f32 %v113, %v123
  %v127 = vadd.f32 %v116, %v123
  %v128 = vadd.f32 %v119, %v123
  %129 = vst [vmem:[%s5] sm:$0xff] %v125
  %130 = vst [vmem:[%s5 + $0x8] sm:$0xff] %v126
  %131 = vst [vmem:[%s5 + $0x10] sm:$0xff] %v127
  %132 = vst [vmem:[%s5 + $0x18] sm:$0xff] %v128
  // Predicated region
  $region22: #{_lambda_.9} parent=0 // pred_check
    _
  $region23: #{_lambda_.9} parent=0 // pred_check_branch
    %134 = sbr.rel (0) target = $region25
  $region24: #{_lambda_.9} parent=0 // pred_region
    _
  $region25: #{_lambda_.9} parent=0 // pred_fallthru
    _
  // Predicated region
  $region26: #{_lambda_.9} parent=0 // pred_check
    _
  $region27: #{_lambda_.9} parent=0 // pred_check_branch
    %136 = sbr.rel (0) target = $region29
  $region28: #{_lambda_.9} parent=0 // pred_region
    _
  $region29: #{_lambda_.9} parent=0 // pred_fallthru
    _

</llo_original>
